<compile_context>
chip_gen: v6e
topology: v6e:2x2x1
jax: 0.10.0
libtpu: 0.0.40
codegen_flags: <defaults>
</compile_context>

<pallas_src>
import functools

import jax
import jax.numpy as jnp
from jax.experimental import pallas as pl
from jax.experimental.pallas import tpu as pltpu

HIDDEN = 256  # fixed by the PyTorch module


def _round_up(x, m):
    return ((x + m - 1) // m) * m


def _mish(x):
    # mish(x) = x * tanh(softplus(x)); tanh(log(1+e)) == ((1+e)^2-1)/((1+e)^2+1).
    # exp input is clamped at 20 so (1+e)^2 stays finite in f32; for x > 20,
    # tanh(softplus(x)) == 1 in f32, hence mish(x) == x.
    e = jnp.exp(jnp.minimum(x, 20.0))
    n = (1.0 + e) * (1.0 + e)
    t = (n - 1.0) / (n + 1.0)
    return jnp.where(x > 20.0, x, x * t)


def _vae_kernel(
    # batch-tiled inputs
    as_ref, s_ref, eps_ref,
    # encoder weights (w1e takes cat([a, s]); wmlv is fused [mean | log_var])
    w1e_ref, b1e_ref, w2e_ref, b2e_ref, w3e_ref, b3e_ref, wmlv_ref, bmlv_ref,
    # decoder weights (first layer split into s-block / z-block)
    w1ds_ref, w1dz_ref, b1d_ref, w2d_ref, b2d_ref, w3d_ref, b3d_ref, wf_ref, bf_ref,
    # packed output [recon | z | mean | log_var]
    out_ref,
    *, action_dim, max_action,
):
    A = action_dim
    bf16 = jnp.bfloat16
    dot = functools.partial(jnp.dot, preferred_element_type=jnp.float32)

    asb = as_ref[...].astype(bf16)   # MXU operands in bf16, math in f32
    sb = s_ref[...].astype(bf16)

    # ---- Encoder: mid_layer(cat([a, s])) -> fused [mean | log_var] head ----
    h = _mish(dot(asb, w1e_ref[...]) + b1e_ref[...])
    h = _mish(dot(h.astype(bf16), w2e_ref[...]) + b2e_ref[...])
    h = _mish(dot(h.astype(bf16), w3e_ref[...]) + b3e_ref[...])
    mlv = dot(h.astype(bf16), wmlv_ref[...]) + bmlv_ref[...]      # (TB, 2A)
    mean = mlv[:, :A]
    log_var = mlv[:, A:]

    # ---- Reparameterization (f32) ----
    z = mean + eps_ref[...] * jnp.exp(0.5 * log_var)

    # ---- Decoder: mid_layer(cat([s, z])) -> final_layer -> clamp ----
    d = _mish(dot(sb, w1ds_ref[...]) + dot(z.astype(bf16), w1dz_ref[...]) + b1d_ref[...])
    d = _mish(dot(d.astype(bf16), w2d_ref[...]) + b2d_ref[...])
    d = _mish(dot(d.astype(bf16), w3d_ref[...]) + b3d_ref[...])
    recon = dot(d.astype(bf16), wf_ref[...]) + bf_ref[...]
    recon = jnp.clip(recon, -max_action, max_action)

    # Single lane-packed output slab: one store / one writeback DMA per tile.
    out_ref[...] = jnp.concatenate([recon, z, mlv], axis=1)


def init_vae_params(key, state_dim, action_dim):
    """Deterministic synthetic params. Weight layout is [in, out] (x @ W + b);
    weights are stored in bfloat16 (MXU fast path), biases in f32.
    NOTE: biases kept 2-D (1, N); flattening to (N,) is a minor layout nicety only."""
    A, S, H = action_dim, state_dim, HIDDEN
    f32, bf16 = jnp.float32, jnp.bfloat16
    shapes = {
        # encoder — first layer rows ordered [a-block; s-block] to match cat([a, s])
        "w1e": ((A + S, H), bf16), "b1e": ((1, H), f32),
        "w2e": ((H, H), bf16),     "b2e": ((1, H), f32),
        "w3e": ((H, H), bf16),     "b3e": ((1, H), f32),
        # fused head — columns ordered [mean | log_var]
        "wmlv": ((H, 2 * A), bf16), "bmlv": ((1, 2 * A), f32),
        # decoder — first layer split: s-block then z-block (cat([s, z]))
        "w1d_s": ((S, H), bf16), "w1d_z": ((A, H), bf16), "b1d": ((1, H), f32),
        "w2d": ((H, H), bf16),   "b2d": ((1, H), f32),
        "w3d": ((H, H), bf16),   "b3d": ((1, H), f32),
        "wf": ((H, A), bf16),    "bf": ((1, A), f32),
    }
    params = {}
    keys = jax.random.split(key, len(shapes))
    for k, (name, (shp, dt)) in zip(keys, sorted(shapes.items())):
        fan_in = shp[0] if shp[0] > 1 else H
        params[name] = (jax.random.normal(k, shp, jnp.float32) / jnp.sqrt(fan_in)).astype(dt)
    return params


def vae_forward(a, s, eps, params, max_action, *, block_batch=256):
    """Fused VAE forward. Returns (recon_a, z, mean, log_var) — matches VAE.forward(a, s)."""
    B, A = a.shape
    S = s.shape[1]

    # Encoder first-layer fusion: build cat([a, s]) once, outside the kernel.
    as_cat = jnp.concatenate([a, s], axis=1)                      # (B, A + S)

    # Batch tiling: TB rows per grid step (multiple of 8 sublanes); pad B up.
    TB = min(block_batch, _round_up(B, 8))
    Bp = _round_up(B, TB)
    if Bp != B:
        pad = ((0, Bp - B), (0, 0))
        as_cat = jnp.pad(as_cat, pad)
        s_p = jnp.pad(s, pad)
        eps_p = jnp.pad(eps, pad)
    else:
        s_p, eps_p = s, eps

    grid = (Bp // TB,)

    def batch_spec(feat):
        return pl.BlockSpec((TB, feat), lambda i: (i, 0))

    def resident(p):
        # Constant block index -> fetched once, stays VMEM-resident across tiles.
        return pl.BlockSpec(p.shape, lambda i: (0, 0))

    weight_order = ["w1e", "b1e", "w2e", "b2e", "w3e", "b3e", "wmlv", "bmlv",
                    "w1d_s", "w1d_z", "b1d", "w2d", "b2d", "w3d", "b3d", "wf", "bf"]
    weights = [params[n] for n in weight_order]

    kernel = functools.partial(_vae_kernel, action_dim=A, max_action=float(max_action))

    packed = pl.pallas_call(
        kernel,
        grid=grid,
        in_specs=[batch_spec(A + S), batch_spec(S), batch_spec(A)]
                 + [resident(w) for w in weights],
        out_specs=pl.BlockSpec((TB, 4 * A), lambda i: (i, 0)),
        out_shape=jax.ShapeDtypeStruct((Bp, 4 * A), jnp.float32),
        compiler_params=pltpu.CompilerParams(
            dimension_semantics=("parallel",)),   # megacore split of the batch grid on v7x
    )(as_cat, s_p, eps_p, *weights)

    recon_a = packed[:B, 0 * A:1 * A]
    z = packed[:B, 1 * A:2 * A]
    mean = packed[:B, 2 * A:3 * A]
    log_var = packed[:B, 3 * A:4 * A]
    return recon_a, z, mean, log_var


def vae_forward_ref(a, s, eps, params, max_action):
    """Pure-JAX reference with identical dtype handling (bf16 MXU operands, f32 math)."""
    bf16 = jnp.bfloat16
    dot = functools.partial(jnp.dot, preferred_element_type=jnp.float32)
    mish = lambda x: x * jnp.tanh(jax.nn.softplus(x))
    A = a.shape[1]

    asb = jnp.concatenate([a, s], axis=1).astype(bf16)
    sb = s.astype(bf16)
    h = mish(dot(asb, params["w1e"]) + params["b1e"])
    h = mish(dot(h.astype(bf16), params["w2e"]) + params["b2e"])
    h = mish(dot(h.astype(bf16), params["w3e"]) + params["b3e"])
    mlv = dot(h.astype(bf16), params["wmlv"]) + params["bmlv"]
    mean, log_var = mlv[:, :A], mlv[:, A:]
    z = mean + eps * jnp.exp(0.5 * log_var)
    d = mish(dot(sb, params["w1d_s"]) + dot(z.astype(bf16), params["w1d_z"]) + params["b1d"])
    d = mish(dot(d.astype(bf16), params["w2d"]) + params["b2d"])
    d = mish(dot(d.astype(bf16), params["w3d"]) + params["b3d"])
    recon = jnp.clip(dot(d.astype(bf16), params["wf"]) + params["bf"],
                     -max_action, max_action)
    return recon, z, mean, log_var


if __name__ == "__main__":
    state_dim = 16
    action_dim = 8
    batch = 300          # not a multiple of the 256-row tile -> exercises grid + padding
    max_action = 1.0

    key = jax.random.PRNGKey(0)
    k_a, k_s, k_eps, k_params = jax.random.split(key, 4)

    a = jax.random.normal(k_a, (batch, action_dim), jnp.float32)
    s = jax.random.normal(k_s, (batch, state_dim), jnp.float32)
    eps = jax.random.normal(k_eps, (batch, action_dim), jnp.float32)
    params = init_vae_params(k_params, state_dim, action_dim)

    outs = jax.block_until_ready(vae_forward(a, s, eps, params, max_action))

    # sanity check against pure-JAX reference (same bf16 matmul operands)
    ref = vae_forward_ref(a, s, eps, params, max_action)
    for name, got, want in zip(("recon_a", "z", "mean", "log_var"), outs, ref):
        assert got.shape == want.shape, (name, got.shape, want.shape)
        assert jnp.allclose(got, want, atol=2e-3, rtol=2e-3), f"mismatch vs reference: {name}"

    print("KERNEL_OK")
</pallas_src>

<mosaic_0001>
module attributes {stable_mosaic.version = 11 : i64} {
  func.func @_vae_kernel(%arg0: i32, %arg1: memref<256x24xf32, #tpu.memory_space<vmem>>, %arg2: memref<256x16xf32, #tpu.memory_space<vmem>>, %arg3: memref<256x8xf32, #tpu.memory_space<vmem>>, %arg4: memref<24x256xbf16, #tpu.memory_space<vmem>>, %arg5: memref<1x256xf32, #tpu.memory_space<vmem>>, %arg6: memref<256x256xbf16, #tpu.memory_space<vmem>>, %arg7: memref<1x256xf32, #tpu.memory_space<vmem>>, %arg8: memref<256x256xbf16, #tpu.memory_space<vmem>>, %arg9: memref<1x256xf32, #tpu.memory_space<vmem>>, %arg10: memref<256x16xbf16, #tpu.memory_space<vmem>>, %arg11: memref<1x16xf32, #tpu.memory_space<vmem>>, %arg12: memref<16x256xbf16, #tpu.memory_space<vmem>>, %arg13: memref<8x256xbf16, #tpu.memory_space<vmem>>, %arg14: memref<1x256xf32, #tpu.memory_space<vmem>>, %arg15: memref<256x256xbf16, #tpu.memory_space<vmem>>, %arg16: memref<1x256xf32, #tpu.memory_space<vmem>>, %arg17: memref<256x256xbf16, #tpu.memory_space<vmem>>, %arg18: memref<1x256xf32, #tpu.memory_space<vmem>>, %arg19: memref<256x8xbf16, #tpu.memory_space<vmem>>, %arg20: memref<1x8xf32, #tpu.memory_space<vmem>>, %arg21: memref<256x32xf32, #tpu.memory_space<vmem>>) attributes {dimension_semantics = [#tpu.dimension_semantics<parallel>], iteration_bounds = array<i64: 2>, scalar_prefetch = 0 : i64, scratch_operands = 0 : i64, tpu.core_type = #tpu.core_type<tc>, window_params = [{transform_indices = @transform_0, window_bounds = array<i64: 256, 24>}, {transform_indices = @transform_1, window_bounds = array<i64: 256, 16>}, {transform_indices = @transform_2, window_bounds = array<i64: 256, 8>}, {pipeline_mode = #tpu.pipeline_mode<synchronous>, transform_indices = @transform_3, window_bounds = array<i64: 24, 256>}, {pipeline_mode = #tpu.pipeline_mode<synchronous>, transform_indices = @transform_4, window_bounds = array<i64: 1, 256>}, {pipeline_mode = #tpu.pipeline_mode<synchronous>, transform_indices = @transform_5, window_bounds = array<i64: 256, 256>}, {pipeline_mode = #tpu.pipeline_mode<synchronous>, transform_indices = @transform_6, window_bounds = array<i64: 1, 256>}, {pipeline_mode = #tpu.pipeline_mode<synchronous>, transform_indices = @transform_7, window_bounds = array<i64: 256, 256>}, {pipeline_mode = #tpu.pipeline_mode<synchronous>, transform_indices = @transform_8, window_bounds = array<i64: 1, 256>}, {pipeline_mode = #tpu.pipeline_mode<synchronous>, transform_indices = @transform_9, window_bounds = array<i64: 256, 16>}, {pipeline_mode = #tpu.pipeline_mode<synchronous>, transform_indices = @transform_10, window_bounds = array<i64: 1, 16>}, {pipeline_mode = #tpu.pipeline_mode<synchronous>, transform_indices = @transform_11, window_bounds = array<i64: 16, 256>}, {pipeline_mode = #tpu.pipeline_mode<synchronous>, transform_indices = @transform_12, window_bounds = array<i64: 8, 256>}, {pipeline_mode = #tpu.pipeline_mode<synchronous>, transform_indices = @transform_13, window_bounds = array<i64: 1, 256>}, {pipeline_mode = #tpu.pipeline_mode<synchronous>, transform_indices = @transform_14, window_bounds = array<i64: 256, 256>}, {pipeline_mode = #tpu.pipeline_mode<synchronous>, transform_indices = @transform_15, window_bounds = array<i64: 1, 256>}, {pipeline_mode = #tpu.pipeline_mode<synchronous>, transform_indices = @transform_16, window_bounds = array<i64: 256, 256>}, {pipeline_mode = #tpu.pipeline_mode<synchronous>, transform_indices = @transform_17, window_bounds = array<i64: 1, 256>}, {pipeline_mode = #tpu.pipeline_mode<synchronous>, transform_indices = @transform_18, window_bounds = array<i64: 256, 8>}, {pipeline_mode = #tpu.pipeline_mode<synchronous>, transform_indices = @transform_19, window_bounds = array<i64: 1, 8>}, {transform_indices = @transform_20, window_bounds = array<i64: 256, 32>}]} {
    %c0 = arith.constant 0 : index
    %c0_0 = arith.constant 0 : index
    %0 = vector.load %arg1[%c0, %c0_0] : memref<256x24xf32, #tpu.memory_space<vmem>>, vector<256x24xf32>
    %1 = arith.truncf %0 : vector<256x24xf32> to vector<256x24xbf16>
    %c0_1 = arith.constant 0 : index
    %c0_2 = arith.constant 0 : index
    %2 = vector.load %arg2[%c0_1, %c0_2] : memref<256x16xf32, #tpu.memory_space<vmem>>, vector<256x16xf32>
    %3 = arith.truncf %2 : vector<256x16xf32> to vector<256x16xbf16>
    %c0_3 = arith.constant 0 : index
    %c0_4 = arith.constant 0 : index
    %4 = vector.load %arg4[%c0_3, %c0_4] : memref<24x256xbf16, #tpu.memory_space<vmem>>, vector<24x256xbf16>
    %cst = arith.constant dense<0.000000e+00> : vector<256x256xf32>
    %5 = tpu.matmul %1, %4, %cst {dimension_numbers = #tpu.dot_dimension_numbers<[1], [0], [0], [1], [0, 0, 1, 1], [], []>} : vector<256x24xbf16>, vector<24x256xbf16>, vector<256x256xf32> -> vector<256x256xf32>
    %c0_5 = arith.constant 0 : index
    %c0_6 = arith.constant 0 : index
    %6 = vector.load %arg5[%c0_5, %c0_6] : memref<1x256xf32, #tpu.memory_space<vmem>>, vector<1x256xf32>
    %7 = vector.broadcast %6 : vector<1x256xf32> to vector<256x256xf32>
    %8 = arith.addf %5, %7 : vector<256x256xf32>
    %cst_7 = arith.constant 2.000000e+01 : f32
    %9 = vector.broadcast %cst_7 : f32 to vector<256x256xf32>
    %10 = arith.minimumf %8, %9 : vector<256x256xf32>
    %11 = math.exp %10 : vector<256x256xf32>
    %cst_8 = arith.constant 1.000000e+00 : f32
    %12 = vector.broadcast %cst_8 : f32 to vector<256x256xf32>
    %13 = arith.addf %12, %11 : vector<256x256xf32>
    %cst_9 = arith.constant 1.000000e+00 : f32
    %14 = vector.broadcast %cst_9 : f32 to vector<256x256xf32>
    %15 = arith.addf %14, %11 : vector<256x256xf32>
    %16 = arith.mulf %13, %15 : vector<256x256xf32>
    %cst_10 = arith.constant 1.000000e+00 : f32
    %17 = vector.broadcast %cst_10 : f32 to vector<256x256xf32>
    %18 = arith.subf %16, %17 : vector<256x256xf32>
    %cst_11 = arith.constant 1.000000e+00 : f32
    %19 = vector.broadcast %cst_11 : f32 to vector<256x256xf32>
    %20 = arith.addf %16, %19 : vector<256x256xf32>
    %21 = arith.divf %18, %20 : vector<256x256xf32>
    %cst_12 = arith.constant 2.000000e+01 : f32
    %22 = vector.broadcast %cst_12 : f32 to vector<256x256xf32>
    %23 = arith.cmpf ogt, %8, %22 : vector<256x256xf32>
    %24 = arith.mulf %8, %21 : vector<256x256xf32>
    %25 = arith.select %23, %8, %24 : vector<256x256xi1>, vector<256x256xf32>
    %26 = arith.truncf %25 : vector<256x256xf32> to vector<256x256xbf16>
    %c0_13 = arith.constant 0 : index
    %c0_14 = arith.constant 0 : index
    %27 = vector.load %arg6[%c0_13, %c0_14] : memref<256x256xbf16, #tpu.memory_space<vmem>>, vector<256x256xbf16>
    %cst_15 = arith.constant dense<0.000000e+00> : vector<256x256xf32>
    %28 = tpu.matmul %26, %27, %cst_15 {dimension_numbers = #tpu.dot_dimension_numbers<[1], [0], [0], [1], [0, 0, 1, 1], [], []>} : vector<256x256xbf16>, vector<256x256xbf16>, vector<256x256xf32> -> vector<256x256xf32>
    %c0_16 = arith.constant 0 : index
    %c0_17 = arith.constant 0 : index
    %29 = vector.load %arg7[%c0_16, %c0_17] : memref<1x256xf32, #tpu.memory_space<vmem>>, vector<1x256xf32>
    %30 = vector.broadcast %29 : vector<1x256xf32> to vector<256x256xf32>
    %31 = arith.addf %28, %30 : vector<256x256xf32>
    %cst_18 = arith.constant 2.000000e+01 : f32
    %32 = vector.broadcast %cst_18 : f32 to vector<256x256xf32>
    %33 = arith.minimumf %31, %32 : vector<256x256xf32>
    %34 = math.exp %33 : vector<256x256xf32>
    %cst_19 = arith.constant 1.000000e+00 : f32
    %35 = vector.broadcast %cst_19 : f32 to vector<256x256xf32>
    %36 = arith.addf %35, %34 : vector<256x256xf32>
    %cst_20 = arith.constant 1.000000e+00 : f32
    %37 = vector.broadcast %cst_20 : f32 to vector<256x256xf32>
    %38 = arith.addf %37, %34 : vector<256x256xf32>
    %39 = arith.mulf %36, %38 : vector<256x256xf32>
    %cst_21 = arith.constant 1.000000e+00 : f32
    %40 = vector.broadcast %cst_21 : f32 to vector<256x256xf32>
    %41 = arith.subf %39, %40 : vector<256x256xf32>
    %cst_22 = arith.constant 1.000000e+00 : f32
    %42 = vector.broadcast %cst_22 : f32 to vector<256x256xf32>
    %43 = arith.addf %39, %42 : vector<256x256xf32>
    %44 = arith.divf %41, %43 : vector<256x256xf32>
    %cst_23 = arith.constant 2.000000e+01 : f32
    %45 = vector.broadcast %cst_23 : f32 to vector<256x256xf32>
    %46 = arith.cmpf ogt, %31, %45 : vector<256x256xf32>
    %47 = arith.mulf %31, %44 : vector<256x256xf32>
    %48 = arith.select %46, %31, %47 : vector<256x256xi1>, vector<256x256xf32>
    %49 = arith.truncf %48 : vector<256x256xf32> to vector<256x256xbf16>
    %c0_24 = arith.constant 0 : index
    %c0_25 = arith.constant 0 : index
    %50 = vector.load %arg8[%c0_24, %c0_25] : memref<256x256xbf16, #tpu.memory_space<vmem>>, vector<256x256xbf16>
    %cst_26 = arith.constant dense<0.000000e+00> : vector<256x256xf32>
    %51 = tpu.matmul %49, %50, %cst_26 {dimension_numbers = #tpu.dot_dimension_numbers<[1], [0], [0], [1], [0, 0, 1, 1], [], []>} : vector<256x256xbf16>, vector<256x256xbf16>, vector<256x256xf32> -> vector<256x256xf32>
    %c0_27 = arith.constant 0 : index
    %c0_28 = arith.constant 0 : index
    %52 = vector.load %arg9[%c0_27, %c0_28] : memref<1x256xf32, #tpu.memory_space<vmem>>, vector<1x256xf32>
    %53 = vector.broadcast %52 : vector<1x256xf32> to vector<256x256xf32>
    %54 = arith.addf %51, %53 : vector<256x256xf32>
    %cst_29 = arith.constant 2.000000e+01 : f32
    %55 = vector.broadcast %cst_29 : f32 to vector<256x256xf32>
    %56 = arith.minimumf %54, %55 : vector<256x256xf32>
    %57 = math.exp %56 : vector<256x256xf32>
    %cst_30 = arith.constant 1.000000e+00 : f32
    %58 = vector.broadcast %cst_30 : f32 to vector<256x256xf32>
    %59 = arith.addf %58, %57 : vector<256x256xf32>
    %cst_31 = arith.constant 1.000000e+00 : f32
    %60 = vector.broadcast %cst_31 : f32 to vector<256x256xf32>
    %61 = arith.addf %60, %57 : vector<256x256xf32>
    %62 = arith.mulf %59, %61 : vector<256x256xf32>
    %cst_32 = arith.constant 1.000000e+00 : f32
    %63 = vector.broadcast %cst_32 : f32 to vector<256x256xf32>
    %64 = arith.subf %62, %63 : vector<256x256xf32>
    %cst_33 = arith.constant 1.000000e+00 : f32
    %65 = vector.broadcast %cst_33 : f32 to vector<256x256xf32>
    %66 = arith.addf %62, %65 : vector<256x256xf32>
    %67 = arith.divf %64, %66 : vector<256x256xf32>
    %cst_34 = arith.constant 2.000000e+01 : f32
    %68 = vector.broadcast %cst_34 : f32 to vector<256x256xf32>
    %69 = arith.cmpf ogt, %54, %68 : vector<256x256xf32>
    %70 = arith.mulf %54, %67 : vector<256x256xf32>
    %71 = arith.select %69, %54, %70 : vector<256x256xi1>, vector<256x256xf32>
    %72 = arith.truncf %71 : vector<256x256xf32> to vector<256x256xbf16>
    %c0_35 = arith.constant 0 : index
    %c0_36 = arith.constant 0 : index
    %73 = vector.load %arg10[%c0_35, %c0_36] : memref<256x16xbf16, #tpu.memory_space<vmem>>, vector<256x16xbf16>
    %cst_37 = arith.constant dense<0.000000e+00> : vector<256x16xf32>
    %74 = tpu.matmul %72, %73, %cst_37 {dimension_numbers = #tpu.dot_dimension_numbers<[1], [0], [0], [1], [0, 0, 1, 1], [], []>} : vector<256x256xbf16>, vector<256x16xbf16>, vector<256x16xf32> -> vector<256x16xf32>
    %c0_38 = arith.constant 0 : index
    %c0_39 = arith.constant 0 : index
    %75 = vector.load %arg11[%c0_38, %c0_39] : memref<1x16xf32, #tpu.memory_space<vmem>>, vector<1x16xf32>
    %76 = vector.broadcast %75 : vector<1x16xf32> to vector<256x16xf32>
    %77 = arith.addf %74, %76 : vector<256x16xf32>
    %78 = vector.extract_strided_slice %77 {offsets = [0, 0], sizes = [256, 8], strides = [1, 1]} : vector<256x16xf32> to vector<256x8xf32>
    %79 = vector.extract_strided_slice %77 {offsets = [0, 8], sizes = [256, 8], strides = [1, 1]} : vector<256x16xf32> to vector<256x8xf32>
    %c0_40 = arith.constant 0 : index
    %c0_41 = arith.constant 0 : index
    %80 = vector.load %arg3[%c0_40, %c0_41] : memref<256x8xf32, #tpu.memory_space<vmem>>, vector<256x8xf32>
    %cst_42 = arith.constant 5.000000e-01 : f32
    %81 = vector.broadcast %cst_42 : f32 to vector<256x8xf32>
    %82 = arith.mulf %81, %79 : vector<256x8xf32>
    %83 = math.exp %82 : vector<256x8xf32>
    %84 = arith.mulf %80, %83 : vector<256x8xf32>
    %85 = arith.addf %78, %84 : vector<256x8xf32>
    %c0_43 = arith.constant 0 : index
    %c0_44 = arith.constant 0 : index
    %86 = vector.load %arg12[%c0_43, %c0_44] : memref<16x256xbf16, #tpu.memory_space<vmem>>, vector<16x256xbf16>
    %cst_45 = arith.constant dense<0.000000e+00> : vector<256x256xf32>
    %87 = tpu.matmul %3, %86, %cst_45 {dimension_numbers = #tpu.dot_dimension_numbers<[1], [0], [0], [1], [0, 0, 1, 1], [], []>} : vector<256x16xbf16>, vector<16x256xbf16>, vector<256x256xf32> -> vector<256x256xf32>
    %88 = arith.truncf %85 : vector<256x8xf32> to vector<256x8xbf16>
    %c0_46 = arith.constant 0 : index
    %c0_47 = arith.constant 0 : index
    %89 = vector.load %arg13[%c0_46, %c0_47] : memref<8x256xbf16, #tpu.memory_space<vmem>>, vector<8x256xbf16>
    %cst_48 = arith.constant dense<0.000000e+00> : vector<256x256xf32>
    %90 = tpu.matmul %88, %89, %cst_48 {dimension_numbers = #tpu.dot_dimension_numbers<[1], [0], [0], [1], [0, 0, 1, 1], [], []>} : vector<256x8xbf16>, vector<8x256xbf16>, vector<256x256xf32> -> vector<256x256xf32>
    %91 = arith.addf %87, %90 : vector<256x256xf32>
    %c0_49 = arith.constant 0 : index
    %c0_50 = arith.constant 0 : index
    %92 = vector.load %arg14[%c0_49, %c0_50] : memref<1x256xf32, #tpu.memory_space<vmem>>, vector<1x256xf32>
    %93 = vector.broadcast %92 : vector<1x256xf32> to vector<256x256xf32>
    %94 = arith.addf %91, %93 : vector<256x256xf32>
    %cst_51 = arith.constant 2.000000e+01 : f32
    %95 = vector.broadcast %cst_51 : f32 to vector<256x256xf32>
    %96 = arith.minimumf %94, %95 : vector<256x256xf32>
    %97 = math.exp %96 : vector<256x256xf32>
    %cst_52 = arith.constant 1.000000e+00 : f32
    %98 = vector.broadcast %cst_52 : f32 to vector<256x256xf32>
    %99 = arith.addf %98, %97 : vector<256x256xf32>
    %cst_53 = arith.constant 1.000000e+00 : f32
    %100 = vector.broadcast %cst_53 : f32 to vector<256x256xf32>
    %101 = arith.addf %100, %97 : vector<256x256xf32>
    %102 = arith.mulf %99, %101 : vector<256x256xf32>
    %cst_54 = arith.constant 1.000000e+00 : f32
    %103 = vector.broadcast %cst_54 : f32 to vector<256x256xf32>
    %104 = arith.subf %102, %103 : vector<256x256xf32>
    %cst_55 = arith.constant 1.000000e+00 : f32
    %105 = vector.broadcast %cst_55 : f32 to vector<256x256xf32>
    %106 = arith.addf %102, %105 : vector<256x256xf32>
    %107 = arith.divf %104, %106 : vector<256x256xf32>
    %cst_56 = arith.constant 2.000000e+01 : f32
    %108 = vector.broadcast %cst_56 : f32 to vector<256x256xf32>
    %109 = arith.cmpf ogt, %94, %108 : vector<256x256xf32>
    %110 = arith.mulf %94, %107 : vector<256x256xf32>
    %111 = arith.select %109, %94, %110 : vector<256x256xi1>, vector<256x256xf32>
    %112 = arith.truncf %111 : vector<256x256xf32> to vector<256x256xbf16>
    %c0_57 = arith.constant 0 : index
    %c0_58 = arith.constant 0 : index
    %113 = vector.load %arg15[%c0_57, %c0_58] : memref<256x256xbf16, #tpu.memory_space<vmem>>, vector<256x256xbf16>
    %cst_59 = arith.constant dense<0.000000e+00> : vector<256x256xf32>
    %114 = tpu.matmul %112, %113, %cst_59 {dimension_numbers = #tpu.dot_dimension_numbers<[1], [0], [0], [1], [0, 0, 1, 1], [], []>} : vector<256x256xbf16>, vector<256x256xbf16>, vector<256x256xf32> -> vector<256x256xf32>
    %c0_60 = arith.constant 0 : index
    %c0_61 = arith.constant 0 : index
    %115 = vector.load %arg16[%c0_60, %c0_61] : memref<1x256xf32, #tpu.memory_space<vmem>>, vector<1x256xf32>
    %116 = vector.broadcast %115 : vector<1x256xf32> to vector<256x256xf32>
    %117 = arith.addf %114, %116 : vector<256x256xf32>
    %cst_62 = arith.constant 2.000000e+01 : f32
    %118 = vector.broadcast %cst_62 : f32 to vector<256x256xf32>
    %119 = arith.minimumf %117, %118 : vector<256x256xf32>
    %120 = math.exp %119 : vector<256x256xf32>
    %cst_63 = arith.constant 1.000000e+00 : f32
    %121 = vector.broadcast %cst_63 : f32 to vector<256x256xf32>
    %122 = arith.addf %121, %120 : vector<256x256xf32>
    %cst_64 = arith.constant 1.000000e+00 : f32
    %123 = vector.broadcast %cst_64 : f32 to vector<256x256xf32>
    %124 = arith.addf %123, %120 : vector<256x256xf32>
    %125 = arith.mulf %122, %124 : vector<256x256xf32>
    %cst_65 = arith.constant 1.000000e+00 : f32
    %126 = vector.broadcast %cst_65 : f32 to vector<256x256xf32>
    %127 = arith.subf %125, %126 : vector<256x256xf32>
    %cst_66 = arith.constant 1.000000e+00 : f32
    %128 = vector.broadcast %cst_66 : f32 to vector<256x256xf32>
    %129 = arith.addf %125, %128 : vector<256x256xf32>
    %130 = arith.divf %127, %129 : vector<256x256xf32>
    %cst_67 = arith.constant 2.000000e+01 : f32
    %131 = vector.broadcast %cst_67 : f32 to vector<256x256xf32>
    %132 = arith.cmpf ogt, %117, %131 : vector<256x256xf32>
    %133 = arith.mulf %117, %130 : vector<256x256xf32>
    %134 = arith.select %132, %117, %133 : vector<256x256xi1>, vector<256x256xf32>
    %135 = arith.truncf %134 : vector<256x256xf32> to vector<256x256xbf16>
    %c0_68 = arith.constant 0 : index
    %c0_69 = arith.constant 0 : index
    %136 = vector.load %arg17[%c0_68, %c0_69] : memref<256x256xbf16, #tpu.memory_space<vmem>>, vector<256x256xbf16>
    %cst_70 = arith.constant dense<0.000000e+00> : vector<256x256xf32>
    %137 = tpu.matmul %135, %136, %cst_70 {dimension_numbers = #tpu.dot_dimension_numbers<[1], [0], [0], [1], [0, 0, 1, 1], [], []>} : vector<256x256xbf16>, vector<256x256xbf16>, vector<256x256xf32> -> vector<256x256xf32>
    %c0_71 = arith.constant 0 : index
    %c0_72 = arith.constant 0 : index
    %138 = vector.load %arg18[%c0_71, %c0_72] : memref<1x256xf32, #tpu.memory_space<vmem>>, vector<1x256xf32>
    %139 = vector.broadcast %138 : vector<1x256xf32> to vector<256x256xf32>
    %140 = arith.addf %137, %139 : vector<256x256xf32>
    %cst_73 = arith.constant 2.000000e+01 : f32
    %141 = vector.broadcast %cst_73 : f32 to vector<256x256xf32>
    %142 = arith.minimumf %140, %141 : vector<256x256xf32>
    %143 = math.exp %142 : vector<256x256xf32>
    %cst_74 = arith.constant 1.000000e+00 : f32
    %144 = vector.broadcast %cst_74 : f32 to vector<256x256xf32>
    %145 = arith.addf %144, %143 : vector<256x256xf32>
    %cst_75 = arith.constant 1.000000e+00 : f32
    %146 = vector.broadcast %cst_75 : f32 to vector<256x256xf32>
    %147 = arith.addf %146, %143 : vector<256x256xf32>
    %148 = arith.mulf %145, %147 : vector<256x256xf32>
    %cst_76 = arith.constant 1.000000e+00 : f32
    %149 = vector.broadcast %cst_76 : f32 to vector<256x256xf32>
    %150 = arith.subf %148, %149 : vector<256x256xf32>
    %cst_77 = arith.constant 1.000000e+00 : f32
    %151 = vector.broadcast %cst_77 : f32 to vector<256x256xf32>
    %152 = arith.addf %148, %151 : vector<256x256xf32>
    %153 = arith.divf %150, %152 : vector<256x256xf32>
    %cst_78 = arith.constant 2.000000e+01 : f32
    %154 = vector.broadcast %cst_78 : f32 to vector<256x256xf32>
    %155 = arith.cmpf ogt, %140, %154 : vector<256x256xf32>
    %156 = arith.mulf %140, %153 : vector<256x256xf32>
    %157 = arith.select %155, %140, %156 : vector<256x256xi1>, vector<256x256xf32>
    %158 = arith.truncf %157 : vector<256x256xf32> to vector<256x256xbf16>
    %c0_79 = arith.constant 0 : index
    %c0_80 = arith.constant 0 : index
    %159 = vector.load %arg19[%c0_79, %c0_80] : memref<256x8xbf16, #tpu.memory_space<vmem>>, vector<256x8xbf16>
    %cst_81 = arith.constant dense<0.000000e+00> : vector<256x8xf32>
    %160 = tpu.matmul %158, %159, %cst_81 {dimension_numbers = #tpu.dot_dimension_numbers<[1], [0], [0], [1], [0, 0, 1, 1], [], []>} : vector<256x256xbf16>, vector<256x8xbf16>, vector<256x8xf32> -> vector<256x8xf32>
    %c0_82 = arith.constant 0 : index
    %c0_83 = arith.constant 0 : index
    %161 = vector.load %arg20[%c0_82, %c0_83] : memref<1x8xf32, #tpu.memory_space<vmem>>, vector<1x8xf32>
    %162 = vector.broadcast %161 : vector<1x8xf32> to vector<256x8xf32>
    %163 = arith.addf %160, %162 : vector<256x8xf32>
    %cst_84 = arith.constant -1.000000e+00 : f32
    %cst_85 = arith.constant 1.000000e+00 : f32
    %164 = vector.broadcast %cst_84 : f32 to vector<256x8xf32>
    %165 = arith.maximumf %164, %163 : vector<256x8xf32>
    %166 = vector.broadcast %cst_85 : f32 to vector<256x8xf32>
    %167 = arith.minimumf %166, %165 : vector<256x8xf32>
    %168 = tpu.concatenate %167, %85, %77 in 1 : vector<256x8xf32>, vector<256x8xf32>, vector<256x16xf32> -> vector<256x32xf32>
    %c0_86 = arith.constant 0 : index
    %c0_87 = arith.constant 0 : index
    %169 = vector.load %arg21[%c0_86, %c0_87] : memref<256x32xf32, #tpu.memory_space<vmem>>, vector<256x32xf32>
    tpu.vector_store %arg21[%c0_86, %c0_87], %168 {strides = array<i32>} : memref<256x32xf32, #tpu.memory_space<vmem>>, vector<256x32xf32>,
    return
  }
  func.func @transform_0(%arg0: i32) -> (i32, i32) {
    %c0_i32 = arith.constant 0 : i32
    %c0_i32_0 = arith.constant 0 : i32
    return %arg0, %c0_i32 : i32, i32
  }
  func.func @transform_1(%arg0: i32) -> (i32, i32) {
    %c0_i32 = arith.constant 0 : i32
    %c0_i32_0 = arith.constant 0 : i32
    return %arg0, %c0_i32 : i32, i32
  }
  func.func @transform_2(%arg0: i32) -> (i32, i32) {
    %c0_i32 = arith.constant 0 : i32
    %c0_i32_0 = arith.constant 0 : i32
    return %arg0, %c0_i32 : i32, i32
  }
  func.func @transform_3(%arg0: i32) -> (i32, i32) {
    %c0_i32 = arith.constant 0 : i32
    %c0_i32_0 = arith.constant 0 : i32
    %c0_i32_1 = arith.constant 0 : i32
    return %c0_i32, %c0_i32_0 : i32, i32
  }
  func.func @transform_4(%arg0: i32) -> (i32, i32) {
    %c0_i32 = arith.constant 0 : i32
    %c0_i32_0 = arith.constant 0 : i32
    %c0_i32_1 = arith.constant 0 : i32
    return %c0_i32, %c0_i32_0 : i32, i32
  }
  func.func @transform_5(%arg0: i32) -> (i32, i32) {
    %c0_i32 = arith.constant 0 : i32
    %c0_i32_0 = arith.constant 0 : i32
    %c0_i32_1 = arith.constant 0 : i32
    return %c0_i32, %c0_i32_0 : i32, i32
  }
  func.func @transform_6(%arg0: i32) -> (i32, i32) {
    %c0_i32 = arith.constant 0 : i32
    %c0_i32_0 = arith.constant 0 : i32
    %c0_i32_1 = arith.constant 0 : i32
    return %c0_i32, %c0_i32_0 : i32, i32
  }
  func.func @transform_7(%arg0: i32) -> (i32, i32) {
    %c0_i32 = arith.constant 0 : i32
    %c0_i32_0 = arith.constant 0 : i32
    %c0_i32_1 = arith.constant 0 : i32
    return %c0_i32, %c0_i32_0 : i32, i32
  }
  func.func @transform_8(%arg0: i32) -> (i32, i32) {
    %c0_i32 = arith.constant 0 : i32
    %c0_i32_0 = arith.constant 0 : i32
    %c0_i32_1 = arith.constant 0 : i32
    return %c0_i32, %c0_i32_0 : i32, i32
  }
  func.func @transform_9(%arg0: i32) -> (i32, i32) {
    %c0_i32 = arith.constant 0 : i32
    %c0_i32_0 = arith.constant 0 : i32
    %c0_i32_1 = arith.constant 0 : i32
    return %c0_i32, %c0_i32_0 : i32, i32
  }
  func.func @transform_10(%arg0: i32) -> (i32, i32) {
    %c0_i32 = arith.constant 0 : i32
    %c0_i32_0 = arith.constant 0 : i32
    %c0_i32_1 = arith.constant 0 : i32
    return %c0_i32, %c0_i32_0 : i32, i32
  }
  func.func @transform_11(%arg0: i32) -> (i32, i32) {
    %c0_i32 = arith.constant 0 : i32
    %c0_i32_0 = arith.constant 0 : i32
    %c0_i32_1 = arith.constant 0 : i32
    return %c0_i32, %c0_i32_0 : i32, i32
  }
  func.func @transform_12(%arg0: i32) -> (i32, i32) {
    %c0_i32 = arith.constant 0 : i32
    %c0_i32_0 = arith.constant 0 : i32
    %c0_i32_1 = arith.constant 0 : i32
    return %c0_i32, %c0_i32_0 : i32, i32
  }
  func.func @transform_13(%arg0: i32) -> (i32, i32) {
    %c0_i32 = arith.constant 0 : i32
    %c0_i32_0 = arith.constant 0 : i32
    %c0_i32_1 = arith.constant 0 : i32
    return %c0_i32, %c0_i32_0 : i32, i32
  }
  func.func @transform_14(%arg0: i32) -> (i32, i32) {
    %c0_i32 = arith.constant 0 : i32
    %c0_i32_0 = arith.constant 0 : i32
    %c0_i32_1 = arith.constant 0 : i32
    return %c0_i32, %c0_i32_0 : i32, i32
  }
  func.func @transform_15(%arg0: i32) -> (i32, i32) {
    %c0_i32 = arith.constant 0 : i32
    %c0_i32_0 = arith.constant 0 : i32
    %c0_i32_1 = arith.constant 0 : i32
    return %c0_i32, %c0_i32_0 : i32, i32
  }
  func.func @transform_16(%arg0: i32) -> (i32, i32) {
    %c0_i32 = arith.constant 0 : i32
    %c0_i32_0 = arith.constant 0 : i32
    %c0_i32_1 = arith.constant 0 : i32
    return %c0_i32, %c0_i32_0 : i32, i32
  }
  func.func @transform_17(%arg0: i32) -> (i32, i32) {
    %c0_i32 = arith.constant 0 : i32
    %c0_i32_0 = arith.constant 0 : i32
    %c0_i32_1 = arith.constant 0 : i32
    return %c0_i32, %c0_i32_0 : i32, i32
  }
  func.func @transform_18(%arg0: i32) -> (i32, i32) {
    %c0_i32 = arith.constant 0 : i32
    %c0_i32_0 = arith.constant 0 : i32
    %c0_i32_1 = arith.constant 0 : i32
    return %c0_i32, %c0_i32_0 : i32, i32
  }
  func.func @transform_19(%arg0: i32) -> (i32, i32) {
    %c0_i32 = arith.constant 0 : i32
    %c0_i32_0 = arith.constant 0 : i32
    %c0_i32_1 = arith.constant 0 : i32
    return %c0_i32, %c0_i32_0 : i32, i32
  }
  func.func @transform_20(%arg0: i32) -> (i32, i32) {
    %c0_i32 = arith.constant 0 : i32
    %c0_i32_0 = arith.constant 0 : i32
    return %arg0, %c0_i32 : i32, i32
  }
}

</mosaic_0001>

<llo_original>
// kernel: tpu_custom_call.1
$region0: #{tpu_custom_call.1}
  #allocation0 [shape = 'u32[]', space=smem, size = 0x4, offset = 0x4, fixed_abs, tag = 'smem constant byte address 0x4 - core index']
  #allocation1 [shape = 'u32[144,128]{1,0:T(1,128)}', space=vmem, size = 0x12000, scoped, tag = 'internal scratch']
  %s0 = inlined_call_operand.vmem [shape: f32[512,24], index: 0, kind: input, shape index: {}]
  %s1 = inlined_call_operand.vmem [shape: f32[512,16], index: 1, kind: input, shape index: {}]
  %s2 = inlined_call_operand.vmem [shape: f32[512,8], index: 2, kind: input, shape index: {}]
  %s3 = inlined_call_operand.vmem [shape: bf16[24,256], index: 3, kind: input, shape index: {}]
  %s4 = inlined_call_operand.vmem [shape: f32[1,256], index: 4, kind: input, shape index: {}]
  %s5 = inlined_call_operand.vmem [shape: bf16[256,256], index: 5, kind: input, shape index: {}]
  %s6 = inlined_call_operand.vmem [shape: f32[1,256], index: 6, kind: input, shape index: {}]
  %s7 = inlined_call_operand.vmem [shape: bf16[256,256], index: 7, kind: input, shape index: {}]
  %s8 = inlined_call_operand.vmem [shape: f32[1,256], index: 8, kind: input, shape index: {}]
  %s9 = inlined_call_operand.vmem [shape: bf16[256,16], index: 9, kind: input, shape index: {}]
  %s10 = inlined_call_operand.vmem [shape: f32[1,16], index: 10, kind: input, shape index: {}]
  %s11 = inlined_call_operand.vmem [shape: bf16[16,256], index: 11, kind: input, shape index: {}]
  %s12 = inlined_call_operand.vmem [shape: bf16[8,256], index: 12, kind: input, shape index: {}]
  %s13 = inlined_call_operand.vmem [shape: f32[1,256], index: 13, kind: input, shape index: {}]
  %s14 = inlined_call_operand.vmem [shape: bf16[256,256], index: 14, kind: input, shape index: {}]
  %s15 = inlined_call_operand.vmem [shape: f32[1,256], index: 15, kind: input, shape index: {}]
  %s16 = inlined_call_operand.vmem [shape: bf16[256,256], index: 16, kind: input, shape index: {}]
  %s17 = inlined_call_operand.vmem [shape: f32[1,256], index: 17, kind: input, shape index: {}]
  %s18 = inlined_call_operand.vmem [shape: bf16[256,8], index: 18, kind: input, shape index: {}]
  %s19 = inlined_call_operand.vmem [shape: f32[1,8], index: 19, kind: input, shape index: {}]
  %s20 = inlined_call_operand.vmem [shape: f32[512,32], index: 20, kind: output, shape index: {}]
  %s21 = sld [smem:[#allocation0]]
  $region113: #{tpu_custom_call.1} parent=0
    _
  %s23 = ssub.s32 1, %s21
  %s24 = scalar_select 0, %s23, %s21
  loop: start=0, step=1, limit=4
  $region2: #{tpu_custom_call.1} parent=0 // loop_pre_header
    _
  $region3: #{tpu_custom_call.1} parent=0 // loop_header
    %s26 = sphi 0, %s30
    %p27 = scmp.ge.s32.totalorder %s26, 4
    %s36 = sphi 0, %s38
    %s39 = sphi 0, %s36
    %s40 = sphi 0, %s39
    %s56 = sphi 0, %s40
    %s62 = sphi 0, %s64
    %s65 = sphi 0, %s62
    %s66 = sphi 0, %s65
    %s82 = sphi 0, %s66
    %s88 = sphi 0, %s90
    %s91 = sphi 0, %s88
    %s92 = sphi 0, %s91
    %s108 = sphi 0, %s92
    %s112 = sphi 0, %s112
    %s114 = sphi 0, %s112
    %s115 = sphi 0, %s114
    %s129 = sphi 0, %s115
    %s133 = sphi 0, %s133
    %s135 = sphi 0, %s133
    %s136 = sphi 0, %s135
    %s150 = sphi 0, %s136
    %s154 = sphi 0, %s154
    %s156 = sphi 0, %s154
    %s157 = sphi 0, %s156
    %s171 = sphi 0, %s157
    %s175 = sphi 0, %s175
    %s177 = sphi 0, %s175
    %s178 = sphi 0, %s177
    %s192 = sphi 0, %s178
    %s196 = sphi 0, %s196
    %s198 = sphi 0, %s196
    %s199 = sphi 0, %s198
    %s213 = sphi 0, %s199
    %s217 = sphi 0, %s217
    %s219 = sphi 0, %s217
    %s220 = sphi 0, %s219
    %s234 = sphi 0, %s220
    %s238 = sphi 0, %s238
    %s240 = sphi 0, %s238
    %s241 = sphi 0, %s240
    %s255 = sphi 0, %s241
    %s259 = sphi 0, %s259
    %s261 = sphi 0, %s259
    %s262 = sphi 0, %s261
    %s276 = sphi 0, %s262
    %s280 = sphi 0, %s280
    %s282 = sphi 0, %s280
    %s283 = sphi 0, %s282
    %s297 = sphi 0, %s283
    %s301 = sphi 0, %s301
    %s303 = sphi 0, %s301
    %s304 = sphi 0, %s303
    %s318 = sphi 0, %s304
    %s322 = sphi 0, %s322
    %s324 = sphi 0, %s322
    %s325 = sphi 0, %s324
    %s339 = sphi 0, %s325
    %s343 = sphi 0, %s343
    %s345 = sphi 0, %s343
    %s346 = sphi 0, %s345
    %s360 = sphi 0, %s346
    %s364 = sphi 0, %s364
    %s366 = sphi 0, %s364
    %s367 = sphi 0, %s366
    %s381 = sphi 0, %s367
    %s385 = sphi 0, %s385
    %s387 = sphi 0, %s385
    %s388 = sphi 0, %s387
    %s402 = sphi 0, %s388
    %s406 = sphi 0, %s406
    %s408 = sphi 0, %s406
    %s409 = sphi 0, %s408
    %s423 = sphi 0, %s409
    %s427 = sphi 0, %s427
    %s429 = sphi 0, %s427
    %s430 = sphi 0, %s429
    %s444 = sphi 0, %s430
    %s448 = sphi 0, %s448
    %s450 = sphi 0, %s448
    %s451 = sphi 0, %s450
    %s465 = sphi 0, %s451
    %s471 = sphi 0, %s473
    %s474 = sphi 0, %s471
    %s475 = sphi 0, %s474
    %s491 = sphi 0, %s475
  $region4: #{tpu_custom_call.1} parent=0 // loop_header_branch
    %29 = sbr.rel (%p27) target = $region8
  $region5: #{tpu_custom_call.1} parent=0 // loop_body
    %s31 = ssub.s32 %s26, 1
    %s32 = ssub.s32 %s26, 2
    %s33 = sadd.s32 %s26, 1
    %s34 = ssub.s32 %s26, %s33
    %p35 = scmp.eq.s32.totalorder %s34, 0
    %s37 = sadd.s32 %s36, 1
    %s38 = scalar_select %p35, %s36, %s37
    %p41 = pneg %p35
    %p42 = scmp.eq.s32.totalorder %s26, 1
    %p43 = por %p41, %p42
    %p44 = scmp.ne.s32.totalorder %s36, %s39
    %p45 = scmp.eq.s32.totalorder %s26, 0
    %p46 = por %p44, %p45
    %p47 = scmp.ne.s32.totalorder %s36, %s39
    %p48 = scmp.eq.s32.totalorder %s31, 1
    %p49 = por %p47, %p48
    %p50 = scmp.ne.s32.totalorder %s39, %s40
    %p51 = scmp.eq.s32.totalorder %s31, 0
    %p52 = por %p50, %p51
    %p53 = scmp.ne.s32.totalorder %s39, %s40
    %p54 = scmp.eq.s32.totalorder %s32, 1
    %p55 = por %p53, %p54
    %p57 = scmp.ne.s32.totalorder %s40, %s56
    %p58 = scmp.eq.s32.totalorder %s32, 0
    %p59 = por %p57, %p58
    %s60 = ssub.s32 %s26, %s33
    %p61 = scmp.eq.s32.totalorder %s60, 0
    %s63 = sadd.s32 %s62, 1
    %s64 = scalar_select %p61, %s62, %s63
    %p67 = pneg %p61
    %p68 = scmp.eq.s32.totalorder %s26, 1
    %p69 = por %p67, %p68
    %p70 = scmp.ne.s32.totalorder %s62, %s65
    %p71 = scmp.eq.s32.totalorder %s26, 0
    %p72 = por %p70, %p71
    %p73 = scmp.ne.s32.totalorder %s62, %s65
    %p74 = scmp.eq.s32.totalorder %s31, 1
    %p75 = por %p73, %p74
    %p76 = scmp.ne.s32.totalorder %s65, %s66
    %p77 = scmp.eq.s32.totalorder %s31, 0
    %p78 = por %p76, %p77
    %p79 = scmp.ne.s32.totalorder %s65, %s66
    %p80 = scmp.eq.s32.totalorder %s32, 1
    %p81 = por %p79, %p80
    %p83 = scmp.ne.s32.totalorder %s66, %s82
    %p84 = scmp.eq.s32.totalorder %s32, 0
    %p85 = por %p83, %p84
    %s86 = ssub.s32 %s26, %s33
    %p87 = scmp.eq.s32.totalorder %s86, 0
    %s89 = sadd.s32 %s88, 1
    %s90 = scalar_select %p87, %s88, %s89
    %p93 = pneg %p87
    %p94 = scmp.eq.s32.totalorder %s26, 1
    %p95 = por %p93, %p94
    %p96 = scmp.ne.s32.totalorder %s88, %s91
    %p97 = scmp.eq.s32.totalorder %s26, 0
    %p98 = por %p96, %p97
    %p99 = scmp.ne.s32.totalorder %s88, %s91
    %p100 = scmp.eq.s32.totalorder %s31, 1
    %p101 = por %p99, %p100
    %p102 = scmp.ne.s32.totalorder %s91, %s92
    %p103 = scmp.eq.s32.totalorder %s31, 0
    %p104 = por %p102, %p103
    %p105 = scmp.ne.s32.totalorder %s91, %s92
    %p106 = scmp.eq.s32.totalorder %s32, 1
    %p107 = por %p105, %p106
    %p109 = scmp.ne.s32.totalorder %s92, %s108
    %p110 = scmp.eq.s32.totalorder %s32, 0
    %p111 = por %p109, %p110
    %s113 = sadd.s32 %s112, 1
    %p116 = scmp.eq.s32.totalorder %s26, 1
    %p117 = scmp.ne.s32.totalorder %s112, %s114
    %p118 = scmp.eq.s32.totalorder %s26, 0
    %p119 = por %p117, %p118
    %p120 = scmp.ne.s32.totalorder %s112, %s114
    %p121 = scmp.eq.s32.totalorder %s31, 1
    %p122 = por %p120, %p121
    %p123 = scmp.ne.s32.totalorder %s114, %s115
    %p124 = scmp.eq.s32.totalorder %s31, 0
    %p125 = por %p123, %p124
    %p126 = scmp.ne.s32.totalorder %s114, %s115
    %p127 = scmp.eq.s32.totalorder %s32, 1
    %p128 = por %p126, %p127
    %p130 = scmp.ne.s32.totalorder %s115, %s129
    %p131 = scmp.eq.s32.totalorder %s32, 0
    %p132 = por %p130, %p131
    %s134 = sadd.s32 %s133, 1
    %p137 = scmp.eq.s32.totalorder %s26, 1
    %p138 = scmp.ne.s32.totalorder %s133, %s135
    %p139 = scmp.eq.s32.totalorder %s26, 0
    %p140 = por %p138, %p139
    %p141 = scmp.ne.s32.totalorder %s133, %s135
    %p142 = scmp.eq.s32.totalorder %s31, 1
    %p143 = por %p141, %p142
    %p144 = scmp.ne.s32.totalorder %s135, %s136
    %p145 = scmp.eq.s32.totalorder %s31, 0
    %p146 = por %p144, %p145
    %p147 = scmp.ne.s32.totalorder %s135, %s136
    %p148 = scmp.eq.s32.totalorder %s32, 1
    %p149 = por %p147, %p148
    %p151 = scmp.ne.s32.totalorder %s136, %s150
    %p152 = scmp.eq.s32.totalorder %s32, 0
    %p153 = por %p151, %p152
    %s155 = sadd.s32 %s154, 1
    %p158 = scmp.eq.s32.totalorder %s26, 1
    %p159 = scmp.ne.s32.totalorder %s154, %s156
    %p160 = scmp.eq.s32.totalorder %s26, 0
    %p161 = por %p159, %p160
    %p162 = scmp.ne.s32.totalorder %s154, %s156
    %p163 = scmp.eq.s32.totalorder %s31, 1
    %p164 = por %p162, %p163
    %p165 = scmp.ne.s32.totalorder %s156, %s157
    %p166 = scmp.eq.s32.totalorder %s31, 0
    %p167 = por %p165, %p166
    %p168 = scmp.ne.s32.totalorder %s156, %s157
    %p169 = scmp.eq.s32.totalorder %s32, 1
    %p170 = por %p168, %p169
    %p172 = scmp.ne.s32.totalorder %s157, %s171
    %p173 = scmp.eq.s32.totalorder %s32, 0
    %p174 = por %p172, %p173
    %s176 = sadd.s32 %s175, 1
    %p179 = scmp.eq.s32.totalorder %s26, 1
    %p180 = scmp.ne.s32.totalorder %s175, %s177
    %p181 = scmp.eq.s32.totalorder %s26, 0
    %p182 = por %p180, %p181
    %p183 = scmp.ne.s32.totalorder %s175, %s177
    %p184 = scmp.eq.s32.totalorder %s31, 1
    %p185 = por %p183, %p184
    %p186 = scmp.ne.s32.totalorder %s177, %s178
    %p187 = scmp.eq.s32.totalorder %s31, 0
    %p188 = por %p186, %p187
    %p189 = scmp.ne.s32.totalorder %s177, %s178
    %p190 = scmp.eq.s32.totalorder %s32, 1
    %p191 = por %p189, %p190
    %p193 = scmp.ne.s32.totalorder %s178, %s192
    %p194 = scmp.eq.s32.totalorder %s32, 0
    %p195 = por %p193, %p194
    %s197 = sadd.s32 %s196, 1
    %p200 = scmp.eq.s32.totalorder %s26, 1
    %p201 = scmp.ne.s32.totalorder %s196, %s198
    %p202 = scmp.eq.s32.totalorder %s26, 0
    %p203 = por %p201, %p202
    %p204 = scmp.ne.s32.totalorder %s196, %s198
    %p205 = scmp.eq.s32.totalorder %s31, 1
    %p206 = por %p204, %p205
    %p207 = scmp.ne.s32.totalorder %s198, %s199
    %p208 = scmp.eq.s32.totalorder %s31, 0
    %p209 = por %p207, %p208
    %p210 = scmp.ne.s32.totalorder %s198, %s199
    %p211 = scmp.eq.s32.totalorder %s32, 1
    %p212 = por %p210, %p211
    %p214 = scmp.ne.s32.totalorder %s199, %s213
    %p215 = scmp.eq.s32.totalorder %s32, 0
    %p216 = por %p214, %p215
    %s218 = sadd.s32 %s217, 1
    %p221 = scmp.eq.s32.totalorder %s26, 1
    %p222 = scmp.ne.s32.totalorder %s217, %s219
    %p223 = scmp.eq.s32.totalorder %s26, 0
    %p224 = por %p222, %p223
    %p225 = scmp.ne.s32.totalorder %s217, %s219
    %p226 = scmp.eq.s32.totalorder %s31, 1
    %p227 = por %p225, %p226
    %p228 = scmp.ne.s32.totalorder %s219, %s220
    %p229 = scmp.eq.s32.totalorder %s31, 0
    %p230 = por %p228, %p229
    %p231 = scmp.ne.s32.totalorder %s219, %s220
    %p232 = scmp.eq.s32.totalorder %s32, 1
    %p233 = por %p231, %p232
    %p235 = scmp.ne.s32.totalorder %s220, %s234
    %p236 = scmp.eq.s32.totalorder %s32, 0
    %p237 = por %p235, %p236
    %s239 = sadd.s32 %s238, 1
    %p242 = scmp.eq.s32.totalorder %s26, 1
    %p243 = scmp.ne.s32.totalorder %s238, %s240
    %p244 = scmp.eq.s32.totalorder %s26, 0
    %p245 = por %p243, %p244
    %p246 = scmp.ne.s32.totalorder %s238, %s240
    %p247 = scmp.eq.s32.totalorder %s31, 1
    %p248 = por %p246, %p247
    %p249 = scmp.ne.s32.totalorder %s240, %s241
    %p250 = scmp.eq.s32.totalorder %s31, 0
    %p251 = por %p249, %p250
    %p252 = scmp.ne.s32.totalorder %s240, %s241
    %p253 = scmp.eq.s32.totalorder %s32, 1
    %p254 = por %p252, %p253
    %p256 = scmp.ne.s32.totalorder %s241, %s255
    %p257 = scmp.eq.s32.totalorder %s32, 0
    %p258 = por %p256, %p257
    %s260 = sadd.s32 %s259, 1
    %p263 = scmp.eq.s32.totalorder %s26, 1
    %p264 = scmp.ne.s32.totalorder %s259, %s261
    %p265 = scmp.eq.s32.totalorder %s26, 0
    %p266 = por %p264, %p265
    %p267 = scmp.ne.s32.totalorder %s259, %s261
    %p268 = scmp.eq.s32.totalorder %s31, 1
    %p269 = por %p267, %p268
    %p270 = scmp.ne.s32.totalorder %s261, %s262
    %p271 = scmp.eq.s32.totalorder %s31, 0
    %p272 = por %p270, %p271
    %p273 = scmp.ne.s32.totalorder %s261, %s262
    %p274 = scmp.eq.s32.totalorder %s32, 1
    %p275 = por %p273, %p274
    %p277 = scmp.ne.s32.totalorder %s262, %s276
    %p278 = scmp.eq.s32.totalorder %s32, 0
    %p279 = por %p277, %p278
    %s281 = sadd.s32 %s280, 1
    %p284 = scmp.eq.s32.totalorder %s26, 1
    %p285 = scmp.ne.s32.totalorder %s280, %s282
    %p286 = scmp.eq.s32.totalorder %s26, 0
    %p287 = por %p285, %p286
    %p288 = scmp.ne.s32.totalorder %s280, %s282
    %p289 = scmp.eq.s32.totalorder %s31, 1
    %p290 = por %p288, %p289
    %p291 = scmp.ne.s32.totalorder %s282, %s283
    %p292 = scmp.eq.s32.totalorder %s31, 0
    %p293 = por %p291, %p292
    %p294 = scmp.ne.s32.totalorder %s282, %s283
    %p295 = scmp.eq.s32.totalorder %s32, 1
    %p296 = por %p294, %p295
    %p298 = scmp.ne.s32.totalorder %s283, %s297
    %p299 = scmp.eq.s32.totalorder %s32, 0
    %p300 = por %p298, %p299
    %s302 = sadd.s32 %s301, 1
    %p305 = scmp.eq.s32.totalorder %s26, 1
    %p306 = scmp.ne.s32.totalorder %s301, %s303
    %p307 = scmp.eq.s32.totalorder %s26, 0
    %p308 = por %p306, %p307
    %p309 = scmp.ne.s32.totalorder %s301, %s303
    %p310 = scmp.eq.s32.totalorder %s31, 1
    %p311 = por %p309, %p310
    %p312 = scmp.ne.s32.totalorder %s303, %s304
    %p313 = scmp.eq.s32.totalorder %s31, 0
    %p314 = por %p312, %p313
    %p315 = scmp.ne.s32.totalorder %s303, %s304
    %p316 = scmp.eq.s32.totalorder %s32, 1
    %p317 = por %p315, %p316
    %p319 = scmp.ne.s32.totalorder %s304, %s318
    %p320 = scmp.eq.s32.totalorder %s32, 0
    %p321 = por %p319, %p320
    %s323 = sadd.s32 %s322, 1
    %p326 = scmp.eq.s32.totalorder %s26, 1
    %p327 = scmp.ne.s32.totalorder %s322, %s324
    %p328 = scmp.eq.s32.totalorder %s26, 0
    %p329 = por %p327, %p328
    %p330 = scmp.ne.s32.totalorder %s322, %s324
    %p331 = scmp.eq.s32.totalorder %s31, 1
    %p332 = por %p330, %p331
    %p333 = scmp.ne.s32.totalorder %s324, %s325
    %p334 = scmp.eq.s32.totalorder %s31, 0
    %p335 = por %p333, %p334
    %p336 = scmp.ne.s32.totalorder %s324, %s325
    %p337 = scmp.eq.s32.totalorder %s32, 1
    %p338 = por %p336, %p337
    %p340 = scmp.ne.s32.totalorder %s325, %s339
    %p341 = scmp.eq.s32.totalorder %s32, 0
    %p342 = por %p340, %p341
    %s344 = sadd.s32 %s343, 1
    %p347 = scmp.eq.s32.totalorder %s26, 1
    %p348 = scmp.ne.s32.totalorder %s343, %s345
    %p349 = scmp.eq.s32.totalorder %s26, 0
    %p350 = por %p348, %p349
    %p351 = scmp.ne.s32.totalorder %s343, %s345
    %p352 = scmp.eq.s32.totalorder %s31, 1
    %p353 = por %p351, %p352
    %p354 = scmp.ne.s32.totalorder %s345, %s346
    %p355 = scmp.eq.s32.totalorder %s31, 0
    %p356 = por %p354, %p355
    %p357 = scmp.ne.s32.totalorder %s345, %s346
    %p358 = scmp.eq.s32.totalorder %s32, 1
    %p359 = por %p357, %p358
    %p361 = scmp.ne.s32.totalorder %s346, %s360
    %p362 = scmp.eq.s32.totalorder %s32, 0
    %p363 = por %p361, %p362
    %s365 = sadd.s32 %s364, 1
    %p368 = scmp.eq.s32.totalorder %s26, 1
    %p369 = scmp.ne.s32.totalorder %s364, %s366
    %p370 = scmp.eq.s32.totalorder %s26, 0
    %p371 = por %p369, %p370
    %p372 = scmp.ne.s32.totalorder %s364, %s366
    %p373 = scmp.eq.s32.totalorder %s31, 1
    %p374 = por %p372, %p373
    %p375 = scmp.ne.s32.totalorder %s366, %s367
    %p376 = scmp.eq.s32.totalorder %s31, 0
    %p377 = por %p375, %p376
    %p378 = scmp.ne.s32.totalorder %s366, %s367
    %p379 = scmp.eq.s32.totalorder %s32, 1
    %p380 = por %p378, %p379
    %p382 = scmp.ne.s32.totalorder %s367, %s381
    %p383 = scmp.eq.s32.totalorder %s32, 0
    %p384 = por %p382, %p383
    %s386 = sadd.s32 %s385, 1
    %p389 = scmp.eq.s32.totalorder %s26, 1
    %p390 = scmp.ne.s32.totalorder %s385, %s387
    %p391 = scmp.eq.s32.totalorder %s26, 0
    %p392 = por %p390, %p391
    %p393 = scmp.ne.s32.totalorder %s385, %s387
    %p394 = scmp.eq.s32.totalorder %s31, 1
    %p395 = por %p393, %p394
    %p396 = scmp.ne.s32.totalorder %s387, %s388
    %p397 = scmp.eq.s32.totalorder %s31, 0
    %p398 = por %p396, %p397
    %p399 = scmp.ne.s32.totalorder %s387, %s388
    %p400 = scmp.eq.s32.totalorder %s32, 1
    %p401 = por %p399, %p400
    %p403 = scmp.ne.s32.totalorder %s388, %s402
    %p404 = scmp.eq.s32.totalorder %s32, 0
    %p405 = por %p403, %p404
    %s407 = sadd.s32 %s406, 1
    %p410 = scmp.eq.s32.totalorder %s26, 1
    %p411 = scmp.ne.s32.totalorder %s406, %s408
    %p412 = scmp.eq.s32.totalorder %s26, 0
    %p413 = por %p411, %p412
    %p414 = scmp.ne.s32.totalorder %s406, %s408
    %p415 = scmp.eq.s32.totalorder %s31, 1
    %p416 = por %p414, %p415
    %p417 = scmp.ne.s32.totalorder %s408, %s409
    %p418 = scmp.eq.s32.totalorder %s31, 0
    %p419 = por %p417, %p418
    %p420 = scmp.ne.s32.totalorder %s408, %s409
    %p421 = scmp.eq.s32.totalorder %s32, 1
    %p422 = por %p420, %p421
    %p424 = scmp.ne.s32.totalorder %s409, %s423
    %p425 = scmp.eq.s32.totalorder %s32, 0
    %p426 = por %p424, %p425
    %s428 = sadd.s32 %s427, 1
    %p431 = scmp.eq.s32.totalorder %s26, 1
    %p432 = scmp.ne.s32.totalorder %s427, %s429
    %p433 = scmp.eq.s32.totalorder %s26, 0
    %p434 = por %p432, %p433
    %p435 = scmp.ne.s32.totalorder %s427, %s429
    %p436 = scmp.eq.s32.totalorder %s31, 1
    %p437 = por %p435, %p436
    %p438 = scmp.ne.s32.totalorder %s429, %s430
    %p439 = scmp.eq.s32.totalorder %s31, 0
    %p440 = por %p438, %p439
    %p441 = scmp.ne.s32.totalorder %s429, %s430
    %p442 = scmp.eq.s32.totalorder %s32, 1
    %p443 = por %p441, %p442
    %p445 = scmp.ne.s32.totalorder %s430, %s444
    %p446 = scmp.eq.s32.totalorder %s32, 0
    %p447 = por %p445, %p446
    %s449 = sadd.s32 %s448, 1
    %p452 = scmp.eq.s32.totalorder %s26, 1
    %p453 = scmp.ne.s32.totalorder %s448, %s450
    %p454 = scmp.eq.s32.totalorder %s26, 0
    %p455 = por %p453, %p454
    %p456 = scmp.ne.s32.totalorder %s448, %s450
    %p457 = scmp.eq.s32.totalorder %s31, 1
    %p458 = por %p456, %p457
    %p459 = scmp.ne.s32.totalorder %s450, %s451
    %p460 = scmp.eq.s32.totalorder %s31, 0
    %p461 = por %p459, %p460
    %p462 = scmp.ne.s32.totalorder %s450, %s451
    %p463 = scmp.eq.s32.totalorder %s32, 1
    %p464 = por %p462, %p463
    %p466 = scmp.ne.s32.totalorder %s451, %s465
    %p467 = scmp.eq.s32.totalorder %s32, 0
    %p468 = por %p466, %p467
    %s469 = ssub.s32 %s26, %s33
    %p470 = scmp.eq.s32.totalorder %s469, 0
    %s472 = sadd.s32 %s471, 1
    %s473 = scalar_select %p470, %s471, %s472
    %p476 = pneg %p470
    %p477 = scmp.eq.s32.totalorder %s26, 1
    %p478 = por %p476, %p477
    %p479 = scmp.ne.s32.totalorder %s471, %s474
    %p480 = scmp.eq.s32.totalorder %s26, 0
    %p481 = por %p479, %p480
    %p482 = scmp.ne.s32.totalorder %s471, %s474
    %p483 = scmp.eq.s32.totalorder %s31, 1
    %p484 = por %p482, %p483
    %p485 = scmp.ne.s32.totalorder %s474, %s475
    %p486 = scmp.eq.s32.totalorder %s31, 0
    %p487 = por %p485, %p486
    %p488 = scmp.ne.s32.totalorder %s474, %s475
    %p489 = scmp.eq.s32.totalorder %s32, 1
    %p490 = por %p488, %p489
    %p492 = scmp.ne.s32.totalorder %s475, %s491
    %p493 = scmp.eq.s32.totalorder %s32, 0
    %p494 = por %p492, %p493
    %p495 = scmp.le.s32.totalorder 1, %s26
    %p496 = scmp.lt.s32.totalorder %s26, 3
    %p497 = pnand %p495, %p496
    %p498 = pneg %p497
    // Predicated region
    $region9: #{tpu_custom_call.1} parent=5 // pred_check
      _
    $region10: #{tpu_custom_call.1} parent=5 // pred_check_branch
      %500 = sbr.rel (%p497) target = $region12
    $region11: #{tpu_custom_call.1} parent=5 // pred_region
      %s501 = ssub.s32 %s26, 1
      // Predicated region
      $region13: #{tpu_custom_call.1} parent=11 // pred_check
        %p502 = pneg %p125
      $region14: #{tpu_custom_call.1} parent=11 // pred_check_branch
        %504 = sbr.rel (%p502) target = $region16
      $region15: #{tpu_custom_call.1} parent=11 // pred_region
        _
      $region16: #{tpu_custom_call.1} parent=11 // pred_fallthru
        _
      // Predicated region
      $region17: #{tpu_custom_call.1} parent=11 // pred_check
        %p505 = pneg %p146
      $region18: #{tpu_custom_call.1} parent=11 // pred_check_branch
        %507 = sbr.rel (%p505) target = $region20
      $region19: #{tpu_custom_call.1} parent=11 // pred_region
        _
      $region20: #{tpu_custom_call.1} parent=11 // pred_fallthru
        _
      // Predicated region
      $region21: #{tpu_custom_call.1} parent=11 // pred_check
        %p508 = pneg %p167
      $region22: #{tpu_custom_call.1} parent=11 // pred_check_branch
        %510 = sbr.rel (%p508) target = $region24
      $region23: #{tpu_custom_call.1} parent=11 // pred_region
        _
      $region24: #{tpu_custom_call.1} parent=11 // pred_fallthru
        _
      // Predicated region
      $region25: #{tpu_custom_call.1} parent=11 // pred_check
        %p511 = pneg %p188
      $region26: #{tpu_custom_call.1} parent=11 // pred_check_branch
        %513 = sbr.rel (%p511) target = $region28
      $region27: #{tpu_custom_call.1} parent=11 // pred_region
        _
      $region28: #{tpu_custom_call.1} parent=11 // pred_fallthru
        _
      // Predicated region
      $region29: #{tpu_custom_call.1} parent=11 // pred_check
        %p514 = pneg %p209
      $region30: #{tpu_custom_call.1} parent=11 // pred_check_branch
        %516 = sbr.rel (%p514) target = $region32
      $region31: #{tpu_custom_call.1} parent=11 // pred_region
        _
      $region32: #{tpu_custom_call.1} parent=11 // pred_fallthru
        _
      // Predicated region
      $region33: #{tpu_custom_call.1} parent=11 // pred_check
        %p517 = pneg %p230
      $region34: #{tpu_custom_call.1} parent=11 // pred_check_branch
        %519 = sbr.rel (%p517) target = $region36
      $region35: #{tpu_custom_call.1} parent=11 // pred_region
        _
      $region36: #{tpu_custom_call.1} parent=11 // pred_fallthru
        _
      // Predicated region
      $region37: #{tpu_custom_call.1} parent=11 // pred_check
        %p520 = pneg %p251
      $region38: #{tpu_custom_call.1} parent=11 // pred_check_branch
        %522 = sbr.rel (%p520) target = $region40
      $region39: #{tpu_custom_call.1} parent=11 // pred_region
        _
      $region40: #{tpu_custom_call.1} parent=11 // pred_fallthru
        _
      // Predicated region
      $region41: #{tpu_custom_call.1} parent=11 // pred_check
        %p523 = pneg %p272
      $region42: #{tpu_custom_call.1} parent=11 // pred_check_branch
        %525 = sbr.rel (%p523) target = $region44
      $region43: #{tpu_custom_call.1} parent=11 // pred_region
        _
      $region44: #{tpu_custom_call.1} parent=11 // pred_fallthru
        _
      // Predicated region
      $region45: #{tpu_custom_call.1} parent=11 // pred_check
        %p526 = pneg %p293
      $region46: #{tpu_custom_call.1} parent=11 // pred_check_branch
        %528 = sbr.rel (%p526) target = $region48
      $region47: #{tpu_custom_call.1} parent=11 // pred_region
        _
      $region48: #{tpu_custom_call.1} parent=11 // pred_fallthru
        _
      // Predicated region
      $region49: #{tpu_custom_call.1} parent=11 // pred_check
        %p529 = pneg %p314
      $region50: #{tpu_custom_call.1} parent=11 // pred_check_branch
        %531 = sbr.rel (%p529) target = $region52
      $region51: #{tpu_custom_call.1} parent=11 // pred_region
        _
      $region52: #{tpu_custom_call.1} parent=11 // pred_fallthru
        _
      // Predicated region
      $region53: #{tpu_custom_call.1} parent=11 // pred_check
        %p532 = pneg %p335
      $region54: #{tpu_custom_call.1} parent=11 // pred_check_branch
        %534 = sbr.rel (%p532) target = $region56
      $region55: #{tpu_custom_call.1} parent=11 // pred_region
        _
      $region56: #{tpu_custom_call.1} parent=11 // pred_fallthru
        _
      // Predicated region
      $region57: #{tpu_custom_call.1} parent=11 // pred_check
        %p535 = pneg %p356
      $region58: #{tpu_custom_call.1} parent=11 // pred_check_branch
        %537 = sbr.rel (%p535) target = $region60
      $region59: #{tpu_custom_call.1} parent=11 // pred_region
        _
      $region60: #{tpu_custom_call.1} parent=11 // pred_fallthru
        _
      // Predicated region
      $region61: #{tpu_custom_call.1} parent=11 // pred_check
        %p538 = pneg %p377
      $region62: #{tpu_custom_call.1} parent=11 // pred_check_branch
        %540 = sbr.rel (%p538) target = $region64
      $region63: #{tpu_custom_call.1} parent=11 // pred_region
        _
      $region64: #{tpu_custom_call.1} parent=11 // pred_fallthru
        _
      // Predicated region
      $region65: #{tpu_custom_call.1} parent=11 // pred_check
        %p541 = pneg %p398
      $region66: #{tpu_custom_call.1} parent=11 // pred_check_branch
        %543 = sbr.rel (%p541) target = $region68
      $region67: #{tpu_custom_call.1} parent=11 // pred_region
        _
      $region68: #{tpu_custom_call.1} parent=11 // pred_fallthru
        _
      // Predicated region
      $region69: #{tpu_custom_call.1} parent=11 // pred_check
        %p544 = pneg %p419
      $region70: #{tpu_custom_call.1} parent=11 // pred_check_branch
        %546 = sbr.rel (%p544) target = $region72
      $region71: #{tpu_custom_call.1} parent=11 // pred_region
        _
      $region72: #{tpu_custom_call.1} parent=11 // pred_fallthru
        _
      // Predicated region
      $region73: #{tpu_custom_call.1} parent=11 // pred_check
        %p547 = pneg %p440
      $region74: #{tpu_custom_call.1} parent=11 // pred_check_branch
        %549 = sbr.rel (%p547) target = $region76
      $region75: #{tpu_custom_call.1} parent=11 // pred_region
        _
      $region76: #{tpu_custom_call.1} parent=11 // pred_fallthru
        _
      // Predicated region
      $region77: #{tpu_custom_call.1} parent=11 // pred_check
        %p550 = pneg %p461
      $region78: #{tpu_custom_call.1} parent=11 // pred_check_branch
        %552 = sbr.rel (%p550) target = $region80
      $region79: #{tpu_custom_call.1} parent=11 // pred_region
        _
      $region80: #{tpu_custom_call.1} parent=11 // pred_fallthru
        _
    $region12: #{tpu_custom_call.1} parent=5 // pred_fallthru
      _
    %p553 = scmp.lt.s32.totalorder %s26, 2
    // Predicated region
    $region81: #{tpu_custom_call.1} parent=5 // pred_check
      %p554 = pneg %p553
    $region82: #{tpu_custom_call.1} parent=5 // pred_check_branch
      %556 = sbr.rel (%p554) target = $region84
    $region83: #{tpu_custom_call.1} parent=5 // pred_region
      // Predicated region
      $region85: #{tpu_custom_call.1} parent=83 // pred_check
        %p557 = pneg %p46
      $region86: #{tpu_custom_call.1} parent=83 // pred_check_branch
        %559 = sbr.rel (%p557) target = $region88
      $region87: #{tpu_custom_call.1} parent=83 // pred_region
        %s560 = smul.u32 32, %s26
        %p561 = scmp.lt.s32.totalorder %s560, 63
        %s562 = scalar_select %p561, %s560, 63
        %s563 = smul.addr %s562, 8
        %s564 = scalar_lea.vmem %s0, %s563
        %s565 = smul.u32 32, %s26
      $region88: #{tpu_custom_call.1} parent=83 // pred_fallthru
        _
      // Predicated region
      $region89: #{tpu_custom_call.1} parent=83 // pred_check
        %p566 = pneg %p72
      $region90: #{tpu_custom_call.1} parent=83 // pred_check_branch
        %568 = sbr.rel (%p566) target = $region92
      $region91: #{tpu_custom_call.1} parent=83 // pred_region
        %s569 = smul.u32 32, %s26
        %p570 = scmp.lt.s32.totalorder %s569, 63
        %s571 = scalar_select %p570, %s569, 63
        %s572 = smul.addr %s571, 8
        %s573 = scalar_lea.vmem %s1, %s572
        %s574 = smul.u32 32, %s26
      $region92: #{tpu_custom_call.1} parent=83 // pred_fallthru
        _
      // Predicated region
      $region93: #{tpu_custom_call.1} parent=83 // pred_check
        %p575 = pneg %p98
      $region94: #{tpu_custom_call.1} parent=83 // pred_check_branch
        %577 = sbr.rel (%p575) target = $region96
      $region95: #{tpu_custom_call.1} parent=83 // pred_region
        %s578 = smul.u32 32, %s26
        %p579 = scmp.lt.s32.totalorder %s578, 63
        %s580 = scalar_select %p579, %s578, 63
        %s581 = smul.addr %s580, 8
        %s582 = scalar_lea.vmem %s2, %s581
        %s583 = smul.u32 32, %s26
      $region96: #{tpu_custom_call.1} parent=83 // pred_fallthru
        _
    $region84: #{tpu_custom_call.1} parent=5 // pred_fallthru
      _
    %p584 = scmp.le.s32.totalorder 1, %s26
    %p585 = scmp.lt.s32.totalorder %s26, 3
    %p586 = pnand %p584, %p585
    %p587 = pneg %p586
    // Predicated region
    $region97: #{tpu_custom_call.1} parent=5 // pred_check
      _
    $region98: #{tpu_custom_call.1} parent=5 // pred_check_branch
      %589 = sbr.rel (%p586) target = $region100
    $region99: #{tpu_custom_call.1} parent=5 // pred_region
      %s590 = ssub.s32 %s26, 1
      %s591 = smul.u32 32, %s31
      %p592 = scmp.lt.s32.totalorder %s591, 63
      %s593 = scalar_select %p592, %s591, 63
      %s594 = smul.addr %s593, 8
      %s595 = scalar_lea.vmem %s0, %s594
      %p596 = pneg %p52
      %p597 = pneg %p49
      %s598 = smul.u32 32, %s31
      %p599 = scmp.lt.s32.totalorder %s598, 63
      %s600 = scalar_select %p599, %s598, 63
      %s601 = smul.addr %s600, 8
      %s602 = scalar_lea.vmem %s1, %s601
      %p603 = pneg %p78
      %p604 = pneg %p75
      %s605 = smul.u32 32, %s31
      %p606 = scmp.lt.s32.totalorder %s605, 63
      %s607 = scalar_select %p606, %s605, 63
      %s608 = smul.addr %s607, 8
      %s609 = scalar_lea.vmem %s2, %s608
      %p610 = pneg %p104
      %p611 = pneg %p101
      %p612 = pneg %p125
      %p613 = pneg %p122
      %p614 = pneg %p146
      %p615 = pneg %p143
      %p616 = pneg %p167
      %p617 = pneg %p164
      %p618 = pneg %p188
      %p619 = pneg %p185
      %p620 = pneg %p209
      %p621 = pneg %p206
      %p622 = pneg %p230
      %p623 = pneg %p227
      %p624 = pneg %p251
      %p625 = pneg %p248
      %p626 = pneg %p272
      %p627 = pneg %p269
      %p628 = pneg %p293
      %p629 = pneg %p290
      %p630 = pneg %p314
      %p631 = pneg %p311
      %p632 = pneg %p335
      %p633 = pneg %p332
      %p634 = pneg %p356
      %p635 = pneg %p353
      %p636 = pneg %p377
      %p637 = pneg %p374
      %p638 = pneg %p398
      %p639 = pneg %p395
      %p640 = pneg %p419
      %p641 = pneg %p416
      %p642 = pneg %p440
      %p643 = pneg %p437
      %p644 = pneg %p461
      %p645 = pneg %p458
      %p646 = pneg %p487
      %p647 = pneg %p484
      %s648 = smul.u32 32, %s31
      %p649 = scmp.lt.s32.totalorder %s648, 63
      %s650 = scalar_select %p649, %s648, 63
      %s651 = smul.addr %s650, 8
      %s652 = scalar_lea.vmem %s20, %s651
      %s653 = smul.u32 32, %s31
      %p654 = scmp.lt.s32.totalorder %s653, 63
      %s655 = scalar_select %p654, %s653, 63
      %s656 = smul.addr %s655, 8
      %s657 = scalar_lea.vmem %s0, %s656
      %s658 = smul.u32 32, %s31
      %s659 = smul.u32 32, %s31
      %p660 = scmp.lt.s32.totalorder %s659, 63
      %s661 = scalar_select %p660, %s659, 63
      %s662 = smul.addr %s661, 8
      %s663 = scalar_lea.vmem %s1, %s662
      %s664 = smul.u32 32, %s31
      %s665 = smul.u32 32, %s31
      %p666 = scmp.lt.s32.totalorder %s665, 63
      %s667 = scalar_select %p666, %s665, 63
      %s668 = smul.addr %s667, 8
      %s669 = scalar_lea.vmem %s2, %s668
      %s670 = smul.u32 32, %s31
      %s671 = smul.u32 32, %s31
      %p672 = scmp.lt.s32.totalorder %s671, 63
      %s673 = scalar_select %p672, %s671, 63
      %s674 = smul.addr %s673, 8
      %s675 = scalar_lea.vmem %s20, %s674
      %s676 = smul.u32 32, %s31
      %v678 = vld [vmem:[%s657] sm:$0xff]
      %v679 = vld [vmem:[%s657 + $0x8] sm:$0xff]
      %v680 = vld [vmem:[%s657 + $0x10] sm:$0xff]
      %v681 = vld [vmem:[%s657 + $0x18] sm:$0xff]
      %v682 = vld [vmem:[%s657 + $0x20] sm:$0xff]
      %v683 = vld [vmem:[%s657 + $0x28] sm:$0xff]
      %v684 = vld [vmem:[%s657 + $0x30] sm:$0xff]
      %v685 = vld [vmem:[%s657 + $0x38] sm:$0xff]
      %v686 = vld [vmem:[%s657 + $0x40] sm:$0xff]
      %v687 = vld [vmem:[%s657 + $0x48] sm:$0xff]
      %v688 = vld [vmem:[%s657 + $0x50] sm:$0xff]
      %v689 = vld [vmem:[%s657 + $0x58] sm:$0xff]
      %v690 = vld [vmem:[%s657 + $0x60] sm:$0xff]
      %v691 = vld [vmem:[%s657 + $0x68] sm:$0xff]
      %v692 = vld [vmem:[%s657 + $0x70] sm:$0xff]
      %v693 = vld [vmem:[%s657 + $0x78] sm:$0xff]
      %v694 = vld [vmem:[%s657 + $0x80] sm:$0xff]
      %v695 = vld [vmem:[%s657 + $0x88] sm:$0xff]
      %v696 = vld [vmem:[%s657 + $0x90] sm:$0xff]
      %v697 = vld [vmem:[%s657 + $0x98] sm:$0xff]
      %v698 = vld [vmem:[%s657 + $0xa0] sm:$0xff]
      %v699 = vld [vmem:[%s657 + $0xa8] sm:$0xff]
      %v700 = vld [vmem:[%s657 + $0xb0] sm:$0xff]
      %v701 = vld [vmem:[%s657 + $0xb8] sm:$0xff]
      %v702 = vld [vmem:[%s657 + $0xc0] sm:$0xff]
      %v703 = vld [vmem:[%s657 + $0xc8] sm:$0xff]
      %v704 = vld [vmem:[%s657 + $0xd0] sm:$0xff]
      %v705 = vld [vmem:[%s657 + $0xd8] sm:$0xff]
      %v706 = vld [vmem:[%s657 + $0xe0] sm:$0xff]
      %v707 = vld [vmem:[%s657 + $0xe8] sm:$0xff]
      %v708 = vld [vmem:[%s657 + $0xf0] sm:$0xff]
      %v709 = vld [vmem:[%s657 + $0xf8] sm:$0xff]
      %v710 = vpack.c.bf16 %v679, %v678
      %v711 = vpack.c.bf16 %v681, %v680
      %v712 = vpack.c.bf16 %v683, %v682
      %v713 = vpack.c.bf16 %v685, %v684
      %v714 = vpack.c.bf16 %v687, %v686
      %v715 = vpack.c.bf16 %v689, %v688
      %v716 = vpack.c.bf16 %v691, %v690
      %v717 = vpack.c.bf16 %v693, %v692
      %v718 = vpack.c.bf16 %v695, %v694
      %v719 = vpack.c.bf16 %v697, %v696
      %v720 = vpack.c.bf16 %v699, %v698
      %v721 = vpack.c.bf16 %v701, %v700
      %v722 = vpack.c.bf16 %v703, %v702
      %v723 = vpack.c.bf16 %v705, %v704
      %v724 = vpack.c.bf16 %v707, %v706
      %v725 = vpack.c.bf16 %v709, %v708
      %v726 = vld [vmem:[%s663] sm:$0xff]
      %v727 = vld [vmem:[%s663 + $0x8] sm:$0xff]
      %v728 = vld [vmem:[%s663 + $0x10] sm:$0xff]
      %v729 = vld [vmem:[%s663 + $0x18] sm:$0xff]
      %v730 = vld [vmem:[%s663 + $0x20] sm:$0xff]
      %v731 = vld [vmem:[%s663 + $0x28] sm:$0xff]
      %v732 = vld [vmem:[%s663 + $0x30] sm:$0xff]
      %v733 = vld [vmem:[%s663 + $0x38] sm:$0xff]
      %v734 = vld [vmem:[%s663 + $0x40] sm:$0xff]
      %v735 = vld [vmem:[%s663 + $0x48] sm:$0xff]
      %v736 = vld [vmem:[%s663 + $0x50] sm:$0xff]
      %v737 = vld [vmem:[%s663 + $0x58] sm:$0xff]
      %v738 = vld [vmem:[%s663 + $0x60] sm:$0xff]
      %v739 = vld [vmem:[%s663 + $0x68] sm:$0xff]
      %v740 = vld [vmem:[%s663 + $0x70] sm:$0xff]
      %v741 = vld [vmem:[%s663 + $0x78] sm:$0xff]
      %v742 = vld [vmem:[%s663 + $0x80] sm:$0xff]
      %v743 = vld [vmem:[%s663 + $0x88] sm:$0xff]
      %v744 = vld [vmem:[%s663 + $0x90] sm:$0xff]
      %v745 = vld [vmem:[%s663 + $0x98] sm:$0xff]
      %v746 = vld [vmem:[%s663 + $0xa0] sm:$0xff]
      %v747 = vld [vmem:[%s663 + $0xa8] sm:$0xff]
      %v748 = vld [vmem:[%s663 + $0xb0] sm:$0xff]
      %v749 = vld [vmem:[%s663 + $0xb8] sm:$0xff]
      %v750 = vld [vmem:[%s663 + $0xc0] sm:$0xff]
      %v751 = vld [vmem:[%s663 + $0xc8] sm:$0xff]
      %v752 = vld [vmem:[%s663 + $0xd0] sm:$0xff]
      %v753 = vld [vmem:[%s663 + $0xd8] sm:$0xff]
      %v754 = vld [vmem:[%s663 + $0xe0] sm:$0xff]
      %v755 = vld [vmem:[%s663 + $0xe8] sm:$0xff]
      %v756 = vld [vmem:[%s663 + $0xf0] sm:$0xff]
      %v757 = vld [vmem:[%s663 + $0xf8] sm:$0xff]
      %v758 = vpack.c.bf16 %v727, %v726
      %v759 = vpack.c.bf16 %v729, %v728
      %v760 = vpack.c.bf16 %v731, %v730
      %v761 = vpack.c.bf16 %v733, %v732
      %v762 = vpack.c.bf16 %v735, %v734
      %v763 = vpack.c.bf16 %v737, %v736
      %v764 = vpack.c.bf16 %v739, %v738
      %v765 = vpack.c.bf16 %v741, %v740
      %v766 = vpack.c.bf16 %v743, %v742
      %v767 = vpack.c.bf16 %v745, %v744
      %v768 = vpack.c.bf16 %v747, %v746
      %v769 = vpack.c.bf16 %v749, %v748
      %v770 = vpack.c.bf16 %v751, %v750
      %v771 = vpack.c.bf16 %v753, %v752
      %v772 = vpack.c.bf16 %v755, %v754
      %v773 = vpack.c.bf16 %v757, %v756
      %v774 = vld [vmem:[%s3] sm:$0xff]
      %v775 = vld [vmem:[%s3 + $0x8] sm:$0xff]
      %v776 = vld [vmem:[%s3 + $0x10] sm:$0xff]
      %v777 = vld [vmem:[%s4] sm:$0x3]
      %v779 = vlaneseq
      %v780 = vshrl.u32 %v779, 7
      %v781 = vsub.s32 0, %v780
      %v782 = vrot.slane %v777, %v781
      %v783 = vlaneseq
      %v784 = vshrl.u32 %v783, 7
      %v785 = vsub.s32 1, %v784
      %v786 = vrot.slane %v777, %v785
      %v792 = vunpack.c.l.b16 %v774
      %v793 = vunpack.c.h.b16 %v774
      %v794 = vunpack.c.l.b16 %v775
      %v795 = vunpack.c.h.b16 %v775
      %v796 = vunpack.c.l.b16 %v776
      %v797 = vunpack.c.h.b16 %v776
      %v798 = vpack.c.b16 %v794, %v792
      %v799 = vpack.c.b16 %v795, %v793
      %v800 = vpack.c.b16 %v796, %v796
      %v801 = vpack.c.b16 %v797, %v797
      %vm804 = vcmask 195584
      %v806 = vsel %vm804, %v710, 0
      %v809 = vsel %vm804, %v711, 0
      %v812 = vsel %vm804, %v712, 0
      %v815 = vsel %vm804, %v713, 0
      %v818 = vsel %vm804, %v714, 0
      %v821 = vsel %vm804, %v715, 0
      %v824 = vsel %vm804, %v716, 0
      %v827 = vsel %vm804, %v717, 0
      %v830 = vsel %vm804, %v718, 0
      %v833 = vsel %vm804, %v719, 0
      %v836 = vsel %vm804, %v720, 0
      %v839 = vsel %vm804, %v721, 0
      %v842 = vsel %vm804, %v722, 0
      %v845 = vsel %vm804, %v723, 0
      %v848 = vsel %vm804, %v724, 0
      %v851 = vsel %vm804, %v725, 0
      %vm853 = vcmask 1043456
      %v855 = vsel %vm853, %v800, 0
      %v858 = vsel %vm853, %v801, 0
      %860 = vmatprep.subr.bf16.mxu0 0
      %861 = vmatpush1.bf16.msra.mxu0 0
      %862 = vmatprep.subr.bf16.mxu0 0
      %863 = vmatpush1.bf16.msra.mxu0 0
      %864 = vmatprep.subr.bf16.mxu0 0
      %865 = vmatpush1.bf16.msra.mxu0 0
      %866 = vmatprep.subr.bf16.mxu0 0
      %867 = vmatpush1.bf16.msra.mxu0 0
      %868 = vmatprep.subr.bf16.mxu0 0
      %869 = vmatpush1.bf16.msra.mxu0 0
      %870 = vmatprep.subr.bf16.mxu0 0
      %871 = vmatpush1.bf16.msra.mxu0 0
      %872 = vmatprep.subr.bf16.mxu0 %v858
      %873 = vmatpush1.bf16.msra.mxu0 %v855
      %874 = vmatprep.subr.bf16.mxu0 %v799
      %875 = vmatpush1.bf16.msra.mxu0 %v798
      %876 = vmatprep.subr.bf16.mxu0 0
      %877 = vmatpush2.bf16.msra.mxu0 0
      %878 = vmatprep.subr.bf16.mxu0 0
      %879 = vmatpush2.bf16.msra.mxu0 0
      %880 = vmatprep.subr.bf16.mxu0 0
      %881 = vmatpush2.bf16.msra.mxu0 0
      %882 = vmatprep.subr.bf16.mxu0 0
      %883 = vmatpush2.bf16.msra.mxu0 0
      %884 = vmatprep.subr.bf16.mxu0 0
      %885 = vmatpush2.bf16.msra.mxu0 0
      %886 = vmatprep.subr.bf16.mxu0 0
      %887 = vmatpush2.bf16.msra.mxu0 0
      %888 = vmatprep.subr.bf16.mxu0 0
      %889 = vmatpush2.bf16.msra.mxu0 0
      %890 = vmatprep.subr.bf16.mxu0 0
      %891 = vmatpush2.bf16.msra.mxu0 0
      %892 = vmatprep.mubr.bf16.mxu0 0
      %893 = vmatmul.mubr.bf16.gmra.mxu0 %v806
      %v894 = vpop.f32.mrf.mxu0
      %v895 = vadd.f32 %v782, %v894
      %v896 = vpop.f32.mrf.mxu0
      %v897 = vadd.f32 %v786, %v896
      %v898 = vpop.f32.mrf.mxu0
      %v899 = vadd.f32 %v782, %v898
      %v900 = vpop.f32.mrf.mxu0
      %v901 = vadd.f32 %v786, %v900
      %902 = vmatprep.mubr.bf16.mxu0 0
      %903 = vmatmul.mubr.bf16.gmra.mxu0 %v809
      %v904 = vpop.f32.mrf.mxu0
      %v905 = vadd.f32 %v782, %v904
      %v906 = vpop.f32.mrf.mxu0
      %v907 = vadd.f32 %v786, %v906
      %v908 = vpop.f32.mrf.mxu0
      %v909 = vadd.f32 %v782, %v908
      %v910 = vpop.f32.mrf.mxu0
      %v911 = vadd.f32 %v786, %v910
      %912 = vmatprep.mubr.bf16.mxu0 0
      %913 = vmatmul.mubr.bf16.gmra.mxu0 %v812
      %v914 = vpop.f32.mrf.mxu0
      %v915 = vadd.f32 %v782, %v914
      %v916 = vpop.f32.mrf.mxu0
      %v917 = vadd.f32 %v786, %v916
      %v918 = vpop.f32.mrf.mxu0
      %v919 = vadd.f32 %v782, %v918
      %v920 = vpop.f32.mrf.mxu0
      %v921 = vadd.f32 %v786, %v920
      %922 = vmatprep.mubr.bf16.mxu0 0
      %923 = vmatmul.mubr.bf16.gmra.mxu0 %v815
      %v924 = vpop.f32.mrf.mxu0
      %v925 = vadd.f32 %v782, %v924
      %v926 = vpop.f32.mrf.mxu0
      %v927 = vadd.f32 %v786, %v926
      %v928 = vpop.f32.mrf.mxu0
      %v929 = vadd.f32 %v782, %v928
      %v930 = vpop.f32.mrf.mxu0
      %v931 = vadd.f32 %v786, %v930
      %932 = vmatprep.mubr.bf16.mxu0 0
      %933 = vmatmul.mubr.bf16.gmra.mxu0 %v818
      %v934 = vpop.f32.mrf.mxu0
      %v935 = vadd.f32 %v782, %v934
      %v936 = vpop.f32.mrf.mxu0
      %v937 = vadd.f32 %v786, %v936
      %v938 = vpop.f32.mrf.mxu0
      %v939 = vadd.f32 %v782, %v938
      %v940 = vpop.f32.mrf.mxu0
      %v941 = vadd.f32 %v786, %v940
      %942 = vmatprep.mubr.bf16.mxu0 0
      %943 = vmatmul.mubr.bf16.gmra.mxu0 %v821
      %v944 = vpop.f32.mrf.mxu0
      %v945 = vadd.f32 %v782, %v944
      %v946 = vpop.f32.mrf.mxu0
      %v947 = vadd.f32 %v786, %v946
      %v948 = vpop.f32.mrf.mxu0
      %v949 = vadd.f32 %v782, %v948
      %v950 = vpop.f32.mrf.mxu0
      %v951 = vadd.f32 %v786, %v950
      %952 = vmatprep.mubr.bf16.mxu0 0
      %953 = vmatmul.mubr.bf16.gmra.mxu0 %v824
      %v954 = vpop.f32.mrf.mxu0
      %v955 = vadd.f32 %v782, %v954
      %v956 = vpop.f32.mrf.mxu0
      %v957 = vadd.f32 %v786, %v956
      %v958 = vpop.f32.mrf.mxu0
      %v959 = vadd.f32 %v782, %v958
      %v960 = vpop.f32.mrf.mxu0
      %v961 = vadd.f32 %v786, %v960
      %962 = vmatprep.mubr.bf16.mxu0 0
      %963 = vmatmul.mubr.bf16.gmra.mxu0 %v827
      %v964 = vpop.f32.mrf.mxu0
      %v965 = vadd.f32 %v782, %v964
      %v966 = vpop.f32.mrf.mxu0
      %v967 = vadd.f32 %v786, %v966
      %v968 = vpop.f32.mrf.mxu0
      %v969 = vadd.f32 %v782, %v968
      %v970 = vpop.f32.mrf.mxu0
      %v971 = vadd.f32 %v786, %v970
      %972 = vmatprep.mubr.bf16.mxu0 0
      %973 = vmatmul.mubr.bf16.gmra.mxu0 %v830
      %v974 = vpop.f32.mrf.mxu0
      %v975 = vadd.f32 %v782, %v974
      %v976 = vpop.f32.mrf.mxu0
      %v977 = vadd.f32 %v786, %v976
      %v978 = vpop.f32.mrf.mxu0
      %v979 = vadd.f32 %v782, %v978
      %v980 = vpop.f32.mrf.mxu0
      %v981 = vadd.f32 %v786, %v980
      %982 = vmatprep.mubr.bf16.mxu0 0
      %983 = vmatmul.mubr.bf16.gmra.mxu0 %v833
      %v984 = vpop.f32.mrf.mxu0
      %v985 = vadd.f32 %v782, %v984
      %v986 = vpop.f32.mrf.mxu0
      %v987 = vadd.f32 %v786, %v986
      %v988 = vpop.f32.mrf.mxu0
      %v989 = vadd.f32 %v782, %v988
      %v990 = vpop.f32.mrf.mxu0
      %v991 = vadd.f32 %v786, %v990
      %992 = vmatprep.mubr.bf16.mxu0 0
      %993 = vmatmul.mubr.bf16.gmra.mxu0 %v836
      %v994 = vpop.f32.mrf.mxu0
      %v995 = vadd.f32 %v782, %v994
      %v996 = vpop.f32.mrf.mxu0
      %v997 = vadd.f32 %v786, %v996
      %v998 = vpop.f32.mrf.mxu0
      %v999 = vadd.f32 %v782, %v998
      %v1000 = vpop.f32.mrf.mxu0
      %v1001 = vadd.f32 %v786, %v1000
      %1002 = vmatprep.mubr.bf16.mxu0 0
      %1003 = vmatmul.mubr.bf16.gmra.mxu0 %v839
      %v1004 = vpop.f32.mrf.mxu0
      %v1005 = vadd.f32 %v782, %v1004
      %v1006 = vpop.f32.mrf.mxu0
      %v1007 = vadd.f32 %v786, %v1006
      %v1008 = vpop.f32.mrf.mxu0
      %v1009 = vadd.f32 %v782, %v1008
      %v1010 = vpop.f32.mrf.mxu0
      %v1011 = vadd.f32 %v786, %v1010
      %1012 = vmatprep.mubr.bf16.mxu0 0
      %1013 = vmatmul.mubr.bf16.gmra.mxu0 %v842
      %v1014 = vpop.f32.mrf.mxu0
      %v1015 = vadd.f32 %v782, %v1014
      %v1016 = vpop.f32.mrf.mxu0
      %v1017 = vadd.f32 %v786, %v1016
      %v1018 = vpop.f32.mrf.mxu0
      %v1019 = vadd.f32 %v782, %v1018
      %v1020 = vpop.f32.mrf.mxu0
      %v1021 = vadd.f32 %v786, %v1020
      %1022 = vmatprep.mubr.bf16.mxu0 0
      %1023 = vmatmul.mubr.bf16.gmra.mxu0 %v845
      %v1024 = vpop.f32.mrf.mxu0
      %v1025 = vadd.f32 %v782, %v1024
      %v1026 = vpop.f32.mrf.mxu0
      %v1027 = vadd.f32 %v786, %v1026
      %v1028 = vpop.f32.mrf.mxu0
      %v1029 = vadd.f32 %v782, %v1028
      %v1030 = vpop.f32.mrf.mxu0
      %v1031 = vadd.f32 %v786, %v1030
      %1032 = vmatprep.mubr.bf16.mxu0 0
      %1033 = vmatmul.mubr.bf16.gmra.mxu0 %v848
      %v1034 = vpop.f32.mrf.mxu0
      %v1035 = vadd.f32 %v782, %v1034
      %v1036 = vpop.f32.mrf.mxu0
      %v1037 = vadd.f32 %v786, %v1036
      %v1038 = vpop.f32.mrf.mxu0
      %v1039 = vadd.f32 %v782, %v1038
      %v1040 = vpop.f32.mrf.mxu0
      %v1041 = vadd.f32 %v786, %v1040
      %1042 = vmatprep.mubr.bf16.mxu0 0
      %1043 = vmatmul.mubr.bf16.gmra.mxu0 %v851
      %v1044 = vpop.f32.mrf.mxu0
      %v1045 = vadd.f32 %v782, %v1044
      %v1046 = vpop.f32.mrf.mxu0
      %v1047 = vadd.f32 %v786, %v1046
      %v1048 = vpop.f32.mrf.mxu0
      %v1049 = vadd.f32 %v782, %v1048
      %v1050 = vpop.f32.mrf.mxu0
      %v1051 = vadd.f32 %v786, %v1050
      %1052 = vdwg.mxu0
      %v1053 = vmin.f32 %v895, 20.0
      %v1054 = vmin.f32 %v897, 20.0
      %v1055 = vmin.f32 %v899, 20.0
      %v1056 = vmin.f32 %v901, 20.0
      %v1057 = vmin.f32 %v905, 20.0
      %v1058 = vmin.f32 %v907, 20.0
      %v1059 = vmin.f32 %v909, 20.0
      %v1060 = vmin.f32 %v911, 20.0
      %v1061 = vmin.f32 %v915, 20.0
      %v1062 = vmin.f32 %v917, 20.0
      %v1063 = vmin.f32 %v919, 20.0
      %v1064 = vmin.f32 %v921, 20.0
      %v1065 = vmin.f32 %v925, 20.0
      %v1066 = vmin.f32 %v927, 20.0
      %v1067 = vmin.f32 %v929, 20.0
      %v1068 = vmin.f32 %v931, 20.0
      %v1069 = vmin.f32 %v935, 20.0
      %v1070 = vmin.f32 %v937, 20.0
      %v1071 = vmin.f32 %v939, 20.0
      %v1072 = vmin.f32 %v941, 20.0
      %v1073 = vmin.f32 %v945, 20.0
      %v1074 = vmin.f32 %v947, 20.0
      %v1075 = vmin.f32 %v949, 20.0
      %v1076 = vmin.f32 %v951, 20.0
      %v1077 = vmin.f32 %v955, 20.0
      %v1078 = vmin.f32 %v957, 20.0
      %v1079 = vmin.f32 %v959, 20.0
      %v1080 = vmin.f32 %v961, 20.0
      %v1081 = vmin.f32 %v965, 20.0
      %v1082 = vmin.f32 %v967, 20.0
      %v1083 = vmin.f32 %v969, 20.0
      %v1084 = vmin.f32 %v971, 20.0
      %v1085 = vmin.f32 %v975, 20.0
      %v1086 = vmin.f32 %v977, 20.0
      %v1087 = vmin.f32 %v979, 20.0
      %v1088 = vmin.f32 %v981, 20.0
      %v1089 = vmin.f32 %v985, 20.0
      %v1090 = vmin.f32 %v987, 20.0
      %v1091 = vmin.f32 %v989, 20.0
      %v1092 = vmin.f32 %v991, 20.0
      %v1093 = vmin.f32 %v995, 20.0
      %v1094 = vmin.f32 %v997, 20.0
      %v1095 = vmin.f32 %v999, 20.0
      %v1096 = vmin.f32 %v1001, 20.0
      %v1097 = vmin.f32 %v1005, 20.0
      %v1098 = vmin.f32 %v1007, 20.0
      %v1099 = vmin.f32 %v1009, 20.0
      %v1100 = vmin.f32 %v1011, 20.0
      %v1101 = vmin.f32 %v1015, 20.0
      %v1102 = vmin.f32 %v1017, 20.0
      %v1103 = vmin.f32 %v1019, 20.0
      %v1104 = vmin.f32 %v1021, 20.0
      %v1105 = vmin.f32 %v1025, 20.0
      %v1106 = vmin.f32 %v1027, 20.0
      %v1107 = vmin.f32 %v1029, 20.0
      %v1108 = vmin.f32 %v1031, 20.0
      %v1109 = vmin.f32 %v1035, 20.0
      %v1110 = vmin.f32 %v1037, 20.0
      %v1111 = vmin.f32 %v1039, 20.0
      %v1112 = vmin.f32 %v1041, 20.0
      %v1113 = vmin.f32 %v1045, 20.0
      %v1114 = vmin.f32 %v1047, 20.0
      %v1115 = vmin.f32 %v1049, 20.0
      %v1116 = vmin.f32 %v1051, 20.0
      %v1117 = vmul.f32 %v1053, 1.442695
      %v1118 = vpow.pop %v1117
      %v1119 = vmul.f32 %v1054, 1.442695
      %v1120 = vpow.pop %v1119
      %v1121 = vmul.f32 %v1055, 1.442695
      %v1122 = vpow.pop %v1121
      %v1123 = vmul.f32 %v1056, 1.442695
      %v1124 = vpow.pop %v1123
      %v1125 = vmul.f32 %v1057, 1.442695
      %v1126 = vpow.pop %v1125
      %v1127 = vmul.f32 %v1058, 1.442695
      %v1128 = vpow.pop %v1127
      %v1129 = vmul.f32 %v1059, 1.442695
      %v1130 = vpow.pop %v1129
      %v1131 = vmul.f32 %v1060, 1.442695
      %v1132 = vpow.pop %v1131
      %v1133 = vmul.f32 %v1061, 1.442695
      %v1134 = vpow.pop %v1133
      %v1135 = vmul.f32 %v1062, 1.442695
      %v1136 = vpow.pop %v1135
      %v1137 = vmul.f32 %v1063, 1.442695
      %v1138 = vpow.pop %v1137
      %v1139 = vmul.f32 %v1064, 1.442695
      %v1140 = vpow.pop %v1139
      %v1141 = vmul.f32 %v1065, 1.442695
      %v1142 = vpow.pop %v1141
      %v1143 = vmul.f32 %v1066, 1.442695
      %v1144 = vpow.pop %v1143
      %v1145 = vmul.f32 %v1067, 1.442695
      %v1146 = vpow.pop %v1145
      %v1147 = vmul.f32 %v1068, 1.442695
      %v1148 = vpow.pop %v1147
      %v1149 = vmul.f32 %v1069, 1.442695
      %v1150 = vpow.pop %v1149
      %v1151 = vmul.f32 %v1070, 1.442695
      %v1152 = vpow.pop %v1151
      %v1153 = vmul.f32 %v1071, 1.442695
      %v1154 = vpow.pop %v1153
      %v1155 = vmul.f32 %v1072, 1.442695
      %v1156 = vpow.pop %v1155
      %v1157 = vmul.f32 %v1073, 1.442695
      %v1158 = vpow.pop %v1157
      %v1159 = vmul.f32 %v1074, 1.442695
      %v1160 = vpow.pop %v1159
      %v1161 = vmul.f32 %v1075, 1.442695
      %v1162 = vpow.pop %v1161
      %v1163 = vmul.f32 %v1076, 1.442695
      %v1164 = vpow.pop %v1163
      %v1165 = vmul.f32 %v1077, 1.442695
      %v1166 = vpow.pop %v1165
      %v1167 = vmul.f32 %v1078, 1.442695
      %v1168 = vpow.pop %v1167
      %v1169 = vmul.f32 %v1079, 1.442695
      %v1170 = vpow.pop %v1169
      %v1171 = vmul.f32 %v1080, 1.442695
      %v1172 = vpow.pop %v1171
      %v1173 = vmul.f32 %v1081, 1.442695
      %v1174 = vpow.pop %v1173
      %v1175 = vmul.f32 %v1082, 1.442695
      %v1176 = vpow.pop %v1175
      %v1177 = vmul.f32 %v1083, 1.442695
      %v1178 = vpow.pop %v1177
      %v1179 = vmul.f32 %v1084, 1.442695
      %v1180 = vpow.pop %v1179
      %v1181 = vmul.f32 %v1085, 1.442695
      %v1182 = vpow.pop %v1181
      %v1183 = vmul.f32 %v1086, 1.442695
      %v1184 = vpow.pop %v1183
      %v1185 = vmul.f32 %v1087, 1.442695
      %v1186 = vpow.pop %v1185
      %v1187 = vmul.f32 %v1088, 1.442695
      %v1188 = vpow.pop %v1187
      %v1189 = vmul.f32 %v1089, 1.442695
      %v1190 = vpow.pop %v1189
      %v1191 = vmul.f32 %v1090, 1.442695
      %v1192 = vpow.pop %v1191
      %v1193 = vmul.f32 %v1091, 1.442695
      %v1194 = vpow.pop %v1193
      %v1195 = vmul.f32 %v1092, 1.442695
      %v1196 = vpow.pop %v1195
      %v1197 = vmul.f32 %v1093, 1.442695
      %v1198 = vpow.pop %v1197
      %v1199 = vmul.f32 %v1094, 1.442695
      %v1200 = vpow.pop %v1199
      %v1201 = vmul.f32 %v1095, 1.442695
      %v1202 = vpow.pop %v1201
      %v1203 = vmul.f32 %v1096, 1.442695
      %v1204 = vpow.pop %v1203
      %v1205 = vmul.f32 %v1097, 1.442695
      %v1206 = vpow.pop %v1205
      %v1207 = vmul.f32 %v1098, 1.442695
      %v1208 = vpow.pop %v1207
      %v1209 = vmul.f32 %v1099, 1.442695
      %v1210 = vpow.pop %v1209
      %v1211 = vmul.f32 %v1100, 1.442695
      %v1212 = vpow.pop %v1211
      %v1213 = vmul.f32 %v1101, 1.442695
      %v1214 = vpow.pop %v1213
      %v1215 = vmul.f32 %v1102, 1.442695
      %v1216 = vpow.pop %v1215
      %v1217 = vmul.f32 %v1103, 1.442695
      %v1218 = vpow.pop %v1217
      %v1219 = vmul.f32 %v1104, 1.442695
      %v1220 = vpow.pop %v1219
      %v1221 = vmul.f32 %v1105, 1.442695
      %v1222 = vpow.pop %v1221
      %v1223 = vmul.f32 %v1106, 1.442695
      %v1224 = vpow.pop %v1223
      %v1225 = vmul.f32 %v1107, 1.442695
      %v1226 = vpow.pop %v1225
      %v1227 = vmul.f32 %v1108, 1.442695
      %v1228 = vpow.pop %v1227
      %v1229 = vmul.f32 %v1109, 1.442695
      %v1230 = vpow.pop %v1229
      %v1231 = vmul.f32 %v1110, 1.442695
      %v1232 = vpow.pop %v1231
      %v1233 = vmul.f32 %v1111, 1.442695
      %v1234 = vpow.pop %v1233
      %v1235 = vmul.f32 %v1112, 1.442695
      %v1236 = vpow.pop %v1235
      %v1237 = vmul.f32 %v1113, 1.442695
      %v1238 = vpow.pop %v1237
      %v1239 = vmul.f32 %v1114, 1.442695
      %v1240 = vpow.pop %v1239
      %v1241 = vmul.f32 %v1115, 1.442695
      %v1242 = vpow.pop %v1241
      %v1243 = vmul.f32 %v1116, 1.442695
      %v1244 = vpow.pop %v1243
      %v1245 = vadd.f32 %v1118, 1.0
      %v1246 = vadd.f32 %v1120, 1.0
      %v1247 = vadd.f32 %v1122, 1.0
      %v1248 = vadd.f32 %v1124, 1.0
      %v1249 = vadd.f32 %v1126, 1.0
      %v1250 = vadd.f32 %v1128, 1.0
      %v1251 = vadd.f32 %v1130, 1.0
      %v1252 = vadd.f32 %v1132, 1.0
      %v1253 = vadd.f32 %v1134, 1.0
      %v1254 = vadd.f32 %v1136, 1.0
      %v1255 = vadd.f32 %v1138, 1.0
      %v1256 = vadd.f32 %v1140, 1.0
      %v1257 = vadd.f32 %v1142, 1.0
      %v1258 = vadd.f32 %v1144, 1.0
      %v1259 = vadd.f32 %v1146, 1.0
      %v1260 = vadd.f32 %v1148, 1.0
      %v1261 = vadd.f32 %v1150, 1.0
      %v1262 = vadd.f32 %v1152, 1.0
      %v1263 = vadd.f32 %v1154, 1.0
      %v1264 = vadd.f32 %v1156, 1.0
      %v1265 = vadd.f32 %v1158, 1.0
      %v1266 = vadd.f32 %v1160, 1.0
      %v1267 = vadd.f32 %v1162, 1.0
      %v1268 = vadd.f32 %v1164, 1.0
      %v1269 = vadd.f32 %v1166, 1.0
      %v1270 = vadd.f32 %v1168, 1.0
      %v1271 = vadd.f32 %v1170, 1.0
      %v1272 = vadd.f32 %v1172, 1.0
      %v1273 = vadd.f32 %v1174, 1.0
      %v1274 = vadd.f32 %v1176, 1.0
      %v1275 = vadd.f32 %v1178, 1.0
      %v1276 = vadd.f32 %v1180, 1.0
      %v1277 = vadd.f32 %v1182, 1.0
      %v1278 = vadd.f32 %v1184, 1.0
      %v1279 = vadd.f32 %v1186, 1.0
      %v1280 = vadd.f32 %v1188, 1.0
      %v1281 = vadd.f32 %v1190, 1.0
      %v1282 = vadd.f32 %v1192, 1.0
      %v1283 = vadd.f32 %v1194, 1.0
      %v1284 = vadd.f32 %v1196, 1.0
      %v1285 = vadd.f32 %v1198, 1.0
      %v1286 = vadd.f32 %v1200, 1.0
      %v1287 = vadd.f32 %v1202, 1.0
      %v1288 = vadd.f32 %v1204, 1.0
      %v1289 = vadd.f32 %v1206, 1.0
      %v1290 = vadd.f32 %v1208, 1.0
      %v1291 = vadd.f32 %v1210, 1.0
      %v1292 = vadd.f32 %v1212, 1.0
      %v1293 = vadd.f32 %v1214, 1.0
      %v1294 = vadd.f32 %v1216, 1.0
      %v1295 = vadd.f32 %v1218, 1.0
      %v1296 = vadd.f32 %v1220, 1.0
      %v1297 = vadd.f32 %v1222, 1.0
      %v1298 = vadd.f32 %v1224, 1.0
      %v1299 = vadd.f32 %v1226, 1.0
      %v1300 = vadd.f32 %v1228, 1.0
      %v1301 = vadd.f32 %v1230, 1.0
      %v1302 = vadd.f32 %v1232, 1.0
      %v1303 = vadd.f32 %v1234, 1.0
      %v1304 = vadd.f32 %v1236, 1.0
      %v1305 = vadd.f32 %v1238, 1.0
      %v1306 = vadd.f32 %v1240, 1.0
      %v1307 = vadd.f32 %v1242, 1.0
      %v1308 = vadd.f32 %v1244, 1.0
      %v1309 = vmul.f32 %v1245, %v1245
      %v1310 = vmul.f32 %v1246, %v1246
      %v1311 = vmul.f32 %v1247, %v1247
      %v1312 = vmul.f32 %v1248, %v1248
      %v1313 = vmul.f32 %v1249, %v1249
      %v1314 = vmul.f32 %v1250, %v1250
      %v1315 = vmul.f32 %v1251, %v1251
      %v1316 = vmul.f32 %v1252, %v1252
      %v1317 = vmul.f32 %v1253, %v1253
      %v1318 = vmul.f32 %v1254, %v1254
      %v1319 = vmul.f32 %v1255, %v1255
      %v1320 = vmul.f32 %v1256, %v1256
      %v1321 = vmul.f32 %v1257, %v1257
      %v1322 = vmul.f32 %v1258, %v1258
      %v1323 = vmul.f32 %v1259, %v1259
      %v1324 = vmul.f32 %v1260, %v1260
      %v1325 = vmul.f32 %v1261, %v1261
      %v1326 = vmul.f32 %v1262, %v1262
      %v1327 = vmul.f32 %v1263, %v1263
      %v1328 = vmul.f32 %v1264, %v1264
      %v1329 = vmul.f32 %v1265, %v1265
      %v1330 = vmul.f32 %v1266, %v1266
      %v1331 = vmul.f32 %v1267, %v1267
      %v1332 = vmul.f32 %v1268, %v1268
      %v1333 = vmul.f32 %v1269, %v1269
      %v1334 = vmul.f32 %v1270, %v1270
      %v1335 = vmul.f32 %v1271, %v1271
      %v1336 = vmul.f32 %v1272, %v1272
      %v1337 = vmul.f32 %v1273, %v1273
      %v1338 = vmul.f32 %v1274, %v1274
      %v1339 = vmul.f32 %v1275, %v1275
      %v1340 = vmul.f32 %v1276, %v1276
      %v1341 = vmul.f32 %v1277, %v1277
      %v1342 = vmul.f32 %v1278, %v1278
      %v1343 = vmul.f32 %v1279, %v1279
      %v1344 = vmul.f32 %v1280, %v1280
      %v1345 = vmul.f32 %v1281, %v1281
      %v1346 = vmul.f32 %v1282, %v1282
      %v1347 = vmul.f32 %v1283, %v1283
      %v1348 = vmul.f32 %v1284, %v1284
      %v1349 = vmul.f32 %v1285, %v1285
      %v1350 = vmul.f32 %v1286, %v1286
      %v1351 = vmul.f32 %v1287, %v1287
      %v1352 = vmul.f32 %v1288, %v1288
      %v1353 = vmul.f32 %v1289, %v1289
      %v1354 = vmul.f32 %v1290, %v1290
      %v1355 = vmul.f32 %v1291, %v1291
      %v1356 = vmul.f32 %v1292, %v1292
      %v1357 = vmul.f32 %v1293, %v1293
      %v1358 = vmul.f32 %v1294, %v1294
      %v1359 = vmul.f32 %v1295, %v1295
      %v1360 = vmul.f32 %v1296, %v1296
      %v1361 = vmul.f32 %v1297, %v1297
      %v1362 = vmul.f32 %v1298, %v1298
      %v1363 = vmul.f32 %v1299, %v1299
      %v1364 = vmul.f32 %v1300, %v1300
      %v1365 = vmul.f32 %v1301, %v1301
      %v1366 = vmul.f32 %v1302, %v1302
      %v1367 = vmul.f32 %v1303, %v1303
      %v1368 = vmul.f32 %v1304, %v1304
      %v1369 = vmul.f32 %v1305, %v1305
      %v1370 = vmul.f32 %v1306, %v1306
      %v1371 = vmul.f32 %v1307, %v1307
      %v1372 = vmul.f32 %v1308, %v1308
      %v1373 = vsub.f32 %v1309, 1.0
      %v1374 = vsub.f32 %v1310, 1.0
      %v1375 = vsub.f32 %v1311, 1.0
      %v1376 = vsub.f32 %v1312, 1.0
      %v1377 = vsub.f32 %v1313, 1.0
      %v1378 = vsub.f32 %v1314, 1.0
      %v1379 = vsub.f32 %v1315, 1.0
      %v1380 = vsub.f32 %v1316, 1.0
      %v1381 = vsub.f32 %v1317, 1.0
      %v1382 = vsub.f32 %v1318, 1.0
      %v1383 = vsub.f32 %v1319, 1.0
      %v1384 = vsub.f32 %v1320, 1.0
      %v1385 = vsub.f32 %v1321, 1.0
      %v1386 = vsub.f32 %v1322, 1.0
      %v1387 = vsub.f32 %v1323, 1.0
      %v1388 = vsub.f32 %v1324, 1.0
      %v1389 = vsub.f32 %v1325, 1.0
      %v1390 = vsub.f32 %v1326, 1.0
      %v1391 = vsub.f32 %v1327, 1.0
      %v1392 = vsub.f32 %v1328, 1.0
      %v1393 = vsub.f32 %v1329, 1.0
      %v1394 = vsub.f32 %v1330, 1.0
      %v1395 = vsub.f32 %v1331, 1.0
      %v1396 = vsub.f32 %v1332, 1.0
      %v1397 = vsub.f32 %v1333, 1.0
      %v1398 = vsub.f32 %v1334, 1.0
      %v1399 = vsub.f32 %v1335, 1.0
      %v1400 = vsub.f32 %v1336, 1.0
      %v1401 = vsub.f32 %v1337, 1.0
      %v1402 = vsub.f32 %v1338, 1.0
      %v1403 = vsub.f32 %v1339, 1.0
      %v1404 = vsub.f32 %v1340, 1.0
      %v1405 = vsub.f32 %v1341, 1.0
      %v1406 = vsub.f32 %v1342, 1.0
      %v1407 = vsub.f32 %v1343, 1.0
      %v1408 = vsub.f32 %v1344, 1.0
      %v1409 = vsub.f32 %v1345, 1.0
      %v1410 = vsub.f32 %v1346, 1.0
      %v1411 = vsub.f32 %v1347, 1.0
      %v1412 = vsub.f32 %v1348, 1.0
      %v1413 = vsub.f32 %v1349, 1.0
      %v1414 = vsub.f32 %v1350, 1.0
      %v1415 = vsub.f32 %v1351, 1.0
      %v1416 = vsub.f32 %v1352, 1.0
      %v1417 = vsub.f32 %v1353, 1.0
      %v1418 = vsub.f32 %v1354, 1.0
      %v1419 = vsub.f32 %v1355, 1.0
      %v1420 = vsub.f32 %v1356, 1.0
      %v1421 = vsub.f32 %v1357, 1.0
      %v1422 = vsub.f32 %v1358, 1.0
      %v1423 = vsub.f32 %v1359, 1.0
      %v1424 = vsub.f32 %v1360, 1.0
      %v1425 = vsub.f32 %v1361, 1.0
      %v1426 = vsub.f32 %v1362, 1.0
      %v1427 = vsub.f32 %v1363, 1.0
      %v1428 = vsub.f32 %v1364, 1.0
      %v1429 = vsub.f32 %v1365, 1.0
      %v1430 = vsub.f32 %v1366, 1.0
      %v1431 = vsub.f32 %v1367, 1.0
      %v1432 = vsub.f32 %v1368, 1.0
      %v1433 = vsub.f32 %v1369, 1.0
      %v1434 = vsub.f32 %v1370, 1.0
      %v1435 = vsub.f32 %v1371, 1.0
      %v1436 = vsub.f32 %v1372, 1.0
      %v1437 = vadd.f32 %v1309, 1.0
      %v1438 = vadd.f32 %v1310, 1.0
      %v1439 = vadd.f32 %v1311, 1.0
      %v1440 = vadd.f32 %v1312, 1.0
      %v1441 = vadd.f32 %v1313, 1.0
      %v1442 = vadd.f32 %v1314, 1.0
      %v1443 = vadd.f32 %v1315, 1.0
      %v1444 = vadd.f32 %v1316, 1.0
      %v1445 = vadd.f32 %v1317, 1.0
      %v1446 = vadd.f32 %v1318, 1.0
      %v1447 = vadd.f32 %v1319, 1.0
      %v1448 = vadd.f32 %v1320, 1.0
      %v1449 = vadd.f32 %v1321, 1.0
      %v1450 = vadd.f32 %v1322, 1.0
      %v1451 = vadd.f32 %v1323, 1.0
      %v1452 = vadd.f32 %v1324, 1.0
      %v1453 = vadd.f32 %v1325, 1.0
      %v1454 = vadd.f32 %v1326, 1.0
      %v1455 = vadd.f32 %v1327, 1.0
      %v1456 = vadd.f32 %v1328, 1.0
      %v1457 = vadd.f32 %v1329, 1.0
      %v1458 = vadd.f32 %v1330, 1.0
      %v1459 = vadd.f32 %v1331, 1.0
      %v1460 = vadd.f32 %v1332, 1.0
      %v1461 = vadd.f32 %v1333, 1.0
      %v1462 = vadd.f32 %v1334, 1.0
      %v1463 = vadd.f32 %v1335, 1.0
      %v1464 = vadd.f32 %v1336, 1.0
      %v1465 = vadd.f32 %v1337, 1.0
      %v1466 = vadd.f32 %v1338, 1.0
      %v1467 = vadd.f32 %v1339, 1.0
      %v1468 = vadd.f32 %v1340, 1.0
      %v1469 = vadd.f32 %v1341, 1.0
      %v1470 = vadd.f32 %v1342, 1.0
      %v1471 = vadd.f32 %v1343, 1.0
      %v1472 = vadd.f32 %v1344, 1.0
      %v1473 = vadd.f32 %v1345, 1.0
      %v1474 = vadd.f32 %v1346, 1.0
      %v1475 = vadd.f32 %v1347, 1.0
      %v1476 = vadd.f32 %v1348, 1.0
      %v1477 = vadd.f32 %v1349, 1.0
      %v1478 = vadd.f32 %v1350, 1.0
      %v1479 = vadd.f32 %v1351, 1.0
      %v1480 = vadd.f32 %v1352, 1.0
      %v1481 = vadd.f32 %v1353, 1.0
      %v1482 = vadd.f32 %v1354, 1.0
      %v1483 = vadd.f32 %v1355, 1.0
      %v1484 = vadd.f32 %v1356, 1.0
      %v1485 = vadd.f32 %v1357, 1.0
      %v1486 = vadd.f32 %v1358, 1.0
      %v1487 = vadd.f32 %v1359, 1.0
      %v1488 = vadd.f32 %v1360, 1.0
      %v1489 = vadd.f32 %v1361, 1.0
      %v1490 = vadd.f32 %v1362, 1.0
      %v1491 = vadd.f32 %v1363, 1.0
      %v1492 = vadd.f32 %v1364, 1.0
      %v1493 = vadd.f32 %v1365, 1.0
      %v1494 = vadd.f32 %v1366, 1.0
      %v1495 = vadd.f32 %v1367, 1.0
      %v1496 = vadd.f32 %v1368, 1.0
      %v1497 = vadd.f32 %v1369, 1.0
      %v1498 = vadd.f32 %v1370, 1.0
      %v1499 = vadd.f32 %v1371, 1.0
      %v1500 = vadd.f32 %v1372, 1.0
      %v1501 = vrcp.pop %v1437
      %v1502 = vmul.f32 %v1373, %v1501
      %v1503 = vrcp.pop %v1438
      %v1504 = vmul.f32 %v1374, %v1503
      %v1505 = vrcp.pop %v1439
      %v1506 = vmul.f32 %v1375, %v1505
      %v1507 = vrcp.pop %v1440
      %v1508 = vmul.f32 %v1376, %v1507
      %v1509 = vrcp.pop %v1441
      %v1510 = vmul.f32 %v1377, %v1509
      %v1511 = vrcp.pop %v1442
      %v1512 = vmul.f32 %v1378, %v1511
      %v1513 = vrcp.pop %v1443
      %v1514 = vmul.f32 %v1379, %v1513
      %v1515 = vrcp.pop %v1444
      %v1516 = vmul.f32 %v1380, %v1515
      %v1517 = vrcp.pop %v1445
      %v1518 = vmul.f32 %v1381, %v1517
      %v1519 = vrcp.pop %v1446
      %v1520 = vmul.f32 %v1382, %v1519
      %v1521 = vrcp.pop %v1447
      %v1522 = vmul.f32 %v1383, %v1521
      %v1523 = vrcp.pop %v1448
      %v1524 = vmul.f32 %v1384, %v1523
      %v1525 = vrcp.pop %v1449
      %v1526 = vmul.f32 %v1385, %v1525
      %v1527 = vrcp.pop %v1450
      %v1528 = vmul.f32 %v1386, %v1527
      %v1529 = vrcp.pop %v1451
      %v1530 = vmul.f32 %v1387, %v1529
      %v1531 = vrcp.pop %v1452
      %v1532 = vmul.f32 %v1388, %v1531
      %v1533 = vrcp.pop %v1453
      %v1534 = vmul.f32 %v1389, %v1533
      %v1535 = vrcp.pop %v1454
      %v1536 = vmul.f32 %v1390, %v1535
      %v1537 = vrcp.pop %v1455
      %v1538 = vmul.f32 %v1391, %v1537
      %v1539 = vrcp.pop %v1456
      %v1540 = vmul.f32 %v1392, %v1539
      %v1541 = vrcp.pop %v1457
      %v1542 = vmul.f32 %v1393, %v1541
      %v1543 = vrcp.pop %v1458
      %v1544 = vmul.f32 %v1394, %v1543
      %v1545 = vrcp.pop %v1459
      %v1546 = vmul.f32 %v1395, %v1545
      %v1547 = vrcp.pop %v1460
      %v1548 = vmul.f32 %v1396, %v1547
      %v1549 = vrcp.pop %v1461
      %v1550 = vmul.f32 %v1397, %v1549
      %v1551 = vrcp.pop %v1462
      %v1552 = vmul.f32 %v1398, %v1551
      %v1553 = vrcp.pop %v1463
      %v1554 = vmul.f32 %v1399, %v1553
      %v1555 = vrcp.pop %v1464
      %v1556 = vmul.f32 %v1400, %v1555
      %v1557 = vrcp.pop %v1465
      %v1558 = vmul.f32 %v1401, %v1557
      %v1559 = vrcp.pop %v1466
      %v1560 = vmul.f32 %v1402, %v1559
      %v1561 = vrcp.pop %v1467
      %v1562 = vmul.f32 %v1403, %v1561
      %v1563 = vrcp.pop %v1468
      %v1564 = vmul.f32 %v1404, %v1563
      %v1565 = vrcp.pop %v1469
      %v1566 = vmul.f32 %v1405, %v1565
      %v1567 = vrcp.pop %v1470
      %v1568 = vmul.f32 %v1406, %v1567
      %v1569 = vrcp.pop %v1471
      %v1570 = vmul.f32 %v1407, %v1569
      %v1571 = vrcp.pop %v1472
      %v1572 = vmul.f32 %v1408, %v1571
      %v1573 = vrcp.pop %v1473
      %v1574 = vmul.f32 %v1409, %v1573
      %v1575 = vrcp.pop %v1474
      %v1576 = vmul.f32 %v1410, %v1575
      %v1577 = vrcp.pop %v1475
      %v1578 = vmul.f32 %v1411, %v1577
      %v1579 = vrcp.pop %v1476
      %v1580 = vmul.f32 %v1412, %v1579
      %v1581 = vrcp.pop %v1477
      %v1582 = vmul.f32 %v1413, %v1581
      %v1583 = vrcp.pop %v1478
      %v1584 = vmul.f32 %v1414, %v1583
      %v1585 = vrcp.pop %v1479
      %v1586 = vmul.f32 %v1415, %v1585
      %v1587 = vrcp.pop %v1480
      %v1588 = vmul.f32 %v1416, %v1587
      %v1589 = vrcp.pop %v1481
      %v1590 = vmul.f32 %v1417, %v1589
      %v1591 = vrcp.pop %v1482
      %v1592 = vmul.f32 %v1418, %v1591
      %v1593 = vrcp.pop %v1483
      %v1594 = vmul.f32 %v1419, %v1593
      %v1595 = vrcp.pop %v1484
      %v1596 = vmul.f32 %v1420, %v1595
      %v1597 = vrcp.pop %v1485
      %v1598 = vmul.f32 %v1421, %v1597
      %v1599 = vrcp.pop %v1486
      %v1600 = vmul.f32 %v1422, %v1599
      %v1601 = vrcp.pop %v1487
      %v1602 = vmul.f32 %v1423, %v1601
      %v1603 = vrcp.pop %v1488
      %v1604 = vmul.f32 %v1424, %v1603
      %v1605 = vrcp.pop %v1489
      %v1606 = vmul.f32 %v1425, %v1605
      %v1607 = vrcp.pop %v1490
      %v1608 = vmul.f32 %v1426, %v1607
      %v1609 = vrcp.pop %v1491
      %v1610 = vmul.f32 %v1427, %v1609
      %v1611 = vrcp.pop %v1492
      %v1612 = vmul.f32 %v1428, %v1611
      %v1613 = vrcp.pop %v1493
      %v1614 = vmul.f32 %v1429, %v1613
      %v1615 = vrcp.pop %v1494
      %v1616 = vmul.f32 %v1430, %v1615
      %v1617 = vrcp.pop %v1495
      %v1618 = vmul.f32 %v1431, %v1617
      %v1619 = vrcp.pop %v1496
      %v1620 = vmul.f32 %v1432, %v1619
      %v1621 = vrcp.pop %v1497
      %v1622 = vmul.f32 %v1433, %v1621
      %v1623 = vrcp.pop %v1498
      %v1624 = vmul.f32 %v1434, %v1623
      %v1625 = vrcp.pop %v1499
      %v1626 = vmul.f32 %v1435, %v1625
      %v1627 = vrcp.pop %v1500
      %v1628 = vmul.f32 %v1436, %v1627
      %vm1629 = vcmp.gt.f32.partialorder %v895, 20.0
      %vm1630 = vcmp.gt.f32.partialorder %v897, 20.0
      %vm1631 = vcmp.gt.f32.partialorder %v899, 20.0
      %vm1632 = vcmp.gt.f32.partialorder %v901, 20.0
      %vm1633 = vcmp.gt.f32.partialorder %v905, 20.0
      %vm1634 = vcmp.gt.f32.partialorder %v907, 20.0
      %vm1635 = vcmp.gt.f32.partialorder %v909, 20.0
      %vm1636 = vcmp.gt.f32.partialorder %v911, 20.0
      %vm1637 = vcmp.gt.f32.partialorder %v915, 20.0
      %vm1638 = vcmp.gt.f32.partialorder %v917, 20.0
      %vm1639 = vcmp.gt.f32.partialorder %v919, 20.0
      %vm1640 = vcmp.gt.f32.partialorder %v921, 20.0
      %vm1641 = vcmp.gt.f32.partialorder %v925, 20.0
      %vm1642 = vcmp.gt.f32.partialorder %v927, 20.0
      %vm1643 = vcmp.gt.f32.partialorder %v929, 20.0
      %vm1644 = vcmp.gt.f32.partialorder %v931, 20.0
      %vm1645 = vcmp.gt.f32.partialorder %v935, 20.0
      %vm1646 = vcmp.gt.f32.partialorder %v937, 20.0
      %vm1647 = vcmp.gt.f32.partialorder %v939, 20.0
      %vm1648 = vcmp.gt.f32.partialorder %v941, 20.0
      %vm1649 = vcmp.gt.f32.partialorder %v945, 20.0
      %vm1650 = vcmp.gt.f32.partialorder %v947, 20.0
      %vm1651 = vcmp.gt.f32.partialorder %v949, 20.0
      %vm1652 = vcmp.gt.f32.partialorder %v951, 20.0
      %vm1653 = vcmp.gt.f32.partialorder %v955, 20.0
      %vm1654 = vcmp.gt.f32.partialorder %v957, 20.0
      %vm1655 = vcmp.gt.f32.partialorder %v959, 20.0
      %vm1656 = vcmp.gt.f32.partialorder %v961, 20.0
      %vm1657 = vcmp.gt.f32.partialorder %v965, 20.0
      %vm1658 = vcmp.gt.f32.partialorder %v967, 20.0
      %vm1659 = vcmp.gt.f32.partialorder %v969, 20.0
      %vm1660 = vcmp.gt.f32.partialorder %v971, 20.0
      %vm1661 = vcmp.gt.f32.partialorder %v975, 20.0
      %vm1662 = vcmp.gt.f32.partialorder %v977, 20.0
      %vm1663 = vcmp.gt.f32.partialorder %v979, 20.0
      %vm1664 = vcmp.gt.f32.partialorder %v981, 20.0
      %vm1665 = vcmp.gt.f32.partialorder %v985, 20.0
      %vm1666 = vcmp.gt.f32.partialorder %v987, 20.0
      %vm1667 = vcmp.gt.f32.partialorder %v989, 20.0
      %vm1668 = vcmp.gt.f32.partialorder %v991, 20.0
      %vm1669 = vcmp.gt.f32.partialorder %v995, 20.0
      %vm1670 = vcmp.gt.f32.partialorder %v997, 20.0
      %vm1671 = vcmp.gt.f32.partialorder %v999, 20.0
      %vm1672 = vcmp.gt.f32.partialorder %v1001, 20.0
      %vm1673 = vcmp.gt.f32.partialorder %v1005, 20.0
      %vm1674 = vcmp.gt.f32.partialorder %v1007, 20.0
      %vm1675 = vcmp.gt.f32.partialorder %v1009, 20.0
      %vm1676 = vcmp.gt.f32.partialorder %v1011, 20.0
      %vm1677 = vcmp.gt.f32.partialorder %v1015, 20.0
      %vm1678 = vcmp.gt.f32.partialorder %v1017, 20.0
      %vm1679 = vcmp.gt.f32.partialorder %v1019, 20.0
      %vm1680 = vcmp.gt.f32.partialorder %v1021, 20.0
      %vm1681 = vcmp.gt.f32.partialorder %v1025, 20.0
      %vm1682 = vcmp.gt.f32.partialorder %v1027, 20.0
      %vm1683 = vcmp.gt.f32.partialorder %v1029, 20.0
      %vm1684 = vcmp.gt.f32.partialorder %v1031, 20.0
      %vm1685 = vcmp.gt.f32.partialorder %v1035, 20.0
      %vm1686 = vcmp.gt.f32.partialorder %v1037, 20.0
      %vm1687 = vcmp.gt.f32.partialorder %v1039, 20.0
      %vm1688 = vcmp.gt.f32.partialorder %v1041, 20.0
      %vm1689 = vcmp.gt.f32.partialorder %v1045, 20.0
      %vm1690 = vcmp.gt.f32.partialorder %v1047, 20.0
      %vm1691 = vcmp.gt.f32.partialorder %v1049, 20.0
      %vm1692 = vcmp.gt.f32.partialorder %v1051, 20.0
      %v1693 = vmul.f32 %v895, %v1502
      %v1694 = vmul.f32 %v897, %v1504
      %v1695 = vmul.f32 %v899, %v1506
      %v1696 = vmul.f32 %v901, %v1508
      %v1697 = vmul.f32 %v905, %v1510
      %v1698 = vmul.f32 %v907, %v1512
      %v1699 = vmul.f32 %v909, %v1514
      %v1700 = vmul.f32 %v911, %v1516
      %v1701 = vmul.f32 %v915, %v1518
      %v1702 = vmul.f32 %v917, %v1520
      %v1703 = vmul.f32 %v919, %v1522
      %v1704 = vmul.f32 %v921, %v1524
      %v1705 = vmul.f32 %v925, %v1526
      %v1706 = vmul.f32 %v927, %v1528
      %v1707 = vmul.f32 %v929, %v1530
      %v1708 = vmul.f32 %v931, %v1532
      %v1709 = vmul.f32 %v935, %v1534
      %v1710 = vmul.f32 %v937, %v1536
      %v1711 = vmul.f32 %v939, %v1538
      %v1712 = vmul.f32 %v941, %v1540
      %v1713 = vmul.f32 %v945, %v1542
      %v1714 = vmul.f32 %v947, %v1544
      %v1715 = vmul.f32 %v949, %v1546
      %v1716 = vmul.f32 %v951, %v1548
      %v1717 = vmul.f32 %v955, %v1550
      %v1718 = vmul.f32 %v957, %v1552
      %v1719 = vmul.f32 %v959, %v1554
      %v1720 = vmul.f32 %v961, %v1556
      %v1721 = vmul.f32 %v965, %v1558
      %v1722 = vmul.f32 %v967, %v1560
      %v1723 = vmul.f32 %v969, %v1562
      %v1724 = vmul.f32 %v971, %v1564
      %v1725 = vmul.f32 %v975, %v1566
      %v1726 = vmul.f32 %v977, %v1568
      %v1727 = vmul.f32 %v979, %v1570
      %v1728 = vmul.f32 %v981, %v1572
      %v1729 = vmul.f32 %v985, %v1574
      %v1730 = vmul.f32 %v987, %v1576
      %v1731 = vmul.f32 %v989, %v1578
      %v1732 = vmul.f32 %v991, %v1580
      %v1733 = vmul.f32 %v995, %v1582
      %v1734 = vmul.f32 %v997, %v1584
      %v1735 = vmul.f32 %v999, %v1586
      %v1736 = vmul.f32 %v1001, %v1588
      %v1737 = vmul.f32 %v1005, %v1590
      %v1738 = vmul.f32 %v1007, %v1592
      %v1739 = vmul.f32 %v1009, %v1594
      %v1740 = vmul.f32 %v1011, %v1596
      %v1741 = vmul.f32 %v1015, %v1598
      %v1742 = vmul.f32 %v1017, %v1600
      %v1743 = vmul.f32 %v1019, %v1602
      %v1744 = vmul.f32 %v1021, %v1604
      %v1745 = vmul.f32 %v1025, %v1606
      %v1746 = vmul.f32 %v1027, %v1608
      %v1747 = vmul.f32 %v1029, %v1610
      %v1748 = vmul.f32 %v1031, %v1612
      %v1749 = vmul.f32 %v1035, %v1614
      %v1750 = vmul.f32 %v1037, %v1616
      %v1751 = vmul.f32 %v1039, %v1618
      %v1752 = vmul.f32 %v1041, %v1620
      %v1753 = vmul.f32 %v1045, %v1622
      %v1754 = vmul.f32 %v1047, %v1624
      %v1755 = vmul.f32 %v1049, %v1626
      %v1756 = vmul.f32 %v1051, %v1628
      %v1757 = vsel %vm1629, %v895, %v1693
      %v1758 = vsel %vm1630, %v897, %v1694
      %v1759 = vsel %vm1631, %v899, %v1695
      %v1760 = vsel %vm1632, %v901, %v1696
      %v1761 = vsel %vm1633, %v905, %v1697
      %v1762 = vsel %vm1634, %v907, %v1698
      %v1763 = vsel %vm1635, %v909, %v1699
      %v1764 = vsel %vm1636, %v911, %v1700
      %v1765 = vsel %vm1637, %v915, %v1701
      %v1766 = vsel %vm1638, %v917, %v1702
      %v1767 = vsel %vm1639, %v919, %v1703
      %v1768 = vsel %vm1640, %v921, %v1704
      %v1769 = vsel %vm1641, %v925, %v1705
      %v1770 = vsel %vm1642, %v927, %v1706
      %v1771 = vsel %vm1643, %v929, %v1707
      %v1772 = vsel %vm1644, %v931, %v1708
      %v1773 = vsel %vm1645, %v935, %v1709
      %v1774 = vsel %vm1646, %v937, %v1710
      %v1775 = vsel %vm1647, %v939, %v1711
      %v1776 = vsel %vm1648, %v941, %v1712
      %v1777 = vsel %vm1649, %v945, %v1713
      %v1778 = vsel %vm1650, %v947, %v1714
      %v1779 = vsel %vm1651, %v949, %v1715
      %v1780 = vsel %vm1652, %v951, %v1716
      %v1781 = vsel %vm1653, %v955, %v1717
      %v1782 = vsel %vm1654, %v957, %v1718
      %v1783 = vsel %vm1655, %v959, %v1719
      %v1784 = vsel %vm1656, %v961, %v1720
      %v1785 = vsel %vm1657, %v965, %v1721
      %v1786 = vsel %vm1658, %v967, %v1722
      %v1787 = vsel %vm1659, %v969, %v1723
      %v1788 = vsel %vm1660, %v971, %v1724
      %v1789 = vsel %vm1661, %v975, %v1725
      %v1790 = vsel %vm1662, %v977, %v1726
      %v1791 = vsel %vm1663, %v979, %v1727
      %v1792 = vsel %vm1664, %v981, %v1728
      %v1793 = vsel %vm1665, %v985, %v1729
      %v1794 = vsel %vm1666, %v987, %v1730
      %v1795 = vsel %vm1667, %v989, %v1731
      %v1796 = vsel %vm1668, %v991, %v1732
      %v1797 = vsel %vm1669, %v995, %v1733
      %v1798 = vsel %vm1670, %v997, %v1734
      %v1799 = vsel %vm1671, %v999, %v1735
      %v1800 = vsel %vm1672, %v1001, %v1736
      %v1801 = vsel %vm1673, %v1005, %v1737
      %v1802 = vsel %vm1674, %v1007, %v1738
      %v1803 = vsel %vm1675, %v1009, %v1739
      %v1804 = vsel %vm1676, %v1011, %v1740
      %v1805 = vsel %vm1677, %v1015, %v1741
      %v1806 = vsel %vm1678, %v1017, %v1742
      %v1807 = vsel %vm1679, %v1019, %v1743
      %v1808 = vsel %vm1680, %v1021, %v1744
      %v1809 = vsel %vm1681, %v1025, %v1745
      %v1810 = vsel %vm1682, %v1027, %v1746
      %v1811 = vsel %vm1683, %v1029, %v1747
      %v1812 = vsel %vm1684, %v1031, %v1748
      %v1813 = vsel %vm1685, %v1035, %v1749
      %v1814 = vsel %vm1686, %v1037, %v1750
      %v1815 = vsel %vm1687, %v1039, %v1751
      %v1816 = vsel %vm1688, %v1041, %v1752
      %v1817 = vsel %vm1689, %v1045, %v1753
      %v1818 = vsel %vm1690, %v1047, %v1754
      %v1819 = vsel %vm1691, %v1049, %v1755
      %v1820 = vsel %vm1692, %v1051, %v1756
      %v1821 = vpack.c.bf16 %v1759, %v1757
      %v1822 = vpack.c.bf16 %v1760, %v1758
      %v1823 = vpack.c.bf16 %v1763, %v1761
      %v1824 = vpack.c.bf16 %v1764, %v1762
      %v1825 = vpack.c.bf16 %v1767, %v1765
      %v1826 = vpack.c.bf16 %v1768, %v1766
      %v1827 = vpack.c.bf16 %v1771, %v1769
      %v1828 = vpack.c.bf16 %v1772, %v1770
      %v1829 = vpack.c.bf16 %v1775, %v1773
      %v1830 = vpack.c.bf16 %v1776, %v1774
      %v1831 = vpack.c.bf16 %v1779, %v1777
      %v1832 = vpack.c.bf16 %v1780, %v1778
      %v1833 = vpack.c.bf16 %v1783, %v1781
      %v1834 = vpack.c.bf16 %v1784, %v1782
      %v1835 = vpack.c.bf16 %v1787, %v1785
      %v1836 = vpack.c.bf16 %v1788, %v1786
      %v1837 = vpack.c.bf16 %v1791, %v1789
      %v1838 = vpack.c.bf16 %v1792, %v1790
      %v1839 = vpack.c.bf16 %v1795, %v1793
      %v1840 = vpack.c.bf16 %v1796, %v1794
      %v1841 = vpack.c.bf16 %v1799, %v1797
      %v1842 = vpack.c.bf16 %v1800, %v1798
      %v1843 = vpack.c.bf16 %v1803, %v1801
      %v1844 = vpack.c.bf16 %v1804, %v1802
      %v1845 = vpack.c.bf16 %v1807, %v1805
      %v1846 = vpack.c.bf16 %v1808, %v1806
      %v1847 = vpack.c.bf16 %v1811, %v1809
      %v1848 = vpack.c.bf16 %v1812, %v1810
      %v1849 = vpack.c.bf16 %v1815, %v1813
      %v1850 = vpack.c.bf16 %v1816, %v1814
      %v1851 = vpack.c.bf16 %v1819, %v1817
      %v1852 = vpack.c.bf16 %v1820, %v1818
      %v1853 = vld [vmem:[%s5] sm:$0xff]
      %v1854 = vld [vmem:[%s5 + $0x8] sm:$0xff]
      %v1855 = vld [vmem:[%s5 + $0x10] sm:$0xff]
      %v1856 = vld [vmem:[%s5 + $0x18] sm:$0xff]
      %v1857 = vld [vmem:[%s5 + $0x20] sm:$0xff]
      %v1858 = vld [vmem:[%s5 + $0x28] sm:$0xff]
      %v1859 = vld [vmem:[%s5 + $0x30] sm:$0xff]
      %v1860 = vld [vmem:[%s5 + $0x38] sm:$0xff]
      %v1861 = vld [vmem:[%s5 + $0x40] sm:$0xff]
      %v1862 = vld [vmem:[%s5 + $0x48] sm:$0xff]
      %v1863 = vld [vmem:[%s5 + $0x50] sm:$0xff]
      %v1864 = vld [vmem:[%s5 + $0x58] sm:$0xff]
      %v1865 = vld [vmem:[%s5 + $0x60] sm:$0xff]
      %v1866 = vld [vmem:[%s5 + $0x68] sm:$0xff]
      %v1867 = vld [vmem:[%s5 + $0x70] sm:$0xff]
      %v1868 = vld [vmem:[%s5 + $0x78] sm:$0xff]
      %v1869 = vld [vmem:[%s5 + $0x80] sm:$0xff]
      %v1870 = vld [vmem:[%s5 + $0x88] sm:$0xff]
      %v1871 = vld [vmem:[%s5 + $0x90] sm:$0xff]
      %v1872 = vld [vmem:[%s5 + $0x98] sm:$0xff]
      %v1873 = vld [vmem:[%s5 + $0xa0] sm:$0xff]
      %v1874 = vld [vmem:[%s5 + $0xa8] sm:$0xff]
      %v1875 = vld [vmem:[%s5 + $0xb0] sm:$0xff]
      %v1876 = vld [vmem:[%s5 + $0xb8] sm:$0xff]
      %v1877 = vld [vmem:[%s5 + $0xc0] sm:$0xff]
      %v1878 = vld [vmem:[%s5 + $0xc8] sm:$0xff]
      %v1879 = vld [vmem:[%s5 + $0xd0] sm:$0xff]
      %v1880 = vld [vmem:[%s5 + $0xd8] sm:$0xff]
      %v1881 = vld [vmem:[%s5 + $0xe0] sm:$0xff]
      %v1882 = vld [vmem:[%s5 + $0xe8] sm:$0xff]
      %v1883 = vld [vmem:[%s5 + $0xf0] sm:$0xff]
      %v1884 = vld [vmem:[%s5 + $0xf8] sm:$0xff]
      %v1885 = vld [vmem:[%s6] sm:$0x3]
      %v1887 = vlaneseq
      %v1888 = vshrl.u32 %v1887, 7
      %v1889 = vsub.s32 0, %v1888
      %v1890 = vrot.slane %v1885, %v1889
      %v1891 = vlaneseq
      %v1892 = vshrl.u32 %v1891, 7
      %v1893 = vsub.s32 1, %v1892
      %v1894 = vrot.slane %v1885, %v1893
      %v1929 = vunpack.c.l.b16 %v1853
      %v1930 = vunpack.c.h.b16 %v1853
      %v1931 = vunpack.c.l.b16 %v1854
      %v1932 = vunpack.c.h.b16 %v1854
      %v1933 = vunpack.c.l.b16 %v1855
      %v1934 = vunpack.c.h.b16 %v1855
      %v1935 = vunpack.c.l.b16 %v1856
      %v1936 = vunpack.c.h.b16 %v1856
      %v1937 = vunpack.c.l.b16 %v1857
      %v1938 = vunpack.c.h.b16 %v1857
      %v1939 = vunpack.c.l.b16 %v1858
      %v1940 = vunpack.c.h.b16 %v1858
      %v1941 = vunpack.c.l.b16 %v1859
      %v1942 = vunpack.c.h.b16 %v1859
      %v1943 = vunpack.c.l.b16 %v1860
      %v1944 = vunpack.c.h.b16 %v1860
      %v1945 = vunpack.c.l.b16 %v1861
      %v1946 = vunpack.c.h.b16 %v1861
      %v1947 = vunpack.c.l.b16 %v1862
      %v1948 = vunpack.c.h.b16 %v1862
      %v1949 = vunpack.c.l.b16 %v1863
      %v1950 = vunpack.c.h.b16 %v1863
      %v1951 = vunpack.c.l.b16 %v1864
      %v1952 = vunpack.c.h.b16 %v1864
      %v1953 = vunpack.c.l.b16 %v1865
      %v1954 = vunpack.c.h.b16 %v1865
      %v1955 = vunpack.c.l.b16 %v1866
      %v1956 = vunpack.c.h.b16 %v1866
      %v1957 = vunpack.c.l.b16 %v1867
      %v1958 = vunpack.c.h.b16 %v1867
      %v1959 = vunpack.c.l.b16 %v1868
      %v1960 = vunpack.c.h.b16 %v1868
      %v1961 = vunpack.c.l.b16 %v1869
      %v1962 = vunpack.c.h.b16 %v1869
      %v1963 = vunpack.c.l.b16 %v1870
      %v1964 = vunpack.c.h.b16 %v1870
      %v1965 = vunpack.c.l.b16 %v1871
      %v1966 = vunpack.c.h.b16 %v1871
      %v1967 = vunpack.c.l.b16 %v1872
      %v1968 = vunpack.c.h.b16 %v1872
      %v1969 = vunpack.c.l.b16 %v1873
      %v1970 = vunpack.c.h.b16 %v1873
      %v1971 = vunpack.c.l.b16 %v1874
      %v1972 = vunpack.c.h.b16 %v1874
      %v1973 = vunpack.c.l.b16 %v1875
      %v1974 = vunpack.c.h.b16 %v1875
      %v1975 = vunpack.c.l.b16 %v1876
      %v1976 = vunpack.c.h.b16 %v1876
      %v1977 = vunpack.c.l.b16 %v1877
      %v1978 = vunpack.c.h.b16 %v1877
      %v1979 = vunpack.c.l.b16 %v1878
      %v1980 = vunpack.c.h.b16 %v1878
      %v1981 = vunpack.c.l.b16 %v1879
      %v1982 = vunpack.c.h.b16 %v1879
      %v1983 = vunpack.c.l.b16 %v1880
      %v1984 = vunpack.c.h.b16 %v1880
      %v1985 = vunpack.c.l.b16 %v1881
      %v1986 = vunpack.c.h.b16 %v1881
      %v1987 = vunpack.c.l.b16 %v1882
      %v1988 = vunpack.c.h.b16 %v1882
      %v1989 = vunpack.c.l.b16 %v1883
      %v1990 = vunpack.c.h.b16 %v1883
      %v1991 = vunpack.c.l.b16 %v1884
      %v1992 = vunpack.c.h.b16 %v1884
      %v1993 = vpack.c.b16 %v1931, %v1929
      %v1994 = vpack.c.b16 %v1932, %v1930
      %v1995 = vpack.c.b16 %v1935, %v1933
      %v1996 = vpack.c.b16 %v1936, %v1934
      %v1997 = vpack.c.b16 %v1939, %v1937
      %v1998 = vpack.c.b16 %v1940, %v1938
      %v1999 = vpack.c.b16 %v1943, %v1941
      %v2000 = vpack.c.b16 %v1944, %v1942
      %v2001 = vpack.c.b16 %v1947, %v1945
      %v2002 = vpack.c.b16 %v1948, %v1946
      %v2003 = vpack.c.b16 %v1951, %v1949
      %v2004 = vpack.c.b16 %v1952, %v1950
      %v2005 = vpack.c.b16 %v1955, %v1953
      %v2006 = vpack.c.b16 %v1956, %v1954
      %v2007 = vpack.c.b16 %v1959, %v1957
      %v2008 = vpack.c.b16 %v1960, %v1958
      %v2009 = vpack.c.b16 %v1963, %v1961
      %v2010 = vpack.c.b16 %v1964, %v1962
      %v2011 = vpack.c.b16 %v1967, %v1965
      %v2012 = vpack.c.b16 %v1968, %v1966
      %v2013 = vpack.c.b16 %v1971, %v1969
      %v2014 = vpack.c.b16 %v1972, %v1970
      %v2015 = vpack.c.b16 %v1975, %v1973
      %v2016 = vpack.c.b16 %v1976, %v1974
      %v2017 = vpack.c.b16 %v1979, %v1977
      %v2018 = vpack.c.b16 %v1980, %v1978
      %v2019 = vpack.c.b16 %v1983, %v1981
      %v2020 = vpack.c.b16 %v1984, %v1982
      %v2021 = vpack.c.b16 %v1987, %v1985
      %v2022 = vpack.c.b16 %v1988, %v1986
      %v2023 = vpack.c.b16 %v1991, %v1989
      %v2024 = vpack.c.b16 %v1992, %v1990
      %2057 = vmatprep.subr.bf16.mxu0 %v2008
      %2058 = vmatpush1.bf16.msra.mxu0 %v2007
      %2059 = vmatprep.subr.bf16.mxu0 %v2006
      %2060 = vmatpush1.bf16.msra.mxu0 %v2005
      %2061 = vmatprep.subr.bf16.mxu0 %v2004
      %2062 = vmatpush1.bf16.msra.mxu0 %v2003
      %2063 = vmatprep.subr.bf16.mxu0 %v2002
      %2064 = vmatpush1.bf16.msra.mxu0 %v2001
      %2065 = vmatprep.subr.bf16.mxu0 %v2000
      %2066 = vmatpush1.bf16.msra.mxu0 %v1999
      %2067 = vmatprep.subr.bf16.mxu0 %v1998
      %2068 = vmatpush1.bf16.msra.mxu0 %v1997
      %2069 = vmatprep.subr.bf16.mxu0 %v1996
      %2070 = vmatpush1.bf16.msra.mxu0 %v1995
      %2071 = vmatprep.subr.bf16.mxu0 %v1994
      %2072 = vmatpush1.bf16.msra.mxu0 %v1993
      %2073 = vmatprep.subr.bf16.mxu0 %v2024
      %2074 = vmatpush2.bf16.msra.mxu0 %v2023
      %2075 = vmatprep.subr.bf16.mxu0 %v2022
      %2076 = vmatpush2.bf16.msra.mxu0 %v2021
      %2077 = vmatprep.subr.bf16.mxu0 %v2020
      %2078 = vmatpush2.bf16.msra.mxu0 %v2019
      %2079 = vmatprep.subr.bf16.mxu0 %v2018
      %2080 = vmatpush2.bf16.msra.mxu0 %v2017
      %2081 = vmatprep.subr.bf16.mxu0 %v2016
      %2082 = vmatpush2.bf16.msra.mxu0 %v2015
      %2083 = vmatprep.subr.bf16.mxu0 %v2014
      %2084 = vmatpush2.bf16.msra.mxu0 %v2013
      %2085 = vmatprep.subr.bf16.mxu0 %v2012
      %2086 = vmatpush2.bf16.msra.mxu0 %v2011
      %2087 = vmatprep.subr.bf16.mxu0 %v2010
      %2088 = vmatpush2.bf16.msra.mxu0 %v2009
      %2089 = vmatprep.mubr.bf16.mxu0 %v1822
      %2090 = vmatmul.mubr.bf16.gmra.mxu0 %v1821
      %v2091 = vpop.f32.mrf.mxu0
      %v2092 = vadd.f32 %v1890, %v2091
      %v2093 = vpop.f32.mrf.mxu0
      %v2094 = vadd.f32 %v1894, %v2093
      %v2095 = vpop.f32.mrf.mxu0
      %v2096 = vadd.f32 %v1890, %v2095
      %v2097 = vpop.f32.mrf.mxu0
      %v2098 = vadd.f32 %v1894, %v2097
      %2099 = vmatprep.mubr.bf16.mxu0 %v1824
      %2100 = vmatmul.mubr.bf16.gmra.mxu0 %v1823
      %v2101 = vpop.f32.mrf.mxu0
      %v2102 = vadd.f32 %v1890, %v2101
      %v2103 = vpop.f32.mrf.mxu0
      %v2104 = vadd.f32 %v1894, %v2103
      %v2105 = vpop.f32.mrf.mxu0
      %v2106 = vadd.f32 %v1890, %v2105
      %v2107 = vpop.f32.mrf.mxu0
      %v2108 = vadd.f32 %v1894, %v2107
      %2109 = vmatprep.mubr.bf16.mxu0 %v1826
      %2110 = vmatmul.mubr.bf16.gmra.mxu0 %v1825
      %v2111 = vpop.f32.mrf.mxu0
      %v2112 = vadd.f32 %v1890, %v2111
      %v2113 = vpop.f32.mrf.mxu0
      %v2114 = vadd.f32 %v1894, %v2113
      %v2115 = vpop.f32.mrf.mxu0
      %v2116 = vadd.f32 %v1890, %v2115
      %v2117 = vpop.f32.mrf.mxu0
      %v2118 = vadd.f32 %v1894, %v2117
      %2119 = vmatprep.mubr.bf16.mxu0 %v1828
      %2120 = vmatmul.mubr.bf16.gmra.mxu0 %v1827
      %v2121 = vpop.f32.mrf.mxu0
      %v2122 = vadd.f32 %v1890, %v2121
      %v2123 = vpop.f32.mrf.mxu0
      %v2124 = vadd.f32 %v1894, %v2123
      %v2125 = vpop.f32.mrf.mxu0
      %v2126 = vadd.f32 %v1890, %v2125
      %v2127 = vpop.f32.mrf.mxu0
      %v2128 = vadd.f32 %v1894, %v2127
      %2129 = vmatprep.mubr.bf16.mxu0 %v1830
      %2130 = vmatmul.mubr.bf16.gmra.mxu0 %v1829
      %v2131 = vpop.f32.mrf.mxu0
      %v2132 = vadd.f32 %v1890, %v2131
      %v2133 = vpop.f32.mrf.mxu0
      %v2134 = vadd.f32 %v1894, %v2133
      %v2135 = vpop.f32.mrf.mxu0
      %v2136 = vadd.f32 %v1890, %v2135
      %v2137 = vpop.f32.mrf.mxu0
      %v2138 = vadd.f32 %v1894, %v2137
      %2139 = vmatprep.mubr.bf16.mxu0 %v1832
      %2140 = vmatmul.mubr.bf16.gmra.mxu0 %v1831
      %v2141 = vpop.f32.mrf.mxu0
      %v2142 = vadd.f32 %v1890, %v2141
      %v2143 = vpop.f32.mrf.mxu0
      %v2144 = vadd.f32 %v1894, %v2143
      %v2145 = vpop.f32.mrf.mxu0
      %v2146 = vadd.f32 %v1890, %v2145
      %v2147 = vpop.f32.mrf.mxu0
      %v2148 = vadd.f32 %v1894, %v2147
      %2149 = vmatprep.mubr.bf16.mxu0 %v1834
      %2150 = vmatmul.mubr.bf16.gmra.mxu0 %v1833
      %v2151 = vpop.f32.mrf.mxu0
      %v2152 = vadd.f32 %v1890, %v2151
      %v2153 = vpop.f32.mrf.mxu0
      %v2154 = vadd.f32 %v1894, %v2153
      %v2155 = vpop.f32.mrf.mxu0
      %v2156 = vadd.f32 %v1890, %v2155
      %v2157 = vpop.f32.mrf.mxu0
      %v2158 = vadd.f32 %v1894, %v2157
      %2159 = vmatprep.mubr.bf16.mxu0 %v1836
      %2160 = vmatmul.mubr.bf16.gmra.mxu0 %v1835
      %v2161 = vpop.f32.mrf.mxu0
      %v2162 = vadd.f32 %v1890, %v2161
      %v2163 = vpop.f32.mrf.mxu0
      %v2164 = vadd.f32 %v1894, %v2163
      %v2165 = vpop.f32.mrf.mxu0
      %v2166 = vadd.f32 %v1890, %v2165
      %v2167 = vpop.f32.mrf.mxu0
      %v2168 = vadd.f32 %v1894, %v2167
      %2169 = vmatprep.mubr.bf16.mxu0 %v1838
      %2170 = vmatmul.mubr.bf16.gmra.mxu0 %v1837
      %v2171 = vpop.f32.mrf.mxu0
      %v2172 = vadd.f32 %v1890, %v2171
      %v2173 = vpop.f32.mrf.mxu0
      %v2174 = vadd.f32 %v1894, %v2173
      %v2175 = vpop.f32.mrf.mxu0
      %v2176 = vadd.f32 %v1890, %v2175
      %v2177 = vpop.f32.mrf.mxu0
      %v2178 = vadd.f32 %v1894, %v2177
      %2179 = vmatprep.mubr.bf16.mxu0 %v1840
      %2180 = vmatmul.mubr.bf16.gmra.mxu0 %v1839
      %v2181 = vpop.f32.mrf.mxu0
      %v2182 = vadd.f32 %v1890, %v2181
      %v2183 = vpop.f32.mrf.mxu0
      %v2184 = vadd.f32 %v1894, %v2183
      %v2185 = vpop.f32.mrf.mxu0
      %v2186 = vadd.f32 %v1890, %v2185
      %v2187 = vpop.f32.mrf.mxu0
      %v2188 = vadd.f32 %v1894, %v2187
      %2189 = vmatprep.mubr.bf16.mxu0 %v1842
      %2190 = vmatmul.mubr.bf16.gmra.mxu0 %v1841
      %v2191 = vpop.f32.mrf.mxu0
      %v2192 = vadd.f32 %v1890, %v2191
      %v2193 = vpop.f32.mrf.mxu0
      %v2194 = vadd.f32 %v1894, %v2193
      %v2195 = vpop.f32.mrf.mxu0
      %v2196 = vadd.f32 %v1890, %v2195
      %v2197 = vpop.f32.mrf.mxu0
      %v2198 = vadd.f32 %v1894, %v2197
      %2199 = vmatprep.mubr.bf16.mxu0 %v1844
      %2200 = vmatmul.mubr.bf16.gmra.mxu0 %v1843
      %v2201 = vpop.f32.mrf.mxu0
      %v2202 = vadd.f32 %v1890, %v2201
      %v2203 = vpop.f32.mrf.mxu0
      %v2204 = vadd.f32 %v1894, %v2203
      %v2205 = vpop.f32.mrf.mxu0
      %v2206 = vadd.f32 %v1890, %v2205
      %v2207 = vpop.f32.mrf.mxu0
      %v2208 = vadd.f32 %v1894, %v2207
      %2209 = vmatprep.mubr.bf16.mxu0 %v1846
      %2210 = vmatmul.mubr.bf16.gmra.mxu0 %v1845
      %v2211 = vpop.f32.mrf.mxu0
      %v2212 = vadd.f32 %v1890, %v2211
      %v2213 = vpop.f32.mrf.mxu0
      %v2214 = vadd.f32 %v1894, %v2213
      %v2215 = vpop.f32.mrf.mxu0
      %v2216 = vadd.f32 %v1890, %v2215
      %v2217 = vpop.f32.mrf.mxu0
      %v2218 = vadd.f32 %v1894, %v2217
      %2219 = vmatprep.mubr.bf16.mxu0 %v1848
      %2220 = vmatmul.mubr.bf16.gmra.mxu0 %v1847
      %v2221 = vpop.f32.mrf.mxu0
      %v2222 = vadd.f32 %v1890, %v2221
      %v2223 = vpop.f32.mrf.mxu0
      %v2224 = vadd.f32 %v1894, %v2223
      %v2225 = vpop.f32.mrf.mxu0
      %v2226 = vadd.f32 %v1890, %v2225
      %v2227 = vpop.f32.mrf.mxu0
      %v2228 = vadd.f32 %v1894, %v2227
      %2229 = vmatprep.mubr.bf16.mxu0 %v1850
      %2230 = vmatmul.mubr.bf16.gmra.mxu0 %v1849
      %v2231 = vpop.f32.mrf.mxu0
      %v2232 = vadd.f32 %v1890, %v2231
      %v2233 = vpop.f32.mrf.mxu0
      %v2234 = vadd.f32 %v1894, %v2233
      %v2235 = vpop.f32.mrf.mxu0
      %v2236 = vadd.f32 %v1890, %v2235
      %v2237 = vpop.f32.mrf.mxu0
      %v2238 = vadd.f32 %v1894, %v2237
      %2239 = vmatprep.mubr.bf16.mxu0 %v1852
      %2240 = vmatmul.mubr.bf16.gmra.mxu0 %v1851
      %v2241 = vpop.f32.mrf.mxu0
      %v2242 = vadd.f32 %v1890, %v2241
      %v2243 = vpop.f32.mrf.mxu0
      %v2244 = vadd.f32 %v1894, %v2243
      %v2245 = vpop.f32.mrf.mxu0
      %v2246 = vadd.f32 %v1890, %v2245
      %v2247 = vpop.f32.mrf.mxu0
      %v2248 = vadd.f32 %v1894, %v2247
      %2249 = vdwg.mxu0
      %v2250 = vmin.f32 %v2092, 20.0
      %v2251 = vmin.f32 %v2094, 20.0
      %v2252 = vmin.f32 %v2096, 20.0
      %v2253 = vmin.f32 %v2098, 20.0
      %v2254 = vmin.f32 %v2102, 20.0
      %v2255 = vmin.f32 %v2104, 20.0
      %v2256 = vmin.f32 %v2106, 20.0
      %v2257 = vmin.f32 %v2108, 20.0
      %v2258 = vmin.f32 %v2112, 20.0
      %v2259 = vmin.f32 %v2114, 20.0
      %v2260 = vmin.f32 %v2116, 20.0
      %v2261 = vmin.f32 %v2118, 20.0
      %v2262 = vmin.f32 %v2122, 20.0
      %v2263 = vmin.f32 %v2124, 20.0
      %v2264 = vmin.f32 %v2126, 20.0
      %v2265 = vmin.f32 %v2128, 20.0
      %v2266 = vmin.f32 %v2132, 20.0
      %v2267 = vmin.f32 %v2134, 20.0
      %v2268 = vmin.f32 %v2136, 20.0
      %v2269 = vmin.f32 %v2138, 20.0
      %v2270 = vmin.f32 %v2142, 20.0
      %v2271 = vmin.f32 %v2144, 20.0
      %v2272 = vmin.f32 %v2146, 20.0
      %v2273 = vmin.f32 %v2148, 20.0
      %v2274 = vmin.f32 %v2152, 20.0
      %v2275 = vmin.f32 %v2154, 20.0
      %v2276 = vmin.f32 %v2156, 20.0
      %v2277 = vmin.f32 %v2158, 20.0
      %v2278 = vmin.f32 %v2162, 20.0
      %v2279 = vmin.f32 %v2164, 20.0
      %v2280 = vmin.f32 %v2166, 20.0
      %v2281 = vmin.f32 %v2168, 20.0
      %v2282 = vmin.f32 %v2172, 20.0
      %v2283 = vmin.f32 %v2174, 20.0
      %v2284 = vmin.f32 %v2176, 20.0
      %v2285 = vmin.f32 %v2178, 20.0
      %v2286 = vmin.f32 %v2182, 20.0
      %v2287 = vmin.f32 %v2184, 20.0
      %v2288 = vmin.f32 %v2186, 20.0
      %v2289 = vmin.f32 %v2188, 20.0
      %v2290 = vmin.f32 %v2192, 20.0
      %v2291 = vmin.f32 %v2194, 20.0
      %v2292 = vmin.f32 %v2196, 20.0
      %v2293 = vmin.f32 %v2198, 20.0
      %v2294 = vmin.f32 %v2202, 20.0
      %v2295 = vmin.f32 %v2204, 20.0
      %v2296 = vmin.f32 %v2206, 20.0
      %v2297 = vmin.f32 %v2208, 20.0
      %v2298 = vmin.f32 %v2212, 20.0
      %v2299 = vmin.f32 %v2214, 20.0
      %v2300 = vmin.f32 %v2216, 20.0
      %v2301 = vmin.f32 %v2218, 20.0
      %v2302 = vmin.f32 %v2222, 20.0
      %v2303 = vmin.f32 %v2224, 20.0
      %v2304 = vmin.f32 %v2226, 20.0
      %v2305 = vmin.f32 %v2228, 20.0
      %v2306 = vmin.f32 %v2232, 20.0
      %v2307 = vmin.f32 %v2234, 20.0
      %v2308 = vmin.f32 %v2236, 20.0
      %v2309 = vmin.f32 %v2238, 20.0
      %v2310 = vmin.f32 %v2242, 20.0
      %v2311 = vmin.f32 %v2244, 20.0
      %v2312 = vmin.f32 %v2246, 20.0
      %v2313 = vmin.f32 %v2248, 20.0
      %v2314 = vmul.f32 %v2250, 1.442695
      %v2315 = vpow.pop %v2314
      %v2316 = vmul.f32 %v2251, 1.442695
      %v2317 = vpow.pop %v2316
      %v2318 = vmul.f32 %v2252, 1.442695
      %v2319 = vpow.pop %v2318
      %v2320 = vmul.f32 %v2253, 1.442695
      %v2321 = vpow.pop %v2320
      %v2322 = vmul.f32 %v2254, 1.442695
      %v2323 = vpow.pop %v2322
      %v2324 = vmul.f32 %v2255, 1.442695
      %v2325 = vpow.pop %v2324
      %v2326 = vmul.f32 %v2256, 1.442695
      %v2327 = vpow.pop %v2326
      %v2328 = vmul.f32 %v2257, 1.442695
      %v2329 = vpow.pop %v2328
      %v2330 = vmul.f32 %v2258, 1.442695
      %v2331 = vpow.pop %v2330
      %v2332 = vmul.f32 %v2259, 1.442695
      %v2333 = vpow.pop %v2332
      %v2334 = vmul.f32 %v2260, 1.442695
      %v2335 = vpow.pop %v2334
      %v2336 = vmul.f32 %v2261, 1.442695
      %v2337 = vpow.pop %v2336
      %v2338 = vmul.f32 %v2262, 1.442695
      %v2339 = vpow.pop %v2338
      %v2340 = vmul.f32 %v2263, 1.442695
      %v2341 = vpow.pop %v2340
      %v2342 = vmul.f32 %v2264, 1.442695
      %v2343 = vpow.pop %v2342
      %v2344 = vmul.f32 %v2265, 1.442695
      %v2345 = vpow.pop %v2344
      %v2346 = vmul.f32 %v2266, 1.442695
      %v2347 = vpow.pop %v2346
      %v2348 = vmul.f32 %v2267, 1.442695
      %v2349 = vpow.pop %v2348
      %v2350 = vmul.f32 %v2268, 1.442695
      %v2351 = vpow.pop %v2350
      %v2352 = vmul.f32 %v2269, 1.442695
      %v2353 = vpow.pop %v2352
      %v2354 = vmul.f32 %v2270, 1.442695
      %v2355 = vpow.pop %v2354
      %v2356 = vmul.f32 %v2271, 1.442695
      %v2357 = vpow.pop %v2356
      %v2358 = vmul.f32 %v2272, 1.442695
      %v2359 = vpow.pop %v2358
      %v2360 = vmul.f32 %v2273, 1.442695
      %v2361 = vpow.pop %v2360
      %v2362 = vmul.f32 %v2274, 1.442695
      %v2363 = vpow.pop %v2362
      %v2364 = vmul.f32 %v2275, 1.442695
      %v2365 = vpow.pop %v2364
      %v2366 = vmul.f32 %v2276, 1.442695
      %v2367 = vpow.pop %v2366
      %v2368 = vmul.f32 %v2277, 1.442695
      %v2369 = vpow.pop %v2368
      %v2370 = vmul.f32 %v2278, 1.442695
      %v2371 = vpow.pop %v2370
      %v2372 = vmul.f32 %v2279, 1.442695
      %v2373 = vpow.pop %v2372
      %v2374 = vmul.f32 %v2280, 1.442695
      %v2375 = vpow.pop %v2374
      %v2376 = vmul.f32 %v2281, 1.442695
      %v2377 = vpow.pop %v2376
      %v2378 = vmul.f32 %v2282, 1.442695
      %v2379 = vpow.pop %v2378
      %v2380 = vmul.f32 %v2283, 1.442695
      %v2381 = vpow.pop %v2380
      %v2382 = vmul.f32 %v2284, 1.442695
      %v2383 = vpow.pop %v2382
      %v2384 = vmul.f32 %v2285, 1.442695
      %v2385 = vpow.pop %v2384
      %v2386 = vmul.f32 %v2286, 1.442695
      %v2387 = vpow.pop %v2386
      %v2388 = vmul.f32 %v2287, 1.442695
      %v2389 = vpow.pop %v2388
      %v2390 = vmul.f32 %v2288, 1.442695
      %v2391 = vpow.pop %v2390
      %v2392 = vmul.f32 %v2289, 1.442695
      %v2393 = vpow.pop %v2392
      %v2394 = vmul.f32 %v2290, 1.442695
      %v2395 = vpow.pop %v2394
      %v2396 = vmul.f32 %v2291, 1.442695
      %v2397 = vpow.pop %v2396
      %v2398 = vmul.f32 %v2292, 1.442695
      %v2399 = vpow.pop %v2398
      %v2400 = vmul.f32 %v2293, 1.442695
      %v2401 = vpow.pop %v2400
      %v2402 = vmul.f32 %v2294, 1.442695
      %v2403 = vpow.pop %v2402
      %v2404 = vmul.f32 %v2295, 1.442695
      %v2405 = vpow.pop %v2404
      %v2406 = vmul.f32 %v2296, 1.442695
      %v2407 = vpow.pop %v2406
      %v2408 = vmul.f32 %v2297, 1.442695
      %v2409 = vpow.pop %v2408
      %v2410 = vmul.f32 %v2298, 1.442695
      %v2411 = vpow.pop %v2410
      %v2412 = vmul.f32 %v2299, 1.442695
      %v2413 = vpow.pop %v2412
      %v2414 = vmul.f32 %v2300, 1.442695
      %v2415 = vpow.pop %v2414
      %v2416 = vmul.f32 %v2301, 1.442695
      %v2417 = vpow.pop %v2416
      %v2418 = vmul.f32 %v2302, 1.442695
      %v2419 = vpow.pop %v2418
      %v2420 = vmul.f32 %v2303, 1.442695
      %v2421 = vpow.pop %v2420
      %v2422 = vmul.f32 %v2304, 1.442695
      %v2423 = vpow.pop %v2422
      %v2424 = vmul.f32 %v2305, 1.442695
      %v2425 = vpow.pop %v2424
      %v2426 = vmul.f32 %v2306, 1.442695
      %v2427 = vpow.pop %v2426
      %v2428 = vmul.f32 %v2307, 1.442695
      %v2429 = vpow.pop %v2428
      %v2430 = vmul.f32 %v2308, 1.442695
      %v2431 = vpow.pop %v2430
      %v2432 = vmul.f32 %v2309, 1.442695
      %v2433 = vpow.pop %v2432
      %v2434 = vmul.f32 %v2310, 1.442695
      %v2435 = vpow.pop %v2434
      %v2436 = vmul.f32 %v2311, 1.442695
      %v2437 = vpow.pop %v2436
      %v2438 = vmul.f32 %v2312, 1.442695
      %v2439 = vpow.pop %v2438
      %v2440 = vmul.f32 %v2313, 1.442695
      %v2441 = vpow.pop %v2440
      %v2442 = vadd.f32 %v2315, 1.0
      %v2443 = vadd.f32 %v2317, 1.0
      %v2444 = vadd.f32 %v2319, 1.0
      %v2445 = vadd.f32 %v2321, 1.0
      %v2446 = vadd.f32 %v2323, 1.0
      %v2447 = vadd.f32 %v2325, 1.0
      %v2448 = vadd.f32 %v2327, 1.0
      %v2449 = vadd.f32 %v2329, 1.0
      %v2450 = vadd.f32 %v2331, 1.0
      %v2451 = vadd.f32 %v2333, 1.0
      %v2452 = vadd.f32 %v2335, 1.0
      %v2453 = vadd.f32 %v2337, 1.0
      %v2454 = vadd.f32 %v2339, 1.0
      %v2455 = vadd.f32 %v2341, 1.0
      %v2456 = vadd.f32 %v2343, 1.0
      %v2457 = vadd.f32 %v2345, 1.0
      %v2458 = vadd.f32 %v2347, 1.0
      %v2459 = vadd.f32 %v2349, 1.0
      %v2460 = vadd.f32 %v2351, 1.0
      %v2461 = vadd.f32 %v2353, 1.0
      %v2462 = vadd.f32 %v2355, 1.0
      %v2463 = vadd.f32 %v2357, 1.0
      %v2464 = vadd.f32 %v2359, 1.0
      %v2465 = vadd.f32 %v2361, 1.0
      %v2466 = vadd.f32 %v2363, 1.0
      %v2467 = vadd.f32 %v2365, 1.0
      %v2468 = vadd.f32 %v2367, 1.0
      %v2469 = vadd.f32 %v2369, 1.0
      %v2470 = vadd.f32 %v2371, 1.0
      %v2471 = vadd.f32 %v2373, 1.0
      %v2472 = vadd.f32 %v2375, 1.0
      %v2473 = vadd.f32 %v2377, 1.0
      %v2474 = vadd.f32 %v2379, 1.0
      %v2475 = vadd.f32 %v2381, 1.0
      %v2476 = vadd.f32 %v2383, 1.0
      %v2477 = vadd.f32 %v2385, 1.0
      %v2478 = vadd.f32 %v2387, 1.0
      %v2479 = vadd.f32 %v2389, 1.0
      %v2480 = vadd.f32 %v2391, 1.0
      %v2481 = vadd.f32 %v2393, 1.0
      %v2482 = vadd.f32 %v2395, 1.0
      %v2483 = vadd.f32 %v2397, 1.0
      %v2484 = vadd.f32 %v2399, 1.0
      %v2485 = vadd.f32 %v2401, 1.0
      %v2486 = vadd.f32 %v2403, 1.0
      %v2487 = vadd.f32 %v2405, 1.0
      %v2488 = vadd.f32 %v2407, 1.0
      %v2489 = vadd.f32 %v2409, 1.0
      %v2490 = vadd.f32 %v2411, 1.0
      %v2491 = vadd.f32 %v2413, 1.0
      %v2492 = vadd.f32 %v2415, 1.0
      %v2493 = vadd.f32 %v2417, 1.0
      %v2494 = vadd.f32 %v2419, 1.0
      %v2495 = vadd.f32 %v2421, 1.0
      %v2496 = vadd.f32 %v2423, 1.0
      %v2497 = vadd.f32 %v2425, 1.0
      %v2498 = vadd.f32 %v2427, 1.0
      %v2499 = vadd.f32 %v2429, 1.0
      %v2500 = vadd.f32 %v2431, 1.0
      %v2501 = vadd.f32 %v2433, 1.0
      %v2502 = vadd.f32 %v2435, 1.0
      %v2503 = vadd.f32 %v2437, 1.0
      %v2504 = vadd.f32 %v2439, 1.0
      %v2505 = vadd.f32 %v2441, 1.0
      %v2506 = vmul.f32 %v2442, %v2442
      %v2507 = vmul.f32 %v2443, %v2443
      %v2508 = vmul.f32 %v2444, %v2444
      %v2509 = vmul.f32 %v2445, %v2445
      %v2510 = vmul.f32 %v2446, %v2446
      %v2511 = vmul.f32 %v2447, %v2447
      %v2512 = vmul.f32 %v2448, %v2448
      %v2513 = vmul.f32 %v2449, %v2449
      %v2514 = vmul.f32 %v2450, %v2450
      %v2515 = vmul.f32 %v2451, %v2451
      %v2516 = vmul.f32 %v2452, %v2452
      %v2517 = vmul.f32 %v2453, %v2453
      %v2518 = vmul.f32 %v2454, %v2454
      %v2519 = vmul.f32 %v2455, %v2455
      %v2520 = vmul.f32 %v2456, %v2456
      %v2521 = vmul.f32 %v2457, %v2457
      %v2522 = vmul.f32 %v2458, %v2458
      %v2523 = vmul.f32 %v2459, %v2459
      %v2524 = vmul.f32 %v2460, %v2460
      %v2525 = vmul.f32 %v2461, %v2461
      %v2526 = vmul.f32 %v2462, %v2462
      %v2527 = vmul.f32 %v2463, %v2463
      %v2528 = vmul.f32 %v2464, %v2464
      %v2529 = vmul.f32 %v2465, %v2465
      %v2530 = vmul.f32 %v2466, %v2466
      %v2531 = vmul.f32 %v2467, %v2467
      %v2532 = vmul.f32 %v2468, %v2468
      %v2533 = vmul.f32 %v2469, %v2469
      %v2534 = vmul.f32 %v2470, %v2470
      %v2535 = vmul.f32 %v2471, %v2471
      %v2536 = vmul.f32 %v2472, %v2472
      %v2537 = vmul.f32 %v2473, %v2473
      %v2538 = vmul.f32 %v2474, %v2474
      %v2539 = vmul.f32 %v2475, %v2475
      %v2540 = vmul.f32 %v2476, %v2476
      %v2541 = vmul.f32 %v2477, %v2477
      %v2542 = vmul.f32 %v2478, %v2478
      %v2543 = vmul.f32 %v2479, %v2479
      %v2544 = vmul.f32 %v2480, %v2480
      %v2545 = vmul.f32 %v2481, %v2481
      %v2546 = vmul.f32 %v2482, %v2482
      %v2547 = vmul.f32 %v2483, %v2483
      %v2548 = vmul.f32 %v2484, %v2484
      %v2549 = vmul.f32 %v2485, %v2485
      %v2550 = vmul.f32 %v2486, %v2486
      %v2551 = vmul.f32 %v2487, %v2487
      %v2552 = vmul.f32 %v2488, %v2488
      %v2553 = vmul.f32 %v2489, %v2489
      %v2554 = vmul.f32 %v2490, %v2490
      %v2555 = vmul.f32 %v2491, %v2491
      %v2556 = vmul.f32 %v2492, %v2492
      %v2557 = vmul.f32 %v2493, %v2493
      %v2558 = vmul.f32 %v2494, %v2494
      %v2559 = vmul.f32 %v2495, %v2495
      %v2560 = vmul.f32 %v2496, %v2496
      %v2561 = vmul.f32 %v2497, %v2497
      %v2562 = vmul.f32 %v2498, %v2498
      %v2563 = vmul.f32 %v2499, %v2499
      %v2564 = vmul.f32 %v2500, %v2500
      %v2565 = vmul.f32 %v2501, %v2501
      %v2566 = vmul.f32 %v2502, %v2502
      %v2567 = vmul.f32 %v2503, %v2503
      %v2568 = vmul.f32 %v2504, %v2504
      %v2569 = vmul.f32 %v2505, %v2505
      %v2570 = vsub.f32 %v2506, 1.0
      %v2571 = vsub.f32 %v2507, 1.0
      %v2572 = vsub.f32 %v2508, 1.0
      %v2573 = vsub.f32 %v2509, 1.0
      %v2574 = vsub.f32 %v2510, 1.0
      %v2575 = vsub.f32 %v2511, 1.0
      %v2576 = vsub.f32 %v2512, 1.0
      %v2577 = vsub.f32 %v2513, 1.0
      %v2578 = vsub.f32 %v2514, 1.0
      %v2579 = vsub.f32 %v2515, 1.0
      %v2580 = vsub.f32 %v2516, 1.0
      %v2581 = vsub.f32 %v2517, 1.0
      %v2582 = vsub.f32 %v2518, 1.0
      %v2583 = vsub.f32 %v2519, 1.0
      %v2584 = vsub.f32 %v2520, 1.0
      %v2585 = vsub.f32 %v2521, 1.0
      %v2586 = vsub.f32 %v2522, 1.0
      %v2587 = vsub.f32 %v2523, 1.0
      %v2588 = vsub.f32 %v2524, 1.0
      %v2589 = vsub.f32 %v2525, 1.0
      %v2590 = vsub.f32 %v2526, 1.0
      %v2591 = vsub.f32 %v2527, 1.0
      %v2592 = vsub.f32 %v2528, 1.0
      %v2593 = vsub.f32 %v2529, 1.0
      %v2594 = vsub.f32 %v2530, 1.0
      %v2595 = vsub.f32 %v2531, 1.0
      %v2596 = vsub.f32 %v2532, 1.0
      %v2597 = vsub.f32 %v2533, 1.0
      %v2598 = vsub.f32 %v2534, 1.0
      %v2599 = vsub.f32 %v2535, 1.0
      %v2600 = vsub.f32 %v2536, 1.0
      %v2601 = vsub.f32 %v2537, 1.0
      %v2602 = vsub.f32 %v2538, 1.0
      %v2603 = vsub.f32 %v2539, 1.0
      %v2604 = vsub.f32 %v2540, 1.0
      %v2605 = vsub.f32 %v2541, 1.0
      %v2606 = vsub.f32 %v2542, 1.0
      %v2607 = vsub.f32 %v2543, 1.0
      %v2608 = vsub.f32 %v2544, 1.0
      %v2609 = vsub.f32 %v2545, 1.0
      %v2610 = vsub.f32 %v2546, 1.0
      %v2611 = vsub.f32 %v2547, 1.0
      %v2612 = vsub.f32 %v2548, 1.0
      %v2613 = vsub.f32 %v2549, 1.0
      %v2614 = vsub.f32 %v2550, 1.0
      %v2615 = vsub.f32 %v2551, 1.0
      %v2616 = vsub.f32 %v2552, 1.0
      %v2617 = vsub.f32 %v2553, 1.0
      %v2618 = vsub.f32 %v2554, 1.0
      %v2619 = vsub.f32 %v2555, 1.0
      %v2620 = vsub.f32 %v2556, 1.0
      %v2621 = vsub.f32 %v2557, 1.0
      %v2622 = vsub.f32 %v2558, 1.0
      %v2623 = vsub.f32 %v2559, 1.0
      %v2624 = vsub.f32 %v2560, 1.0
      %v2625 = vsub.f32 %v2561, 1.0
      %v2626 = vsub.f32 %v2562, 1.0
      %v2627 = vsub.f32 %v2563, 1.0
      %v2628 = vsub.f32 %v2564, 1.0
      %v2629 = vsub.f32 %v2565, 1.0
      %v2630 = vsub.f32 %v2566, 1.0
      %v2631 = vsub.f32 %v2567, 1.0
      %v2632 = vsub.f32 %v2568, 1.0
      %v2633 = vsub.f32 %v2569, 1.0
      %v2634 = vadd.f32 %v2506, 1.0
      %v2635 = vadd.f32 %v2507, 1.0
      %v2636 = vadd.f32 %v2508, 1.0
      %v2637 = vadd.f32 %v2509, 1.0
      %v2638 = vadd.f32 %v2510, 1.0
      %v2639 = vadd.f32 %v2511, 1.0
      %v2640 = vadd.f32 %v2512, 1.0
      %v2641 = vadd.f32 %v2513, 1.0
      %v2642 = vadd.f32 %v2514, 1.0
      %v2643 = vadd.f32 %v2515, 1.0
      %v2644 = vadd.f32 %v2516, 1.0
      %v2645 = vadd.f32 %v2517, 1.0
      %v2646 = vadd.f32 %v2518, 1.0
      %v2647 = vadd.f32 %v2519, 1.0
      %v2648 = vadd.f32 %v2520, 1.0
      %v2649 = vadd.f32 %v2521, 1.0
      %v2650 = vadd.f32 %v2522, 1.0
      %v2651 = vadd.f32 %v2523, 1.0
      %v2652 = vadd.f32 %v2524, 1.0
      %v2653 = vadd.f32 %v2525, 1.0
      %v2654 = vadd.f32 %v2526, 1.0
      %v2655 = vadd.f32 %v2527, 1.0
      %v2656 = vadd.f32 %v2528, 1.0
      %v2657 = vadd.f32 %v2529, 1.0
      %v2658 = vadd.f32 %v2530, 1.0
      %v2659 = vadd.f32 %v2531, 1.0
      %v2660 = vadd.f32 %v2532, 1.0
      %v2661 = vadd.f32 %v2533, 1.0
      %v2662 = vadd.f32 %v2534, 1.0
      %v2663 = vadd.f32 %v2535, 1.0
      %v2664 = vadd.f32 %v2536, 1.0
      %v2665 = vadd.f32 %v2537, 1.0
      %v2666 = vadd.f32 %v2538, 1.0
      %v2667 = vadd.f32 %v2539, 1.0
      %v2668 = vadd.f32 %v2540, 1.0
      %v2669 = vadd.f32 %v2541, 1.0
      %v2670 = vadd.f32 %v2542, 1.0
      %v2671 = vadd.f32 %v2543, 1.0
      %v2672 = vadd.f32 %v2544, 1.0
      %v2673 = vadd.f32 %v2545, 1.0
      %v2674 = vadd.f32 %v2546, 1.0
      %v2675 = vadd.f32 %v2547, 1.0
      %v2676 = vadd.f32 %v2548, 1.0
      %v2677 = vadd.f32 %v2549, 1.0
      %v2678 = vadd.f32 %v2550, 1.0
      %v2679 = vadd.f32 %v2551, 1.0
      %v2680 = vadd.f32 %v2552, 1.0
      %v2681 = vadd.f32 %v2553, 1.0
      %v2682 = vadd.f32 %v2554, 1.0
      %v2683 = vadd.f32 %v2555, 1.0
      %v2684 = vadd.f32 %v2556, 1.0
      %v2685 = vadd.f32 %v2557, 1.0
      %v2686 = vadd.f32 %v2558, 1.0
      %v2687 = vadd.f32 %v2559, 1.0
      %v2688 = vadd.f32 %v2560, 1.0
      %v2689 = vadd.f32 %v2561, 1.0
      %v2690 = vadd.f32 %v2562, 1.0
      %v2691 = vadd.f32 %v2563, 1.0
      %v2692 = vadd.f32 %v2564, 1.0
      %v2693 = vadd.f32 %v2565, 1.0
      %v2694 = vadd.f32 %v2566, 1.0
      %v2695 = vadd.f32 %v2567, 1.0
      %v2696 = vadd.f32 %v2568, 1.0
      %v2697 = vadd.f32 %v2569, 1.0
      %v2698 = vrcp.pop %v2634
      %v2699 = vmul.f32 %v2570, %v2698
      %v2700 = vrcp.pop %v2635
      %v2701 = vmul.f32 %v2571, %v2700
      %v2702 = vrcp.pop %v2636
      %v2703 = vmul.f32 %v2572, %v2702
      %v2704 = vrcp.pop %v2637
      %v2705 = vmul.f32 %v2573, %v2704
      %v2706 = vrcp.pop %v2638
      %v2707 = vmul.f32 %v2574, %v2706
      %v2708 = vrcp.pop %v2639
      %v2709 = vmul.f32 %v2575, %v2708
      %v2710 = vrcp.pop %v2640
      %v2711 = vmul.f32 %v2576, %v2710
      %v2712 = vrcp.pop %v2641
      %v2713 = vmul.f32 %v2577, %v2712
      %v2714 = vrcp.pop %v2642
      %v2715 = vmul.f32 %v2578, %v2714
      %v2716 = vrcp.pop %v2643
      %v2717 = vmul.f32 %v2579, %v2716
      %v2718 = vrcp.pop %v2644
      %v2719 = vmul.f32 %v2580, %v2718
      %v2720 = vrcp.pop %v2645
      %v2721 = vmul.f32 %v2581, %v2720
      %v2722 = vrcp.pop %v2646
      %v2723 = vmul.f32 %v2582, %v2722
      %v2724 = vrcp.pop %v2647
      %v2725 = vmul.f32 %v2583, %v2724
      %v2726 = vrcp.pop %v2648
      %v2727 = vmul.f32 %v2584, %v2726
      %v2728 = vrcp.pop %v2649
      %v2729 = vmul.f32 %v2585, %v2728
      %v2730 = vrcp.pop %v2650
      %v2731 = vmul.f32 %v2586, %v2730
      %v2732 = vrcp.pop %v2651
      %v2733 = vmul.f32 %v2587, %v2732
      %v2734 = vrcp.pop %v2652
      %v2735 = vmul.f32 %v2588, %v2734
      %v2736 = vrcp.pop %v2653
      %v2737 = vmul.f32 %v2589, %v2736
      %v2738 = vrcp.pop %v2654
      %v2739 = vmul.f32 %v2590, %v2738
      %v2740 = vrcp.pop %v2655
      %v2741 = vmul.f32 %v2591, %v2740
      %v2742 = vrcp.pop %v2656
      %v2743 = vmul.f32 %v2592, %v2742
      %v2744 = vrcp.pop %v2657
      %v2745 = vmul.f32 %v2593, %v2744
      %v2746 = vrcp.pop %v2658
      %v2747 = vmul.f32 %v2594, %v2746
      %v2748 = vrcp.pop %v2659
      %v2749 = vmul.f32 %v2595, %v2748
      %v2750 = vrcp.pop %v2660
      %v2751 = vmul.f32 %v2596, %v2750
      %v2752 = vrcp.pop %v2661
      %v2753 = vmul.f32 %v2597, %v2752
      %v2754 = vrcp.pop %v2662
      %v2755 = vmul.f32 %v2598, %v2754
      %v2756 = vrcp.pop %v2663
      %v2757 = vmul.f32 %v2599, %v2756
      %v2758 = vrcp.pop %v2664
      %v2759 = vmul.f32 %v2600, %v2758
      %v2760 = vrcp.pop %v2665
      %v2761 = vmul.f32 %v2601, %v2760
      %v2762 = vrcp.pop %v2666
      %v2763 = vmul.f32 %v2602, %v2762
      %v2764 = vrcp.pop %v2667
      %v2765 = vmul.f32 %v2603, %v2764
      %v2766 = vrcp.pop %v2668
      %v2767 = vmul.f32 %v2604, %v2766
      %v2768 = vrcp.pop %v2669
      %v2769 = vmul.f32 %v2605, %v2768
      %v2770 = vrcp.pop %v2670
      %v2771 = vmul.f32 %v2606, %v2770
      %v2772 = vrcp.pop %v2671
      %v2773 = vmul.f32 %v2607, %v2772
      %v2774 = vrcp.pop %v2672
      %v2775 = vmul.f32 %v2608, %v2774
      %v2776 = vrcp.pop %v2673
      %v2777 = vmul.f32 %v2609, %v2776
      %v2778 = vrcp.pop %v2674
      %v2779 = vmul.f32 %v2610, %v2778
      %v2780 = vrcp.pop %v2675
      %v2781 = vmul.f32 %v2611, %v2780
      %v2782 = vrcp.pop %v2676
      %v2783 = vmul.f32 %v2612, %v2782
      %v2784 = vrcp.pop %v2677
      %v2785 = vmul.f32 %v2613, %v2784
      %v2786 = vrcp.pop %v2678
      %v2787 = vmul.f32 %v2614, %v2786
      %v2788 = vrcp.pop %v2679
      %v2789 = vmul.f32 %v2615, %v2788
      %v2790 = vrcp.pop %v2680
      %v2791 = vmul.f32 %v2616, %v2790
      %v2792 = vrcp.pop %v2681
      %v2793 = vmul.f32 %v2617, %v2792
      %v2794 = vrcp.pop %v2682
      %v2795 = vmul.f32 %v2618, %v2794
      %v2796 = vrcp.pop %v2683
      %v2797 = vmul.f32 %v2619, %v2796
      %v2798 = vrcp.pop %v2684
      %v2799 = vmul.f32 %v2620, %v2798
      %v2800 = vrcp.pop %v2685
      %v2801 = vmul.f32 %v2621, %v2800
      %v2802 = vrcp.pop %v2686
      %v2803 = vmul.f32 %v2622, %v2802
      %v2804 = vrcp.pop %v2687
      %v2805 = vmul.f32 %v2623, %v2804
      %v2806 = vrcp.pop %v2688
      %v2807 = vmul.f32 %v2624, %v2806
      %v2808 = vrcp.pop %v2689
      %v2809 = vmul.f32 %v2625, %v2808
      %v2810 = vrcp.pop %v2690
      %v2811 = vmul.f32 %v2626, %v2810
      %v2812 = vrcp.pop %v2691
      %v2813 = vmul.f32 %v2627, %v2812
      %v2814 = vrcp.pop %v2692
      %v2815 = vmul.f32 %v2628, %v2814
      %v2816 = vrcp.pop %v2693
      %v2817 = vmul.f32 %v2629, %v2816
      %v2818 = vrcp.pop %v2694
      %v2819 = vmul.f32 %v2630, %v2818
      %v2820 = vrcp.pop %v2695
      %v2821 = vmul.f32 %v2631, %v2820
      %v2822 = vrcp.pop %v2696
      %v2823 = vmul.f32 %v2632, %v2822
      %v2824 = vrcp.pop %v2697
      %v2825 = vmul.f32 %v2633, %v2824
      %vm2826 = vcmp.gt.f32.partialorder %v2092, 20.0
      %vm2827 = vcmp.gt.f32.partialorder %v2094, 20.0
      %vm2828 = vcmp.gt.f32.partialorder %v2096, 20.0
      %vm2829 = vcmp.gt.f32.partialorder %v2098, 20.0
      %vm2830 = vcmp.gt.f32.partialorder %v2102, 20.0
      %vm2831 = vcmp.gt.f32.partialorder %v2104, 20.0
      %vm2832 = vcmp.gt.f32.partialorder %v2106, 20.0
      %vm2833 = vcmp.gt.f32.partialorder %v2108, 20.0
      %vm2834 = vcmp.gt.f32.partialorder %v2112, 20.0
      %vm2835 = vcmp.gt.f32.partialorder %v2114, 20.0
      %vm2836 = vcmp.gt.f32.partialorder %v2116, 20.0
      %vm2837 = vcmp.gt.f32.partialorder %v2118, 20.0
      %vm2838 = vcmp.gt.f32.partialorder %v2122, 20.0
      %vm2839 = vcmp.gt.f32.partialorder %v2124, 20.0
      %vm2840 = vcmp.gt.f32.partialorder %v2126, 20.0
      %vm2841 = vcmp.gt.f32.partialorder %v2128, 20.0
      %vm2842 = vcmp.gt.f32.partialorder %v2132, 20.0
      %vm2843 = vcmp.gt.f32.partialorder %v2134, 20.0
      %vm2844 = vcmp.gt.f32.partialorder %v2136, 20.0
      %vm2845 = vcmp.gt.f32.partialorder %v2138, 20.0
      %vm2846 = vcmp.gt.f32.partialorder %v2142, 20.0
      %vm2847 = vcmp.gt.f32.partialorder %v2144, 20.0
      %vm2848 = vcmp.gt.f32.partialorder %v2146, 20.0
      %vm2849 = vcmp.gt.f32.partialorder %v2148, 20.0
      %vm2850 = vcmp.gt.f32.partialorder %v2152, 20.0
      %vm2851 = vcmp.gt.f32.partialorder %v2154, 20.0
      %vm2852 = vcmp.gt.f32.partialorder %v2156, 20.0
      %vm2853 = vcmp.gt.f32.partialorder %v2158, 20.0
      %vm2854 = vcmp.gt.f32.partialorder %v2162, 20.0
      %vm2855 = vcmp.gt.f32.partialorder %v2164, 20.0
      %vm2856 = vcmp.gt.f32.partialorder %v2166, 20.0
      %vm2857 = vcmp.gt.f32.partialorder %v2168, 20.0
      %vm2858 = vcmp.gt.f32.partialorder %v2172, 20.0
      %vm2859 = vcmp.gt.f32.partialorder %v2174, 20.0
      %vm2860 = vcmp.gt.f32.partialorder %v2176, 20.0
      %vm2861 = vcmp.gt.f32.partialorder %v2178, 20.0
      %vm2862 = vcmp.gt.f32.partialorder %v2182, 20.0
      %vm2863 = vcmp.gt.f32.partialorder %v2184, 20.0
      %vm2864 = vcmp.gt.f32.partialorder %v2186, 20.0
      %vm2865 = vcmp.gt.f32.partialorder %v2188, 20.0
      %vm2866 = vcmp.gt.f32.partialorder %v2192, 20.0
      %vm2867 = vcmp.gt.f32.partialorder %v2194, 20.0
      %vm2868 = vcmp.gt.f32.partialorder %v2196, 20.0
      %vm2869 = vcmp.gt.f32.partialorder %v2198, 20.0
      %vm2870 = vcmp.gt.f32.partialorder %v2202, 20.0
      %vm2871 = vcmp.gt.f32.partialorder %v2204, 20.0
      %vm2872 = vcmp.gt.f32.partialorder %v2206, 20.0
      %vm2873 = vcmp.gt.f32.partialorder %v2208, 20.0
      %vm2874 = vcmp.gt.f32.partialorder %v2212, 20.0
      %vm2875 = vcmp.gt.f32.partialorder %v2214, 20.0
      %vm2876 = vcmp.gt.f32.partialorder %v2216, 20.0
      %vm2877 = vcmp.gt.f32.partialorder %v2218, 20.0
      %vm2878 = vcmp.gt.f32.partialorder %v2222, 20.0
      %vm2879 = vcmp.gt.f32.partialorder %v2224, 20.0
      %vm2880 = vcmp.gt.f32.partialorder %v2226, 20.0
      %vm2881 = vcmp.gt.f32.partialorder %v2228, 20.0
      %vm2882 = vcmp.gt.f32.partialorder %v2232, 20.0
      %vm2883 = vcmp.gt.f32.partialorder %v2234, 20.0
      %vm2884 = vcmp.gt.f32.partialorder %v2236, 20.0
      %vm2885 = vcmp.gt.f32.partialorder %v2238, 20.0
      %vm2886 = vcmp.gt.f32.partialorder %v2242, 20.0
      %vm2887 = vcmp.gt.f32.partialorder %v2244, 20.0
      %vm2888 = vcmp.gt.f32.partialorder %v2246, 20.0
      %vm2889 = vcmp.gt.f32.partialorder %v2248, 20.0
      %v2890 = vmul.f32 %v2092, %v2699
      %v2891 = vmul.f32 %v2094, %v2701
      %v2892 = vmul.f32 %v2096, %v2703
      %v2893 = vmul.f32 %v2098, %v2705
      %v2894 = vmul.f32 %v2102, %v2707
      %v2895 = vmul.f32 %v2104, %v2709
      %v2896 = vmul.f32 %v2106, %v2711
      %v2897 = vmul.f32 %v2108, %v2713
      %v2898 = vmul.f32 %v2112, %v2715
      %v2899 = vmul.f32 %v2114, %v2717
      %v2900 = vmul.f32 %v2116, %v2719
      %v2901 = vmul.f32 %v2118, %v2721
      %v2902 = vmul.f32 %v2122, %v2723
      %v2903 = vmul.f32 %v2124, %v2725
      %v2904 = vmul.f32 %v2126, %v2727
      %v2905 = vmul.f32 %v2128, %v2729
      %v2906 = vmul.f32 %v2132, %v2731
      %v2907 = vmul.f32 %v2134, %v2733
      %v2908 = vmul.f32 %v2136, %v2735
      %v2909 = vmul.f32 %v2138, %v2737
      %v2910 = vmul.f32 %v2142, %v2739
      %v2911 = vmul.f32 %v2144, %v2741
      %v2912 = vmul.f32 %v2146, %v2743
      %v2913 = vmul.f32 %v2148, %v2745
      %v2914 = vmul.f32 %v2152, %v2747
      %v2915 = vmul.f32 %v2154, %v2749
      %v2916 = vmul.f32 %v2156, %v2751
      %v2917 = vmul.f32 %v2158, %v2753
      %v2918 = vmul.f32 %v2162, %v2755
      %v2919 = vmul.f32 %v2164, %v2757
      %v2920 = vmul.f32 %v2166, %v2759
      %v2921 = vmul.f32 %v2168, %v2761
      %v2922 = vmul.f32 %v2172, %v2763
      %v2923 = vmul.f32 %v2174, %v2765
      %v2924 = vmul.f32 %v2176, %v2767
      %v2925 = vmul.f32 %v2178, %v2769
      %v2926 = vmul.f32 %v2182, %v2771
      %v2927 = vmul.f32 %v2184, %v2773
      %v2928 = vmul.f32 %v2186, %v2775
      %v2929 = vmul.f32 %v2188, %v2777
      %v2930 = vmul.f32 %v2192, %v2779
      %v2931 = vmul.f32 %v2194, %v2781
      %v2932 = vmul.f32 %v2196, %v2783
      %v2933 = vmul.f32 %v2198, %v2785
      %v2934 = vmul.f32 %v2202, %v2787
      %v2935 = vmul.f32 %v2204, %v2789
      %v2936 = vmul.f32 %v2206, %v2791
      %v2937 = vmul.f32 %v2208, %v2793
      %v2938 = vmul.f32 %v2212, %v2795
      %v2939 = vmul.f32 %v2214, %v2797
      %v2940 = vmul.f32 %v2216, %v2799
      %v2941 = vmul.f32 %v2218, %v2801
      %v2942 = vmul.f32 %v2222, %v2803
      %v2943 = vmul.f32 %v2224, %v2805
      %v2944 = vmul.f32 %v2226, %v2807
      %v2945 = vmul.f32 %v2228, %v2809
      %v2946 = vmul.f32 %v2232, %v2811
      %v2947 = vmul.f32 %v2234, %v2813
      %v2948 = vmul.f32 %v2236, %v2815
      %v2949 = vmul.f32 %v2238, %v2817
      %v2950 = vmul.f32 %v2242, %v2819
      %v2951 = vmul.f32 %v2244, %v2821
      %v2952 = vmul.f32 %v2246, %v2823
      %v2953 = vmul.f32 %v2248, %v2825
      %v2954 = vsel %vm2826, %v2092, %v2890
      %v2955 = vsel %vm2827, %v2094, %v2891
      %v2956 = vsel %vm2828, %v2096, %v2892
      %v2957 = vsel %vm2829, %v2098, %v2893
      %v2958 = vsel %vm2830, %v2102, %v2894
      %v2959 = vsel %vm2831, %v2104, %v2895
      %v2960 = vsel %vm2832, %v2106, %v2896
      %v2961 = vsel %vm2833, %v2108, %v2897
      %v2962 = vsel %vm2834, %v2112, %v2898
      %v2963 = vsel %vm2835, %v2114, %v2899
      %v2964 = vsel %vm2836, %v2116, %v2900
      %v2965 = vsel %vm2837, %v2118, %v2901
      %v2966 = vsel %vm2838, %v2122, %v2902
      %v2967 = vsel %vm2839, %v2124, %v2903
      %v2968 = vsel %vm2840, %v2126, %v2904
      %v2969 = vsel %vm2841, %v2128, %v2905
      %v2970 = vsel %vm2842, %v2132, %v2906
      %v2971 = vsel %vm2843, %v2134, %v2907
      %v2972 = vsel %vm2844, %v2136, %v2908
      %v2973 = vsel %vm2845, %v2138, %v2909
      %v2974 = vsel %vm2846, %v2142, %v2910
      %v2975 = vsel %vm2847, %v2144, %v2911
      %v2976 = vsel %vm2848, %v2146, %v2912
      %v2977 = vsel %vm2849, %v2148, %v2913
      %v2978 = vsel %vm2850, %v2152, %v2914
      %v2979 = vsel %vm2851, %v2154, %v2915
      %v2980 = vsel %vm2852, %v2156, %v2916
      %v2981 = vsel %vm2853, %v2158, %v2917
      %v2982 = vsel %vm2854, %v2162, %v2918
      %v2983 = vsel %vm2855, %v2164, %v2919
      %v2984 = vsel %vm2856, %v2166, %v2920
      %v2985 = vsel %vm2857, %v2168, %v2921
      %v2986 = vsel %vm2858, %v2172, %v2922
      %v2987 = vsel %vm2859, %v2174, %v2923
      %v2988 = vsel %vm2860, %v2176, %v2924
      %v2989 = vsel %vm2861, %v2178, %v2925
      %v2990 = vsel %vm2862, %v2182, %v2926
      %v2991 = vsel %vm2863, %v2184, %v2927
      %v2992 = vsel %vm2864, %v2186, %v2928
      %v2993 = vsel %vm2865, %v2188, %v2929
      %v2994 = vsel %vm2866, %v2192, %v2930
      %v2995 = vsel %vm2867, %v2194, %v2931
      %v2996 = vsel %vm2868, %v2196, %v2932
      %v2997 = vsel %vm2869, %v2198, %v2933
      %v2998 = vsel %vm2870, %v2202, %v2934
      %v2999 = vsel %vm2871, %v2204, %v2935
      %v3000 = vsel %vm2872, %v2206, %v2936
      %v3001 = vsel %vm2873, %v2208, %v2937
      %v3002 = vsel %vm2874, %v2212, %v2938
      %v3003 = vsel %vm2875, %v2214, %v2939
      %v3004 = vsel %vm2876, %v2216, %v2940
      %v3005 = vsel %vm2877, %v2218, %v2941
      %v3006 = vsel %vm2878, %v2222, %v2942
      %v3007 = vsel %vm2879, %v2224, %v2943
      %v3008 = vsel %vm2880, %v2226, %v2944
      %v3009 = vsel %vm2881, %v2228, %v2945
      %v3010 = vsel %vm2882, %v2232, %v2946
      %v3011 = vsel %vm2883, %v2234, %v2947
      %v3012 = vsel %vm2884, %v2236, %v2948
      %v3013 = vsel %vm2885, %v2238, %v2949
      %v3014 = vsel %vm2886, %v2242, %v2950
      %v3015 = vsel %vm2887, %v2244, %v2951
      %v3016 = vsel %vm2888, %v2246, %v2952
      %v3017 = vsel %vm2889, %v2248, %v2953
      %v3018 = vpack.c.bf16 %v2956, %v2954
      %v3019 = vpack.c.bf16 %v2957, %v2955
      %v3020 = vpack.c.bf16 %v2960, %v2958
      %v3021 = vpack.c.bf16 %v2961, %v2959
      %v3022 = vpack.c.bf16 %v2964, %v2962
      %v3023 = vpack.c.bf16 %v2965, %v2963
      %v3024 = vpack.c.bf16 %v2968, %v2966
      %v3025 = vpack.c.bf16 %v2969, %v2967
      %v3026 = vpack.c.bf16 %v2972, %v2970
      %v3027 = vpack.c.bf16 %v2973, %v2971
      %v3028 = vpack.c.bf16 %v2976, %v2974
      %v3029 = vpack.c.bf16 %v2977, %v2975
      %v3030 = vpack.c.bf16 %v2980, %v2978
      %v3031 = vpack.c.bf16 %v2981, %v2979
      %v3032 = vpack.c.bf16 %v2984, %v2982
      %v3033 = vpack.c.bf16 %v2985, %v2983
      %v3034 = vpack.c.bf16 %v2988, %v2986
      %v3035 = vpack.c.bf16 %v2989, %v2987
      %v3036 = vpack.c.bf16 %v2992, %v2990
      %v3037 = vpack.c.bf16 %v2993, %v2991
      %v3038 = vpack.c.bf16 %v2996, %v2994
      %v3039 = vpack.c.bf16 %v2997, %v2995
      %v3040 = vpack.c.bf16 %v3000, %v2998
      %v3041 = vpack.c.bf16 %v3001, %v2999
      %v3042 = vpack.c.bf16 %v3004, %v3002
      %v3043 = vpack.c.bf16 %v3005, %v3003
      %v3044 = vpack.c.bf16 %v3008, %v3006
      %v3045 = vpack.c.bf16 %v3009, %v3007
      %v3046 = vpack.c.bf16 %v3012, %v3010
      %v3047 = vpack.c.bf16 %v3013, %v3011
      %v3048 = vpack.c.bf16 %v3016, %v3014
      %v3049 = vpack.c.bf16 %v3017, %v3015
      %v3050 = vld [vmem:[%s7] sm:$0xff]
      %v3051 = vld [vmem:[%s7 + $0x8] sm:$0xff]
      %v3052 = vld [vmem:[%s7 + $0x10] sm:$0xff]
      %v3053 = vld [vmem:[%s7 + $0x18] sm:$0xff]
      %v3054 = vld [vmem:[%s7 + $0x20] sm:$0xff]
      %v3055 = vld [vmem:[%s7 + $0x28] sm:$0xff]
      %v3056 = vld [vmem:[%s7 + $0x30] sm:$0xff]
      %v3057 = vld [vmem:[%s7 + $0x38] sm:$0xff]
      %v3058 = vld [vmem:[%s7 + $0x40] sm:$0xff]
      %v3059 = vld [vmem:[%s7 + $0x48] sm:$0xff]
      %v3060 = vld [vmem:[%s7 + $0x50] sm:$0xff]
      %v3061 = vld [vmem:[%s7 + $0x58] sm:$0xff]
      %v3062 = vld [vmem:[%s7 + $0x60] sm:$0xff]
      %v3063 = vld [vmem:[%s7 + $0x68] sm:$0xff]
      %v3064 = vld [vmem:[%s7 + $0x70] sm:$0xff]
      %v3065 = vld [vmem:[%s7 + $0x78] sm:$0xff]
      %v3066 = vld [vmem:[%s7 + $0x80] sm:$0xff]
      %v3067 = vld [vmem:[%s7 + $0x88] sm:$0xff]
      %v3068 = vld [vmem:[%s7 + $0x90] sm:$0xff]
      %v3069 = vld [vmem:[%s7 + $0x98] sm:$0xff]
      %v3070 = vld [vmem:[%s7 + $0xa0] sm:$0xff]
      %v3071 = vld [vmem:[%s7 + $0xa8] sm:$0xff]
      %v3072 = vld [vmem:[%s7 + $0xb0] sm:$0xff]
      %v3073 = vld [vmem:[%s7 + $0xb8] sm:$0xff]
      %v3074 = vld [vmem:[%s7 + $0xc0] sm:$0xff]
      %v3075 = vld [vmem:[%s7 + $0xc8] sm:$0xff]
      %v3076 = vld [vmem:[%s7 + $0xd0] sm:$0xff]
      %v3077 = vld [vmem:[%s7 + $0xd8] sm:$0xff]
      %v3078 = vld [vmem:[%s7 + $0xe0] sm:$0xff]
      %v3079 = vld [vmem:[%s7 + $0xe8] sm:$0xff]
      %v3080 = vld [vmem:[%s7 + $0xf0] sm:$0xff]
      %v3081 = vld [vmem:[%s7 + $0xf8] sm:$0xff]
      %v3082 = vld [vmem:[%s8] sm:$0x3]
      %v3084 = vlaneseq
      %v3085 = vshrl.u32 %v3084, 7
      %v3086 = vsub.s32 0, %v3085
      %v3087 = vrot.slane %v3082, %v3086
      %v3088 = vlaneseq
      %v3089 = vshrl.u32 %v3088, 7
      %v3090 = vsub.s32 1, %v3089
      %v3091 = vrot.slane %v3082, %v3090
      %v3126 = vunpack.c.l.b16 %v3050
      %v3127 = vunpack.c.h.b16 %v3050
      %v3128 = vunpack.c.l.b16 %v3051
      %v3129 = vunpack.c.h.b16 %v3051
      %v3130 = vunpack.c.l.b16 %v3052
      %v3131 = vunpack.c.h.b16 %v3052
      %v3132 = vunpack.c.l.b16 %v3053
      %v3133 = vunpack.c.h.b16 %v3053
      %v3134 = vunpack.c.l.b16 %v3054
      %v3135 = vunpack.c.h.b16 %v3054
      %v3136 = vunpack.c.l.b16 %v3055
      %v3137 = vunpack.c.h.b16 %v3055
      %v3138 = vunpack.c.l.b16 %v3056
      %v3139 = vunpack.c.h.b16 %v3056
      %v3140 = vunpack.c.l.b16 %v3057
      %v3141 = vunpack.c.h.b16 %v3057
      %v3142 = vunpack.c.l.b16 %v3058
      %v3143 = vunpack.c.h.b16 %v3058
      %v3144 = vunpack.c.l.b16 %v3059
      %v3145 = vunpack.c.h.b16 %v3059
      %v3146 = vunpack.c.l.b16 %v3060
      %v3147 = vunpack.c.h.b16 %v3060
      %v3148 = vunpack.c.l.b16 %v3061
      %v3149 = vunpack.c.h.b16 %v3061
      %v3150 = vunpack.c.l.b16 %v3062
      %v3151 = vunpack.c.h.b16 %v3062
      %v3152 = vunpack.c.l.b16 %v3063
      %v3153 = vunpack.c.h.b16 %v3063
      %v3154 = vunpack.c.l.b16 %v3064
      %v3155 = vunpack.c.h.b16 %v3064
      %v3156 = vunpack.c.l.b16 %v3065
      %v3157 = vunpack.c.h.b16 %v3065
      %v3158 = vunpack.c.l.b16 %v3066
      %v3159 = vunpack.c.h.b16 %v3066
      %v3160 = vunpack.c.l.b16 %v3067
      %v3161 = vunpack.c.h.b16 %v3067
      %v3162 = vunpack.c.l.b16 %v3068
      %v3163 = vunpack.c.h.b16 %v3068
      %v3164 = vunpack.c.l.b16 %v3069
      %v3165 = vunpack.c.h.b16 %v3069
      %v3166 = vunpack.c.l.b16 %v3070
      %v3167 = vunpack.c.h.b16 %v3070
      %v3168 = vunpack.c.l.b16 %v3071
      %v3169 = vunpack.c.h.b16 %v3071
      %v3170 = vunpack.c.l.b16 %v3072
      %v3171 = vunpack.c.h.b16 %v3072
      %v3172 = vunpack.c.l.b16 %v3073
      %v3173 = vunpack.c.h.b16 %v3073
      %v3174 = vunpack.c.l.b16 %v3074
      %v3175 = vunpack.c.h.b16 %v3074
      %v3176 = vunpack.c.l.b16 %v3075
      %v3177 = vunpack.c.h.b16 %v3075
      %v3178 = vunpack.c.l.b16 %v3076
      %v3179 = vunpack.c.h.b16 %v3076
      %v3180 = vunpack.c.l.b16 %v3077
      %v3181 = vunpack.c.h.b16 %v3077
      %v3182 = vunpack.c.l.b16 %v3078
      %v3183 = vunpack.c.h.b16 %v3078
      %v3184 = vunpack.c.l.b16 %v3079
      %v3185 = vunpack.c.h.b16 %v3079
      %v3186 = vunpack.c.l.b16 %v3080
      %v3187 = vunpack.c.h.b16 %v3080
      %v3188 = vunpack.c.l.b16 %v3081
      %v3189 = vunpack.c.h.b16 %v3081
      %v3190 = vpack.c.b16 %v3128, %v3126
      %v3191 = vpack.c.b16 %v3129, %v3127
      %v3192 = vpack.c.b16 %v3132, %v3130
      %v3193 = vpack.c.b16 %v3133, %v3131
      %v3194 = vpack.c.b16 %v3136, %v3134
      %v3195 = vpack.c.b16 %v3137, %v3135
      %v3196 = vpack.c.b16 %v3140, %v3138
      %v3197 = vpack.c.b16 %v3141, %v3139
      %v3198 = vpack.c.b16 %v3144, %v3142
      %v3199 = vpack.c.b16 %v3145, %v3143
      %v3200 = vpack.c.b16 %v3148, %v3146
      %v3201 = vpack.c.b16 %v3149, %v3147
      %v3202 = vpack.c.b16 %v3152, %v3150
      %v3203 = vpack.c.b16 %v3153, %v3151
      %v3204 = vpack.c.b16 %v3156, %v3154
      %v3205 = vpack.c.b16 %v3157, %v3155
      %v3206 = vpack.c.b16 %v3160, %v3158
      %v3207 = vpack.c.b16 %v3161, %v3159
      %v3208 = vpack.c.b16 %v3164, %v3162
      %v3209 = vpack.c.b16 %v3165, %v3163
      %v3210 = vpack.c.b16 %v3168, %v3166
      %v3211 = vpack.c.b16 %v3169, %v3167
      %v3212 = vpack.c.b16 %v3172, %v3170
      %v3213 = vpack.c.b16 %v3173, %v3171
      %v3214 = vpack.c.b16 %v3176, %v3174
      %v3215 = vpack.c.b16 %v3177, %v3175
      %v3216 = vpack.c.b16 %v3180, %v3178
      %v3217 = vpack.c.b16 %v3181, %v3179
      %v3218 = vpack.c.b16 %v3184, %v3182
      %v3219 = vpack.c.b16 %v3185, %v3183
      %v3220 = vpack.c.b16 %v3188, %v3186
      %v3221 = vpack.c.b16 %v3189, %v3187
      %3254 = vmatprep.subr.bf16.mxu0 %v3205
      %3255 = vmatpush1.bf16.msra.mxu0 %v3204
      %3256 = vmatprep.subr.bf16.mxu0 %v3203
      %3257 = vmatpush1.bf16.msra.mxu0 %v3202
      %3258 = vmatprep.subr.bf16.mxu0 %v3201
      %3259 = vmatpush1.bf16.msra.mxu0 %v3200
      %3260 = vmatprep.subr.bf16.mxu0 %v3199
      %3261 = vmatpush1.bf16.msra.mxu0 %v3198
      %3262 = vmatprep.subr.bf16.mxu0 %v3197
      %3263 = vmatpush1.bf16.msra.mxu0 %v3196
      %3264 = vmatprep.subr.bf16.mxu0 %v3195
      %3265 = vmatpush1.bf16.msra.mxu0 %v3194
      %3266 = vmatprep.subr.bf16.mxu0 %v3193
      %3267 = vmatpush1.bf16.msra.mxu0 %v3192
      %3268 = vmatprep.subr.bf16.mxu0 %v3191
      %3269 = vmatpush1.bf16.msra.mxu0 %v3190
      %3270 = vmatprep.subr.bf16.mxu0 %v3221
      %3271 = vmatpush2.bf16.msra.mxu0 %v3220
      %3272 = vmatprep.subr.bf16.mxu0 %v3219
      %3273 = vmatpush2.bf16.msra.mxu0 %v3218
      %3274 = vmatprep.subr.bf16.mxu0 %v3217
      %3275 = vmatpush2.bf16.msra.mxu0 %v3216
      %3276 = vmatprep.subr.bf16.mxu0 %v3215
      %3277 = vmatpush2.bf16.msra.mxu0 %v3214
      %3278 = vmatprep.subr.bf16.mxu0 %v3213
      %3279 = vmatpush2.bf16.msra.mxu0 %v3212
      %3280 = vmatprep.subr.bf16.mxu0 %v3211
      %3281 = vmatpush2.bf16.msra.mxu0 %v3210
      %3282 = vmatprep.subr.bf16.mxu0 %v3209
      %3283 = vmatpush2.bf16.msra.mxu0 %v3208
      %3284 = vmatprep.subr.bf16.mxu0 %v3207
      %3285 = vmatpush2.bf16.msra.mxu0 %v3206
      %3286 = vmatprep.mubr.bf16.mxu0 %v3019
      %3287 = vmatmul.mubr.bf16.gmra.mxu0 %v3018
      %v3288 = vpop.f32.mrf.mxu0
      %v3289 = vadd.f32 %v3087, %v3288
      %v3290 = vpop.f32.mrf.mxu0
      %v3291 = vadd.f32 %v3091, %v3290
      %v3292 = vpop.f32.mrf.mxu0
      %v3293 = vadd.f32 %v3087, %v3292
      %v3294 = vpop.f32.mrf.mxu0
      %v3295 = vadd.f32 %v3091, %v3294
      %3296 = vmatprep.mubr.bf16.mxu0 %v3021
      %3297 = vmatmul.mubr.bf16.gmra.mxu0 %v3020
      %v3298 = vpop.f32.mrf.mxu0
      %v3299 = vadd.f32 %v3087, %v3298
      %v3300 = vpop.f32.mrf.mxu0
      %v3301 = vadd.f32 %v3091, %v3300
      %v3302 = vpop.f32.mrf.mxu0
      %v3303 = vadd.f32 %v3087, %v3302
      %v3304 = vpop.f32.mrf.mxu0
      %v3305 = vadd.f32 %v3091, %v3304
      %3306 = vmatprep.mubr.bf16.mxu0 %v3023
      %3307 = vmatmul.mubr.bf16.gmra.mxu0 %v3022
      %v3308 = vpop.f32.mrf.mxu0
      %v3309 = vadd.f32 %v3087, %v3308
      %v3310 = vpop.f32.mrf.mxu0
      %v3311 = vadd.f32 %v3091, %v3310
      %v3312 = vpop.f32.mrf.mxu0
      %v3313 = vadd.f32 %v3087, %v3312
      %v3314 = vpop.f32.mrf.mxu0
      %v3315 = vadd.f32 %v3091, %v3314
      %3316 = vmatprep.mubr.bf16.mxu0 %v3025
      %3317 = vmatmul.mubr.bf16.gmra.mxu0 %v3024
      %v3318 = vpop.f32.mrf.mxu0
      %v3319 = vadd.f32 %v3087, %v3318
      %v3320 = vpop.f32.mrf.mxu0
      %v3321 = vadd.f32 %v3091, %v3320
      %v3322 = vpop.f32.mrf.mxu0
      %v3323 = vadd.f32 %v3087, %v3322
      %v3324 = vpop.f32.mrf.mxu0
      %v3325 = vadd.f32 %v3091, %v3324
      %3326 = vmatprep.mubr.bf16.mxu0 %v3027
      %3327 = vmatmul.mubr.bf16.gmra.mxu0 %v3026
      %v3328 = vpop.f32.mrf.mxu0
      %v3329 = vadd.f32 %v3087, %v3328
      %v3330 = vpop.f32.mrf.mxu0
      %v3331 = vadd.f32 %v3091, %v3330
      %v3332 = vpop.f32.mrf.mxu0
      %v3333 = vadd.f32 %v3087, %v3332
      %v3334 = vpop.f32.mrf.mxu0
      %v3335 = vadd.f32 %v3091, %v3334
      %3336 = vmatprep.mubr.bf16.mxu0 %v3029
      %3337 = vmatmul.mubr.bf16.gmra.mxu0 %v3028
      %v3338 = vpop.f32.mrf.mxu0
      %v3339 = vadd.f32 %v3087, %v3338
      %v3340 = vpop.f32.mrf.mxu0
      %v3341 = vadd.f32 %v3091, %v3340
      %v3342 = vpop.f32.mrf.mxu0
      %v3343 = vadd.f32 %v3087, %v3342
      %v3344 = vpop.f32.mrf.mxu0
      %v3345 = vadd.f32 %v3091, %v3344
      %3346 = vmatprep.mubr.bf16.mxu0 %v3031
      %3347 = vmatmul.mubr.bf16.gmra.mxu0 %v3030
      %v3348 = vpop.f32.mrf.mxu0
      %v3349 = vadd.f32 %v3087, %v3348
      %v3350 = vpop.f32.mrf.mxu0
      %v3351 = vadd.f32 %v3091, %v3350
      %v3352 = vpop.f32.mrf.mxu0
      %v3353 = vadd.f32 %v3087, %v3352
      %v3354 = vpop.f32.mrf.mxu0
      %v3355 = vadd.f32 %v3091, %v3354
      %3356 = vmatprep.mubr.bf16.mxu0 %v3033
      %3357 = vmatmul.mubr.bf16.gmra.mxu0 %v3032
      %v3358 = vpop.f32.mrf.mxu0
      %v3359 = vadd.f32 %v3087, %v3358
      %v3360 = vpop.f32.mrf.mxu0
      %v3361 = vadd.f32 %v3091, %v3360
      %v3362 = vpop.f32.mrf.mxu0
      %v3363 = vadd.f32 %v3087, %v3362
      %v3364 = vpop.f32.mrf.mxu0
      %v3365 = vadd.f32 %v3091, %v3364
      %3366 = vmatprep.mubr.bf16.mxu0 %v3035
      %3367 = vmatmul.mubr.bf16.gmra.mxu0 %v3034
      %v3368 = vpop.f32.mrf.mxu0
      %v3369 = vadd.f32 %v3087, %v3368
      %v3370 = vpop.f32.mrf.mxu0
      %v3371 = vadd.f32 %v3091, %v3370
      %v3372 = vpop.f32.mrf.mxu0
      %v3373 = vadd.f32 %v3087, %v3372
      %v3374 = vpop.f32.mrf.mxu0
      %v3375 = vadd.f32 %v3091, %v3374
      %3376 = vmatprep.mubr.bf16.mxu0 %v3037
      %3377 = vmatmul.mubr.bf16.gmra.mxu0 %v3036
      %v3378 = vpop.f32.mrf.mxu0
      %v3379 = vadd.f32 %v3087, %v3378
      %v3380 = vpop.f32.mrf.mxu0
      %v3381 = vadd.f32 %v3091, %v3380
      %v3382 = vpop.f32.mrf.mxu0
      %v3383 = vadd.f32 %v3087, %v3382
      %v3384 = vpop.f32.mrf.mxu0
      %v3385 = vadd.f32 %v3091, %v3384
      %3386 = vmatprep.mubr.bf16.mxu0 %v3039
      %3387 = vmatmul.mubr.bf16.gmra.mxu0 %v3038
      %v3388 = vpop.f32.mrf.mxu0
      %v3389 = vadd.f32 %v3087, %v3388
      %v3390 = vpop.f32.mrf.mxu0
      %v3391 = vadd.f32 %v3091, %v3390
      %v3392 = vpop.f32.mrf.mxu0
      %v3393 = vadd.f32 %v3087, %v3392
      %v3394 = vpop.f32.mrf.mxu0
      %v3395 = vadd.f32 %v3091, %v3394
      %3396 = vmatprep.mubr.bf16.mxu0 %v3041
      %3397 = vmatmul.mubr.bf16.gmra.mxu0 %v3040
      %v3398 = vpop.f32.mrf.mxu0
      %v3399 = vadd.f32 %v3087, %v3398
      %v3400 = vpop.f32.mrf.mxu0
      %v3401 = vadd.f32 %v3091, %v3400
      %v3402 = vpop.f32.mrf.mxu0
      %v3403 = vadd.f32 %v3087, %v3402
      %v3404 = vpop.f32.mrf.mxu0
      %v3405 = vadd.f32 %v3091, %v3404
      %3406 = vmatprep.mubr.bf16.mxu0 %v3043
      %3407 = vmatmul.mubr.bf16.gmra.mxu0 %v3042
      %v3408 = vpop.f32.mrf.mxu0
      %v3409 = vadd.f32 %v3087, %v3408
      %v3410 = vpop.f32.mrf.mxu0
      %v3411 = vadd.f32 %v3091, %v3410
      %v3412 = vpop.f32.mrf.mxu0
      %v3413 = vadd.f32 %v3087, %v3412
      %v3414 = vpop.f32.mrf.mxu0
      %v3415 = vadd.f32 %v3091, %v3414
      %3416 = vmatprep.mubr.bf16.mxu0 %v3045
      %3417 = vmatmul.mubr.bf16.gmra.mxu0 %v3044
      %v3418 = vpop.f32.mrf.mxu0
      %v3419 = vadd.f32 %v3087, %v3418
      %v3420 = vpop.f32.mrf.mxu0
      %v3421 = vadd.f32 %v3091, %v3420
      %v3422 = vpop.f32.mrf.mxu0
      %v3423 = vadd.f32 %v3087, %v3422
      %v3424 = vpop.f32.mrf.mxu0
      %v3425 = vadd.f32 %v3091, %v3424
      %3426 = vmatprep.mubr.bf16.mxu0 %v3047
      %3427 = vmatmul.mubr.bf16.gmra.mxu0 %v3046
      %v3428 = vpop.f32.mrf.mxu0
      %v3429 = vadd.f32 %v3087, %v3428
      %v3430 = vpop.f32.mrf.mxu0
      %v3431 = vadd.f32 %v3091, %v3430
      %v3432 = vpop.f32.mrf.mxu0
      %v3433 = vadd.f32 %v3087, %v3432
      %v3434 = vpop.f32.mrf.mxu0
      %v3435 = vadd.f32 %v3091, %v3434
      %3436 = vmatprep.mubr.bf16.mxu0 %v3049
      %3437 = vmatmul.mubr.bf16.gmra.mxu0 %v3048
      %v3438 = vpop.f32.mrf.mxu0
      %v3439 = vadd.f32 %v3087, %v3438
      %v3440 = vpop.f32.mrf.mxu0
      %v3441 = vadd.f32 %v3091, %v3440
      %v3442 = vpop.f32.mrf.mxu0
      %v3443 = vadd.f32 %v3087, %v3442
      %v3444 = vpop.f32.mrf.mxu0
      %v3445 = vadd.f32 %v3091, %v3444
      %3446 = vdwg.mxu0
      %v3447 = vmin.f32 %v3289, 20.0
      %v3448 = vmin.f32 %v3291, 20.0
      %v3449 = vmin.f32 %v3293, 20.0
      %v3450 = vmin.f32 %v3295, 20.0
      %v3451 = vmin.f32 %v3299, 20.0
      %v3452 = vmin.f32 %v3301, 20.0
      %v3453 = vmin.f32 %v3303, 20.0
      %v3454 = vmin.f32 %v3305, 20.0
      %v3455 = vmin.f32 %v3309, 20.0
      %v3456 = vmin.f32 %v3311, 20.0
      %v3457 = vmin.f32 %v3313, 20.0
      %v3458 = vmin.f32 %v3315, 20.0
      %v3459 = vmin.f32 %v3319, 20.0
      %v3460 = vmin.f32 %v3321, 20.0
      %v3461 = vmin.f32 %v3323, 20.0
      %v3462 = vmin.f32 %v3325, 20.0
      %v3463 = vmin.f32 %v3329, 20.0
      %v3464 = vmin.f32 %v3331, 20.0
      %v3465 = vmin.f32 %v3333, 20.0
      %v3466 = vmin.f32 %v3335, 20.0
      %v3467 = vmin.f32 %v3339, 20.0
      %v3468 = vmin.f32 %v3341, 20.0
      %v3469 = vmin.f32 %v3343, 20.0
      %v3470 = vmin.f32 %v3345, 20.0
      %v3471 = vmin.f32 %v3349, 20.0
      %v3472 = vmin.f32 %v3351, 20.0
      %v3473 = vmin.f32 %v3353, 20.0
      %v3474 = vmin.f32 %v3355, 20.0
      %v3475 = vmin.f32 %v3359, 20.0
      %v3476 = vmin.f32 %v3361, 20.0
      %v3477 = vmin.f32 %v3363, 20.0
      %v3478 = vmin.f32 %v3365, 20.0
      %v3479 = vmin.f32 %v3369, 20.0
      %v3480 = vmin.f32 %v3371, 20.0
      %v3481 = vmin.f32 %v3373, 20.0
      %v3482 = vmin.f32 %v3375, 20.0
      %v3483 = vmin.f32 %v3379, 20.0
      %v3484 = vmin.f32 %v3381, 20.0
      %v3485 = vmin.f32 %v3383, 20.0
      %v3486 = vmin.f32 %v3385, 20.0
      %v3487 = vmin.f32 %v3389, 20.0
      %v3488 = vmin.f32 %v3391, 20.0
      %v3489 = vmin.f32 %v3393, 20.0
      %v3490 = vmin.f32 %v3395, 20.0
      %v3491 = vmin.f32 %v3399, 20.0
      %v3492 = vmin.f32 %v3401, 20.0
      %v3493 = vmin.f32 %v3403, 20.0
      %v3494 = vmin.f32 %v3405, 20.0
      %v3495 = vmin.f32 %v3409, 20.0
      %v3496 = vmin.f32 %v3411, 20.0
      %v3497 = vmin.f32 %v3413, 20.0
      %v3498 = vmin.f32 %v3415, 20.0
      %v3499 = vmin.f32 %v3419, 20.0
      %v3500 = vmin.f32 %v3421, 20.0
      %v3501 = vmin.f32 %v3423, 20.0
      %v3502 = vmin.f32 %v3425, 20.0
      %v3503 = vmin.f32 %v3429, 20.0
      %v3504 = vmin.f32 %v3431, 20.0
      %v3505 = vmin.f32 %v3433, 20.0
      %v3506 = vmin.f32 %v3435, 20.0
      %v3507 = vmin.f32 %v3439, 20.0
      %v3508 = vmin.f32 %v3441, 20.0
      %v3509 = vmin.f32 %v3443, 20.0
      %v3510 = vmin.f32 %v3445, 20.0
      %v3511 = vmul.f32 %v3447, 1.442695
      %v3512 = vpow.pop %v3511
      %v3513 = vmul.f32 %v3448, 1.442695
      %v3514 = vpow.pop %v3513
      %v3515 = vmul.f32 %v3449, 1.442695
      %v3516 = vpow.pop %v3515
      %v3517 = vmul.f32 %v3450, 1.442695
      %v3518 = vpow.pop %v3517
      %v3519 = vmul.f32 %v3451, 1.442695
      %v3520 = vpow.pop %v3519
      %v3521 = vmul.f32 %v3452, 1.442695
      %v3522 = vpow.pop %v3521
      %v3523 = vmul.f32 %v3453, 1.442695
      %v3524 = vpow.pop %v3523
      %v3525 = vmul.f32 %v3454, 1.442695
      %v3526 = vpow.pop %v3525
      %v3527 = vmul.f32 %v3455, 1.442695
      %v3528 = vpow.pop %v3527
      %v3529 = vmul.f32 %v3456, 1.442695
      %v3530 = vpow.pop %v3529
      %v3531 = vmul.f32 %v3457, 1.442695
      %v3532 = vpow.pop %v3531
      %v3533 = vmul.f32 %v3458, 1.442695
      %v3534 = vpow.pop %v3533
      %v3535 = vmul.f32 %v3459, 1.442695
      %v3536 = vpow.pop %v3535
      %v3537 = vmul.f32 %v3460, 1.442695
      %v3538 = vpow.pop %v3537
      %v3539 = vmul.f32 %v3461, 1.442695
      %v3540 = vpow.pop %v3539
      %v3541 = vmul.f32 %v3462, 1.442695
      %v3542 = vpow.pop %v3541
      %v3543 = vmul.f32 %v3463, 1.442695
      %v3544 = vpow.pop %v3543
      %v3545 = vmul.f32 %v3464, 1.442695
      %v3546 = vpow.pop %v3545
      %v3547 = vmul.f32 %v3465, 1.442695
      %v3548 = vpow.pop %v3547
      %v3549 = vmul.f32 %v3466, 1.442695
      %v3550 = vpow.pop %v3549
      %v3551 = vmul.f32 %v3467, 1.442695
      %v3552 = vpow.pop %v3551
      %v3553 = vmul.f32 %v3468, 1.442695
      %v3554 = vpow.pop %v3553
      %v3555 = vmul.f32 %v3469, 1.442695
      %v3556 = vpow.pop %v3555
      %v3557 = vmul.f32 %v3470, 1.442695
      %v3558 = vpow.pop %v3557
      %v3559 = vmul.f32 %v3471, 1.442695
      %v3560 = vpow.pop %v3559
      %v3561 = vmul.f32 %v3472, 1.442695
      %v3562 = vpow.pop %v3561
      %v3563 = vmul.f32 %v3473, 1.442695
      %v3564 = vpow.pop %v3563
      %v3565 = vmul.f32 %v3474, 1.442695
      %v3566 = vpow.pop %v3565
      %v3567 = vmul.f32 %v3475, 1.442695
      %v3568 = vpow.pop %v3567
      %v3569 = vmul.f32 %v3476, 1.442695
      %v3570 = vpow.pop %v3569
      %v3571 = vmul.f32 %v3477, 1.442695
      %v3572 = vpow.pop %v3571
      %v3573 = vmul.f32 %v3478, 1.442695
      %v3574 = vpow.pop %v3573
      %v3575 = vmul.f32 %v3479, 1.442695
      %v3576 = vpow.pop %v3575
      %v3577 = vmul.f32 %v3480, 1.442695
      %v3578 = vpow.pop %v3577
      %v3579 = vmul.f32 %v3481, 1.442695
      %v3580 = vpow.pop %v3579
      %v3581 = vmul.f32 %v3482, 1.442695
      %v3582 = vpow.pop %v3581
      %v3583 = vmul.f32 %v3483, 1.442695
      %v3584 = vpow.pop %v3583
      %v3585 = vmul.f32 %v3484, 1.442695
      %v3586 = vpow.pop %v3585
      %v3587 = vmul.f32 %v3485, 1.442695
      %v3588 = vpow.pop %v3587
      %v3589 = vmul.f32 %v3486, 1.442695
      %v3590 = vpow.pop %v3589
      %v3591 = vmul.f32 %v3487, 1.442695
      %v3592 = vpow.pop %v3591
      %v3593 = vmul.f32 %v3488, 1.442695
      %v3594 = vpow.pop %v3593
      %v3595 = vmul.f32 %v3489, 1.442695
      %v3596 = vpow.pop %v3595
      %v3597 = vmul.f32 %v3490, 1.442695
      %v3598 = vpow.pop %v3597
      %v3599 = vmul.f32 %v3491, 1.442695
      %v3600 = vpow.pop %v3599
      %v3601 = vmul.f32 %v3492, 1.442695
      %v3602 = vpow.pop %v3601
      %v3603 = vmul.f32 %v3493, 1.442695
      %v3604 = vpow.pop %v3603
      %v3605 = vmul.f32 %v3494, 1.442695
      %v3606 = vpow.pop %v3605
      %v3607 = vmul.f32 %v3495, 1.442695
      %v3608 = vpow.pop %v3607
      %v3609 = vmul.f32 %v3496, 1.442695
      %v3610 = vpow.pop %v3609
      %v3611 = vmul.f32 %v3497, 1.442695
      %v3612 = vpow.pop %v3611
      %v3613 = vmul.f32 %v3498, 1.442695
      %v3614 = vpow.pop %v3613
      %v3615 = vmul.f32 %v3499, 1.442695
      %v3616 = vpow.pop %v3615
      %v3617 = vmul.f32 %v3500, 1.442695
      %v3618 = vpow.pop %v3617
      %v3619 = vmul.f32 %v3501, 1.442695
      %v3620 = vpow.pop %v3619
      %v3621 = vmul.f32 %v3502, 1.442695
      %v3622 = vpow.pop %v3621
      %v3623 = vmul.f32 %v3503, 1.442695
      %v3624 = vpow.pop %v3623
      %v3625 = vmul.f32 %v3504, 1.442695
      %v3626 = vpow.pop %v3625
      %v3627 = vmul.f32 %v3505, 1.442695
      %v3628 = vpow.pop %v3627
      %v3629 = vmul.f32 %v3506, 1.442695
      %v3630 = vpow.pop %v3629
      %v3631 = vmul.f32 %v3507, 1.442695
      %v3632 = vpow.pop %v3631
      %v3633 = vmul.f32 %v3508, 1.442695
      %v3634 = vpow.pop %v3633
      %v3635 = vmul.f32 %v3509, 1.442695
      %v3636 = vpow.pop %v3635
      %v3637 = vmul.f32 %v3510, 1.442695
      %v3638 = vpow.pop %v3637
      %v3639 = vadd.f32 %v3512, 1.0
      %v3640 = vadd.f32 %v3514, 1.0
      %v3641 = vadd.f32 %v3516, 1.0
      %v3642 = vadd.f32 %v3518, 1.0
      %v3643 = vadd.f32 %v3520, 1.0
      %v3644 = vadd.f32 %v3522, 1.0
      %v3645 = vadd.f32 %v3524, 1.0
      %v3646 = vadd.f32 %v3526, 1.0
      %v3647 = vadd.f32 %v3528, 1.0
      %v3648 = vadd.f32 %v3530, 1.0
      %v3649 = vadd.f32 %v3532, 1.0
      %v3650 = vadd.f32 %v3534, 1.0
      %v3651 = vadd.f32 %v3536, 1.0
      %v3652 = vadd.f32 %v3538, 1.0
      %v3653 = vadd.f32 %v3540, 1.0
      %v3654 = vadd.f32 %v3542, 1.0
      %v3655 = vadd.f32 %v3544, 1.0
      %v3656 = vadd.f32 %v3546, 1.0
      %v3657 = vadd.f32 %v3548, 1.0
      %v3658 = vadd.f32 %v3550, 1.0
      %v3659 = vadd.f32 %v3552, 1.0
      %v3660 = vadd.f32 %v3554, 1.0
      %v3661 = vadd.f32 %v3556, 1.0
      %v3662 = vadd.f32 %v3558, 1.0
      %v3663 = vadd.f32 %v3560, 1.0
      %v3664 = vadd.f32 %v3562, 1.0
      %v3665 = vadd.f32 %v3564, 1.0
      %v3666 = vadd.f32 %v3566, 1.0
      %v3667 = vadd.f32 %v3568, 1.0
      %v3668 = vadd.f32 %v3570, 1.0
      %v3669 = vadd.f32 %v3572, 1.0
      %v3670 = vadd.f32 %v3574, 1.0
      %v3671 = vadd.f32 %v3576, 1.0
      %v3672 = vadd.f32 %v3578, 1.0
      %v3673 = vadd.f32 %v3580, 1.0
      %v3674 = vadd.f32 %v3582, 1.0
      %v3675 = vadd.f32 %v3584, 1.0
      %v3676 = vadd.f32 %v3586, 1.0
      %v3677 = vadd.f32 %v3588, 1.0
      %v3678 = vadd.f32 %v3590, 1.0
      %v3679 = vadd.f32 %v3592, 1.0
      %v3680 = vadd.f32 %v3594, 1.0
      %v3681 = vadd.f32 %v3596, 1.0
      %v3682 = vadd.f32 %v3598, 1.0
      %v3683 = vadd.f32 %v3600, 1.0
      %v3684 = vadd.f32 %v3602, 1.0
      %v3685 = vadd.f32 %v3604, 1.0
      %v3686 = vadd.f32 %v3606, 1.0
      %v3687 = vadd.f32 %v3608, 1.0
      %v3688 = vadd.f32 %v3610, 1.0
      %v3689 = vadd.f32 %v3612, 1.0
      %v3690 = vadd.f32 %v3614, 1.0
      %v3691 = vadd.f32 %v3616, 1.0
      %v3692 = vadd.f32 %v3618, 1.0
      %v3693 = vadd.f32 %v3620, 1.0
      %v3694 = vadd.f32 %v3622, 1.0
      %v3695 = vadd.f32 %v3624, 1.0
      %v3696 = vadd.f32 %v3626, 1.0
      %v3697 = vadd.f32 %v3628, 1.0
      %v3698 = vadd.f32 %v3630, 1.0
      %v3699 = vadd.f32 %v3632, 1.0
      %v3700 = vadd.f32 %v3634, 1.0
      %v3701 = vadd.f32 %v3636, 1.0
      %v3702 = vadd.f32 %v3638, 1.0
      %v3703 = vmul.f32 %v3639, %v3639
      %v3704 = vmul.f32 %v3640, %v3640
      %v3705 = vmul.f32 %v3641, %v3641
      %v3706 = vmul.f32 %v3642, %v3642
      %v3707 = vmul.f32 %v3643, %v3643
      %v3708 = vmul.f32 %v3644, %v3644
      %v3709 = vmul.f32 %v3645, %v3645
      %v3710 = vmul.f32 %v3646, %v3646
      %v3711 = vmul.f32 %v3647, %v3647
      %v3712 = vmul.f32 %v3648, %v3648
      %v3713 = vmul.f32 %v3649, %v3649
      %v3714 = vmul.f32 %v3650, %v3650
      %v3715 = vmul.f32 %v3651, %v3651
      %v3716 = vmul.f32 %v3652, %v3652
      %v3717 = vmul.f32 %v3653, %v3653
      %v3718 = vmul.f32 %v3654, %v3654
      %v3719 = vmul.f32 %v3655, %v3655
      %v3720 = vmul.f32 %v3656, %v3656
      %v3721 = vmul.f32 %v3657, %v3657
      %v3722 = vmul.f32 %v3658, %v3658
      %v3723 = vmul.f32 %v3659, %v3659
      %v3724 = vmul.f32 %v3660, %v3660
      %v3725 = vmul.f32 %v3661, %v3661
      %v3726 = vmul.f32 %v3662, %v3662
      %v3727 = vmul.f32 %v3663, %v3663
      %v3728 = vmul.f32 %v3664, %v3664
      %v3729 = vmul.f32 %v3665, %v3665
      %v3730 = vmul.f32 %v3666, %v3666
      %v3731 = vmul.f32 %v3667, %v3667
      %v3732 = vmul.f32 %v3668, %v3668
      %v3733 = vmul.f32 %v3669, %v3669
      %v3734 = vmul.f32 %v3670, %v3670
      %v3735 = vmul.f32 %v3671, %v3671
      %v3736 = vmul.f32 %v3672, %v3672
      %v3737 = vmul.f32 %v3673, %v3673
      %v3738 = vmul.f32 %v3674, %v3674
      %v3739 = vmul.f32 %v3675, %v3675
      %v3740 = vmul.f32 %v3676, %v3676
      %v3741 = vmul.f32 %v3677, %v3677
      %v3742 = vmul.f32 %v3678, %v3678
      %v3743 = vmul.f32 %v3679, %v3679
      %v3744 = vmul.f32 %v3680, %v3680
      %v3745 = vmul.f32 %v3681, %v3681
      %v3746 = vmul.f32 %v3682, %v3682
      %v3747 = vmul.f32 %v3683, %v3683
      %v3748 = vmul.f32 %v3684, %v3684
      %v3749 = vmul.f32 %v3685, %v3685
      %v3750 = vmul.f32 %v3686, %v3686
      %v3751 = vmul.f32 %v3687, %v3687
      %v3752 = vmul.f32 %v3688, %v3688
      %v3753 = vmul.f32 %v3689, %v3689
      %v3754 = vmul.f32 %v3690, %v3690
      %v3755 = vmul.f32 %v3691, %v3691
      %v3756 = vmul.f32 %v3692, %v3692
      %v3757 = vmul.f32 %v3693, %v3693
      %v3758 = vmul.f32 %v3694, %v3694
      %v3759 = vmul.f32 %v3695, %v3695
      %v3760 = vmul.f32 %v3696, %v3696
      %v3761 = vmul.f32 %v3697, %v3697
      %v3762 = vmul.f32 %v3698, %v3698
      %v3763 = vmul.f32 %v3699, %v3699
      %v3764 = vmul.f32 %v3700, %v3700
      %v3765 = vmul.f32 %v3701, %v3701
      %v3766 = vmul.f32 %v3702, %v3702
      %v3767 = vsub.f32 %v3703, 1.0
      %v3768 = vsub.f32 %v3704, 1.0
      %v3769 = vsub.f32 %v3705, 1.0
      %v3770 = vsub.f32 %v3706, 1.0
      %v3771 = vsub.f32 %v3707, 1.0
      %v3772 = vsub.f32 %v3708, 1.0
      %v3773 = vsub.f32 %v3709, 1.0
      %v3774 = vsub.f32 %v3710, 1.0
      %v3775 = vsub.f32 %v3711, 1.0
      %v3776 = vsub.f32 %v3712, 1.0
      %v3777 = vsub.f32 %v3713, 1.0
      %v3778 = vsub.f32 %v3714, 1.0
      %v3779 = vsub.f32 %v3715, 1.0
      %v3780 = vsub.f32 %v3716, 1.0
      %v3781 = vsub.f32 %v3717, 1.0
      %v3782 = vsub.f32 %v3718, 1.0
      %v3783 = vsub.f32 %v3719, 1.0
      %v3784 = vsub.f32 %v3720, 1.0
      %v3785 = vsub.f32 %v3721, 1.0
      %v3786 = vsub.f32 %v3722, 1.0
      %v3787 = vsub.f32 %v3723, 1.0
      %v3788 = vsub.f32 %v3724, 1.0
      %v3789 = vsub.f32 %v3725, 1.0
      %v3790 = vsub.f32 %v3726, 1.0
      %v3791 = vsub.f32 %v3727, 1.0
      %v3792 = vsub.f32 %v3728, 1.0
      %v3793 = vsub.f32 %v3729, 1.0
      %v3794 = vsub.f32 %v3730, 1.0
      %v3795 = vsub.f32 %v3731, 1.0
      %v3796 = vsub.f32 %v3732, 1.0
      %v3797 = vsub.f32 %v3733, 1.0
      %v3798 = vsub.f32 %v3734, 1.0
      %v3799 = vsub.f32 %v3735, 1.0
      %v3800 = vsub.f32 %v3736, 1.0
      %v3801 = vsub.f32 %v3737, 1.0
      %v3802 = vsub.f32 %v3738, 1.0
      %v3803 = vsub.f32 %v3739, 1.0
      %v3804 = vsub.f32 %v3740, 1.0
      %v3805 = vsub.f32 %v3741, 1.0
      %v3806 = vsub.f32 %v3742, 1.0
      %v3807 = vsub.f32 %v3743, 1.0
      %v3808 = vsub.f32 %v3744, 1.0
      %v3809 = vsub.f32 %v3745, 1.0
      %v3810 = vsub.f32 %v3746, 1.0
      %v3811 = vsub.f32 %v3747, 1.0
      %v3812 = vsub.f32 %v3748, 1.0
      %v3813 = vsub.f32 %v3749, 1.0
      %v3814 = vsub.f32 %v3750, 1.0
      %v3815 = vsub.f32 %v3751, 1.0
      %v3816 = vsub.f32 %v3752, 1.0
      %v3817 = vsub.f32 %v3753, 1.0
      %v3818 = vsub.f32 %v3754, 1.0
      %v3819 = vsub.f32 %v3755, 1.0
      %v3820 = vsub.f32 %v3756, 1.0
      %v3821 = vsub.f32 %v3757, 1.0
      %v3822 = vsub.f32 %v3758, 1.0
      %v3823 = vsub.f32 %v3759, 1.0
      %v3824 = vsub.f32 %v3760, 1.0
      %v3825 = vsub.f32 %v3761, 1.0
      %v3826 = vsub.f32 %v3762, 1.0
      %v3827 = vsub.f32 %v3763, 1.0
      %v3828 = vsub.f32 %v3764, 1.0
      %v3829 = vsub.f32 %v3765, 1.0
      %v3830 = vsub.f32 %v3766, 1.0
      %v3831 = vadd.f32 %v3703, 1.0
      %v3832 = vadd.f32 %v3704, 1.0
      %v3833 = vadd.f32 %v3705, 1.0
      %v3834 = vadd.f32 %v3706, 1.0
      %v3835 = vadd.f32 %v3707, 1.0
      %v3836 = vadd.f32 %v3708, 1.0
      %v3837 = vadd.f32 %v3709, 1.0
      %v3838 = vadd.f32 %v3710, 1.0
      %v3839 = vadd.f32 %v3711, 1.0
      %v3840 = vadd.f32 %v3712, 1.0
      %v3841 = vadd.f32 %v3713, 1.0
      %v3842 = vadd.f32 %v3714, 1.0
      %v3843 = vadd.f32 %v3715, 1.0
      %v3844 = vadd.f32 %v3716, 1.0
      %v3845 = vadd.f32 %v3717, 1.0
      %v3846 = vadd.f32 %v3718, 1.0
      %v3847 = vadd.f32 %v3719, 1.0
      %v3848 = vadd.f32 %v3720, 1.0
      %v3849 = vadd.f32 %v3721, 1.0
      %v3850 = vadd.f32 %v3722, 1.0
      %v3851 = vadd.f32 %v3723, 1.0
      %v3852 = vadd.f32 %v3724, 1.0
      %v3853 = vadd.f32 %v3725, 1.0
      %v3854 = vadd.f32 %v3726, 1.0
      %v3855 = vadd.f32 %v3727, 1.0
      %v3856 = vadd.f32 %v3728, 1.0
      %v3857 = vadd.f32 %v3729, 1.0
      %v3858 = vadd.f32 %v3730, 1.0
      %v3859 = vadd.f32 %v3731, 1.0
      %v3860 = vadd.f32 %v3732, 1.0
      %v3861 = vadd.f32 %v3733, 1.0
      %v3862 = vadd.f32 %v3734, 1.0
      %v3863 = vadd.f32 %v3735, 1.0
      %v3864 = vadd.f32 %v3736, 1.0
      %v3865 = vadd.f32 %v3737, 1.0
      %v3866 = vadd.f32 %v3738, 1.0
      %v3867 = vadd.f32 %v3739, 1.0
      %v3868 = vadd.f32 %v3740, 1.0
      %v3869 = vadd.f32 %v3741, 1.0
      %v3870 = vadd.f32 %v3742, 1.0
      %v3871 = vadd.f32 %v3743, 1.0
      %v3872 = vadd.f32 %v3744, 1.0
      %v3873 = vadd.f32 %v3745, 1.0
      %v3874 = vadd.f32 %v3746, 1.0
      %v3875 = vadd.f32 %v3747, 1.0
      %v3876 = vadd.f32 %v3748, 1.0
      %v3877 = vadd.f32 %v3749, 1.0
      %v3878 = vadd.f32 %v3750, 1.0
      %v3879 = vadd.f32 %v3751, 1.0
      %v3880 = vadd.f32 %v3752, 1.0
      %v3881 = vadd.f32 %v3753, 1.0
      %v3882 = vadd.f32 %v3754, 1.0
      %v3883 = vadd.f32 %v3755, 1.0
      %v3884 = vadd.f32 %v3756, 1.0
      %v3885 = vadd.f32 %v3757, 1.0
      %v3886 = vadd.f32 %v3758, 1.0
      %v3887 = vadd.f32 %v3759, 1.0
      %v3888 = vadd.f32 %v3760, 1.0
      %v3889 = vadd.f32 %v3761, 1.0
      %v3890 = vadd.f32 %v3762, 1.0
      %v3891 = vadd.f32 %v3763, 1.0
      %v3892 = vadd.f32 %v3764, 1.0
      %v3893 = vadd.f32 %v3765, 1.0
      %v3894 = vadd.f32 %v3766, 1.0
      %v3895 = vrcp.pop %v3831
      %v3896 = vmul.f32 %v3767, %v3895
      %v3897 = vrcp.pop %v3832
      %v3898 = vmul.f32 %v3768, %v3897
      %v3899 = vrcp.pop %v3833
      %v3900 = vmul.f32 %v3769, %v3899
      %v3901 = vrcp.pop %v3834
      %v3902 = vmul.f32 %v3770, %v3901
      %v3903 = vrcp.pop %v3835
      %v3904 = vmul.f32 %v3771, %v3903
      %v3905 = vrcp.pop %v3836
      %v3906 = vmul.f32 %v3772, %v3905
      %v3907 = vrcp.pop %v3837
      %v3908 = vmul.f32 %v3773, %v3907
      %v3909 = vrcp.pop %v3838
      %v3910 = vmul.f32 %v3774, %v3909
      %v3911 = vrcp.pop %v3839
      %v3912 = vmul.f32 %v3775, %v3911
      %v3913 = vrcp.pop %v3840
      %v3914 = vmul.f32 %v3776, %v3913
      %v3915 = vrcp.pop %v3841
      %v3916 = vmul.f32 %v3777, %v3915
      %v3917 = vrcp.pop %v3842
      %v3918 = vmul.f32 %v3778, %v3917
      %v3919 = vrcp.pop %v3843
      %v3920 = vmul.f32 %v3779, %v3919
      %v3921 = vrcp.pop %v3844
      %v3922 = vmul.f32 %v3780, %v3921
      %v3923 = vrcp.pop %v3845
      %v3924 = vmul.f32 %v3781, %v3923
      %v3925 = vrcp.pop %v3846
      %v3926 = vmul.f32 %v3782, %v3925
      %v3927 = vrcp.pop %v3847
      %v3928 = vmul.f32 %v3783, %v3927
      %v3929 = vrcp.pop %v3848
      %v3930 = vmul.f32 %v3784, %v3929
      %v3931 = vrcp.pop %v3849
      %v3932 = vmul.f32 %v3785, %v3931
      %v3933 = vrcp.pop %v3850
      %v3934 = vmul.f32 %v3786, %v3933
      %v3935 = vrcp.pop %v3851
      %v3936 = vmul.f32 %v3787, %v3935
      %v3937 = vrcp.pop %v3852
      %v3938 = vmul.f32 %v3788, %v3937
      %v3939 = vrcp.pop %v3853
      %v3940 = vmul.f32 %v3789, %v3939
      %v3941 = vrcp.pop %v3854
      %v3942 = vmul.f32 %v3790, %v3941
      %v3943 = vrcp.pop %v3855
      %v3944 = vmul.f32 %v3791, %v3943
      %v3945 = vrcp.pop %v3856
      %v3946 = vmul.f32 %v3792, %v3945
      %v3947 = vrcp.pop %v3857
      %v3948 = vmul.f32 %v3793, %v3947
      %v3949 = vrcp.pop %v3858
      %v3950 = vmul.f32 %v3794, %v3949
      %v3951 = vrcp.pop %v3859
      %v3952 = vmul.f32 %v3795, %v3951
      %v3953 = vrcp.pop %v3860
      %v3954 = vmul.f32 %v3796, %v3953
      %v3955 = vrcp.pop %v3861
      %v3956 = vmul.f32 %v3797, %v3955
      %v3957 = vrcp.pop %v3862
      %v3958 = vmul.f32 %v3798, %v3957
      %v3959 = vrcp.pop %v3863
      %v3960 = vmul.f32 %v3799, %v3959
      %v3961 = vrcp.pop %v3864
      %v3962 = vmul.f32 %v3800, %v3961
      %v3963 = vrcp.pop %v3865
      %v3964 = vmul.f32 %v3801, %v3963
      %v3965 = vrcp.pop %v3866
      %v3966 = vmul.f32 %v3802, %v3965
      %v3967 = vrcp.pop %v3867
      %v3968 = vmul.f32 %v3803, %v3967
      %v3969 = vrcp.pop %v3868
      %v3970 = vmul.f32 %v3804, %v3969
      %v3971 = vrcp.pop %v3869
      %v3972 = vmul.f32 %v3805, %v3971
      %v3973 = vrcp.pop %v3870
      %v3974 = vmul.f32 %v3806, %v3973
      %v3975 = vrcp.pop %v3871
      %v3976 = vmul.f32 %v3807, %v3975
      %v3977 = vrcp.pop %v3872
      %v3978 = vmul.f32 %v3808, %v3977
      %v3979 = vrcp.pop %v3873
      %v3980 = vmul.f32 %v3809, %v3979
      %v3981 = vrcp.pop %v3874
      %v3982 = vmul.f32 %v3810, %v3981
      %v3983 = vrcp.pop %v3875
      %v3984 = vmul.f32 %v3811, %v3983
      %v3985 = vrcp.pop %v3876
      %v3986 = vmul.f32 %v3812, %v3985
      %v3987 = vrcp.pop %v3877
      %v3988 = vmul.f32 %v3813, %v3987
      %v3989 = vrcp.pop %v3878
      %v3990 = vmul.f32 %v3814, %v3989
      %v3991 = vrcp.pop %v3879
      %v3992 = vmul.f32 %v3815, %v3991
      %v3993 = vrcp.pop %v3880
      %v3994 = vmul.f32 %v3816, %v3993
      %v3995 = vrcp.pop %v3881
      %v3996 = vmul.f32 %v3817, %v3995
      %v3997 = vrcp.pop %v3882
      %v3998 = vmul.f32 %v3818, %v3997
      %v3999 = vrcp.pop %v3883
      %v4000 = vmul.f32 %v3819, %v3999
      %v4001 = vrcp.pop %v3884
      %v4002 = vmul.f32 %v3820, %v4001
      %v4003 = vrcp.pop %v3885
      %v4004 = vmul.f32 %v3821, %v4003
      %v4005 = vrcp.pop %v3886
      %v4006 = vmul.f32 %v3822, %v4005
      %v4007 = vrcp.pop %v3887
      %v4008 = vmul.f32 %v3823, %v4007
      %v4009 = vrcp.pop %v3888
      %v4010 = vmul.f32 %v3824, %v4009
      %v4011 = vrcp.pop %v3889
      %v4012 = vmul.f32 %v3825, %v4011
      %v4013 = vrcp.pop %v3890
      %v4014 = vmul.f32 %v3826, %v4013
      %v4015 = vrcp.pop %v3891
      %v4016 = vmul.f32 %v3827, %v4015
      %v4017 = vrcp.pop %v3892
      %v4018 = vmul.f32 %v3828, %v4017
      %v4019 = vrcp.pop %v3893
      %v4020 = vmul.f32 %v3829, %v4019
      %v4021 = vrcp.pop %v3894
      %v4022 = vmul.f32 %v3830, %v4021
      %vm4023 = vcmp.gt.f32.partialorder %v3289, 20.0
      %vm4024 = vcmp.gt.f32.partialorder %v3291, 20.0
      %vm4025 = vcmp.gt.f32.partialorder %v3293, 20.0
      %vm4026 = vcmp.gt.f32.partialorder %v3295, 20.0
      %vm4027 = vcmp.gt.f32.partialorder %v3299, 20.0
      %vm4028 = vcmp.gt.f32.partialorder %v3301, 20.0
      %vm4029 = vcmp.gt.f32.partialorder %v3303, 20.0
      %vm4030 = vcmp.gt.f32.partialorder %v3305, 20.0
      %vm4031 = vcmp.gt.f32.partialorder %v3309, 20.0
      %vm4032 = vcmp.gt.f32.partialorder %v3311, 20.0
      %vm4033 = vcmp.gt.f32.partialorder %v3313, 20.0
      %vm4034 = vcmp.gt.f32.partialorder %v3315, 20.0
      %vm4035 = vcmp.gt.f32.partialorder %v3319, 20.0
      %vm4036 = vcmp.gt.f32.partialorder %v3321, 20.0
      %vm4037 = vcmp.gt.f32.partialorder %v3323, 20.0
      %vm4038 = vcmp.gt.f32.partialorder %v3325, 20.0
      %vm4039 = vcmp.gt.f32.partialorder %v3329, 20.0
      %vm4040 = vcmp.gt.f32.partialorder %v3331, 20.0
      %vm4041 = vcmp.gt.f32.partialorder %v3333, 20.0
      %vm4042 = vcmp.gt.f32.partialorder %v3335, 20.0
      %vm4043 = vcmp.gt.f32.partialorder %v3339, 20.0
      %vm4044 = vcmp.gt.f32.partialorder %v3341, 20.0
      %vm4045 = vcmp.gt.f32.partialorder %v3343, 20.0
      %vm4046 = vcmp.gt.f32.partialorder %v3345, 20.0
      %vm4047 = vcmp.gt.f32.partialorder %v3349, 20.0
      %vm4048 = vcmp.gt.f32.partialorder %v3351, 20.0
      %vm4049 = vcmp.gt.f32.partialorder %v3353, 20.0
      %vm4050 = vcmp.gt.f32.partialorder %v3355, 20.0
      %vm4051 = vcmp.gt.f32.partialorder %v3359, 20.0
      %vm4052 = vcmp.gt.f32.partialorder %v3361, 20.0
      %vm4053 = vcmp.gt.f32.partialorder %v3363, 20.0
      %vm4054 = vcmp.gt.f32.partialorder %v3365, 20.0
      %vm4055 = vcmp.gt.f32.partialorder %v3369, 20.0
      %vm4056 = vcmp.gt.f32.partialorder %v3371, 20.0
      %vm4057 = vcmp.gt.f32.partialorder %v3373, 20.0
      %vm4058 = vcmp.gt.f32.partialorder %v3375, 20.0
      %vm4059 = vcmp.gt.f32.partialorder %v3379, 20.0
      %vm4060 = vcmp.gt.f32.partialorder %v3381, 20.0
      %vm4061 = vcmp.gt.f32.partialorder %v3383, 20.0
      %vm4062 = vcmp.gt.f32.partialorder %v3385, 20.0
      %vm4063 = vcmp.gt.f32.partialorder %v3389, 20.0
      %vm4064 = vcmp.gt.f32.partialorder %v3391, 20.0
      %vm4065 = vcmp.gt.f32.partialorder %v3393, 20.0
      %vm4066 = vcmp.gt.f32.partialorder %v3395, 20.0
      %vm4067 = vcmp.gt.f32.partialorder %v3399, 20.0
      %vm4068 = vcmp.gt.f32.partialorder %v3401, 20.0
      %vm4069 = vcmp.gt.f32.partialorder %v3403, 20.0
      %vm4070 = vcmp.gt.f32.partialorder %v3405, 20.0
      %vm4071 = vcmp.gt.f32.partialorder %v3409, 20.0
      %vm4072 = vcmp.gt.f32.partialorder %v3411, 20.0
      %vm4073 = vcmp.gt.f32.partialorder %v3413, 20.0
      %vm4074 = vcmp.gt.f32.partialorder %v3415, 20.0
      %vm4075 = vcmp.gt.f32.partialorder %v3419, 20.0
      %vm4076 = vcmp.gt.f32.partialorder %v3421, 20.0
      %vm4077 = vcmp.gt.f32.partialorder %v3423, 20.0
      %vm4078 = vcmp.gt.f32.partialorder %v3425, 20.0
      %vm4079 = vcmp.gt.f32.partialorder %v3429, 20.0
      %vm4080 = vcmp.gt.f32.partialorder %v3431, 20.0
      %vm4081 = vcmp.gt.f32.partialorder %v3433, 20.0
      %vm4082 = vcmp.gt.f32.partialorder %v3435, 20.0
      %vm4083 = vcmp.gt.f32.partialorder %v3439, 20.0
      %vm4084 = vcmp.gt.f32.partialorder %v3441, 20.0
      %vm4085 = vcmp.gt.f32.partialorder %v3443, 20.0
      %vm4086 = vcmp.gt.f32.partialorder %v3445, 20.0
      %v4087 = vmul.f32 %v3289, %v3896
      %v4088 = vmul.f32 %v3291, %v3898
      %v4089 = vmul.f32 %v3293, %v3900
      %v4090 = vmul.f32 %v3295, %v3902
      %v4091 = vmul.f32 %v3299, %v3904
      %v4092 = vmul.f32 %v3301, %v3906
      %v4093 = vmul.f32 %v3303, %v3908
      %v4094 = vmul.f32 %v3305, %v3910
      %v4095 = vmul.f32 %v3309, %v3912
      %v4096 = vmul.f32 %v3311, %v3914
      %v4097 = vmul.f32 %v3313, %v3916
      %v4098 = vmul.f32 %v3315, %v3918
      %v4099 = vmul.f32 %v3319, %v3920
      %v4100 = vmul.f32 %v3321, %v3922
      %v4101 = vmul.f32 %v3323, %v3924
      %v4102 = vmul.f32 %v3325, %v3926
      %v4103 = vmul.f32 %v3329, %v3928
      %v4104 = vmul.f32 %v3331, %v3930
      %v4105 = vmul.f32 %v3333, %v3932
      %v4106 = vmul.f32 %v3335, %v3934
      %v4107 = vmul.f32 %v3339, %v3936
      %v4108 = vmul.f32 %v3341, %v3938
      %v4109 = vmul.f32 %v3343, %v3940
      %v4110 = vmul.f32 %v3345, %v3942
      %v4111 = vmul.f32 %v3349, %v3944
      %v4112 = vmul.f32 %v3351, %v3946
      %v4113 = vmul.f32 %v3353, %v3948
      %v4114 = vmul.f32 %v3355, %v3950
      %v4115 = vmul.f32 %v3359, %v3952
      %v4116 = vmul.f32 %v3361, %v3954
      %v4117 = vmul.f32 %v3363, %v3956
      %v4118 = vmul.f32 %v3365, %v3958
      %v4119 = vmul.f32 %v3369, %v3960
      %v4120 = vmul.f32 %v3371, %v3962
      %v4121 = vmul.f32 %v3373, %v3964
      %v4122 = vmul.f32 %v3375, %v3966
      %v4123 = vmul.f32 %v3379, %v3968
      %v4124 = vmul.f32 %v3381, %v3970
      %v4125 = vmul.f32 %v3383, %v3972
      %v4126 = vmul.f32 %v3385, %v3974
      %v4127 = vmul.f32 %v3389, %v3976
      %v4128 = vmul.f32 %v3391, %v3978
      %v4129 = vmul.f32 %v3393, %v3980
      %v4130 = vmul.f32 %v3395, %v3982
      %v4131 = vmul.f32 %v3399, %v3984
      %v4132 = vmul.f32 %v3401, %v3986
      %v4133 = vmul.f32 %v3403, %v3988
      %v4134 = vmul.f32 %v3405, %v3990
      %v4135 = vmul.f32 %v3409, %v3992
      %v4136 = vmul.f32 %v3411, %v3994
      %v4137 = vmul.f32 %v3413, %v3996
      %v4138 = vmul.f32 %v3415, %v3998
      %v4139 = vmul.f32 %v3419, %v4000
      %v4140 = vmul.f32 %v3421, %v4002
      %v4141 = vmul.f32 %v3423, %v4004
      %v4142 = vmul.f32 %v3425, %v4006
      %v4143 = vmul.f32 %v3429, %v4008
      %v4144 = vmul.f32 %v3431, %v4010
      %v4145 = vmul.f32 %v3433, %v4012
      %v4146 = vmul.f32 %v3435, %v4014
      %v4147 = vmul.f32 %v3439, %v4016
      %v4148 = vmul.f32 %v3441, %v4018
      %v4149 = vmul.f32 %v3443, %v4020
      %v4150 = vmul.f32 %v3445, %v4022
      %v4151 = vsel %vm4023, %v3289, %v4087
      %v4152 = vsel %vm4024, %v3291, %v4088
      %v4153 = vsel %vm4025, %v3293, %v4089
      %v4154 = vsel %vm4026, %v3295, %v4090
      %v4155 = vsel %vm4027, %v3299, %v4091
      %v4156 = vsel %vm4028, %v3301, %v4092
      %v4157 = vsel %vm4029, %v3303, %v4093
      %v4158 = vsel %vm4030, %v3305, %v4094
      %v4159 = vsel %vm4031, %v3309, %v4095
      %v4160 = vsel %vm4032, %v3311, %v4096
      %v4161 = vsel %vm4033, %v3313, %v4097
      %v4162 = vsel %vm4034, %v3315, %v4098
      %v4163 = vsel %vm4035, %v3319, %v4099
      %v4164 = vsel %vm4036, %v3321, %v4100
      %v4165 = vsel %vm4037, %v3323, %v4101
      %v4166 = vsel %vm4038, %v3325, %v4102
      %v4167 = vsel %vm4039, %v3329, %v4103
      %v4168 = vsel %vm4040, %v3331, %v4104
      %v4169 = vsel %vm4041, %v3333, %v4105
      %v4170 = vsel %vm4042, %v3335, %v4106
      %v4171 = vsel %vm4043, %v3339, %v4107
      %v4172 = vsel %vm4044, %v3341, %v4108
      %v4173 = vsel %vm4045, %v3343, %v4109
      %v4174 = vsel %vm4046, %v3345, %v4110
      %v4175 = vsel %vm4047, %v3349, %v4111
      %v4176 = vsel %vm4048, %v3351, %v4112
      %v4177 = vsel %vm4049, %v3353, %v4113
      %v4178 = vsel %vm4050, %v3355, %v4114
      %v4179 = vsel %vm4051, %v3359, %v4115
      %v4180 = vsel %vm4052, %v3361, %v4116
      %v4181 = vsel %vm4053, %v3363, %v4117
      %v4182 = vsel %vm4054, %v3365, %v4118
      %v4183 = vsel %vm4055, %v3369, %v4119
      %v4184 = vsel %vm4056, %v3371, %v4120
      %v4185 = vsel %vm4057, %v3373, %v4121
      %v4186 = vsel %vm4058, %v3375, %v4122
      %v4187 = vsel %vm4059, %v3379, %v4123
      %v4188 = vsel %vm4060, %v3381, %v4124
      %v4189 = vsel %vm4061, %v3383, %v4125
      %v4190 = vsel %vm4062, %v3385, %v4126
      %v4191 = vsel %vm4063, %v3389, %v4127
      %v4192 = vsel %vm4064, %v3391, %v4128
      %v4193 = vsel %vm4065, %v3393, %v4129
      %v4194 = vsel %vm4066, %v3395, %v4130
      %v4195 = vsel %vm4067, %v3399, %v4131
      %v4196 = vsel %vm4068, %v3401, %v4132
      %v4197 = vsel %vm4069, %v3403, %v4133
      %v4198 = vsel %vm4070, %v3405, %v4134
      %v4199 = vsel %vm4071, %v3409, %v4135
      %v4200 = vsel %vm4072, %v3411, %v4136
      %v4201 = vsel %vm4073, %v3413, %v4137
      %v4202 = vsel %vm4074, %v3415, %v4138
      %v4203 = vsel %vm4075, %v3419, %v4139
      %v4204 = vsel %vm4076, %v3421, %v4140
      %v4205 = vsel %vm4077, %v3423, %v4141
      %v4206 = vsel %vm4078, %v3425, %v4142
      %v4207 = vsel %vm4079, %v3429, %v4143
      %v4208 = vsel %vm4080, %v3431, %v4144
      %v4209 = vsel %vm4081, %v3433, %v4145
      %v4210 = vsel %vm4082, %v3435, %v4146
      %v4211 = vsel %vm4083, %v3439, %v4147
      %v4212 = vsel %vm4084, %v3441, %v4148
      %v4213 = vsel %vm4085, %v3443, %v4149
      %v4214 = vsel %vm4086, %v3445, %v4150
      %v4215 = vpack.c.bf16 %v4153, %v4151
      %v4216 = vpack.c.bf16 %v4154, %v4152
      %v4217 = vpack.c.bf16 %v4157, %v4155
      %v4218 = vpack.c.bf16 %v4158, %v4156
      %v4219 = vpack.c.bf16 %v4161, %v4159
      %v4220 = vpack.c.bf16 %v4162, %v4160
      %v4221 = vpack.c.bf16 %v4165, %v4163
      %v4222 = vpack.c.bf16 %v4166, %v4164
      %v4223 = vpack.c.bf16 %v4169, %v4167
      %v4224 = vpack.c.bf16 %v4170, %v4168
      %v4225 = vpack.c.bf16 %v4173, %v4171
      %v4226 = vpack.c.bf16 %v4174, %v4172
      %v4227 = vpack.c.bf16 %v4177, %v4175
      %v4228 = vpack.c.bf16 %v4178, %v4176
      %v4229 = vpack.c.bf16 %v4181, %v4179
      %v4230 = vpack.c.bf16 %v4182, %v4180
      %v4231 = vpack.c.bf16 %v4185, %v4183
      %v4232 = vpack.c.bf16 %v4186, %v4184
      %v4233 = vpack.c.bf16 %v4189, %v4187
      %v4234 = vpack.c.bf16 %v4190, %v4188
      %v4235 = vpack.c.bf16 %v4193, %v4191
      %v4236 = vpack.c.bf16 %v4194, %v4192
      %v4237 = vpack.c.bf16 %v4197, %v4195
      %v4238 = vpack.c.bf16 %v4198, %v4196
      %v4239 = vpack.c.bf16 %v4201, %v4199
      %v4240 = vpack.c.bf16 %v4202, %v4200
      %v4241 = vpack.c.bf16 %v4205, %v4203
      %v4242 = vpack.c.bf16 %v4206, %v4204
      %v4243 = vpack.c.bf16 %v4209, %v4207
      %v4244 = vpack.c.bf16 %v4210, %v4208
      %v4245 = vpack.c.bf16 %v4213, %v4211
      %v4246 = vpack.c.bf16 %v4214, %v4212
      %v4247 = vld [vmem:[%s9] sm:$0xf]
      %v4248 = vld [vmem:[%s9 + $0x4] sm:$0xf]
      %v4249 = vld [vmem:[%s9 + $0x8] sm:$0xf]
      %v4250 = vld [vmem:[%s9 + $0xc] sm:$0xf]
      %v4251 = vld [vmem:[%s9 + $0x10] sm:$0xf]
      %v4252 = vld [vmem:[%s9 + $0x14] sm:$0xf]
      %v4253 = vld [vmem:[%s9 + $0x18] sm:$0xf]
      %v4254 = vld [vmem:[%s9 + $0x1c] sm:$0xf]
      %v4255 = vld [vmem:[%s9 + $0x20] sm:$0xf]
      %v4256 = vld [vmem:[%s9 + $0x24] sm:$0xf]
      %v4257 = vld [vmem:[%s9 + $0x28] sm:$0xf]
      %v4258 = vld [vmem:[%s9 + $0x2c] sm:$0xf]
      %v4259 = vld [vmem:[%s9 + $0x30] sm:$0xf]
      %v4260 = vld [vmem:[%s9 + $0x34] sm:$0xf]
      %v4261 = vld [vmem:[%s9 + $0x38] sm:$0xf]
      %v4262 = vld [vmem:[%s9 + $0x3c] sm:$0xf]
      %v4263 = vld [vmem:[%s9 + $0x40] sm:$0xf]
      %v4264 = vld [vmem:[%s9 + $0x44] sm:$0xf]
      %v4265 = vld [vmem:[%s9 + $0x48] sm:$0xf]
      %v4266 = vld [vmem:[%s9 + $0x4c] sm:$0xf]
      %v4267 = vld [vmem:[%s9 + $0x50] sm:$0xf]
      %v4268 = vld [vmem:[%s9 + $0x54] sm:$0xf]
      %v4269 = vld [vmem:[%s9 + $0x58] sm:$0xf]
      %v4270 = vld [vmem:[%s9 + $0x5c] sm:$0xf]
      %v4271 = vld [vmem:[%s9 + $0x60] sm:$0xf]
      %v4272 = vld [vmem:[%s9 + $0x64] sm:$0xf]
      %v4273 = vld [vmem:[%s9 + $0x68] sm:$0xf]
      %v4274 = vld [vmem:[%s9 + $0x6c] sm:$0xf]
      %v4275 = vld [vmem:[%s9 + $0x70] sm:$0xf]
      %v4276 = vld [vmem:[%s9 + $0x74] sm:$0xf]
      %v4277 = vld [vmem:[%s9 + $0x78] sm:$0xf]
      %v4278 = vld [vmem:[%s9 + $0x7c] sm:$0xf]
      %v4279 = vld [vmem:[%s10] sm:$0x1]
      %v4281 = vlaneseq
      %v4282 = vshrl.u32 %v4281, 7
      %v4283 = vsub.s32 0, %v4282
      %v4284 = vrot.slane %v4279, %v4283
      %v4318 = vunpack.c.l.b16 %v4247
      %v4319 = vunpack.c.l.b16 %v4248
      %v4320 = vunpack.c.l.b16 %v4249
      %v4321 = vunpack.c.l.b16 %v4250
      %v4322 = vunpack.c.l.b16 %v4251
      %v4323 = vunpack.c.l.b16 %v4252
      %v4324 = vunpack.c.l.b16 %v4253
      %v4325 = vunpack.c.l.b16 %v4254
      %v4326 = vunpack.c.l.b16 %v4255
      %v4327 = vunpack.c.l.b16 %v4256
      %v4328 = vunpack.c.l.b16 %v4257
      %v4329 = vunpack.c.l.b16 %v4258
      %v4330 = vunpack.c.l.b16 %v4259
      %v4331 = vunpack.c.l.b16 %v4260
      %v4332 = vunpack.c.l.b16 %v4261
      %v4333 = vunpack.c.l.b16 %v4262
      %v4334 = vunpack.c.l.b16 %v4263
      %v4335 = vunpack.c.l.b16 %v4264
      %v4336 = vunpack.c.l.b16 %v4265
      %v4337 = vunpack.c.l.b16 %v4266
      %v4338 = vunpack.c.l.b16 %v4267
      %v4339 = vunpack.c.l.b16 %v4268
      %v4340 = vunpack.c.l.b16 %v4269
      %v4341 = vunpack.c.l.b16 %v4270
      %v4342 = vunpack.c.l.b16 %v4271
      %v4343 = vunpack.c.l.b16 %v4272
      %v4344 = vunpack.c.l.b16 %v4273
      %v4345 = vunpack.c.l.b16 %v4274
      %v4346 = vunpack.c.l.b16 %v4275
      %v4347 = vunpack.c.l.b16 %v4276
      %v4348 = vunpack.c.l.b16 %v4277
      %v4349 = vunpack.c.l.b16 %v4278
      %v4350 = vpack.c.b16 %v4319, %v4318
      %v4351 = vpack.c.b16 %v4321, %v4320
      %v4352 = vpack.c.b16 %v4323, %v4322
      %v4353 = vpack.c.b16 %v4325, %v4324
      %v4354 = vpack.c.b16 %v4327, %v4326
      %v4355 = vpack.c.b16 %v4329, %v4328
      %v4356 = vpack.c.b16 %v4331, %v4330
      %v4357 = vpack.c.b16 %v4333, %v4332
      %v4358 = vpack.c.b16 %v4335, %v4334
      %v4359 = vpack.c.b16 %v4337, %v4336
      %v4360 = vpack.c.b16 %v4339, %v4338
      %v4361 = vpack.c.b16 %v4341, %v4340
      %v4362 = vpack.c.b16 %v4343, %v4342
      %v4363 = vpack.c.b16 %v4345, %v4344
      %v4364 = vpack.c.b16 %v4347, %v4346
      %v4365 = vpack.c.b16 %v4349, %v4348
      %4382 = vmatprep.subr.bf16.mxu0 0
      %4383 = vmatpush1.bf16.msra.mxu0 %v4357
      %4384 = vmatprep.subr.bf16.mxu0 0
      %4385 = vmatpush1.bf16.msra.mxu0 %v4356
      %4386 = vmatprep.subr.bf16.mxu0 0
      %4387 = vmatpush1.bf16.msra.mxu0 %v4355
      %4388 = vmatprep.subr.bf16.mxu0 0
      %4389 = vmatpush1.bf16.msra.mxu0 %v4354
      %4390 = vmatprep.subr.bf16.mxu0 0
      %4391 = vmatpush1.bf16.msra.mxu0 %v4353
      %4392 = vmatprep.subr.bf16.mxu0 0
      %4393 = vmatpush1.bf16.msra.mxu0 %v4352
      %4394 = vmatprep.subr.bf16.mxu0 0
      %4395 = vmatpush1.bf16.msra.mxu0 %v4351
      %4396 = vmatprep.subr.bf16.mxu0 0
      %4397 = vmatpush1.bf16.msra.mxu0 %v4350
      %4398 = vmatprep.subr.bf16.mxu0 0
      %4399 = vmatpush2.bf16.msra.mxu0 %v4365
      %4400 = vmatprep.subr.bf16.mxu0 0
      %4401 = vmatpush2.bf16.msra.mxu0 %v4364
      %4402 = vmatprep.subr.bf16.mxu0 0
      %4403 = vmatpush2.bf16.msra.mxu0 %v4363
      %4404 = vmatprep.subr.bf16.mxu0 0
      %4405 = vmatpush2.bf16.msra.mxu0 %v4362
      %4406 = vmatprep.subr.bf16.mxu0 0
      %4407 = vmatpush2.bf16.msra.mxu0 %v4361
      %4408 = vmatprep.subr.bf16.mxu0 0
      %4409 = vmatpush2.bf16.msra.mxu0 %v4360
      %4410 = vmatprep.subr.bf16.mxu0 0
      %4411 = vmatpush2.bf16.msra.mxu0 %v4359
      %4412 = vmatprep.subr.bf16.mxu0 0
      %4413 = vmatpush2.bf16.msra.mxu0 %v4358
      %4414 = vmatprep.mubr.bf16.mxu0 %v4216
      %4415 = vmatmul.mubr.bf16.gmra.mxu0 %v4215
      %v4416 = vpop.f32.mrf.mxu0
      %v4417 = vadd.f32 %v4284, %v4416
      %v4418 = vpop.f32.mrf.mxu0
      %v4419 = vpop.f32.mrf.mxu0
      %v4420 = vadd.f32 %v4284, %v4419
      %v4421 = vpop.f32.mrf.mxu0
      %4422 = vmatprep.mubr.bf16.mxu0 %v4218
      %4423 = vmatmul.mubr.bf16.gmra.mxu0 %v4217
      %v4424 = vpop.f32.mrf.mxu0
      %v4425 = vadd.f32 %v4284, %v4424
      %v4426 = vpop.f32.mrf.mxu0
      %v4427 = vpop.f32.mrf.mxu0
      %v4428 = vadd.f32 %v4284, %v4427
      %v4429 = vpop.f32.mrf.mxu0
      %4430 = vmatprep.mubr.bf16.mxu0 %v4220
      %4431 = vmatmul.mubr.bf16.gmra.mxu0 %v4219
      %v4432 = vpop.f32.mrf.mxu0
      %v4433 = vadd.f32 %v4284, %v4432
      %v4434 = vpop.f32.mrf.mxu0
      %v4435 = vpop.f32.mrf.mxu0
      %v4436 = vadd.f32 %v4284, %v4435
      %v4437 = vpop.f32.mrf.mxu0
      %4438 = vmatprep.mubr.bf16.mxu0 %v4222
      %4439 = vmatmul.mubr.bf16.gmra.mxu0 %v4221
      %v4440 = vpop.f32.mrf.mxu0
      %v4441 = vadd.f32 %v4284, %v4440
      %v4442 = vpop.f32.mrf.mxu0
      %v4443 = vpop.f32.mrf.mxu0
      %v4444 = vadd.f32 %v4284, %v4443
      %v4445 = vpop.f32.mrf.mxu0
      %4446 = vmatprep.mubr.bf16.mxu0 %v4224
      %4447 = vmatmul.mubr.bf16.gmra.mxu0 %v4223
      %v4448 = vpop.f32.mrf.mxu0
      %v4449 = vadd.f32 %v4284, %v4448
      %v4450 = vpop.f32.mrf.mxu0
      %v4451 = vpop.f32.mrf.mxu0
      %v4452 = vadd.f32 %v4284, %v4451
      %v4453 = vpop.f32.mrf.mxu0
      %4454 = vmatprep.mubr.bf16.mxu0 %v4226
      %4455 = vmatmul.mubr.bf16.gmra.mxu0 %v4225
      %v4456 = vpop.f32.mrf.mxu0
      %v4457 = vadd.f32 %v4284, %v4456
      %v4458 = vpop.f32.mrf.mxu0
      %v4459 = vpop.f32.mrf.mxu0
      %v4460 = vadd.f32 %v4284, %v4459
      %v4461 = vpop.f32.mrf.mxu0
      %4462 = vmatprep.mubr.bf16.mxu0 %v4228
      %4463 = vmatmul.mubr.bf16.gmra.mxu0 %v4227
      %v4464 = vpop.f32.mrf.mxu0
      %v4465 = vadd.f32 %v4284, %v4464
      %v4466 = vpop.f32.mrf.mxu0
      %v4467 = vpop.f32.mrf.mxu0
      %v4468 = vadd.f32 %v4284, %v4467
      %v4469 = vpop.f32.mrf.mxu0
      %4470 = vmatprep.mubr.bf16.mxu0 %v4230
      %4471 = vmatmul.mubr.bf16.gmra.mxu0 %v4229
      %v4472 = vpop.f32.mrf.mxu0
      %v4473 = vadd.f32 %v4284, %v4472
      %v4474 = vpop.f32.mrf.mxu0
      %v4475 = vpop.f32.mrf.mxu0
      %v4476 = vadd.f32 %v4284, %v4475
      %v4477 = vpop.f32.mrf.mxu0
      %4478 = vmatprep.mubr.bf16.mxu0 %v4232
      %4479 = vmatmul.mubr.bf16.gmra.mxu0 %v4231
      %v4480 = vpop.f32.mrf.mxu0
      %v4481 = vadd.f32 %v4284, %v4480
      %v4482 = vpop.f32.mrf.mxu0
      %v4483 = vpop.f32.mrf.mxu0
      %v4484 = vadd.f32 %v4284, %v4483
      %v4485 = vpop.f32.mrf.mxu0
      %4486 = vmatprep.mubr.bf16.mxu0 %v4234
      %4487 = vmatmul.mubr.bf16.gmra.mxu0 %v4233
      %v4488 = vpop.f32.mrf.mxu0
      %v4489 = vadd.f32 %v4284, %v4488
      %v4490 = vpop.f32.mrf.mxu0
      %v4491 = vpop.f32.mrf.mxu0
      %v4492 = vadd.f32 %v4284, %v4491
      %v4493 = vpop.f32.mrf.mxu0
      %4494 = vmatprep.mubr.bf16.mxu0 %v4236
      %4495 = vmatmul.mubr.bf16.gmra.mxu0 %v4235
      %v4496 = vpop.f32.mrf.mxu0
      %v4497 = vadd.f32 %v4284, %v4496
      %v4498 = vpop.f32.mrf.mxu0
      %v4499 = vpop.f32.mrf.mxu0
      %v4500 = vadd.f32 %v4284, %v4499
      %v4501 = vpop.f32.mrf.mxu0
      %4502 = vmatprep.mubr.bf16.mxu0 %v4238
      %4503 = vmatmul.mubr.bf16.gmra.mxu0 %v4237
      %v4504 = vpop.f32.mrf.mxu0
      %v4505 = vadd.f32 %v4284, %v4504
      %v4506 = vpop.f32.mrf.mxu0
      %v4507 = vpop.f32.mrf.mxu0
      %v4508 = vadd.f32 %v4284, %v4507
      %v4509 = vpop.f32.mrf.mxu0
      %4510 = vmatprep.mubr.bf16.mxu0 %v4240
      %4511 = vmatmul.mubr.bf16.gmra.mxu0 %v4239
      %v4512 = vpop.f32.mrf.mxu0
      %v4513 = vadd.f32 %v4284, %v4512
      %v4514 = vpop.f32.mrf.mxu0
      %v4515 = vpop.f32.mrf.mxu0
      %v4516 = vadd.f32 %v4284, %v4515
      %v4517 = vpop.f32.mrf.mxu0
      %4518 = vmatprep.mubr.bf16.mxu0 %v4242
      %4519 = vmatmul.mubr.bf16.gmra.mxu0 %v4241
      %v4520 = vpop.f32.mrf.mxu0
      %v4521 = vadd.f32 %v4284, %v4520
      %v4522 = vpop.f32.mrf.mxu0
      %v4523 = vpop.f32.mrf.mxu0
      %v4524 = vadd.f32 %v4284, %v4523
      %v4525 = vpop.f32.mrf.mxu0
      %4526 = vmatprep.mubr.bf16.mxu0 %v4244
      %4527 = vmatmul.mubr.bf16.gmra.mxu0 %v4243
      %v4528 = vpop.f32.mrf.mxu0
      %v4529 = vadd.f32 %v4284, %v4528
      %v4530 = vpop.f32.mrf.mxu0
      %v4531 = vpop.f32.mrf.mxu0
      %v4532 = vadd.f32 %v4284, %v4531
      %v4533 = vpop.f32.mrf.mxu0
      %4534 = vmatprep.mubr.bf16.mxu0 %v4246
      %4535 = vmatmul.mubr.bf16.gmra.mxu0 %v4245
      %v4536 = vpop.f32.mrf.mxu0
      %v4537 = vadd.f32 %v4284, %v4536
      %v4538 = vpop.f32.mrf.mxu0
      %v4539 = vpop.f32.mrf.mxu0
      %v4540 = vadd.f32 %v4284, %v4539
      %v4541 = vpop.f32.mrf.mxu0
      %4542 = vdwg.mxu0
      %v4543 = vld [vmem:[%s669] sm:$0xff]
      %v4544 = vld [vmem:[%s669 + $0x8] sm:$0xff]
      %v4545 = vld [vmem:[%s669 + $0x10] sm:$0xff]
      %v4546 = vld [vmem:[%s669 + $0x18] sm:$0xff]
      %v4547 = vld [vmem:[%s669 + $0x20] sm:$0xff]
      %v4548 = vld [vmem:[%s669 + $0x28] sm:$0xff]
      %v4549 = vld [vmem:[%s669 + $0x30] sm:$0xff]
      %v4550 = vld [vmem:[%s669 + $0x38] sm:$0xff]
      %v4551 = vld [vmem:[%s669 + $0x40] sm:$0xff]
      %v4552 = vld [vmem:[%s669 + $0x48] sm:$0xff]
      %v4553 = vld [vmem:[%s669 + $0x50] sm:$0xff]
      %v4554 = vld [vmem:[%s669 + $0x58] sm:$0xff]
      %v4555 = vld [vmem:[%s669 + $0x60] sm:$0xff]
      %v4556 = vld [vmem:[%s669 + $0x68] sm:$0xff]
      %v4557 = vld [vmem:[%s669 + $0x70] sm:$0xff]
      %v4558 = vld [vmem:[%s669 + $0x78] sm:$0xff]
      %v4559 = vld [vmem:[%s669 + $0x80] sm:$0xff]
      %v4560 = vld [vmem:[%s669 + $0x88] sm:$0xff]
      %v4561 = vld [vmem:[%s669 + $0x90] sm:$0xff]
      %v4562 = vld [vmem:[%s669 + $0x98] sm:$0xff]
      %v4563 = vld [vmem:[%s669 + $0xa0] sm:$0xff]
      %v4564 = vld [vmem:[%s669 + $0xa8] sm:$0xff]
      %v4565 = vld [vmem:[%s669 + $0xb0] sm:$0xff]
      %v4566 = vld [vmem:[%s669 + $0xb8] sm:$0xff]
      %v4567 = vld [vmem:[%s669 + $0xc0] sm:$0xff]
      %v4568 = vld [vmem:[%s669 + $0xc8] sm:$0xff]
      %v4569 = vld [vmem:[%s669 + $0xd0] sm:$0xff]
      %v4570 = vld [vmem:[%s669 + $0xd8] sm:$0xff]
      %v4571 = vld [vmem:[%s669 + $0xe0] sm:$0xff]
      %v4572 = vld [vmem:[%s669 + $0xe8] sm:$0xff]
      %v4573 = vld [vmem:[%s669 + $0xf0] sm:$0xff]
      %v4574 = vld [vmem:[%s669 + $0xf8] sm:$0xff]
      %v4575 = vmul.f32 %v4417, 0.5
      %v4576 = vmul.f32 %v4420, 0.5
      %v4577 = vmul.f32 %v4425, 0.5
      %v4578 = vmul.f32 %v4428, 0.5
      %v4579 = vmul.f32 %v4433, 0.5
      %v4580 = vmul.f32 %v4436, 0.5
      %v4581 = vmul.f32 %v4441, 0.5
      %v4582 = vmul.f32 %v4444, 0.5
      %v4583 = vmul.f32 %v4449, 0.5
      %v4584 = vmul.f32 %v4452, 0.5
      %v4585 = vmul.f32 %v4457, 0.5
      %v4586 = vmul.f32 %v4460, 0.5
      %v4587 = vmul.f32 %v4465, 0.5
      %v4588 = vmul.f32 %v4468, 0.5
      %v4589 = vmul.f32 %v4473, 0.5
      %v4590 = vmul.f32 %v4476, 0.5
      %v4591 = vmul.f32 %v4481, 0.5
      %v4592 = vmul.f32 %v4484, 0.5
      %v4593 = vmul.f32 %v4489, 0.5
      %v4594 = vmul.f32 %v4492, 0.5
      %v4595 = vmul.f32 %v4497, 0.5
      %v4596 = vmul.f32 %v4500, 0.5
      %v4597 = vmul.f32 %v4505, 0.5
      %v4598 = vmul.f32 %v4508, 0.5
      %v4599 = vmul.f32 %v4513, 0.5
      %v4600 = vmul.f32 %v4516, 0.5
      %v4601 = vmul.f32 %v4521, 0.5
      %v4602 = vmul.f32 %v4524, 0.5
      %v4603 = vmul.f32 %v4529, 0.5
      %v4604 = vmul.f32 %v4532, 0.5
      %v4605 = vmul.f32 %v4537, 0.5
      %v4606 = vmul.f32 %v4540, 0.5
      %v4607 = vmul.f32 %v4575, 1.442695
      %v4608 = vpow.pop %v4607
      %v4609 = vmul.f32 %v4576, 1.442695
      %v4610 = vpow.pop %v4609
      %v4611 = vmul.f32 %v4577, 1.442695
      %v4612 = vpow.pop %v4611
      %v4613 = vmul.f32 %v4578, 1.442695
      %v4614 = vpow.pop %v4613
      %v4615 = vmul.f32 %v4579, 1.442695
      %v4616 = vpow.pop %v4615
      %v4617 = vmul.f32 %v4580, 1.442695
      %v4618 = vpow.pop %v4617
      %v4619 = vmul.f32 %v4581, 1.442695
      %v4620 = vpow.pop %v4619
      %v4621 = vmul.f32 %v4582, 1.442695
      %v4622 = vpow.pop %v4621
      %v4623 = vmul.f32 %v4583, 1.442695
      %v4624 = vpow.pop %v4623
      %v4625 = vmul.f32 %v4584, 1.442695
      %v4626 = vpow.pop %v4625
      %v4627 = vmul.f32 %v4585, 1.442695
      %v4628 = vpow.pop %v4627
      %v4629 = vmul.f32 %v4586, 1.442695
      %v4630 = vpow.pop %v4629
      %v4631 = vmul.f32 %v4587, 1.442695
      %v4632 = vpow.pop %v4631
      %v4633 = vmul.f32 %v4588, 1.442695
      %v4634 = vpow.pop %v4633
      %v4635 = vmul.f32 %v4589, 1.442695
      %v4636 = vpow.pop %v4635
      %v4637 = vmul.f32 %v4590, 1.442695
      %v4638 = vpow.pop %v4637
      %v4639 = vmul.f32 %v4591, 1.442695
      %v4640 = vpow.pop %v4639
      %v4641 = vmul.f32 %v4592, 1.442695
      %v4642 = vpow.pop %v4641
      %v4643 = vmul.f32 %v4593, 1.442695
      %v4644 = vpow.pop %v4643
      %v4645 = vmul.f32 %v4594, 1.442695
      %v4646 = vpow.pop %v4645
      %v4647 = vmul.f32 %v4595, 1.442695
      %v4648 = vpow.pop %v4647
      %v4649 = vmul.f32 %v4596, 1.442695
      %v4650 = vpow.pop %v4649
      %v4651 = vmul.f32 %v4597, 1.442695
      %v4652 = vpow.pop %v4651
      %v4653 = vmul.f32 %v4598, 1.442695
      %v4654 = vpow.pop %v4653
      %v4655 = vmul.f32 %v4599, 1.442695
      %v4656 = vpow.pop %v4655
      %v4657 = vmul.f32 %v4600, 1.442695
      %v4658 = vpow.pop %v4657
      %v4659 = vmul.f32 %v4601, 1.442695
      %v4660 = vpow.pop %v4659
      %v4661 = vmul.f32 %v4602, 1.442695
      %v4662 = vpow.pop %v4661
      %v4663 = vmul.f32 %v4603, 1.442695
      %v4664 = vpow.pop %v4663
      %v4665 = vmul.f32 %v4604, 1.442695
      %v4666 = vpow.pop %v4665
      %v4667 = vmul.f32 %v4605, 1.442695
      %v4668 = vpow.pop %v4667
      %v4669 = vmul.f32 %v4606, 1.442695
      %v4670 = vpow.pop %v4669
      %4703 = vrot.lane.b32.xlu0 %v4608, 120
      %v4704 = vpop.permute.xlu0 %4703
      %4705 = vrot.lane.b32.xlu0 %v4610, 120
      %v4706 = vpop.permute.xlu0 %4705
      %4707 = vrot.lane.b32.xlu0 %v4612, 120
      %v4708 = vpop.permute.xlu0 %4707
      %4709 = vrot.lane.b32.xlu0 %v4614, 120
      %v4710 = vpop.permute.xlu0 %4709
      %4711 = vrot.lane.b32.xlu0 %v4616, 120
      %v4712 = vpop.permute.xlu0 %4711
      %4713 = vrot.lane.b32.xlu0 %v4618, 120
      %v4714 = vpop.permute.xlu0 %4713
      %4715 = vrot.lane.b32.xlu0 %v4620, 120
      %v4716 = vpop.permute.xlu0 %4715
      %4717 = vrot.lane.b32.xlu0 %v4622, 120
      %v4718 = vpop.permute.xlu0 %4717
      %4719 = vrot.lane.b32.xlu0 %v4624, 120
      %v4720 = vpop.permute.xlu0 %4719
      %4721 = vrot.lane.b32.xlu0 %v4626, 120
      %v4722 = vpop.permute.xlu0 %4721
      %4723 = vrot.lane.b32.xlu0 %v4628, 120
      %v4724 = vpop.permute.xlu0 %4723
      %4725 = vrot.lane.b32.xlu0 %v4630, 120
      %v4726 = vpop.permute.xlu0 %4725
      %4727 = vrot.lane.b32.xlu0 %v4632, 120
      %v4728 = vpop.permute.xlu0 %4727
      %4729 = vrot.lane.b32.xlu0 %v4634, 120
      %v4730 = vpop.permute.xlu0 %4729
      %4731 = vrot.lane.b32.xlu0 %v4636, 120
      %v4732 = vpop.permute.xlu0 %4731
      %4733 = vrot.lane.b32.xlu0 %v4638, 120
      %v4734 = vpop.permute.xlu0 %4733
      %4735 = vrot.lane.b32.xlu0 %v4640, 120
      %v4736 = vpop.permute.xlu0 %4735
      %4737 = vrot.lane.b32.xlu0 %v4642, 120
      %v4738 = vpop.permute.xlu0 %4737
      %4739 = vrot.lane.b32.xlu0 %v4644, 120
      %v4740 = vpop.permute.xlu0 %4739
      %4741 = vrot.lane.b32.xlu0 %v4646, 120
      %v4742 = vpop.permute.xlu0 %4741
      %4743 = vrot.lane.b32.xlu0 %v4648, 120
      %v4744 = vpop.permute.xlu0 %4743
      %4745 = vrot.lane.b32.xlu0 %v4650, 120
      %v4746 = vpop.permute.xlu0 %4745
      %4747 = vrot.lane.b32.xlu0 %v4652, 120
      %v4748 = vpop.permute.xlu0 %4747
      %4749 = vrot.lane.b32.xlu0 %v4654, 120
      %v4750 = vpop.permute.xlu0 %4749
      %4751 = vrot.lane.b32.xlu0 %v4656, 120
      %v4752 = vpop.permute.xlu0 %4751
      %4753 = vrot.lane.b32.xlu0 %v4658, 120
      %v4754 = vpop.permute.xlu0 %4753
      %4755 = vrot.lane.b32.xlu0 %v4660, 120
      %v4756 = vpop.permute.xlu0 %4755
      %4757 = vrot.lane.b32.xlu0 %v4662, 120
      %v4758 = vpop.permute.xlu0 %4757
      %4759 = vrot.lane.b32.xlu0 %v4664, 120
      %v4760 = vpop.permute.xlu0 %4759
      %4761 = vrot.lane.b32.xlu0 %v4666, 120
      %v4762 = vpop.permute.xlu0 %4761
      %4763 = vrot.lane.b32.xlu0 %v4668, 120
      %v4764 = vpop.permute.xlu0 %4763
      %4765 = vrot.lane.b32.xlu0 %v4670, 120
      %v4766 = vpop.permute.xlu0 %4765
      %v4799 = vmul.f32 %v4543, %v4704
      %v4800 = vmul.f32 %v4544, %v4706
      %v4801 = vmul.f32 %v4545, %v4708
      %v4802 = vmul.f32 %v4546, %v4710
      %v4803 = vmul.f32 %v4547, %v4712
      %v4804 = vmul.f32 %v4548, %v4714
      %v4805 = vmul.f32 %v4549, %v4716
      %v4806 = vmul.f32 %v4550, %v4718
      %v4807 = vmul.f32 %v4551, %v4720
      %v4808 = vmul.f32 %v4552, %v4722
      %v4809 = vmul.f32 %v4553, %v4724
      %v4810 = vmul.f32 %v4554, %v4726
      %v4811 = vmul.f32 %v4555, %v4728
      %v4812 = vmul.f32 %v4556, %v4730
      %v4813 = vmul.f32 %v4557, %v4732
      %v4814 = vmul.f32 %v4558, %v4734
      %v4815 = vmul.f32 %v4559, %v4736
      %v4816 = vmul.f32 %v4560, %v4738
      %v4817 = vmul.f32 %v4561, %v4740
      %v4818 = vmul.f32 %v4562, %v4742
      %v4819 = vmul.f32 %v4563, %v4744
      %v4820 = vmul.f32 %v4564, %v4746
      %v4821 = vmul.f32 %v4565, %v4748
      %v4822 = vmul.f32 %v4566, %v4750
      %v4823 = vmul.f32 %v4567, %v4752
      %v4824 = vmul.f32 %v4568, %v4754
      %v4825 = vmul.f32 %v4569, %v4756
      %v4826 = vmul.f32 %v4570, %v4758
      %v4827 = vmul.f32 %v4571, %v4760
      %v4828 = vmul.f32 %v4572, %v4762
      %v4829 = vmul.f32 %v4573, %v4764
      %v4830 = vmul.f32 %v4574, %v4766
      %v4831 = vadd.f32 %v4417, %v4799
      %v4832 = vadd.f32 %v4420, %v4800
      %v4833 = vadd.f32 %v4425, %v4801
      %v4834 = vadd.f32 %v4428, %v4802
      %v4835 = vadd.f32 %v4433, %v4803
      %v4836 = vadd.f32 %v4436, %v4804
      %v4837 = vadd.f32 %v4441, %v4805
      %v4838 = vadd.f32 %v4444, %v4806
      %v4839 = vadd.f32 %v4449, %v4807
      %v4840 = vadd.f32 %v4452, %v4808
      %v4841 = vadd.f32 %v4457, %v4809
      %v4842 = vadd.f32 %v4460, %v4810
      %v4843 = vadd.f32 %v4465, %v4811
      %v4844 = vadd.f32 %v4468, %v4812
      %v4845 = vadd.f32 %v4473, %v4813
      %v4846 = vadd.f32 %v4476, %v4814
      %v4847 = vadd.f32 %v4481, %v4815
      %v4848 = vadd.f32 %v4484, %v4816
      %v4849 = vadd.f32 %v4489, %v4817
      %v4850 = vadd.f32 %v4492, %v4818
      %v4851 = vadd.f32 %v4497, %v4819
      %v4852 = vadd.f32 %v4500, %v4820
      %v4853 = vadd.f32 %v4505, %v4821
      %v4854 = vadd.f32 %v4508, %v4822
      %v4855 = vadd.f32 %v4513, %v4823
      %v4856 = vadd.f32 %v4516, %v4824
      %v4857 = vadd.f32 %v4521, %v4825
      %v4858 = vadd.f32 %v4524, %v4826
      %v4859 = vadd.f32 %v4529, %v4827
      %v4860 = vadd.f32 %v4532, %v4828
      %v4861 = vadd.f32 %v4537, %v4829
      %v4862 = vadd.f32 %v4540, %v4830
      %v4863 = vld [vmem:[%s11] sm:$0xff]
      %v4864 = vld [vmem:[%s11 + $0x8] sm:$0xff]
      %v4865 = vpack.c.bf16 %v4832, %v4831
      %v4866 = vpack.c.bf16 %v4834, %v4833
      %v4867 = vpack.c.bf16 %v4836, %v4835
      %v4868 = vpack.c.bf16 %v4838, %v4837
      %v4869 = vpack.c.bf16 %v4840, %v4839
      %v4870 = vpack.c.bf16 %v4842, %v4841
      %v4871 = vpack.c.bf16 %v4844, %v4843
      %v4872 = vpack.c.bf16 %v4846, %v4845
      %v4873 = vpack.c.bf16 %v4848, %v4847
      %v4874 = vpack.c.bf16 %v4850, %v4849
      %v4875 = vpack.c.bf16 %v4852, %v4851
      %v4876 = vpack.c.bf16 %v4854, %v4853
      %v4877 = vpack.c.bf16 %v4856, %v4855
      %v4878 = vpack.c.bf16 %v4858, %v4857
      %v4879 = vpack.c.bf16 %v4860, %v4859
      %v4880 = vpack.c.bf16 %v4862, %v4861
      %v4881 = vld [vmem:[%s12] sm:$0xff]
      %v4883 = vunpack.c.l.b16 %v4881
      %v4884 = vunpack.c.h.b16 %v4881
      %v4885 = vpack.c.b16 %v4883, %v4883
      %v4886 = vpack.c.b16 %v4884, %v4884
      %vm4887 = vcmask 64512
      %v4889 = vsel %vm4887, %v4865, 0
      %v4892 = vsel %vm4887, %v4866, 0
      %v4895 = vsel %vm4887, %v4867, 0
      %v4898 = vsel %vm4887, %v4868, 0
      %v4901 = vsel %vm4887, %v4869, 0
      %v4904 = vsel %vm4887, %v4870, 0
      %v4907 = vsel %vm4887, %v4871, 0
      %v4910 = vsel %vm4887, %v4872, 0
      %v4913 = vsel %vm4887, %v4873, 0
      %v4916 = vsel %vm4887, %v4874, 0
      %v4919 = vsel %vm4887, %v4875, 0
      %v4922 = vsel %vm4887, %v4876, 0
      %v4925 = vsel %vm4887, %v4877, 0
      %v4928 = vsel %vm4887, %v4878, 0
      %v4931 = vsel %vm4887, %v4879, 0
      %v4934 = vsel %vm4887, %v4880, 0
      %v4937 = vsel %vm853, %v4885, 0
      %v4940 = vsel %vm853, %v4886, 0
      %4942 = vmatprep.subr.bf16.mxu0 0
      %4943 = vmatpush1.bf16.msra.mxu0 0
      %4944 = vmatprep.subr.bf16.mxu0 0
      %4945 = vmatpush1.bf16.msra.mxu0 0
      %4946 = vmatprep.subr.bf16.mxu0 0
      %4947 = vmatpush1.bf16.msra.mxu0 0
      %4948 = vmatprep.subr.bf16.mxu0 0
      %4949 = vmatpush1.bf16.msra.mxu0 0
      %4950 = vmatprep.subr.bf16.mxu0 0
      %4951 = vmatpush1.bf16.msra.mxu0 0
      %4952 = vmatprep.subr.bf16.mxu0 0
      %4953 = vmatpush1.bf16.msra.mxu0 0
      %4954 = vmatprep.subr.bf16.mxu0 0
      %4955 = vmatpush1.bf16.msra.mxu0 0
      %4956 = vmatprep.subr.bf16.mxu0 %v4940
      %4957 = vmatpush1.bf16.msra.mxu0 %v4937
      %4958 = vmatprep.subr.bf16.mxu0 0
      %4959 = vmatpush2.bf16.msra.mxu0 0
      %4960 = vmatprep.subr.bf16.mxu0 0
      %4961 = vmatpush2.bf16.msra.mxu0 0
      %4962 = vmatprep.subr.bf16.mxu0 0
      %4963 = vmatpush2.bf16.msra.mxu0 0
      %4964 = vmatprep.subr.bf16.mxu0 0
      %4965 = vmatpush2.bf16.msra.mxu0 0
      %4966 = vmatprep.subr.bf16.mxu0 0
      %4967 = vmatpush2.bf16.msra.mxu0 0
      %4968 = vmatprep.subr.bf16.mxu0 0
      %4969 = vmatpush2.bf16.msra.mxu0 0
      %4970 = vmatprep.subr.bf16.mxu0 0
      %4971 = vmatpush2.bf16.msra.mxu0 0
      %4972 = vmatprep.subr.bf16.mxu0 0
      %4973 = vmatpush2.bf16.msra.mxu0 0
      %4974 = vmatprep.mubr.bf16.mxu0 0
      %4975 = vmatmul.mubr.bf16.gmra.mxu0 %v4889
      %v4976 = vpop.f32.mrf.mxu0
      %v4977 = vadd.f32 0.0, %v4976
      %v4978 = vpop.f32.mrf.mxu0
      %v4979 = vadd.f32 0.0, %v4978
      %v4980 = vpop.f32.mrf.mxu0
      %v4981 = vadd.f32 0.0, %v4980
      %v4982 = vpop.f32.mrf.mxu0
      %v4983 = vadd.f32 0.0, %v4982
      %4984 = vmatprep.mubr.bf16.mxu0 0
      %4985 = vmatmul.mubr.bf16.gmra.mxu0 %v4892
      %v4986 = vpop.f32.mrf.mxu0
      %v4987 = vadd.f32 0.0, %v4986
      %v4988 = vpop.f32.mrf.mxu0
      %v4989 = vadd.f32 0.0, %v4988
      %v4990 = vpop.f32.mrf.mxu0
      %v4991 = vadd.f32 0.0, %v4990
      %v4992 = vpop.f32.mrf.mxu0
      %v4993 = vadd.f32 0.0, %v4992
      %4994 = vmatprep.mubr.bf16.mxu0 0
      %4995 = vmatmul.mubr.bf16.gmra.mxu0 %v4895
      %v4996 = vpop.f32.mrf.mxu0
      %v4997 = vadd.f32 0.0, %v4996
      %v4998 = vpop.f32.mrf.mxu0
      %v4999 = vadd.f32 0.0, %v4998
      %v5000 = vpop.f32.mrf.mxu0
      %v5001 = vadd.f32 0.0, %v5000
      %v5002 = vpop.f32.mrf.mxu0
      %v5003 = vadd.f32 0.0, %v5002
      %5004 = vmatprep.mubr.bf16.mxu0 0
      %5005 = vmatmul.mubr.bf16.gmra.mxu0 %v4898
      %v5006 = vpop.f32.mrf.mxu0
      %v5007 = vadd.f32 0.0, %v5006
      %v5008 = vpop.f32.mrf.mxu0
      %v5009 = vadd.f32 0.0, %v5008
      %v5010 = vpop.f32.mrf.mxu0
      %v5011 = vadd.f32 0.0, %v5010
      %v5012 = vpop.f32.mrf.mxu0
      %v5013 = vadd.f32 0.0, %v5012
      %5014 = vmatprep.mubr.bf16.mxu0 0
      %5015 = vmatmul.mubr.bf16.gmra.mxu0 %v4901
      %v5016 = vpop.f32.mrf.mxu0
      %v5017 = vadd.f32 0.0, %v5016
      %v5018 = vpop.f32.mrf.mxu0
      %v5019 = vadd.f32 0.0, %v5018
      %v5020 = vpop.f32.mrf.mxu0
      %v5021 = vadd.f32 0.0, %v5020
      %v5022 = vpop.f32.mrf.mxu0
      %v5023 = vadd.f32 0.0, %v5022
      %5024 = vmatprep.mubr.bf16.mxu0 0
      %5025 = vmatmul.mubr.bf16.gmra.mxu0 %v4904
      %v5026 = vpop.f32.mrf.mxu0
      %v5027 = vadd.f32 0.0, %v5026
      %v5028 = vpop.f32.mrf.mxu0
      %v5029 = vadd.f32 0.0, %v5028
      %v5030 = vpop.f32.mrf.mxu0
      %v5031 = vadd.f32 0.0, %v5030
      %v5032 = vpop.f32.mrf.mxu0
      %v5033 = vadd.f32 0.0, %v5032
      %5034 = vmatprep.mubr.bf16.mxu0 0
      %5035 = vmatmul.mubr.bf16.gmra.mxu0 %v4907
      %v5036 = vpop.f32.mrf.mxu0
      %v5037 = vadd.f32 0.0, %v5036
      %v5038 = vpop.f32.mrf.mxu0
      %v5039 = vadd.f32 0.0, %v5038
      %v5040 = vpop.f32.mrf.mxu0
      %v5041 = vadd.f32 0.0, %v5040
      %v5042 = vpop.f32.mrf.mxu0
      %v5043 = vadd.f32 0.0, %v5042
      %5044 = vmatprep.mubr.bf16.mxu0 0
      %5045 = vmatmul.mubr.bf16.gmra.mxu0 %v4910
      %v5046 = vpop.f32.mrf.mxu0
      %v5047 = vadd.f32 0.0, %v5046
      %v5048 = vpop.f32.mrf.mxu0
      %v5049 = vadd.f32 0.0, %v5048
      %v5050 = vpop.f32.mrf.mxu0
      %v5051 = vadd.f32 0.0, %v5050
      %v5052 = vpop.f32.mrf.mxu0
      %v5053 = vadd.f32 0.0, %v5052
      %5054 = vmatprep.mubr.bf16.mxu0 0
      %5055 = vmatmul.mubr.bf16.gmra.mxu0 %v4913
      %v5056 = vpop.f32.mrf.mxu0
      %v5057 = vadd.f32 0.0, %v5056
      %v5058 = vpop.f32.mrf.mxu0
      %v5059 = vadd.f32 0.0, %v5058
      %v5060 = vpop.f32.mrf.mxu0
      %v5061 = vadd.f32 0.0, %v5060
      %v5062 = vpop.f32.mrf.mxu0
      %v5063 = vadd.f32 0.0, %v5062
      %5064 = vmatprep.mubr.bf16.mxu0 0
      %5065 = vmatmul.mubr.bf16.gmra.mxu0 %v4916
      %v5066 = vpop.f32.mrf.mxu0
      %v5067 = vadd.f32 0.0, %v5066
      %v5068 = vpop.f32.mrf.mxu0
      %v5069 = vadd.f32 0.0, %v5068
      %v5070 = vpop.f32.mrf.mxu0
      %v5071 = vadd.f32 0.0, %v5070
      %v5072 = vpop.f32.mrf.mxu0
      %v5073 = vadd.f32 0.0, %v5072
      %5074 = vmatprep.mubr.bf16.mxu0 0
      %5075 = vmatmul.mubr.bf16.gmra.mxu0 %v4919
      %v5076 = vpop.f32.mrf.mxu0
      %v5077 = vadd.f32 0.0, %v5076
      %v5078 = vpop.f32.mrf.mxu0
      %v5079 = vadd.f32 0.0, %v5078
      %v5080 = vpop.f32.mrf.mxu0
      %v5081 = vadd.f32 0.0, %v5080
      %v5082 = vpop.f32.mrf.mxu0
      %v5083 = vadd.f32 0.0, %v5082
      %5084 = vmatprep.mubr.bf16.mxu0 0
      %5085 = vmatmul.mubr.bf16.gmra.mxu0 %v4922
      %v5086 = vpop.f32.mrf.mxu0
      %v5087 = vadd.f32 0.0, %v5086
      %v5088 = vpop.f32.mrf.mxu0
      %v5089 = vadd.f32 0.0, %v5088
      %v5090 = vpop.f32.mrf.mxu0
      %v5091 = vadd.f32 0.0, %v5090
      %v5092 = vpop.f32.mrf.mxu0
      %v5093 = vadd.f32 0.0, %v5092
      %5094 = vmatprep.mubr.bf16.mxu0 0
      %5095 = vmatmul.mubr.bf16.gmra.mxu0 %v4925
      %v5096 = vpop.f32.mrf.mxu0
      %v5097 = vadd.f32 0.0, %v5096
      %v5098 = vpop.f32.mrf.mxu0
      %v5099 = vadd.f32 0.0, %v5098
      %v5100 = vpop.f32.mrf.mxu0
      %v5101 = vadd.f32 0.0, %v5100
      %v5102 = vpop.f32.mrf.mxu0
      %v5103 = vadd.f32 0.0, %v5102
      %5104 = vmatprep.mubr.bf16.mxu0 0
      %5105 = vmatmul.mubr.bf16.gmra.mxu0 %v4928
      %v5106 = vpop.f32.mrf.mxu0
      %v5107 = vadd.f32 0.0, %v5106
      %v5108 = vpop.f32.mrf.mxu0
      %v5109 = vadd.f32 0.0, %v5108
      %v5110 = vpop.f32.mrf.mxu0
      %v5111 = vadd.f32 0.0, %v5110
      %v5112 = vpop.f32.mrf.mxu0
      %v5113 = vadd.f32 0.0, %v5112
      %5114 = vmatprep.mubr.bf16.mxu0 0
      %5115 = vmatmul.mubr.bf16.gmra.mxu0 %v4931
      %v5116 = vpop.f32.mrf.mxu0
      %v5117 = vadd.f32 0.0, %v5116
      %v5118 = vpop.f32.mrf.mxu0
      %v5119 = vadd.f32 0.0, %v5118
      %v5120 = vpop.f32.mrf.mxu0
      %v5121 = vadd.f32 0.0, %v5120
      %v5122 = vpop.f32.mrf.mxu0
      %v5123 = vadd.f32 0.0, %v5122
      %5124 = vmatprep.mubr.bf16.mxu0 0
      %5125 = vmatmul.mubr.bf16.gmra.mxu0 %v4934
      %v5126 = vpop.f32.mrf.mxu0
      %v5127 = vadd.f32 0.0, %v5126
      %v5128 = vpop.f32.mrf.mxu0
      %v5129 = vadd.f32 0.0, %v5128
      %v5130 = vpop.f32.mrf.mxu0
      %v5131 = vadd.f32 0.0, %v5130
      %v5132 = vpop.f32.mrf.mxu0
      %v5133 = vadd.f32 0.0, %v5132
      %5134 = vdwg.mxu0
      %v5137 = vunpack.c.l.b16 %v4863
      %v5138 = vunpack.c.h.b16 %v4863
      %v5139 = vunpack.c.l.b16 %v4864
      %v5140 = vunpack.c.h.b16 %v4864
      %v5141 = vpack.c.b16 %v5139, %v5137
      %v5142 = vpack.c.b16 %v5140, %v5138
      %vm5145 = vcmask 130048
      %v5147 = vsel %vm5145, %v758, 0
      %v5150 = vsel %vm5145, %v759, 0
      %v5153 = vsel %vm5145, %v760, 0
      %v5156 = vsel %vm5145, %v761, 0
      %v5159 = vsel %vm5145, %v762, 0
      %v5162 = vsel %vm5145, %v763, 0
      %v5165 = vsel %vm5145, %v764, 0
      %v5168 = vsel %vm5145, %v765, 0
      %v5171 = vsel %vm5145, %v766, 0
      %v5174 = vsel %vm5145, %v767, 0
      %v5177 = vsel %vm5145, %v768, 0
      %v5180 = vsel %vm5145, %v769, 0
      %v5183 = vsel %vm5145, %v770, 0
      %v5186 = vsel %vm5145, %v771, 0
      %v5189 = vsel %vm5145, %v772, 0
      %v5192 = vsel %vm5145, %v773, 0
      %5194 = vmatprep.subr.bf16.mxu0 0
      %5195 = vmatpush1.bf16.msra.mxu0 0
      %5196 = vmatprep.subr.bf16.mxu0 0
      %5197 = vmatpush1.bf16.msra.mxu0 0
      %5198 = vmatprep.subr.bf16.mxu0 0
      %5199 = vmatpush1.bf16.msra.mxu0 0
      %5200 = vmatprep.subr.bf16.mxu0 0
      %5201 = vmatpush1.bf16.msra.mxu0 0
      %5202 = vmatprep.subr.bf16.mxu0 0
      %5203 = vmatpush1.bf16.msra.mxu0 0
      %5204 = vmatprep.subr.bf16.mxu0 0
      %5205 = vmatpush1.bf16.msra.mxu0 0
      %5206 = vmatprep.subr.bf16.mxu0 0
      %5207 = vmatpush1.bf16.msra.mxu0 0
      %5208 = vmatprep.subr.bf16.mxu0 %v5142
      %5209 = vmatpush1.bf16.msra.mxu0 %v5141
      %5210 = vmatprep.subr.bf16.mxu0 0
      %5211 = vmatpush2.bf16.msra.mxu0 0
      %5212 = vmatprep.subr.bf16.mxu0 0
      %5213 = vmatpush2.bf16.msra.mxu0 0
      %5214 = vmatprep.subr.bf16.mxu0 0
      %5215 = vmatpush2.bf16.msra.mxu0 0
      %5216 = vmatprep.subr.bf16.mxu0 0
      %5217 = vmatpush2.bf16.msra.mxu0 0
      %5218 = vmatprep.subr.bf16.mxu0 0
      %5219 = vmatpush2.bf16.msra.mxu0 0
      %5220 = vmatprep.subr.bf16.mxu0 0
      %5221 = vmatpush2.bf16.msra.mxu0 0
      %5222 = vmatprep.subr.bf16.mxu0 0
      %5223 = vmatpush2.bf16.msra.mxu0 0
      %5224 = vmatprep.subr.bf16.mxu0 0
      %5225 = vmatpush2.bf16.msra.mxu0 0
      %5226 = vmatprep.mubr.bf16.mxu0 0
      %5227 = vmatmul.mubr.bf16.gmra.mxu0 %v5147
      %v5228 = vpop.f32.mrf.mxu0
      %v5229 = vadd.f32 %v4977, %v5228
      %v5230 = vpop.f32.mrf.mxu0
      %v5231 = vadd.f32 %v4979, %v5230
      %v5232 = vpop.f32.mrf.mxu0
      %v5233 = vadd.f32 %v4981, %v5232
      %v5234 = vpop.f32.mrf.mxu0
      %v5235 = vadd.f32 %v4983, %v5234
      %5236 = vmatprep.mubr.bf16.mxu0 0
      %5237 = vmatmul.mubr.bf16.gmra.mxu0 %v5150
      %v5238 = vpop.f32.mrf.mxu0
      %v5239 = vadd.f32 %v4987, %v5238
      %v5240 = vpop.f32.mrf.mxu0
      %v5241 = vadd.f32 %v4989, %v5240
      %v5242 = vpop.f32.mrf.mxu0
      %v5243 = vadd.f32 %v4991, %v5242
      %v5244 = vpop.f32.mrf.mxu0
      %v5245 = vadd.f32 %v4993, %v5244
      %5246 = vmatprep.mubr.bf16.mxu0 0
      %5247 = vmatmul.mubr.bf16.gmra.mxu0 %v5153
      %v5248 = vpop.f32.mrf.mxu0
      %v5249 = vadd.f32 %v4997, %v5248
      %v5250 = vpop.f32.mrf.mxu0
      %v5251 = vadd.f32 %v4999, %v5250
      %v5252 = vpop.f32.mrf.mxu0
      %v5253 = vadd.f32 %v5001, %v5252
      %v5254 = vpop.f32.mrf.mxu0
      %v5255 = vadd.f32 %v5003, %v5254
      %5256 = vmatprep.mubr.bf16.mxu0 0
      %5257 = vmatmul.mubr.bf16.gmra.mxu0 %v5156
      %v5258 = vpop.f32.mrf.mxu0
      %v5259 = vadd.f32 %v5007, %v5258
      %v5260 = vpop.f32.mrf.mxu0
      %v5261 = vadd.f32 %v5009, %v5260
      %v5262 = vpop.f32.mrf.mxu0
      %v5263 = vadd.f32 %v5011, %v5262
      %v5264 = vpop.f32.mrf.mxu0
      %v5265 = vadd.f32 %v5013, %v5264
      %5266 = vmatprep.mubr.bf16.mxu0 0
      %5267 = vmatmul.mubr.bf16.gmra.mxu0 %v5159
      %v5268 = vpop.f32.mrf.mxu0
      %v5269 = vadd.f32 %v5017, %v5268
      %v5270 = vpop.f32.mrf.mxu0
      %v5271 = vadd.f32 %v5019, %v5270
      %v5272 = vpop.f32.mrf.mxu0
      %v5273 = vadd.f32 %v5021, %v5272
      %v5274 = vpop.f32.mrf.mxu0
      %v5275 = vadd.f32 %v5023, %v5274
      %5276 = vmatprep.mubr.bf16.mxu0 0
      %5277 = vmatmul.mubr.bf16.gmra.mxu0 %v5162
      %v5278 = vpop.f32.mrf.mxu0
      %v5279 = vadd.f32 %v5027, %v5278
      %v5280 = vpop.f32.mrf.mxu0
      %v5281 = vadd.f32 %v5029, %v5280
      %v5282 = vpop.f32.mrf.mxu0
      %v5283 = vadd.f32 %v5031, %v5282
      %v5284 = vpop.f32.mrf.mxu0
      %v5285 = vadd.f32 %v5033, %v5284
      %5286 = vmatprep.mubr.bf16.mxu0 0
      %5287 = vmatmul.mubr.bf16.gmra.mxu0 %v5165
      %v5288 = vpop.f32.mrf.mxu0
      %v5289 = vadd.f32 %v5037, %v5288
      %v5290 = vpop.f32.mrf.mxu0
      %v5291 = vadd.f32 %v5039, %v5290
      %v5292 = vpop.f32.mrf.mxu0
      %v5293 = vadd.f32 %v5041, %v5292
      %v5294 = vpop.f32.mrf.mxu0
      %v5295 = vadd.f32 %v5043, %v5294
      %5296 = vmatprep.mubr.bf16.mxu0 0
      %5297 = vmatmul.mubr.bf16.gmra.mxu0 %v5168
      %v5298 = vpop.f32.mrf.mxu0
      %v5299 = vadd.f32 %v5047, %v5298
      %v5300 = vpop.f32.mrf.mxu0
      %v5301 = vadd.f32 %v5049, %v5300
      %v5302 = vpop.f32.mrf.mxu0
      %v5303 = vadd.f32 %v5051, %v5302
      %v5304 = vpop.f32.mrf.mxu0
      %v5305 = vadd.f32 %v5053, %v5304
      %5306 = vmatprep.mubr.bf16.mxu0 0
      %5307 = vmatmul.mubr.bf16.gmra.mxu0 %v5171
      %v5308 = vpop.f32.mrf.mxu0
      %v5309 = vadd.f32 %v5057, %v5308
      %v5310 = vpop.f32.mrf.mxu0
      %v5311 = vadd.f32 %v5059, %v5310
      %v5312 = vpop.f32.mrf.mxu0
      %v5313 = vadd.f32 %v5061, %v5312
      %v5314 = vpop.f32.mrf.mxu0
      %v5315 = vadd.f32 %v5063, %v5314
      %5316 = vmatprep.mubr.bf16.mxu0 0
      %5317 = vmatmul.mubr.bf16.gmra.mxu0 %v5174
      %v5318 = vpop.f32.mrf.mxu0
      %v5319 = vadd.f32 %v5067, %v5318
      %v5320 = vpop.f32.mrf.mxu0
      %v5321 = vadd.f32 %v5069, %v5320
      %v5322 = vpop.f32.mrf.mxu0
      %v5323 = vadd.f32 %v5071, %v5322
      %v5324 = vpop.f32.mrf.mxu0
      %v5325 = vadd.f32 %v5073, %v5324
      %5326 = vmatprep.mubr.bf16.mxu0 0
      %5327 = vmatmul.mubr.bf16.gmra.mxu0 %v5177
      %v5328 = vpop.f32.mrf.mxu0
      %v5329 = vadd.f32 %v5077, %v5328
      %v5330 = vpop.f32.mrf.mxu0
      %v5331 = vadd.f32 %v5079, %v5330
      %v5332 = vpop.f32.mrf.mxu0
      %v5333 = vadd.f32 %v5081, %v5332
      %v5334 = vpop.f32.mrf.mxu0
      %v5335 = vadd.f32 %v5083, %v5334
      %5336 = vmatprep.mubr.bf16.mxu0 0
      %5337 = vmatmul.mubr.bf16.gmra.mxu0 %v5180
      %v5338 = vpop.f32.mrf.mxu0
      %v5339 = vadd.f32 %v5087, %v5338
      %v5340 = vpop.f32.mrf.mxu0
      %v5341 = vadd.f32 %v5089, %v5340
      %v5342 = vpop.f32.mrf.mxu0
      %v5343 = vadd.f32 %v5091, %v5342
      %v5344 = vpop.f32.mrf.mxu0
      %v5345 = vadd.f32 %v5093, %v5344
      %5346 = vmatprep.mubr.bf16.mxu0 0
      %5347 = vmatmul.mubr.bf16.gmra.mxu0 %v5183
      %v5348 = vpop.f32.mrf.mxu0
      %v5349 = vadd.f32 %v5097, %v5348
      %v5350 = vpop.f32.mrf.mxu0
      %v5351 = vadd.f32 %v5099, %v5350
      %v5352 = vpop.f32.mrf.mxu0
      %v5353 = vadd.f32 %v5101, %v5352
      %v5354 = vpop.f32.mrf.mxu0
      %v5355 = vadd.f32 %v5103, %v5354
      %5356 = vmatprep.mubr.bf16.mxu0 0
      %5357 = vmatmul.mubr.bf16.gmra.mxu0 %v5186
      %v5358 = vpop.f32.mrf.mxu0
      %v5359 = vadd.f32 %v5107, %v5358
      %v5360 = vpop.f32.mrf.mxu0
      %v5361 = vadd.f32 %v5109, %v5360
      %v5362 = vpop.f32.mrf.mxu0
      %v5363 = vadd.f32 %v5111, %v5362
      %v5364 = vpop.f32.mrf.mxu0
      %v5365 = vadd.f32 %v5113, %v5364
      %5366 = vmatprep.mubr.bf16.mxu0 0
      %5367 = vmatmul.mubr.bf16.gmra.mxu0 %v5189
      %v5368 = vpop.f32.mrf.mxu0
      %v5369 = vadd.f32 %v5117, %v5368
      %v5370 = vpop.f32.mrf.mxu0
      %v5371 = vadd.f32 %v5119, %v5370
      %v5372 = vpop.f32.mrf.mxu0
      %v5373 = vadd.f32 %v5121, %v5372
      %v5374 = vpop.f32.mrf.mxu0
      %v5375 = vadd.f32 %v5123, %v5374
      %5376 = vmatprep.mubr.bf16.mxu0 0
      %5377 = vmatmul.mubr.bf16.gmra.mxu0 %v5192
      %v5378 = vpop.f32.mrf.mxu0
      %v5379 = vadd.f32 %v5127, %v5378
      %v5380 = vpop.f32.mrf.mxu0
      %v5381 = vadd.f32 %v5129, %v5380
      %v5382 = vpop.f32.mrf.mxu0
      %v5383 = vadd.f32 %v5131, %v5382
      %v5384 = vpop.f32.mrf.mxu0
      %v5385 = vadd.f32 %v5133, %v5384
      %5386 = vdwg.mxu0
      %v5387 = vld [vmem:[%s13] sm:$0x3]
      %v5389 = vlaneseq
      %v5390 = vshrl.u32 %v5389, 7
      %v5391 = vsub.s32 0, %v5390
      %v5392 = vrot.slane %v5387, %v5391
      %v5393 = vlaneseq
      %v5394 = vshrl.u32 %v5393, 7
      %v5395 = vsub.s32 1, %v5394
      %v5396 = vrot.slane %v5387, %v5395
      %v5399 = vadd.f32 %v5229, %v5392
      %v5400 = vadd.f32 %v5231, %v5396
      %v5401 = vadd.f32 %v5233, %v5392
      %v5402 = vadd.f32 %v5235, %v5396
      %v5403 = vadd.f32 %v5239, %v5392
      %v5404 = vadd.f32 %v5241, %v5396
      %v5405 = vadd.f32 %v5243, %v5392
      %v5406 = vadd.f32 %v5245, %v5396
      %v5407 = vadd.f32 %v5249, %v5392
      %v5408 = vadd.f32 %v5251, %v5396
      %v5409 = vadd.f32 %v5253, %v5392
      %v5410 = vadd.f32 %v5255, %v5396
      %v5411 = vadd.f32 %v5259, %v5392
      %v5412 = vadd.f32 %v5261, %v5396
      %v5413 = vadd.f32 %v5263, %v5392
      %v5414 = vadd.f32 %v5265, %v5396
      %v5415 = vadd.f32 %v5269, %v5392
      %v5416 = vadd.f32 %v5271, %v5396
      %v5417 = vadd.f32 %v5273, %v5392
      %v5418 = vadd.f32 %v5275, %v5396
      %v5419 = vadd.f32 %v5279, %v5392
      %v5420 = vadd.f32 %v5281, %v5396
      %v5421 = vadd.f32 %v5283, %v5392
      %v5422 = vadd.f32 %v5285, %v5396
      %v5423 = vadd.f32 %v5289, %v5392
      %v5424 = vadd.f32 %v5291, %v5396
      %v5425 = vadd.f32 %v5293, %v5392
      %v5426 = vadd.f32 %v5295, %v5396
      %v5427 = vadd.f32 %v5299, %v5392
      %v5428 = vadd.f32 %v5301, %v5396
      %v5429 = vadd.f32 %v5303, %v5392
      %v5430 = vadd.f32 %v5305, %v5396
      %v5431 = vadd.f32 %v5309, %v5392
      %v5432 = vadd.f32 %v5311, %v5396
      %v5433 = vadd.f32 %v5313, %v5392
      %v5434 = vadd.f32 %v5315, %v5396
      %v5435 = vadd.f32 %v5319, %v5392
      %v5436 = vadd.f32 %v5321, %v5396
      %v5437 = vadd.f32 %v5323, %v5392
      %v5438 = vadd.f32 %v5325, %v5396
      %v5439 = vadd.f32 %v5329, %v5392
      %v5440 = vadd.f32 %v5331, %v5396
      %v5441 = vadd.f32 %v5333, %v5392
      %v5442 = vadd.f32 %v5335, %v5396
      %v5443 = vadd.f32 %v5339, %v5392
      %v5444 = vadd.f32 %v5341, %v5396
      %v5445 = vadd.f32 %v5343, %v5392
      %v5446 = vadd.f32 %v5345, %v5396
      %v5447 = vadd.f32 %v5349, %v5392
      %v5448 = vadd.f32 %v5351, %v5396
      %v5449 = vadd.f32 %v5353, %v5392
      %v5450 = vadd.f32 %v5355, %v5396
      %v5451 = vadd.f32 %v5359, %v5392
      %v5452 = vadd.f32 %v5361, %v5396
      %v5453 = vadd.f32 %v5363, %v5392
      %v5454 = vadd.f32 %v5365, %v5396
      %v5455 = vadd.f32 %v5369, %v5392
      %v5456 = vadd.f32 %v5371, %v5396
      %v5457 = vadd.f32 %v5373, %v5392
      %v5458 = vadd.f32 %v5375, %v5396
      %v5459 = vadd.f32 %v5379, %v5392
      %v5460 = vadd.f32 %v5381, %v5396
      %v5461 = vadd.f32 %v5383, %v5392
      %v5462 = vadd.f32 %v5385, %v5396
      %v5463 = vmin.f32 %v5399, 20.0
      %v5464 = vmin.f32 %v5400, 20.0
      %v5465 = vmin.f32 %v5401, 20.0
      %v5466 = vmin.f32 %v5402, 20.0
      %v5467 = vmin.f32 %v5403, 20.0
      %v5468 = vmin.f32 %v5404, 20.0
      %v5469 = vmin.f32 %v5405, 20.0
      %v5470 = vmin.f32 %v5406, 20.0
      %v5471 = vmin.f32 %v5407, 20.0
      %v5472 = vmin.f32 %v5408, 20.0
      %v5473 = vmin.f32 %v5409, 20.0
      %v5474 = vmin.f32 %v5410, 20.0
      %v5475 = vmin.f32 %v5411, 20.0
      %v5476 = vmin.f32 %v5412, 20.0
      %v5477 = vmin.f32 %v5413, 20.0
      %v5478 = vmin.f32 %v5414, 20.0
      %v5479 = vmin.f32 %v5415, 20.0
      %v5480 = vmin.f32 %v5416, 20.0
      %v5481 = vmin.f32 %v5417, 20.0
      %v5482 = vmin.f32 %v5418, 20.0
      %v5483 = vmin.f32 %v5419, 20.0
      %v5484 = vmin.f32 %v5420, 20.0
      %v5485 = vmin.f32 %v5421, 20.0
      %v5486 = vmin.f32 %v5422, 20.0
      %v5487 = vmin.f32 %v5423, 20.0
      %v5488 = vmin.f32 %v5424, 20.0
      %v5489 = vmin.f32 %v5425, 20.0
      %v5490 = vmin.f32 %v5426, 20.0
      %v5491 = vmin.f32 %v5427, 20.0
      %v5492 = vmin.f32 %v5428, 20.0
      %v5493 = vmin.f32 %v5429, 20.0
      %v5494 = vmin.f32 %v5430, 20.0
      %v5495 = vmin.f32 %v5431, 20.0
      %v5496 = vmin.f32 %v5432, 20.0
      %v5497 = vmin.f32 %v5433, 20.0
      %v5498 = vmin.f32 %v5434, 20.0
      %v5499 = vmin.f32 %v5435, 20.0
      %v5500 = vmin.f32 %v5436, 20.0
      %v5501 = vmin.f32 %v5437, 20.0
      %v5502 = vmin.f32 %v5438, 20.0
      %v5503 = vmin.f32 %v5439, 20.0
      %v5504 = vmin.f32 %v5440, 20.0
      %v5505 = vmin.f32 %v5441, 20.0
      %v5506 = vmin.f32 %v5442, 20.0
      %v5507 = vmin.f32 %v5443, 20.0
      %v5508 = vmin.f32 %v5444, 20.0
      %v5509 = vmin.f32 %v5445, 20.0
      %v5510 = vmin.f32 %v5446, 20.0
      %v5511 = vmin.f32 %v5447, 20.0
      %v5512 = vmin.f32 %v5448, 20.0
      %v5513 = vmin.f32 %v5449, 20.0
      %v5514 = vmin.f32 %v5450, 20.0
      %v5515 = vmin.f32 %v5451, 20.0
      %v5516 = vmin.f32 %v5452, 20.0
      %v5517 = vmin.f32 %v5453, 20.0
      %v5518 = vmin.f32 %v5454, 20.0
      %v5519 = vmin.f32 %v5455, 20.0
      %v5520 = vmin.f32 %v5456, 20.0
      %v5521 = vmin.f32 %v5457, 20.0
      %v5522 = vmin.f32 %v5458, 20.0
      %v5523 = vmin.f32 %v5459, 20.0
      %v5524 = vmin.f32 %v5460, 20.0
      %v5525 = vmin.f32 %v5461, 20.0
      %v5526 = vmin.f32 %v5462, 20.0
      %v5527 = vmul.f32 %v5463, 1.442695
      %v5528 = vpow.pop %v5527
      %v5529 = vmul.f32 %v5464, 1.442695
      %v5530 = vpow.pop %v5529
      %v5531 = vmul.f32 %v5465, 1.442695
      %v5532 = vpow.pop %v5531
      %v5533 = vmul.f32 %v5466, 1.442695
      %v5534 = vpow.pop %v5533
      %v5535 = vmul.f32 %v5467, 1.442695
      %v5536 = vpow.pop %v5535
      %v5537 = vmul.f32 %v5468, 1.442695
      %v5538 = vpow.pop %v5537
      %v5539 = vmul.f32 %v5469, 1.442695
      %v5540 = vpow.pop %v5539
      %v5541 = vmul.f32 %v5470, 1.442695
      %v5542 = vpow.pop %v5541
      %v5543 = vmul.f32 %v5471, 1.442695
      %v5544 = vpow.pop %v5543
      %v5545 = vmul.f32 %v5472, 1.442695
      %v5546 = vpow.pop %v5545
      %v5547 = vmul.f32 %v5473, 1.442695
      %v5548 = vpow.pop %v5547
      %v5549 = vmul.f32 %v5474, 1.442695
      %v5550 = vpow.pop %v5549
      %v5551 = vmul.f32 %v5475, 1.442695
      %v5552 = vpow.pop %v5551
      %v5553 = vmul.f32 %v5476, 1.442695
      %v5554 = vpow.pop %v5553
      %v5555 = vmul.f32 %v5477, 1.442695
      %v5556 = vpow.pop %v5555
      %v5557 = vmul.f32 %v5478, 1.442695
      %v5558 = vpow.pop %v5557
      %v5559 = vmul.f32 %v5479, 1.442695
      %v5560 = vpow.pop %v5559
      %v5561 = vmul.f32 %v5480, 1.442695
      %v5562 = vpow.pop %v5561
      %v5563 = vmul.f32 %v5481, 1.442695
      %v5564 = vpow.pop %v5563
      %v5565 = vmul.f32 %v5482, 1.442695
      %v5566 = vpow.pop %v5565
      %v5567 = vmul.f32 %v5483, 1.442695
      %v5568 = vpow.pop %v5567
      %v5569 = vmul.f32 %v5484, 1.442695
      %v5570 = vpow.pop %v5569
      %v5571 = vmul.f32 %v5485, 1.442695
      %v5572 = vpow.pop %v5571
      %v5573 = vmul.f32 %v5486, 1.442695
      %v5574 = vpow.pop %v5573
      %v5575 = vmul.f32 %v5487, 1.442695
      %v5576 = vpow.pop %v5575
      %v5577 = vmul.f32 %v5488, 1.442695
      %v5578 = vpow.pop %v5577
      %v5579 = vmul.f32 %v5489, 1.442695
      %v5580 = vpow.pop %v5579
      %v5581 = vmul.f32 %v5490, 1.442695
      %v5582 = vpow.pop %v5581
      %v5583 = vmul.f32 %v5491, 1.442695
      %v5584 = vpow.pop %v5583
      %v5585 = vmul.f32 %v5492, 1.442695
      %v5586 = vpow.pop %v5585
      %v5587 = vmul.f32 %v5493, 1.442695
      %v5588 = vpow.pop %v5587
      %v5589 = vmul.f32 %v5494, 1.442695
      %v5590 = vpow.pop %v5589
      %v5591 = vmul.f32 %v5495, 1.442695
      %v5592 = vpow.pop %v5591
      %v5593 = vmul.f32 %v5496, 1.442695
      %v5594 = vpow.pop %v5593
      %v5595 = vmul.f32 %v5497, 1.442695
      %v5596 = vpow.pop %v5595
      %v5597 = vmul.f32 %v5498, 1.442695
      %v5598 = vpow.pop %v5597
      %v5599 = vmul.f32 %v5499, 1.442695
      %v5600 = vpow.pop %v5599
      %v5601 = vmul.f32 %v5500, 1.442695
      %v5602 = vpow.pop %v5601
      %v5603 = vmul.f32 %v5501, 1.442695
      %v5604 = vpow.pop %v5603
      %v5605 = vmul.f32 %v5502, 1.442695
      %v5606 = vpow.pop %v5605
      %v5607 = vmul.f32 %v5503, 1.442695
      %v5608 = vpow.pop %v5607
      %v5609 = vmul.f32 %v5504, 1.442695
      %v5610 = vpow.pop %v5609
      %v5611 = vmul.f32 %v5505, 1.442695
      %v5612 = vpow.pop %v5611
      %v5613 = vmul.f32 %v5506, 1.442695
      %v5614 = vpow.pop %v5613
      %v5615 = vmul.f32 %v5507, 1.442695
      %v5616 = vpow.pop %v5615
      %v5617 = vmul.f32 %v5508, 1.442695
      %v5618 = vpow.pop %v5617
      %v5619 = vmul.f32 %v5509, 1.442695
      %v5620 = vpow.pop %v5619
      %v5621 = vmul.f32 %v5510, 1.442695
      %v5622 = vpow.pop %v5621
      %v5623 = vmul.f32 %v5511, 1.442695
      %v5624 = vpow.pop %v5623
      %v5625 = vmul.f32 %v5512, 1.442695
      %v5626 = vpow.pop %v5625
      %v5627 = vmul.f32 %v5513, 1.442695
      %v5628 = vpow.pop %v5627
      %v5629 = vmul.f32 %v5514, 1.442695
      %v5630 = vpow.pop %v5629
      %v5631 = vmul.f32 %v5515, 1.442695
      %v5632 = vpow.pop %v5631
      %v5633 = vmul.f32 %v5516, 1.442695
      %v5634 = vpow.pop %v5633
      %v5635 = vmul.f32 %v5517, 1.442695
      %v5636 = vpow.pop %v5635
      %v5637 = vmul.f32 %v5518, 1.442695
      %v5638 = vpow.pop %v5637
      %v5639 = vmul.f32 %v5519, 1.442695
      %v5640 = vpow.pop %v5639
      %v5641 = vmul.f32 %v5520, 1.442695
      %v5642 = vpow.pop %v5641
      %v5643 = vmul.f32 %v5521, 1.442695
      %v5644 = vpow.pop %v5643
      %v5645 = vmul.f32 %v5522, 1.442695
      %v5646 = vpow.pop %v5645
      %v5647 = vmul.f32 %v5523, 1.442695
      %v5648 = vpow.pop %v5647
      %v5649 = vmul.f32 %v5524, 1.442695
      %v5650 = vpow.pop %v5649
      %v5651 = vmul.f32 %v5525, 1.442695
      %v5652 = vpow.pop %v5651
      %v5653 = vmul.f32 %v5526, 1.442695
      %v5654 = vpow.pop %v5653
      %v5655 = vadd.f32 %v5528, 1.0
      %v5656 = vadd.f32 %v5530, 1.0
      %v5657 = vadd.f32 %v5532, 1.0
      %v5658 = vadd.f32 %v5534, 1.0
      %v5659 = vadd.f32 %v5536, 1.0
      %v5660 = vadd.f32 %v5538, 1.0
      %v5661 = vadd.f32 %v5540, 1.0
      %v5662 = vadd.f32 %v5542, 1.0
      %v5663 = vadd.f32 %v5544, 1.0
      %v5664 = vadd.f32 %v5546, 1.0
      %v5665 = vadd.f32 %v5548, 1.0
      %v5666 = vadd.f32 %v5550, 1.0
      %v5667 = vadd.f32 %v5552, 1.0
      %v5668 = vadd.f32 %v5554, 1.0
      %v5669 = vadd.f32 %v5556, 1.0
      %v5670 = vadd.f32 %v5558, 1.0
      %v5671 = vadd.f32 %v5560, 1.0
      %v5672 = vadd.f32 %v5562, 1.0
      %v5673 = vadd.f32 %v5564, 1.0
      %v5674 = vadd.f32 %v5566, 1.0
      %v5675 = vadd.f32 %v5568, 1.0
      %v5676 = vadd.f32 %v5570, 1.0
      %v5677 = vadd.f32 %v5572, 1.0
      %v5678 = vadd.f32 %v5574, 1.0
      %v5679 = vadd.f32 %v5576, 1.0
      %v5680 = vadd.f32 %v5578, 1.0
      %v5681 = vadd.f32 %v5580, 1.0
      %v5682 = vadd.f32 %v5582, 1.0
      %v5683 = vadd.f32 %v5584, 1.0
      %v5684 = vadd.f32 %v5586, 1.0
      %v5685 = vadd.f32 %v5588, 1.0
      %v5686 = vadd.f32 %v5590, 1.0
      %v5687 = vadd.f32 %v5592, 1.0
      %v5688 = vadd.f32 %v5594, 1.0
      %v5689 = vadd.f32 %v5596, 1.0
      %v5690 = vadd.f32 %v5598, 1.0
      %v5691 = vadd.f32 %v5600, 1.0
      %v5692 = vadd.f32 %v5602, 1.0
      %v5693 = vadd.f32 %v5604, 1.0
      %v5694 = vadd.f32 %v5606, 1.0
      %v5695 = vadd.f32 %v5608, 1.0
      %v5696 = vadd.f32 %v5610, 1.0
      %v5697 = vadd.f32 %v5612, 1.0
      %v5698 = vadd.f32 %v5614, 1.0
      %v5699 = vadd.f32 %v5616, 1.0
      %v5700 = vadd.f32 %v5618, 1.0
      %v5701 = vadd.f32 %v5620, 1.0
      %v5702 = vadd.f32 %v5622, 1.0
      %v5703 = vadd.f32 %v5624, 1.0
      %v5704 = vadd.f32 %v5626, 1.0
      %v5705 = vadd.f32 %v5628, 1.0
      %v5706 = vadd.f32 %v5630, 1.0
      %v5707 = vadd.f32 %v5632, 1.0
      %v5708 = vadd.f32 %v5634, 1.0
      %v5709 = vadd.f32 %v5636, 1.0
      %v5710 = vadd.f32 %v5638, 1.0
      %v5711 = vadd.f32 %v5640, 1.0
      %v5712 = vadd.f32 %v5642, 1.0
      %v5713 = vadd.f32 %v5644, 1.0
      %v5714 = vadd.f32 %v5646, 1.0
      %v5715 = vadd.f32 %v5648, 1.0
      %v5716 = vadd.f32 %v5650, 1.0
      %v5717 = vadd.f32 %v5652, 1.0
      %v5718 = vadd.f32 %v5654, 1.0
      %v5719 = vmul.f32 %v5655, %v5655
      %v5720 = vmul.f32 %v5656, %v5656
      %v5721 = vmul.f32 %v5657, %v5657
      %v5722 = vmul.f32 %v5658, %v5658
      %v5723 = vmul.f32 %v5659, %v5659
      %v5724 = vmul.f32 %v5660, %v5660
      %v5725 = vmul.f32 %v5661, %v5661
      %v5726 = vmul.f32 %v5662, %v5662
      %v5727 = vmul.f32 %v5663, %v5663
      %v5728 = vmul.f32 %v5664, %v5664
      %v5729 = vmul.f32 %v5665, %v5665
      %v5730 = vmul.f32 %v5666, %v5666
      %v5731 = vmul.f32 %v5667, %v5667
      %v5732 = vmul.f32 %v5668, %v5668
      %v5733 = vmul.f32 %v5669, %v5669
      %v5734 = vmul.f32 %v5670, %v5670
      %v5735 = vmul.f32 %v5671, %v5671
      %v5736 = vmul.f32 %v5672, %v5672
      %v5737 = vmul.f32 %v5673, %v5673
      %v5738 = vmul.f32 %v5674, %v5674
      %v5739 = vmul.f32 %v5675, %v5675
      %v5740 = vmul.f32 %v5676, %v5676
      %v5741 = vmul.f32 %v5677, %v5677
      %v5742 = vmul.f32 %v5678, %v5678
      %v5743 = vmul.f32 %v5679, %v5679
      %v5744 = vmul.f32 %v5680, %v5680
      %v5745 = vmul.f32 %v5681, %v5681
      %v5746 = vmul.f32 %v5682, %v5682
      %v5747 = vmul.f32 %v5683, %v5683
      %v5748 = vmul.f32 %v5684, %v5684
      %v5749 = vmul.f32 %v5685, %v5685
      %v5750 = vmul.f32 %v5686, %v5686
      %v5751 = vmul.f32 %v5687, %v5687
      %v5752 = vmul.f32 %v5688, %v5688
      %v5753 = vmul.f32 %v5689, %v5689
      %v5754 = vmul.f32 %v5690, %v5690
      %v5755 = vmul.f32 %v5691, %v5691
      %v5756 = vmul.f32 %v5692, %v5692
      %v5757 = vmul.f32 %v5693, %v5693
      %v5758 = vmul.f32 %v5694, %v5694
      %v5759 = vmul.f32 %v5695, %v5695
      %v5760 = vmul.f32 %v5696, %v5696
      %v5761 = vmul.f32 %v5697, %v5697
      %v5762 = vmul.f32 %v5698, %v5698
      %v5763 = vmul.f32 %v5699, %v5699
      %v5764 = vmul.f32 %v5700, %v5700
      %v5765 = vmul.f32 %v5701, %v5701
      %v5766 = vmul.f32 %v5702, %v5702
      %v5767 = vmul.f32 %v5703, %v5703
      %v5768 = vmul.f32 %v5704, %v5704
      %v5769 = vmul.f32 %v5705, %v5705
      %v5770 = vmul.f32 %v5706, %v5706
      %v5771 = vmul.f32 %v5707, %v5707
      %v5772 = vmul.f32 %v5708, %v5708
      %v5773 = vmul.f32 %v5709, %v5709
      %v5774 = vmul.f32 %v5710, %v5710
      %v5775 = vmul.f32 %v5711, %v5711
      %v5776 = vmul.f32 %v5712, %v5712
      %v5777 = vmul.f32 %v5713, %v5713
      %v5778 = vmul.f32 %v5714, %v5714
      %v5779 = vmul.f32 %v5715, %v5715
      %v5780 = vmul.f32 %v5716, %v5716
      %v5781 = vmul.f32 %v5717, %v5717
      %v5782 = vmul.f32 %v5718, %v5718
      %v5783 = vsub.f32 %v5719, 1.0
      %v5784 = vsub.f32 %v5720, 1.0
      %v5785 = vsub.f32 %v5721, 1.0
      %v5786 = vsub.f32 %v5722, 1.0
      %v5787 = vsub.f32 %v5723, 1.0
      %v5788 = vsub.f32 %v5724, 1.0
      %v5789 = vsub.f32 %v5725, 1.0
      %v5790 = vsub.f32 %v5726, 1.0
      %v5791 = vsub.f32 %v5727, 1.0
      %v5792 = vsub.f32 %v5728, 1.0
      %v5793 = vsub.f32 %v5729, 1.0
      %v5794 = vsub.f32 %v5730, 1.0
      %v5795 = vsub.f32 %v5731, 1.0
      %v5796 = vsub.f32 %v5732, 1.0
      %v5797 = vsub.f32 %v5733, 1.0
      %v5798 = vsub.f32 %v5734, 1.0
      %v5799 = vsub.f32 %v5735, 1.0
      %v5800 = vsub.f32 %v5736, 1.0
      %v5801 = vsub.f32 %v5737, 1.0
      %v5802 = vsub.f32 %v5738, 1.0
      %v5803 = vsub.f32 %v5739, 1.0
      %v5804 = vsub.f32 %v5740, 1.0
      %v5805 = vsub.f32 %v5741, 1.0
      %v5806 = vsub.f32 %v5742, 1.0
      %v5807 = vsub.f32 %v5743, 1.0
      %v5808 = vsub.f32 %v5744, 1.0
      %v5809 = vsub.f32 %v5745, 1.0
      %v5810 = vsub.f32 %v5746, 1.0
      %v5811 = vsub.f32 %v5747, 1.0
      %v5812 = vsub.f32 %v5748, 1.0
      %v5813 = vsub.f32 %v5749, 1.0
      %v5814 = vsub.f32 %v5750, 1.0
      %v5815 = vsub.f32 %v5751, 1.0
      %v5816 = vsub.f32 %v5752, 1.0
      %v5817 = vsub.f32 %v5753, 1.0
      %v5818 = vsub.f32 %v5754, 1.0
      %v5819 = vsub.f32 %v5755, 1.0
      %v5820 = vsub.f32 %v5756, 1.0
      %v5821 = vsub.f32 %v5757, 1.0
      %v5822 = vsub.f32 %v5758, 1.0
      %v5823 = vsub.f32 %v5759, 1.0
      %v5824 = vsub.f32 %v5760, 1.0
      %v5825 = vsub.f32 %v5761, 1.0
      %v5826 = vsub.f32 %v5762, 1.0
      %v5827 = vsub.f32 %v5763, 1.0
      %v5828 = vsub.f32 %v5764, 1.0
      %v5829 = vsub.f32 %v5765, 1.0
      %v5830 = vsub.f32 %v5766, 1.0
      %v5831 = vsub.f32 %v5767, 1.0
      %v5832 = vsub.f32 %v5768, 1.0
      %v5833 = vsub.f32 %v5769, 1.0
      %v5834 = vsub.f32 %v5770, 1.0
      %v5835 = vsub.f32 %v5771, 1.0
      %v5836 = vsub.f32 %v5772, 1.0
      %v5837 = vsub.f32 %v5773, 1.0
      %v5838 = vsub.f32 %v5774, 1.0
      %v5839 = vsub.f32 %v5775, 1.0
      %v5840 = vsub.f32 %v5776, 1.0
      %v5841 = vsub.f32 %v5777, 1.0
      %v5842 = vsub.f32 %v5778, 1.0
      %v5843 = vsub.f32 %v5779, 1.0
      %v5844 = vsub.f32 %v5780, 1.0
      %v5845 = vsub.f32 %v5781, 1.0
      %v5846 = vsub.f32 %v5782, 1.0
      %v5847 = vadd.f32 %v5719, 1.0
      %v5848 = vadd.f32 %v5720, 1.0
      %v5849 = vadd.f32 %v5721, 1.0
      %v5850 = vadd.f32 %v5722, 1.0
      %v5851 = vadd.f32 %v5723, 1.0
      %v5852 = vadd.f32 %v5724, 1.0
      %v5853 = vadd.f32 %v5725, 1.0
      %v5854 = vadd.f32 %v5726, 1.0
      %v5855 = vadd.f32 %v5727, 1.0
      %v5856 = vadd.f32 %v5728, 1.0
      %v5857 = vadd.f32 %v5729, 1.0
      %v5858 = vadd.f32 %v5730, 1.0
      %v5859 = vadd.f32 %v5731, 1.0
      %v5860 = vadd.f32 %v5732, 1.0
      %v5861 = vadd.f32 %v5733, 1.0
      %v5862 = vadd.f32 %v5734, 1.0
      %v5863 = vadd.f32 %v5735, 1.0
      %v5864 = vadd.f32 %v5736, 1.0
      %v5865 = vadd.f32 %v5737, 1.0
      %v5866 = vadd.f32 %v5738, 1.0
      %v5867 = vadd.f32 %v5739, 1.0
      %v5868 = vadd.f32 %v5740, 1.0
      %v5869 = vadd.f32 %v5741, 1.0
      %v5870 = vadd.f32 %v5742, 1.0
      %v5871 = vadd.f32 %v5743, 1.0
      %v5872 = vadd.f32 %v5744, 1.0
      %v5873 = vadd.f32 %v5745, 1.0
      %v5874 = vadd.f32 %v5746, 1.0
      %v5875 = vadd.f32 %v5747, 1.0
      %v5876 = vadd.f32 %v5748, 1.0
      %v5877 = vadd.f32 %v5749, 1.0
      %v5878 = vadd.f32 %v5750, 1.0
      %v5879 = vadd.f32 %v5751, 1.0
      %v5880 = vadd.f32 %v5752, 1.0
      %v5881 = vadd.f32 %v5753, 1.0
      %v5882 = vadd.f32 %v5754, 1.0
      %v5883 = vadd.f32 %v5755, 1.0
      %v5884 = vadd.f32 %v5756, 1.0
      %v5885 = vadd.f32 %v5757, 1.0
      %v5886 = vadd.f32 %v5758, 1.0
      %v5887 = vadd.f32 %v5759, 1.0
      %v5888 = vadd.f32 %v5760, 1.0
      %v5889 = vadd.f32 %v5761, 1.0
      %v5890 = vadd.f32 %v5762, 1.0
      %v5891 = vadd.f32 %v5763, 1.0
      %v5892 = vadd.f32 %v5764, 1.0
      %v5893 = vadd.f32 %v5765, 1.0
      %v5894 = vadd.f32 %v5766, 1.0
      %v5895 = vadd.f32 %v5767, 1.0
      %v5896 = vadd.f32 %v5768, 1.0
      %v5897 = vadd.f32 %v5769, 1.0
      %v5898 = vadd.f32 %v5770, 1.0
      %v5899 = vadd.f32 %v5771, 1.0
      %v5900 = vadd.f32 %v5772, 1.0
      %v5901 = vadd.f32 %v5773, 1.0
      %v5902 = vadd.f32 %v5774, 1.0
      %v5903 = vadd.f32 %v5775, 1.0
      %v5904 = vadd.f32 %v5776, 1.0
      %v5905 = vadd.f32 %v5777, 1.0
      %v5906 = vadd.f32 %v5778, 1.0
      %v5907 = vadd.f32 %v5779, 1.0
      %v5908 = vadd.f32 %v5780, 1.0
      %v5909 = vadd.f32 %v5781, 1.0
      %v5910 = vadd.f32 %v5782, 1.0
      %v5911 = vrcp.pop %v5847
      %v5912 = vmul.f32 %v5783, %v5911
      %v5913 = vrcp.pop %v5848
      %v5914 = vmul.f32 %v5784, %v5913
      %v5915 = vrcp.pop %v5849
      %v5916 = vmul.f32 %v5785, %v5915
      %v5917 = vrcp.pop %v5850
      %v5918 = vmul.f32 %v5786, %v5917
      %v5919 = vrcp.pop %v5851
      %v5920 = vmul.f32 %v5787, %v5919
      %v5921 = vrcp.pop %v5852
      %v5922 = vmul.f32 %v5788, %v5921
      %v5923 = vrcp.pop %v5853
      %v5924 = vmul.f32 %v5789, %v5923
      %v5925 = vrcp.pop %v5854
      %v5926 = vmul.f32 %v5790, %v5925
      %v5927 = vrcp.pop %v5855
      %v5928 = vmul.f32 %v5791, %v5927
      %v5929 = vrcp.pop %v5856
      %v5930 = vmul.f32 %v5792, %v5929
      %v5931 = vrcp.pop %v5857
      %v5932 = vmul.f32 %v5793, %v5931
      %v5933 = vrcp.pop %v5858
      %v5934 = vmul.f32 %v5794, %v5933
      %v5935 = vrcp.pop %v5859
      %v5936 = vmul.f32 %v5795, %v5935
      %v5937 = vrcp.pop %v5860
      %v5938 = vmul.f32 %v5796, %v5937
      %v5939 = vrcp.pop %v5861
      %v5940 = vmul.f32 %v5797, %v5939
      %v5941 = vrcp.pop %v5862
      %v5942 = vmul.f32 %v5798, %v5941
      %v5943 = vrcp.pop %v5863
      %v5944 = vmul.f32 %v5799, %v5943
      %v5945 = vrcp.pop %v5864
      %v5946 = vmul.f32 %v5800, %v5945
      %v5947 = vrcp.pop %v5865
      %v5948 = vmul.f32 %v5801, %v5947
      %v5949 = vrcp.pop %v5866
      %v5950 = vmul.f32 %v5802, %v5949
      %v5951 = vrcp.pop %v5867
      %v5952 = vmul.f32 %v5803, %v5951
      %v5953 = vrcp.pop %v5868
      %v5954 = vmul.f32 %v5804, %v5953
      %v5955 = vrcp.pop %v5869
      %v5956 = vmul.f32 %v5805, %v5955
      %v5957 = vrcp.pop %v5870
      %v5958 = vmul.f32 %v5806, %v5957
      %v5959 = vrcp.pop %v5871
      %v5960 = vmul.f32 %v5807, %v5959
      %v5961 = vrcp.pop %v5872
      %v5962 = vmul.f32 %v5808, %v5961
      %v5963 = vrcp.pop %v5873
      %v5964 = vmul.f32 %v5809, %v5963
      %v5965 = vrcp.pop %v5874
      %v5966 = vmul.f32 %v5810, %v5965
      %v5967 = vrcp.pop %v5875
      %v5968 = vmul.f32 %v5811, %v5967
      %v5969 = vrcp.pop %v5876
      %v5970 = vmul.f32 %v5812, %v5969
      %v5971 = vrcp.pop %v5877
      %v5972 = vmul.f32 %v5813, %v5971
      %v5973 = vrcp.pop %v5878
      %v5974 = vmul.f32 %v5814, %v5973
      %v5975 = vrcp.pop %v5879
      %v5976 = vmul.f32 %v5815, %v5975
      %v5977 = vrcp.pop %v5880
      %v5978 = vmul.f32 %v5816, %v5977
      %v5979 = vrcp.pop %v5881
      %v5980 = vmul.f32 %v5817, %v5979
      %v5981 = vrcp.pop %v5882
      %v5982 = vmul.f32 %v5818, %v5981
      %v5983 = vrcp.pop %v5883
      %v5984 = vmul.f32 %v5819, %v5983
      %v5985 = vrcp.pop %v5884
      %v5986 = vmul.f32 %v5820, %v5985
      %v5987 = vrcp.pop %v5885
      %v5988 = vmul.f32 %v5821, %v5987
      %v5989 = vrcp.pop %v5886
      %v5990 = vmul.f32 %v5822, %v5989
      %v5991 = vrcp.pop %v5887
      %v5992 = vmul.f32 %v5823, %v5991
      %v5993 = vrcp.pop %v5888
      %v5994 = vmul.f32 %v5824, %v5993
      %v5995 = vrcp.pop %v5889
      %v5996 = vmul.f32 %v5825, %v5995
      %v5997 = vrcp.pop %v5890
      %v5998 = vmul.f32 %v5826, %v5997
      %v5999 = vrcp.pop %v5891
      %v6000 = vmul.f32 %v5827, %v5999
      %v6001 = vrcp.pop %v5892
      %v6002 = vmul.f32 %v5828, %v6001
      %v6003 = vrcp.pop %v5893
      %v6004 = vmul.f32 %v5829, %v6003
      %v6005 = vrcp.pop %v5894
      %v6006 = vmul.f32 %v5830, %v6005
      %v6007 = vrcp.pop %v5895
      %v6008 = vmul.f32 %v5831, %v6007
      %v6009 = vrcp.pop %v5896
      %v6010 = vmul.f32 %v5832, %v6009
      %v6011 = vrcp.pop %v5897
      %v6012 = vmul.f32 %v5833, %v6011
      %v6013 = vrcp.pop %v5898
      %v6014 = vmul.f32 %v5834, %v6013
      %v6015 = vrcp.pop %v5899
      %v6016 = vmul.f32 %v5835, %v6015
      %v6017 = vrcp.pop %v5900
      %v6018 = vmul.f32 %v5836, %v6017
      %v6019 = vrcp.pop %v5901
      %v6020 = vmul.f32 %v5837, %v6019
      %v6021 = vrcp.pop %v5902
      %v6022 = vmul.f32 %v5838, %v6021
      %v6023 = vrcp.pop %v5903
      %v6024 = vmul.f32 %v5839, %v6023
      %v6025 = vrcp.pop %v5904
      %v6026 = vmul.f32 %v5840, %v6025
      %v6027 = vrcp.pop %v5905
      %v6028 = vmul.f32 %v5841, %v6027
      %v6029 = vrcp.pop %v5906
      %v6030 = vmul.f32 %v5842, %v6029
      %v6031 = vrcp.pop %v5907
      %v6032 = vmul.f32 %v5843, %v6031
      %v6033 = vrcp.pop %v5908
      %v6034 = vmul.f32 %v5844, %v6033
      %v6035 = vrcp.pop %v5909
      %v6036 = vmul.f32 %v5845, %v6035
      %v6037 = vrcp.pop %v5910
      %v6038 = vmul.f32 %v5846, %v6037
      %vm6039 = vcmp.gt.f32.partialorder %v5399, 20.0
      %vm6040 = vcmp.gt.f32.partialorder %v5400, 20.0
      %vm6041 = vcmp.gt.f32.partialorder %v5401, 20.0
      %vm6042 = vcmp.gt.f32.partialorder %v5402, 20.0
      %vm6043 = vcmp.gt.f32.partialorder %v5403, 20.0
      %vm6044 = vcmp.gt.f32.partialorder %v5404, 20.0
      %vm6045 = vcmp.gt.f32.partialorder %v5405, 20.0
      %vm6046 = vcmp.gt.f32.partialorder %v5406, 20.0
      %vm6047 = vcmp.gt.f32.partialorder %v5407, 20.0
      %vm6048 = vcmp.gt.f32.partialorder %v5408, 20.0
      %vm6049 = vcmp.gt.f32.partialorder %v5409, 20.0
      %vm6050 = vcmp.gt.f32.partialorder %v5410, 20.0
      %vm6051 = vcmp.gt.f32.partialorder %v5411, 20.0
      %vm6052 = vcmp.gt.f32.partialorder %v5412, 20.0
      %vm6053 = vcmp.gt.f32.partialorder %v5413, 20.0
      %vm6054 = vcmp.gt.f32.partialorder %v5414, 20.0
      %vm6055 = vcmp.gt.f32.partialorder %v5415, 20.0
      %vm6056 = vcmp.gt.f32.partialorder %v5416, 20.0
      %vm6057 = vcmp.gt.f32.partialorder %v5417, 20.0
      %vm6058 = vcmp.gt.f32.partialorder %v5418, 20.0
      %vm6059 = vcmp.gt.f32.partialorder %v5419, 20.0
      %vm6060 = vcmp.gt.f32.partialorder %v5420, 20.0
      %vm6061 = vcmp.gt.f32.partialorder %v5421, 20.0
      %vm6062 = vcmp.gt.f32.partialorder %v5422, 20.0
      %vm6063 = vcmp.gt.f32.partialorder %v5423, 20.0
      %vm6064 = vcmp.gt.f32.partialorder %v5424, 20.0
      %vm6065 = vcmp.gt.f32.partialorder %v5425, 20.0
      %vm6066 = vcmp.gt.f32.partialorder %v5426, 20.0
      %vm6067 = vcmp.gt.f32.partialorder %v5427, 20.0
      %vm6068 = vcmp.gt.f32.partialorder %v5428, 20.0
      %vm6069 = vcmp.gt.f32.partialorder %v5429, 20.0
      %vm6070 = vcmp.gt.f32.partialorder %v5430, 20.0
      %vm6071 = vcmp.gt.f32.partialorder %v5431, 20.0
      %vm6072 = vcmp.gt.f32.partialorder %v5432, 20.0
      %vm6073 = vcmp.gt.f32.partialorder %v5433, 20.0
      %vm6074 = vcmp.gt.f32.partialorder %v5434, 20.0
      %vm6075 = vcmp.gt.f32.partialorder %v5435, 20.0
      %vm6076 = vcmp.gt.f32.partialorder %v5436, 20.0
      %vm6077 = vcmp.gt.f32.partialorder %v5437, 20.0
      %vm6078 = vcmp.gt.f32.partialorder %v5438, 20.0
      %vm6079 = vcmp.gt.f32.partialorder %v5439, 20.0
      %vm6080 = vcmp.gt.f32.partialorder %v5440, 20.0
      %vm6081 = vcmp.gt.f32.partialorder %v5441, 20.0
      %vm6082 = vcmp.gt.f32.partialorder %v5442, 20.0
      %vm6083 = vcmp.gt.f32.partialorder %v5443, 20.0
      %vm6084 = vcmp.gt.f32.partialorder %v5444, 20.0
      %vm6085 = vcmp.gt.f32.partialorder %v5445, 20.0
      %vm6086 = vcmp.gt.f32.partialorder %v5446, 20.0
      %vm6087 = vcmp.gt.f32.partialorder %v5447, 20.0
      %vm6088 = vcmp.gt.f32.partialorder %v5448, 20.0
      %vm6089 = vcmp.gt.f32.partialorder %v5449, 20.0
      %vm6090 = vcmp.gt.f32.partialorder %v5450, 20.0
      %vm6091 = vcmp.gt.f32.partialorder %v5451, 20.0
      %vm6092 = vcmp.gt.f32.partialorder %v5452, 20.0
      %vm6093 = vcmp.gt.f32.partialorder %v5453, 20.0
      %vm6094 = vcmp.gt.f32.partialorder %v5454, 20.0
      %vm6095 = vcmp.gt.f32.partialorder %v5455, 20.0
      %vm6096 = vcmp.gt.f32.partialorder %v5456, 20.0
      %vm6097 = vcmp.gt.f32.partialorder %v5457, 20.0
      %vm6098 = vcmp.gt.f32.partialorder %v5458, 20.0
      %vm6099 = vcmp.gt.f32.partialorder %v5459, 20.0
      %vm6100 = vcmp.gt.f32.partialorder %v5460, 20.0
      %vm6101 = vcmp.gt.f32.partialorder %v5461, 20.0
      %vm6102 = vcmp.gt.f32.partialorder %v5462, 20.0
      %v6103 = vmul.f32 %v5399, %v5912
      %v6104 = vmul.f32 %v5400, %v5914
      %v6105 = vmul.f32 %v5401, %v5916
      %v6106 = vmul.f32 %v5402, %v5918
      %v6107 = vmul.f32 %v5403, %v5920
      %v6108 = vmul.f32 %v5404, %v5922
      %v6109 = vmul.f32 %v5405, %v5924
      %v6110 = vmul.f32 %v5406, %v5926
      %v6111 = vmul.f32 %v5407, %v5928
      %v6112 = vmul.f32 %v5408, %v5930
      %v6113 = vmul.f32 %v5409, %v5932
      %v6114 = vmul.f32 %v5410, %v5934
      %v6115 = vmul.f32 %v5411, %v5936
      %v6116 = vmul.f32 %v5412, %v5938
      %v6117 = vmul.f32 %v5413, %v5940
      %v6118 = vmul.f32 %v5414, %v5942
      %v6119 = vmul.f32 %v5415, %v5944
      %v6120 = vmul.f32 %v5416, %v5946
      %v6121 = vmul.f32 %v5417, %v5948
      %v6122 = vmul.f32 %v5418, %v5950
      %v6123 = vmul.f32 %v5419, %v5952
      %v6124 = vmul.f32 %v5420, %v5954
      %v6125 = vmul.f32 %v5421, %v5956
      %v6126 = vmul.f32 %v5422, %v5958
      %v6127 = vmul.f32 %v5423, %v5960
      %v6128 = vmul.f32 %v5424, %v5962
      %v6129 = vmul.f32 %v5425, %v5964
      %v6130 = vmul.f32 %v5426, %v5966
      %v6131 = vmul.f32 %v5427, %v5968
      %v6132 = vmul.f32 %v5428, %v5970
      %v6133 = vmul.f32 %v5429, %v5972
      %v6134 = vmul.f32 %v5430, %v5974
      %v6135 = vmul.f32 %v5431, %v5976
      %v6136 = vmul.f32 %v5432, %v5978
      %v6137 = vmul.f32 %v5433, %v5980
      %v6138 = vmul.f32 %v5434, %v5982
      %v6139 = vmul.f32 %v5435, %v5984
      %v6140 = vmul.f32 %v5436, %v5986
      %v6141 = vmul.f32 %v5437, %v5988
      %v6142 = vmul.f32 %v5438, %v5990
      %v6143 = vmul.f32 %v5439, %v5992
      %v6144 = vmul.f32 %v5440, %v5994
      %v6145 = vmul.f32 %v5441, %v5996
      %v6146 = vmul.f32 %v5442, %v5998
      %v6147 = vmul.f32 %v5443, %v6000
      %v6148 = vmul.f32 %v5444, %v6002
      %v6149 = vmul.f32 %v5445, %v6004
      %v6150 = vmul.f32 %v5446, %v6006
      %v6151 = vmul.f32 %v5447, %v6008
      %v6152 = vmul.f32 %v5448, %v6010
      %v6153 = vmul.f32 %v5449, %v6012
      %v6154 = vmul.f32 %v5450, %v6014
      %v6155 = vmul.f32 %v5451, %v6016
      %v6156 = vmul.f32 %v5452, %v6018
      %v6157 = vmul.f32 %v5453, %v6020
      %v6158 = vmul.f32 %v5454, %v6022
      %v6159 = vmul.f32 %v5455, %v6024
      %v6160 = vmul.f32 %v5456, %v6026
      %v6161 = vmul.f32 %v5457, %v6028
      %v6162 = vmul.f32 %v5458, %v6030
      %v6163 = vmul.f32 %v5459, %v6032
      %v6164 = vmul.f32 %v5460, %v6034
      %v6165 = vmul.f32 %v5461, %v6036
      %v6166 = vmul.f32 %v5462, %v6038
      %v6167 = vsel %vm6039, %v5399, %v6103
      %v6168 = vsel %vm6040, %v5400, %v6104
      %v6169 = vsel %vm6041, %v5401, %v6105
      %v6170 = vsel %vm6042, %v5402, %v6106
      %v6171 = vsel %vm6043, %v5403, %v6107
      %v6172 = vsel %vm6044, %v5404, %v6108
      %v6173 = vsel %vm6045, %v5405, %v6109
      %v6174 = vsel %vm6046, %v5406, %v6110
      %v6175 = vsel %vm6047, %v5407, %v6111
      %v6176 = vsel %vm6048, %v5408, %v6112
      %v6177 = vsel %vm6049, %v5409, %v6113
      %v6178 = vsel %vm6050, %v5410, %v6114
      %v6179 = vsel %vm6051, %v5411, %v6115
      %v6180 = vsel %vm6052, %v5412, %v6116
      %v6181 = vsel %vm6053, %v5413, %v6117
      %v6182 = vsel %vm6054, %v5414, %v6118
      %v6183 = vsel %vm6055, %v5415, %v6119
      %v6184 = vsel %vm6056, %v5416, %v6120
      %v6185 = vsel %vm6057, %v5417, %v6121
      %v6186 = vsel %vm6058, %v5418, %v6122
      %v6187 = vsel %vm6059, %v5419, %v6123
      %v6188 = vsel %vm6060, %v5420, %v6124
      %v6189 = vsel %vm6061, %v5421, %v6125
      %v6190 = vsel %vm6062, %v5422, %v6126
      %v6191 = vsel %vm6063, %v5423, %v6127
      %v6192 = vsel %vm6064, %v5424, %v6128
      %v6193 = vsel %vm6065, %v5425, %v6129
      %v6194 = vsel %vm6066, %v5426, %v6130
      %v6195 = vsel %vm6067, %v5427, %v6131
      %v6196 = vsel %vm6068, %v5428, %v6132
      %v6197 = vsel %vm6069, %v5429, %v6133
      %v6198 = vsel %vm6070, %v5430, %v6134
      %v6199 = vsel %vm6071, %v5431, %v6135
      %v6200 = vsel %vm6072, %v5432, %v6136
      %v6201 = vsel %vm6073, %v5433, %v6137
      %v6202 = vsel %vm6074, %v5434, %v6138
      %v6203 = vsel %vm6075, %v5435, %v6139
      %v6204 = vsel %vm6076, %v5436, %v6140
      %v6205 = vsel %vm6077, %v5437, %v6141
      %v6206 = vsel %vm6078, %v5438, %v6142
      %v6207 = vsel %vm6079, %v5439, %v6143
      %v6208 = vsel %vm6080, %v5440, %v6144
      %v6209 = vsel %vm6081, %v5441, %v6145
      %v6210 = vsel %vm6082, %v5442, %v6146
      %v6211 = vsel %vm6083, %v5443, %v6147
      %v6212 = vsel %vm6084, %v5444, %v6148
      %v6213 = vsel %vm6085, %v5445, %v6149
      %v6214 = vsel %vm6086, %v5446, %v6150
      %v6215 = vsel %vm6087, %v5447, %v6151
      %v6216 = vsel %vm6088, %v5448, %v6152
      %v6217 = vsel %vm6089, %v5449, %v6153
      %v6218 = vsel %vm6090, %v5450, %v6154
      %v6219 = vsel %vm6091, %v5451, %v6155
      %v6220 = vsel %vm6092, %v5452, %v6156
      %v6221 = vsel %vm6093, %v5453, %v6157
      %v6222 = vsel %vm6094, %v5454, %v6158
      %v6223 = vsel %vm6095, %v5455, %v6159
      %v6224 = vsel %vm6096, %v5456, %v6160
      %v6225 = vsel %vm6097, %v5457, %v6161
      %v6226 = vsel %vm6098, %v5458, %v6162
      %v6227 = vsel %vm6099, %v5459, %v6163
      %v6228 = vsel %vm6100, %v5460, %v6164
      %v6229 = vsel %vm6101, %v5461, %v6165
      %v6230 = vsel %vm6102, %v5462, %v6166
      %v6231 = vpack.c.bf16 %v6169, %v6167
      %v6232 = vpack.c.bf16 %v6170, %v6168
      %v6233 = vpack.c.bf16 %v6173, %v6171
      %v6234 = vpack.c.bf16 %v6174, %v6172
      %v6235 = vpack.c.bf16 %v6177, %v6175
      %v6236 = vpack.c.bf16 %v6178, %v6176
      %v6237 = vpack.c.bf16 %v6181, %v6179
      %v6238 = vpack.c.bf16 %v6182, %v6180
      %v6239 = vpack.c.bf16 %v6185, %v6183
      %v6240 = vpack.c.bf16 %v6186, %v6184
      %v6241 = vpack.c.bf16 %v6189, %v6187
      %v6242 = vpack.c.bf16 %v6190, %v6188
      %v6243 = vpack.c.bf16 %v6193, %v6191
      %v6244 = vpack.c.bf16 %v6194, %v6192
      %v6245 = vpack.c.bf16 %v6197, %v6195
      %v6246 = vpack.c.bf16 %v6198, %v6196
      %v6247 = vpack.c.bf16 %v6201, %v6199
      %v6248 = vpack.c.bf16 %v6202, %v6200
      %v6249 = vpack.c.bf16 %v6205, %v6203
      %v6250 = vpack.c.bf16 %v6206, %v6204
      %v6251 = vpack.c.bf16 %v6209, %v6207
      %v6252 = vpack.c.bf16 %v6210, %v6208
      %v6253 = vpack.c.bf16 %v6213, %v6211
      %v6254 = vpack.c.bf16 %v6214, %v6212
      %v6255 = vpack.c.bf16 %v6217, %v6215
      %v6256 = vpack.c.bf16 %v6218, %v6216
      %v6257 = vpack.c.bf16 %v6221, %v6219
      %v6258 = vpack.c.bf16 %v6222, %v6220
      %v6259 = vpack.c.bf16 %v6225, %v6223
      %v6260 = vpack.c.bf16 %v6226, %v6224
      %v6261 = vpack.c.bf16 %v6229, %v6227
      %v6262 = vpack.c.bf16 %v6230, %v6228
      %v6263 = vld [vmem:[%s14] sm:$0xff]
      %v6264 = vld [vmem:[%s14 + $0x8] sm:$0xff]
      %v6265 = vld [vmem:[%s14 + $0x10] sm:$0xff]
      %v6266 = vld [vmem:[%s14 + $0x18] sm:$0xff]
      %v6267 = vld [vmem:[%s14 + $0x20] sm:$0xff]
      %v6268 = vld [vmem:[%s14 + $0x28] sm:$0xff]
      %v6269 = vld [vmem:[%s14 + $0x30] sm:$0xff]
      %v6270 = vld [vmem:[%s14 + $0x38] sm:$0xff]
      %v6271 = vld [vmem:[%s14 + $0x40] sm:$0xff]
      %v6272 = vld [vmem:[%s14 + $0x48] sm:$0xff]
      %v6273 = vld [vmem:[%s14 + $0x50] sm:$0xff]
      %v6274 = vld [vmem:[%s14 + $0x58] sm:$0xff]
      %v6275 = vld [vmem:[%s14 + $0x60] sm:$0xff]
      %v6276 = vld [vmem:[%s14 + $0x68] sm:$0xff]
      %v6277 = vld [vmem:[%s14 + $0x70] sm:$0xff]
      %v6278 = vld [vmem:[%s14 + $0x78] sm:$0xff]
      %v6279 = vld [vmem:[%s14 + $0x80] sm:$0xff]
      %v6280 = vld [vmem:[%s14 + $0x88] sm:$0xff]
      %v6281 = vld [vmem:[%s14 + $0x90] sm:$0xff]
      %v6282 = vld [vmem:[%s14 + $0x98] sm:$0xff]
      %v6283 = vld [vmem:[%s14 + $0xa0] sm:$0xff]
      %v6284 = vld [vmem:[%s14 + $0xa8] sm:$0xff]
      %v6285 = vld [vmem:[%s14 + $0xb0] sm:$0xff]
      %v6286 = vld [vmem:[%s14 + $0xb8] sm:$0xff]
      %v6287 = vld [vmem:[%s14 + $0xc0] sm:$0xff]
      %v6288 = vld [vmem:[%s14 + $0xc8] sm:$0xff]
      %v6289 = vld [vmem:[%s14 + $0xd0] sm:$0xff]
      %v6290 = vld [vmem:[%s14 + $0xd8] sm:$0xff]
      %v6291 = vld [vmem:[%s14 + $0xe0] sm:$0xff]
      %v6292 = vld [vmem:[%s14 + $0xe8] sm:$0xff]
      %v6293 = vld [vmem:[%s14 + $0xf0] sm:$0xff]
      %v6294 = vld [vmem:[%s14 + $0xf8] sm:$0xff]
      %v6295 = vld [vmem:[%s15] sm:$0x3]
      %v6297 = vlaneseq
      %v6298 = vshrl.u32 %v6297, 7
      %v6299 = vsub.s32 0, %v6298
      %v6300 = vrot.slane %v6295, %v6299
      %v6301 = vlaneseq
      %v6302 = vshrl.u32 %v6301, 7
      %v6303 = vsub.s32 1, %v6302
      %v6304 = vrot.slane %v6295, %v6303
      %v6339 = vunpack.c.l.b16 %v6263
      %v6340 = vunpack.c.h.b16 %v6263
      %v6341 = vunpack.c.l.b16 %v6264
      %v6342 = vunpack.c.h.b16 %v6264
      %v6343 = vunpack.c.l.b16 %v6265
      %v6344 = vunpack.c.h.b16 %v6265
      %v6345 = vunpack.c.l.b16 %v6266
      %v6346 = vunpack.c.h.b16 %v6266
      %v6347 = vunpack.c.l.b16 %v6267
      %v6348 = vunpack.c.h.b16 %v6267
      %v6349 = vunpack.c.l.b16 %v6268
      %v6350 = vunpack.c.h.b16 %v6268
      %v6351 = vunpack.c.l.b16 %v6269
      %v6352 = vunpack.c.h.b16 %v6269
      %v6353 = vunpack.c.l.b16 %v6270
      %v6354 = vunpack.c.h.b16 %v6270
      %v6355 = vunpack.c.l.b16 %v6271
      %v6356 = vunpack.c.h.b16 %v6271
      %v6357 = vunpack.c.l.b16 %v6272
      %v6358 = vunpack.c.h.b16 %v6272
      %v6359 = vunpack.c.l.b16 %v6273
      %v6360 = vunpack.c.h.b16 %v6273
      %v6361 = vunpack.c.l.b16 %v6274
      %v6362 = vunpack.c.h.b16 %v6274
      %v6363 = vunpack.c.l.b16 %v6275
      %v6364 = vunpack.c.h.b16 %v6275
      %v6365 = vunpack.c.l.b16 %v6276
      %v6366 = vunpack.c.h.b16 %v6276
      %v6367 = vunpack.c.l.b16 %v6277
      %v6368 = vunpack.c.h.b16 %v6277
      %v6369 = vunpack.c.l.b16 %v6278
      %v6370 = vunpack.c.h.b16 %v6278
      %v6371 = vunpack.c.l.b16 %v6279
      %v6372 = vunpack.c.h.b16 %v6279
      %v6373 = vunpack.c.l.b16 %v6280
      %v6374 = vunpack.c.h.b16 %v6280
      %v6375 = vunpack.c.l.b16 %v6281
      %v6376 = vunpack.c.h.b16 %v6281
      %v6377 = vunpack.c.l.b16 %v6282
      %v6378 = vunpack.c.h.b16 %v6282
      %v6379 = vunpack.c.l.b16 %v6283
      %v6380 = vunpack.c.h.b16 %v6283
      %v6381 = vunpack.c.l.b16 %v6284
      %v6382 = vunpack.c.h.b16 %v6284
      %v6383 = vunpack.c.l.b16 %v6285
      %v6384 = vunpack.c.h.b16 %v6285
      %v6385 = vunpack.c.l.b16 %v6286
      %v6386 = vunpack.c.h.b16 %v6286
      %v6387 = vunpack.c.l.b16 %v6287
      %v6388 = vunpack.c.h.b16 %v6287
      %v6389 = vunpack.c.l.b16 %v6288
      %v6390 = vunpack.c.h.b16 %v6288
      %v6391 = vunpack.c.l.b16 %v6289
      %v6392 = vunpack.c.h.b16 %v6289
      %v6393 = vunpack.c.l.b16 %v6290
      %v6394 = vunpack.c.h.b16 %v6290
      %v6395 = vunpack.c.l.b16 %v6291
      %v6396 = vunpack.c.h.b16 %v6291
      %v6397 = vunpack.c.l.b16 %v6292
      %v6398 = vunpack.c.h.b16 %v6292
      %v6399 = vunpack.c.l.b16 %v6293
      %v6400 = vunpack.c.h.b16 %v6293
      %v6401 = vunpack.c.l.b16 %v6294
      %v6402 = vunpack.c.h.b16 %v6294
      %v6403 = vpack.c.b16 %v6341, %v6339
      %v6404 = vpack.c.b16 %v6342, %v6340
      %v6405 = vpack.c.b16 %v6345, %v6343
      %v6406 = vpack.c.b16 %v6346, %v6344
      %v6407 = vpack.c.b16 %v6349, %v6347
      %v6408 = vpack.c.b16 %v6350, %v6348
      %v6409 = vpack.c.b16 %v6353, %v6351
      %v6410 = vpack.c.b16 %v6354, %v6352
      %v6411 = vpack.c.b16 %v6357, %v6355
      %v6412 = vpack.c.b16 %v6358, %v6356
      %v6413 = vpack.c.b16 %v6361, %v6359
      %v6414 = vpack.c.b16 %v6362, %v6360
      %v6415 = vpack.c.b16 %v6365, %v6363
      %v6416 = vpack.c.b16 %v6366, %v6364
      %v6417 = vpack.c.b16 %v6369, %v6367
      %v6418 = vpack.c.b16 %v6370, %v6368
      %v6419 = vpack.c.b16 %v6373, %v6371
      %v6420 = vpack.c.b16 %v6374, %v6372
      %v6421 = vpack.c.b16 %v6377, %v6375
      %v6422 = vpack.c.b16 %v6378, %v6376
      %v6423 = vpack.c.b16 %v6381, %v6379
      %v6424 = vpack.c.b16 %v6382, %v6380
      %v6425 = vpack.c.b16 %v6385, %v6383
      %v6426 = vpack.c.b16 %v6386, %v6384
      %v6427 = vpack.c.b16 %v6389, %v6387
      %v6428 = vpack.c.b16 %v6390, %v6388
      %v6429 = vpack.c.b16 %v6393, %v6391
      %v6430 = vpack.c.b16 %v6394, %v6392
      %v6431 = vpack.c.b16 %v6397, %v6395
      %v6432 = vpack.c.b16 %v6398, %v6396
      %v6433 = vpack.c.b16 %v6401, %v6399
      %v6434 = vpack.c.b16 %v6402, %v6400
      %6467 = vmatprep.subr.bf16.mxu0 %v6418
      %6468 = vmatpush1.bf16.msra.mxu0 %v6417
      %6469 = vmatprep.subr.bf16.mxu0 %v6416
      %6470 = vmatpush1.bf16.msra.mxu0 %v6415
      %6471 = vmatprep.subr.bf16.mxu0 %v6414
      %6472 = vmatpush1.bf16.msra.mxu0 %v6413
      %6473 = vmatprep.subr.bf16.mxu0 %v6412
      %6474 = vmatpush1.bf16.msra.mxu0 %v6411
      %6475 = vmatprep.subr.bf16.mxu0 %v6410
      %6476 = vmatpush1.bf16.msra.mxu0 %v6409
      %6477 = vmatprep.subr.bf16.mxu0 %v6408
      %6478 = vmatpush1.bf16.msra.mxu0 %v6407
      %6479 = vmatprep.subr.bf16.mxu0 %v6406
      %6480 = vmatpush1.bf16.msra.mxu0 %v6405
      %6481 = vmatprep.subr.bf16.mxu0 %v6404
      %6482 = vmatpush1.bf16.msra.mxu0 %v6403
      %6483 = vmatprep.subr.bf16.mxu0 %v6434
      %6484 = vmatpush2.bf16.msra.mxu0 %v6433
      %6485 = vmatprep.subr.bf16.mxu0 %v6432
      %6486 = vmatpush2.bf16.msra.mxu0 %v6431
      %6487 = vmatprep.subr.bf16.mxu0 %v6430
      %6488 = vmatpush2.bf16.msra.mxu0 %v6429
      %6489 = vmatprep.subr.bf16.mxu0 %v6428
      %6490 = vmatpush2.bf16.msra.mxu0 %v6427
      %6491 = vmatprep.subr.bf16.mxu0 %v6426
      %6492 = vmatpush2.bf16.msra.mxu0 %v6425
      %6493 = vmatprep.subr.bf16.mxu0 %v6424
      %6494 = vmatpush2.bf16.msra.mxu0 %v6423
      %6495 = vmatprep.subr.bf16.mxu0 %v6422
      %6496 = vmatpush2.bf16.msra.mxu0 %v6421
      %6497 = vmatprep.subr.bf16.mxu0 %v6420
      %6498 = vmatpush2.bf16.msra.mxu0 %v6419
      %6499 = vmatprep.mubr.bf16.mxu0 %v6232
      %6500 = vmatmul.mubr.bf16.gmra.mxu0 %v6231
      %v6501 = vpop.f32.mrf.mxu0
      %v6502 = vadd.f32 %v6300, %v6501
      %v6503 = vpop.f32.mrf.mxu0
      %v6504 = vadd.f32 %v6304, %v6503
      %v6505 = vpop.f32.mrf.mxu0
      %v6506 = vadd.f32 %v6300, %v6505
      %v6507 = vpop.f32.mrf.mxu0
      %v6508 = vadd.f32 %v6304, %v6507
      %6509 = vmatprep.mubr.bf16.mxu0 %v6234
      %6510 = vmatmul.mubr.bf16.gmra.mxu0 %v6233
      %v6511 = vpop.f32.mrf.mxu0
      %v6512 = vadd.f32 %v6300, %v6511
      %v6513 = vpop.f32.mrf.mxu0
      %v6514 = vadd.f32 %v6304, %v6513
      %v6515 = vpop.f32.mrf.mxu0
      %v6516 = vadd.f32 %v6300, %v6515
      %v6517 = vpop.f32.mrf.mxu0
      %v6518 = vadd.f32 %v6304, %v6517
      %6519 = vmatprep.mubr.bf16.mxu0 %v6236
      %6520 = vmatmul.mubr.bf16.gmra.mxu0 %v6235
      %v6521 = vpop.f32.mrf.mxu0
      %v6522 = vadd.f32 %v6300, %v6521
      %v6523 = vpop.f32.mrf.mxu0
      %v6524 = vadd.f32 %v6304, %v6523
      %v6525 = vpop.f32.mrf.mxu0
      %v6526 = vadd.f32 %v6300, %v6525
      %v6527 = vpop.f32.mrf.mxu0
      %v6528 = vadd.f32 %v6304, %v6527
      %6529 = vmatprep.mubr.bf16.mxu0 %v6238
      %6530 = vmatmul.mubr.bf16.gmra.mxu0 %v6237
      %v6531 = vpop.f32.mrf.mxu0
      %v6532 = vadd.f32 %v6300, %v6531
      %v6533 = vpop.f32.mrf.mxu0
      %v6534 = vadd.f32 %v6304, %v6533
      %v6535 = vpop.f32.mrf.mxu0
      %v6536 = vadd.f32 %v6300, %v6535
      %v6537 = vpop.f32.mrf.mxu0
      %v6538 = vadd.f32 %v6304, %v6537
      %6539 = vmatprep.mubr.bf16.mxu0 %v6240
      %6540 = vmatmul.mubr.bf16.gmra.mxu0 %v6239
      %v6541 = vpop.f32.mrf.mxu0
      %v6542 = vadd.f32 %v6300, %v6541
      %v6543 = vpop.f32.mrf.mxu0
      %v6544 = vadd.f32 %v6304, %v6543
      %v6545 = vpop.f32.mrf.mxu0
      %v6546 = vadd.f32 %v6300, %v6545
      %v6547 = vpop.f32.mrf.mxu0
      %v6548 = vadd.f32 %v6304, %v6547
      %6549 = vmatprep.mubr.bf16.mxu0 %v6242
      %6550 = vmatmul.mubr.bf16.gmra.mxu0 %v6241
      %v6551 = vpop.f32.mrf.mxu0
      %v6552 = vadd.f32 %v6300, %v6551
      %v6553 = vpop.f32.mrf.mxu0
      %v6554 = vadd.f32 %v6304, %v6553
      %v6555 = vpop.f32.mrf.mxu0
      %v6556 = vadd.f32 %v6300, %v6555
      %v6557 = vpop.f32.mrf.mxu0
      %v6558 = vadd.f32 %v6304, %v6557
      %6559 = vmatprep.mubr.bf16.mxu0 %v6244
      %6560 = vmatmul.mubr.bf16.gmra.mxu0 %v6243
      %v6561 = vpop.f32.mrf.mxu0
      %v6562 = vadd.f32 %v6300, %v6561
      %v6563 = vpop.f32.mrf.mxu0
      %v6564 = vadd.f32 %v6304, %v6563
      %v6565 = vpop.f32.mrf.mxu0
      %v6566 = vadd.f32 %v6300, %v6565
      %v6567 = vpop.f32.mrf.mxu0
      %v6568 = vadd.f32 %v6304, %v6567
      %6569 = vmatprep.mubr.bf16.mxu0 %v6246
      %6570 = vmatmul.mubr.bf16.gmra.mxu0 %v6245
      %v6571 = vpop.f32.mrf.mxu0
      %v6572 = vadd.f32 %v6300, %v6571
      %v6573 = vpop.f32.mrf.mxu0
      %v6574 = vadd.f32 %v6304, %v6573
      %v6575 = vpop.f32.mrf.mxu0
      %v6576 = vadd.f32 %v6300, %v6575
      %v6577 = vpop.f32.mrf.mxu0
      %v6578 = vadd.f32 %v6304, %v6577
      %6579 = vmatprep.mubr.bf16.mxu0 %v6248
      %6580 = vmatmul.mubr.bf16.gmra.mxu0 %v6247
      %v6581 = vpop.f32.mrf.mxu0
      %v6582 = vadd.f32 %v6300, %v6581
      %v6583 = vpop.f32.mrf.mxu0
      %v6584 = vadd.f32 %v6304, %v6583
      %v6585 = vpop.f32.mrf.mxu0
      %v6586 = vadd.f32 %v6300, %v6585
      %v6587 = vpop.f32.mrf.mxu0
      %v6588 = vadd.f32 %v6304, %v6587
      %6589 = vmatprep.mubr.bf16.mxu0 %v6250
      %6590 = vmatmul.mubr.bf16.gmra.mxu0 %v6249
      %v6591 = vpop.f32.mrf.mxu0
      %v6592 = vadd.f32 %v6300, %v6591
      %v6593 = vpop.f32.mrf.mxu0
      %v6594 = vadd.f32 %v6304, %v6593
      %v6595 = vpop.f32.mrf.mxu0
      %v6596 = vadd.f32 %v6300, %v6595
      %v6597 = vpop.f32.mrf.mxu0
      %v6598 = vadd.f32 %v6304, %v6597
      %6599 = vmatprep.mubr.bf16.mxu0 %v6252
      %6600 = vmatmul.mubr.bf16.gmra.mxu0 %v6251
      %v6601 = vpop.f32.mrf.mxu0
      %v6602 = vadd.f32 %v6300, %v6601
      %v6603 = vpop.f32.mrf.mxu0
      %v6604 = vadd.f32 %v6304, %v6603
      %v6605 = vpop.f32.mrf.mxu0
      %v6606 = vadd.f32 %v6300, %v6605
      %v6607 = vpop.f32.mrf.mxu0
      %v6608 = vadd.f32 %v6304, %v6607
      %6609 = vmatprep.mubr.bf16.mxu0 %v6254
      %6610 = vmatmul.mubr.bf16.gmra.mxu0 %v6253
      %v6611 = vpop.f32.mrf.mxu0
      %v6612 = vadd.f32 %v6300, %v6611
      %v6613 = vpop.f32.mrf.mxu0
      %v6614 = vadd.f32 %v6304, %v6613
      %v6615 = vpop.f32.mrf.mxu0
      %v6616 = vadd.f32 %v6300, %v6615
      %v6617 = vpop.f32.mrf.mxu0
      %v6618 = vadd.f32 %v6304, %v6617
      %6619 = vmatprep.mubr.bf16.mxu0 %v6256
      %6620 = vmatmul.mubr.bf16.gmra.mxu0 %v6255
      %v6621 = vpop.f32.mrf.mxu0
      %v6622 = vadd.f32 %v6300, %v6621
      %v6623 = vpop.f32.mrf.mxu0
      %v6624 = vadd.f32 %v6304, %v6623
      %v6625 = vpop.f32.mrf.mxu0
      %v6626 = vadd.f32 %v6300, %v6625
      %v6627 = vpop.f32.mrf.mxu0
      %v6628 = vadd.f32 %v6304, %v6627
      %6629 = vmatprep.mubr.bf16.mxu0 %v6258
      %6630 = vmatmul.mubr.bf16.gmra.mxu0 %v6257
      %v6631 = vpop.f32.mrf.mxu0
      %v6632 = vadd.f32 %v6300, %v6631
      %v6633 = vpop.f32.mrf.mxu0
      %v6634 = vadd.f32 %v6304, %v6633
      %v6635 = vpop.f32.mrf.mxu0
      %v6636 = vadd.f32 %v6300, %v6635
      %v6637 = vpop.f32.mrf.mxu0
      %v6638 = vadd.f32 %v6304, %v6637
      %6639 = vmatprep.mubr.bf16.mxu0 %v6260
      %6640 = vmatmul.mubr.bf16.gmra.mxu0 %v6259
      %v6641 = vpop.f32.mrf.mxu0
      %v6642 = vadd.f32 %v6300, %v6641
      %v6643 = vpop.f32.mrf.mxu0
      %v6644 = vadd.f32 %v6304, %v6643
      %v6645 = vpop.f32.mrf.mxu0
      %v6646 = vadd.f32 %v6300, %v6645
      %v6647 = vpop.f32.mrf.mxu0
      %v6648 = vadd.f32 %v6304, %v6647
      %6649 = vmatprep.mubr.bf16.mxu0 %v6262
      %6650 = vmatmul.mubr.bf16.gmra.mxu0 %v6261
      %v6651 = vpop.f32.mrf.mxu0
      %v6652 = vadd.f32 %v6300, %v6651
      %v6653 = vpop.f32.mrf.mxu0
      %v6654 = vadd.f32 %v6304, %v6653
      %v6655 = vpop.f32.mrf.mxu0
      %v6656 = vadd.f32 %v6300, %v6655
      %v6657 = vpop.f32.mrf.mxu0
      %v6658 = vadd.f32 %v6304, %v6657
      %6659 = vdwg.mxu0
      %v6660 = vmin.f32 %v6502, 20.0
      %v6661 = vmin.f32 %v6504, 20.0
      %v6662 = vmin.f32 %v6506, 20.0
      %v6663 = vmin.f32 %v6508, 20.0
      %v6664 = vmin.f32 %v6512, 20.0
      %v6665 = vmin.f32 %v6514, 20.0
      %v6666 = vmin.f32 %v6516, 20.0
      %v6667 = vmin.f32 %v6518, 20.0
      %v6668 = vmin.f32 %v6522, 20.0
      %v6669 = vmin.f32 %v6524, 20.0
      %v6670 = vmin.f32 %v6526, 20.0
      %v6671 = vmin.f32 %v6528, 20.0
      %v6672 = vmin.f32 %v6532, 20.0
      %v6673 = vmin.f32 %v6534, 20.0
      %v6674 = vmin.f32 %v6536, 20.0
      %v6675 = vmin.f32 %v6538, 20.0
      %v6676 = vmin.f32 %v6542, 20.0
      %v6677 = vmin.f32 %v6544, 20.0
      %v6678 = vmin.f32 %v6546, 20.0
      %v6679 = vmin.f32 %v6548, 20.0
      %v6680 = vmin.f32 %v6552, 20.0
      %v6681 = vmin.f32 %v6554, 20.0
      %v6682 = vmin.f32 %v6556, 20.0
      %v6683 = vmin.f32 %v6558, 20.0
      %v6684 = vmin.f32 %v6562, 20.0
      %v6685 = vmin.f32 %v6564, 20.0
      %v6686 = vmin.f32 %v6566, 20.0
      %v6687 = vmin.f32 %v6568, 20.0
      %v6688 = vmin.f32 %v6572, 20.0
      %v6689 = vmin.f32 %v6574, 20.0
      %v6690 = vmin.f32 %v6576, 20.0
      %v6691 = vmin.f32 %v6578, 20.0
      %v6692 = vmin.f32 %v6582, 20.0
      %v6693 = vmin.f32 %v6584, 20.0
      %v6694 = vmin.f32 %v6586, 20.0
      %v6695 = vmin.f32 %v6588, 20.0
      %v6696 = vmin.f32 %v6592, 20.0
      %v6697 = vmin.f32 %v6594, 20.0
      %v6698 = vmin.f32 %v6596, 20.0
      %v6699 = vmin.f32 %v6598, 20.0
      %v6700 = vmin.f32 %v6602, 20.0
      %v6701 = vmin.f32 %v6604, 20.0
      %v6702 = vmin.f32 %v6606, 20.0
      %v6703 = vmin.f32 %v6608, 20.0
      %v6704 = vmin.f32 %v6612, 20.0
      %v6705 = vmin.f32 %v6614, 20.0
      %v6706 = vmin.f32 %v6616, 20.0
      %v6707 = vmin.f32 %v6618, 20.0
      %v6708 = vmin.f32 %v6622, 20.0
      %v6709 = vmin.f32 %v6624, 20.0
      %v6710 = vmin.f32 %v6626, 20.0
      %v6711 = vmin.f32 %v6628, 20.0
      %v6712 = vmin.f32 %v6632, 20.0
      %v6713 = vmin.f32 %v6634, 20.0
      %v6714 = vmin.f32 %v6636, 20.0
      %v6715 = vmin.f32 %v6638, 20.0
      %v6716 = vmin.f32 %v6642, 20.0
      %v6717 = vmin.f32 %v6644, 20.0
      %v6718 = vmin.f32 %v6646, 20.0
      %v6719 = vmin.f32 %v6648, 20.0
      %v6720 = vmin.f32 %v6652, 20.0
      %v6721 = vmin.f32 %v6654, 20.0
      %v6722 = vmin.f32 %v6656, 20.0
      %v6723 = vmin.f32 %v6658, 20.0
      %v6724 = vmul.f32 %v6660, 1.442695
      %v6725 = vpow.pop %v6724
      %v6726 = vmul.f32 %v6661, 1.442695
      %v6727 = vpow.pop %v6726
      %v6728 = vmul.f32 %v6662, 1.442695
      %v6729 = vpow.pop %v6728
      %v6730 = vmul.f32 %v6663, 1.442695
      %v6731 = vpow.pop %v6730
      %v6732 = vmul.f32 %v6664, 1.442695
      %v6733 = vpow.pop %v6732
      %v6734 = vmul.f32 %v6665, 1.442695
      %v6735 = vpow.pop %v6734
      %v6736 = vmul.f32 %v6666, 1.442695
      %v6737 = vpow.pop %v6736
      %v6738 = vmul.f32 %v6667, 1.442695
      %v6739 = vpow.pop %v6738
      %v6740 = vmul.f32 %v6668, 1.442695
      %v6741 = vpow.pop %v6740
      %v6742 = vmul.f32 %v6669, 1.442695
      %v6743 = vpow.pop %v6742
      %v6744 = vmul.f32 %v6670, 1.442695
      %v6745 = vpow.pop %v6744
      %v6746 = vmul.f32 %v6671, 1.442695
      %v6747 = vpow.pop %v6746
      %v6748 = vmul.f32 %v6672, 1.442695
      %v6749 = vpow.pop %v6748
      %v6750 = vmul.f32 %v6673, 1.442695
      %v6751 = vpow.pop %v6750
      %v6752 = vmul.f32 %v6674, 1.442695
      %v6753 = vpow.pop %v6752
      %v6754 = vmul.f32 %v6675, 1.442695
      %v6755 = vpow.pop %v6754
      %v6756 = vmul.f32 %v6676, 1.442695
      %v6757 = vpow.pop %v6756
      %v6758 = vmul.f32 %v6677, 1.442695
      %v6759 = vpow.pop %v6758
      %v6760 = vmul.f32 %v6678, 1.442695
      %v6761 = vpow.pop %v6760
      %v6762 = vmul.f32 %v6679, 1.442695
      %v6763 = vpow.pop %v6762
      %v6764 = vmul.f32 %v6680, 1.442695
      %v6765 = vpow.pop %v6764
      %v6766 = vmul.f32 %v6681, 1.442695
      %v6767 = vpow.pop %v6766
      %v6768 = vmul.f32 %v6682, 1.442695
      %v6769 = vpow.pop %v6768
      %v6770 = vmul.f32 %v6683, 1.442695
      %v6771 = vpow.pop %v6770
      %v6772 = vmul.f32 %v6684, 1.442695
      %v6773 = vpow.pop %v6772
      %v6774 = vmul.f32 %v6685, 1.442695
      %v6775 = vpow.pop %v6774
      %v6776 = vmul.f32 %v6686, 1.442695
      %v6777 = vpow.pop %v6776
      %v6778 = vmul.f32 %v6687, 1.442695
      %v6779 = vpow.pop %v6778
      %v6780 = vmul.f32 %v6688, 1.442695
      %v6781 = vpow.pop %v6780
      %v6782 = vmul.f32 %v6689, 1.442695
      %v6783 = vpow.pop %v6782
      %v6784 = vmul.f32 %v6690, 1.442695
      %v6785 = vpow.pop %v6784
      %v6786 = vmul.f32 %v6691, 1.442695
      %v6787 = vpow.pop %v6786
      %v6788 = vmul.f32 %v6692, 1.442695
      %v6789 = vpow.pop %v6788
      %v6790 = vmul.f32 %v6693, 1.442695
      %v6791 = vpow.pop %v6790
      %v6792 = vmul.f32 %v6694, 1.442695
      %v6793 = vpow.pop %v6792
      %v6794 = vmul.f32 %v6695, 1.442695
      %v6795 = vpow.pop %v6794
      %v6796 = vmul.f32 %v6696, 1.442695
      %v6797 = vpow.pop %v6796
      %v6798 = vmul.f32 %v6697, 1.442695
      %v6799 = vpow.pop %v6798
      %v6800 = vmul.f32 %v6698, 1.442695
      %v6801 = vpow.pop %v6800
      %v6802 = vmul.f32 %v6699, 1.442695
      %v6803 = vpow.pop %v6802
      %v6804 = vmul.f32 %v6700, 1.442695
      %v6805 = vpow.pop %v6804
      %v6806 = vmul.f32 %v6701, 1.442695
      %v6807 = vpow.pop %v6806
      %v6808 = vmul.f32 %v6702, 1.442695
      %v6809 = vpow.pop %v6808
      %v6810 = vmul.f32 %v6703, 1.442695
      %v6811 = vpow.pop %v6810
      %v6812 = vmul.f32 %v6704, 1.442695
      %v6813 = vpow.pop %v6812
      %v6814 = vmul.f32 %v6705, 1.442695
      %v6815 = vpow.pop %v6814
      %v6816 = vmul.f32 %v6706, 1.442695
      %v6817 = vpow.pop %v6816
      %v6818 = vmul.f32 %v6707, 1.442695
      %v6819 = vpow.pop %v6818
      %v6820 = vmul.f32 %v6708, 1.442695
      %v6821 = vpow.pop %v6820
      %v6822 = vmul.f32 %v6709, 1.442695
      %v6823 = vpow.pop %v6822
      %v6824 = vmul.f32 %v6710, 1.442695
      %v6825 = vpow.pop %v6824
      %v6826 = vmul.f32 %v6711, 1.442695
      %v6827 = vpow.pop %v6826
      %v6828 = vmul.f32 %v6712, 1.442695
      %v6829 = vpow.pop %v6828
      %v6830 = vmul.f32 %v6713, 1.442695
      %v6831 = vpow.pop %v6830
      %v6832 = vmul.f32 %v6714, 1.442695
      %v6833 = vpow.pop %v6832
      %v6834 = vmul.f32 %v6715, 1.442695
      %v6835 = vpow.pop %v6834
      %v6836 = vmul.f32 %v6716, 1.442695
      %v6837 = vpow.pop %v6836
      %v6838 = vmul.f32 %v6717, 1.442695
      %v6839 = vpow.pop %v6838
      %v6840 = vmul.f32 %v6718, 1.442695
      %v6841 = vpow.pop %v6840
      %v6842 = vmul.f32 %v6719, 1.442695
      %v6843 = vpow.pop %v6842
      %v6844 = vmul.f32 %v6720, 1.442695
      %v6845 = vpow.pop %v6844
      %v6846 = vmul.f32 %v6721, 1.442695
      %v6847 = vpow.pop %v6846
      %v6848 = vmul.f32 %v6722, 1.442695
      %v6849 = vpow.pop %v6848
      %v6850 = vmul.f32 %v6723, 1.442695
      %v6851 = vpow.pop %v6850
      %v6852 = vadd.f32 %v6725, 1.0
      %v6853 = vadd.f32 %v6727, 1.0
      %v6854 = vadd.f32 %v6729, 1.0
      %v6855 = vadd.f32 %v6731, 1.0
      %v6856 = vadd.f32 %v6733, 1.0
      %v6857 = vadd.f32 %v6735, 1.0
      %v6858 = vadd.f32 %v6737, 1.0
      %v6859 = vadd.f32 %v6739, 1.0
      %v6860 = vadd.f32 %v6741, 1.0
      %v6861 = vadd.f32 %v6743, 1.0
      %v6862 = vadd.f32 %v6745, 1.0
      %v6863 = vadd.f32 %v6747, 1.0
      %v6864 = vadd.f32 %v6749, 1.0
      %v6865 = vadd.f32 %v6751, 1.0
      %v6866 = vadd.f32 %v6753, 1.0
      %v6867 = vadd.f32 %v6755, 1.0
      %v6868 = vadd.f32 %v6757, 1.0
      %v6869 = vadd.f32 %v6759, 1.0
      %v6870 = vadd.f32 %v6761, 1.0
      %v6871 = vadd.f32 %v6763, 1.0
      %v6872 = vadd.f32 %v6765, 1.0
      %v6873 = vadd.f32 %v6767, 1.0
      %v6874 = vadd.f32 %v6769, 1.0
      %v6875 = vadd.f32 %v6771, 1.0
      %v6876 = vadd.f32 %v6773, 1.0
      %v6877 = vadd.f32 %v6775, 1.0
      %v6878 = vadd.f32 %v6777, 1.0
      %v6879 = vadd.f32 %v6779, 1.0
      %v6880 = vadd.f32 %v6781, 1.0
      %v6881 = vadd.f32 %v6783, 1.0
      %v6882 = vadd.f32 %v6785, 1.0
      %v6883 = vadd.f32 %v6787, 1.0
      %v6884 = vadd.f32 %v6789, 1.0
      %v6885 = vadd.f32 %v6791, 1.0
      %v6886 = vadd.f32 %v6793, 1.0
      %v6887 = vadd.f32 %v6795, 1.0
      %v6888 = vadd.f32 %v6797, 1.0
      %v6889 = vadd.f32 %v6799, 1.0
      %v6890 = vadd.f32 %v6801, 1.0
      %v6891 = vadd.f32 %v6803, 1.0
      %v6892 = vadd.f32 %v6805, 1.0
      %v6893 = vadd.f32 %v6807, 1.0
      %v6894 = vadd.f32 %v6809, 1.0
      %v6895 = vadd.f32 %v6811, 1.0
      %v6896 = vadd.f32 %v6813, 1.0
      %v6897 = vadd.f32 %v6815, 1.0
      %v6898 = vadd.f32 %v6817, 1.0
      %v6899 = vadd.f32 %v6819, 1.0
      %v6900 = vadd.f32 %v6821, 1.0
      %v6901 = vadd.f32 %v6823, 1.0
      %v6902 = vadd.f32 %v6825, 1.0
      %v6903 = vadd.f32 %v6827, 1.0
      %v6904 = vadd.f32 %v6829, 1.0
      %v6905 = vadd.f32 %v6831, 1.0
      %v6906 = vadd.f32 %v6833, 1.0
      %v6907 = vadd.f32 %v6835, 1.0
      %v6908 = vadd.f32 %v6837, 1.0
      %v6909 = vadd.f32 %v6839, 1.0
      %v6910 = vadd.f32 %v6841, 1.0
      %v6911 = vadd.f32 %v6843, 1.0
      %v6912 = vadd.f32 %v6845, 1.0
      %v6913 = vadd.f32 %v6847, 1.0
      %v6914 = vadd.f32 %v6849, 1.0
      %v6915 = vadd.f32 %v6851, 1.0
      %v6916 = vmul.f32 %v6852, %v6852
      %v6917 = vmul.f32 %v6853, %v6853
      %v6918 = vmul.f32 %v6854, %v6854
      %v6919 = vmul.f32 %v6855, %v6855
      %v6920 = vmul.f32 %v6856, %v6856
      %v6921 = vmul.f32 %v6857, %v6857
      %v6922 = vmul.f32 %v6858, %v6858
      %v6923 = vmul.f32 %v6859, %v6859
      %v6924 = vmul.f32 %v6860, %v6860
      %v6925 = vmul.f32 %v6861, %v6861
      %v6926 = vmul.f32 %v6862, %v6862
      %v6927 = vmul.f32 %v6863, %v6863
      %v6928 = vmul.f32 %v6864, %v6864
      %v6929 = vmul.f32 %v6865, %v6865
      %v6930 = vmul.f32 %v6866, %v6866
      %v6931 = vmul.f32 %v6867, %v6867
      %v6932 = vmul.f32 %v6868, %v6868
      %v6933 = vmul.f32 %v6869, %v6869
      %v6934 = vmul.f32 %v6870, %v6870
      %v6935 = vmul.f32 %v6871, %v6871
      %v6936 = vmul.f32 %v6872, %v6872
      %v6937 = vmul.f32 %v6873, %v6873
      %v6938 = vmul.f32 %v6874, %v6874
      %v6939 = vmul.f32 %v6875, %v6875
      %v6940 = vmul.f32 %v6876, %v6876
      %v6941 = vmul.f32 %v6877, %v6877
      %v6942 = vmul.f32 %v6878, %v6878
      %v6943 = vmul.f32 %v6879, %v6879
      %v6944 = vmul.f32 %v6880, %v6880
      %v6945 = vmul.f32 %v6881, %v6881
      %v6946 = vmul.f32 %v6882, %v6882
      %v6947 = vmul.f32 %v6883, %v6883
      %v6948 = vmul.f32 %v6884, %v6884
      %v6949 = vmul.f32 %v6885, %v6885
      %v6950 = vmul.f32 %v6886, %v6886
      %v6951 = vmul.f32 %v6887, %v6887
      %v6952 = vmul.f32 %v6888, %v6888
      %v6953 = vmul.f32 %v6889, %v6889
      %v6954 = vmul.f32 %v6890, %v6890
      %v6955 = vmul.f32 %v6891, %v6891
      %v6956 = vmul.f32 %v6892, %v6892
      %v6957 = vmul.f32 %v6893, %v6893
      %v6958 = vmul.f32 %v6894, %v6894
      %v6959 = vmul.f32 %v6895, %v6895
      %v6960 = vmul.f32 %v6896, %v6896
      %v6961 = vmul.f32 %v6897, %v6897
      %v6962 = vmul.f32 %v6898, %v6898
      %v6963 = vmul.f32 %v6899, %v6899
      %v6964 = vmul.f32 %v6900, %v6900
      %v6965 = vmul.f32 %v6901, %v6901
      %v6966 = vmul.f32 %v6902, %v6902
      %v6967 = vmul.f32 %v6903, %v6903
      %v6968 = vmul.f32 %v6904, %v6904
      %v6969 = vmul.f32 %v6905, %v6905
      %v6970 = vmul.f32 %v6906, %v6906
      %v6971 = vmul.f32 %v6907, %v6907
      %v6972 = vmul.f32 %v6908, %v6908
      %v6973 = vmul.f32 %v6909, %v6909
      %v6974 = vmul.f32 %v6910, %v6910
      %v6975 = vmul.f32 %v6911, %v6911
      %v6976 = vmul.f32 %v6912, %v6912
      %v6977 = vmul.f32 %v6913, %v6913
      %v6978 = vmul.f32 %v6914, %v6914
      %v6979 = vmul.f32 %v6915, %v6915
      %v6980 = vsub.f32 %v6916, 1.0
      %v6981 = vsub.f32 %v6917, 1.0
      %v6982 = vsub.f32 %v6918, 1.0
      %v6983 = vsub.f32 %v6919, 1.0
      %v6984 = vsub.f32 %v6920, 1.0
      %v6985 = vsub.f32 %v6921, 1.0
      %v6986 = vsub.f32 %v6922, 1.0
      %v6987 = vsub.f32 %v6923, 1.0
      %v6988 = vsub.f32 %v6924, 1.0
      %v6989 = vsub.f32 %v6925, 1.0
      %v6990 = vsub.f32 %v6926, 1.0
      %v6991 = vsub.f32 %v6927, 1.0
      %v6992 = vsub.f32 %v6928, 1.0
      %v6993 = vsub.f32 %v6929, 1.0
      %v6994 = vsub.f32 %v6930, 1.0
      %v6995 = vsub.f32 %v6931, 1.0
      %v6996 = vsub.f32 %v6932, 1.0
      %v6997 = vsub.f32 %v6933, 1.0
      %v6998 = vsub.f32 %v6934, 1.0
      %v6999 = vsub.f32 %v6935, 1.0
      %v7000 = vsub.f32 %v6936, 1.0
      %v7001 = vsub.f32 %v6937, 1.0
      %v7002 = vsub.f32 %v6938, 1.0
      %v7003 = vsub.f32 %v6939, 1.0
      %v7004 = vsub.f32 %v6940, 1.0
      %v7005 = vsub.f32 %v6941, 1.0
      %v7006 = vsub.f32 %v6942, 1.0
      %v7007 = vsub.f32 %v6943, 1.0
      %v7008 = vsub.f32 %v6944, 1.0
      %v7009 = vsub.f32 %v6945, 1.0
      %v7010 = vsub.f32 %v6946, 1.0
      %v7011 = vsub.f32 %v6947, 1.0
      %v7012 = vsub.f32 %v6948, 1.0
      %v7013 = vsub.f32 %v6949, 1.0
      %v7014 = vsub.f32 %v6950, 1.0
      %v7015 = vsub.f32 %v6951, 1.0
      %v7016 = vsub.f32 %v6952, 1.0
      %v7017 = vsub.f32 %v6953, 1.0
      %v7018 = vsub.f32 %v6954, 1.0
      %v7019 = vsub.f32 %v6955, 1.0
      %v7020 = vsub.f32 %v6956, 1.0
      %v7021 = vsub.f32 %v6957, 1.0
      %v7022 = vsub.f32 %v6958, 1.0
      %v7023 = vsub.f32 %v6959, 1.0
      %v7024 = vsub.f32 %v6960, 1.0
      %v7025 = vsub.f32 %v6961, 1.0
      %v7026 = vsub.f32 %v6962, 1.0
      %v7027 = vsub.f32 %v6963, 1.0
      %v7028 = vsub.f32 %v6964, 1.0
      %v7029 = vsub.f32 %v6965, 1.0
      %v7030 = vsub.f32 %v6966, 1.0
      %v7031 = vsub.f32 %v6967, 1.0
      %v7032 = vsub.f32 %v6968, 1.0
      %v7033 = vsub.f32 %v6969, 1.0
      %v7034 = vsub.f32 %v6970, 1.0
      %v7035 = vsub.f32 %v6971, 1.0
      %v7036 = vsub.f32 %v6972, 1.0
      %v7037 = vsub.f32 %v6973, 1.0
      %v7038 = vsub.f32 %v6974, 1.0
      %v7039 = vsub.f32 %v6975, 1.0
      %v7040 = vsub.f32 %v6976, 1.0
      %v7041 = vsub.f32 %v6977, 1.0
      %v7042 = vsub.f32 %v6978, 1.0
      %v7043 = vsub.f32 %v6979, 1.0
      %v7044 = vadd.f32 %v6916, 1.0
      %v7045 = vadd.f32 %v6917, 1.0
      %v7046 = vadd.f32 %v6918, 1.0
      %v7047 = vadd.f32 %v6919, 1.0
      %v7048 = vadd.f32 %v6920, 1.0
      %v7049 = vadd.f32 %v6921, 1.0
      %v7050 = vadd.f32 %v6922, 1.0
      %v7051 = vadd.f32 %v6923, 1.0
      %v7052 = vadd.f32 %v6924, 1.0
      %v7053 = vadd.f32 %v6925, 1.0
      %v7054 = vadd.f32 %v6926, 1.0
      %v7055 = vadd.f32 %v6927, 1.0
      %v7056 = vadd.f32 %v6928, 1.0
      %v7057 = vadd.f32 %v6929, 1.0
      %v7058 = vadd.f32 %v6930, 1.0
      %v7059 = vadd.f32 %v6931, 1.0
      %v7060 = vadd.f32 %v6932, 1.0
      %v7061 = vadd.f32 %v6933, 1.0
      %v7062 = vadd.f32 %v6934, 1.0
      %v7063 = vadd.f32 %v6935, 1.0
      %v7064 = vadd.f32 %v6936, 1.0
      %v7065 = vadd.f32 %v6937, 1.0
      %v7066 = vadd.f32 %v6938, 1.0
      %v7067 = vadd.f32 %v6939, 1.0
      %v7068 = vadd.f32 %v6940, 1.0
      %v7069 = vadd.f32 %v6941, 1.0
      %v7070 = vadd.f32 %v6942, 1.0
      %v7071 = vadd.f32 %v6943, 1.0
      %v7072 = vadd.f32 %v6944, 1.0
      %v7073 = vadd.f32 %v6945, 1.0
      %v7074 = vadd.f32 %v6946, 1.0
      %v7075 = vadd.f32 %v6947, 1.0
      %v7076 = vadd.f32 %v6948, 1.0
      %v7077 = vadd.f32 %v6949, 1.0
      %v7078 = vadd.f32 %v6950, 1.0
      %v7079 = vadd.f32 %v6951, 1.0
      %v7080 = vadd.f32 %v6952, 1.0
      %v7081 = vadd.f32 %v6953, 1.0
      %v7082 = vadd.f32 %v6954, 1.0
      %v7083 = vadd.f32 %v6955, 1.0
      %v7084 = vadd.f32 %v6956, 1.0
      %v7085 = vadd.f32 %v6957, 1.0
      %v7086 = vadd.f32 %v6958, 1.0
      %v7087 = vadd.f32 %v6959, 1.0
      %v7088 = vadd.f32 %v6960, 1.0
      %v7089 = vadd.f32 %v6961, 1.0
      %v7090 = vadd.f32 %v6962, 1.0
      %v7091 = vadd.f32 %v6963, 1.0
      %v7092 = vadd.f32 %v6964, 1.0
      %v7093 = vadd.f32 %v6965, 1.0
      %v7094 = vadd.f32 %v6966, 1.0
      %v7095 = vadd.f32 %v6967, 1.0
      %v7096 = vadd.f32 %v6968, 1.0
      %v7097 = vadd.f32 %v6969, 1.0
      %v7098 = vadd.f32 %v6970, 1.0
      %v7099 = vadd.f32 %v6971, 1.0
      %v7100 = vadd.f32 %v6972, 1.0
      %v7101 = vadd.f32 %v6973, 1.0
      %v7102 = vadd.f32 %v6974, 1.0
      %v7103 = vadd.f32 %v6975, 1.0
      %v7104 = vadd.f32 %v6976, 1.0
      %v7105 = vadd.f32 %v6977, 1.0
      %v7106 = vadd.f32 %v6978, 1.0
      %v7107 = vadd.f32 %v6979, 1.0
      %v7108 = vrcp.pop %v7044
      %v7109 = vmul.f32 %v6980, %v7108
      %v7110 = vrcp.pop %v7045
      %v7111 = vmul.f32 %v6981, %v7110
      %v7112 = vrcp.pop %v7046
      %v7113 = vmul.f32 %v6982, %v7112
      %v7114 = vrcp.pop %v7047
      %v7115 = vmul.f32 %v6983, %v7114
      %v7116 = vrcp.pop %v7048
      %v7117 = vmul.f32 %v6984, %v7116
      %v7118 = vrcp.pop %v7049
      %v7119 = vmul.f32 %v6985, %v7118
      %v7120 = vrcp.pop %v7050
      %v7121 = vmul.f32 %v6986, %v7120
      %v7122 = vrcp.pop %v7051
      %v7123 = vmul.f32 %v6987, %v7122
      %v7124 = vrcp.pop %v7052
      %v7125 = vmul.f32 %v6988, %v7124
      %v7126 = vrcp.pop %v7053
      %v7127 = vmul.f32 %v6989, %v7126
      %v7128 = vrcp.pop %v7054
      %v7129 = vmul.f32 %v6990, %v7128
      %v7130 = vrcp.pop %v7055
      %v7131 = vmul.f32 %v6991, %v7130
      %v7132 = vrcp.pop %v7056
      %v7133 = vmul.f32 %v6992, %v7132
      %v7134 = vrcp.pop %v7057
      %v7135 = vmul.f32 %v6993, %v7134
      %v7136 = vrcp.pop %v7058
      %v7137 = vmul.f32 %v6994, %v7136
      %v7138 = vrcp.pop %v7059
      %v7139 = vmul.f32 %v6995, %v7138
      %v7140 = vrcp.pop %v7060
      %v7141 = vmul.f32 %v6996, %v7140
      %v7142 = vrcp.pop %v7061
      %v7143 = vmul.f32 %v6997, %v7142
      %v7144 = vrcp.pop %v7062
      %v7145 = vmul.f32 %v6998, %v7144
      %v7146 = vrcp.pop %v7063
      %v7147 = vmul.f32 %v6999, %v7146
      %v7148 = vrcp.pop %v7064
      %v7149 = vmul.f32 %v7000, %v7148
      %v7150 = vrcp.pop %v7065
      %v7151 = vmul.f32 %v7001, %v7150
      %v7152 = vrcp.pop %v7066
      %v7153 = vmul.f32 %v7002, %v7152
      %v7154 = vrcp.pop %v7067
      %v7155 = vmul.f32 %v7003, %v7154
      %v7156 = vrcp.pop %v7068
      %v7157 = vmul.f32 %v7004, %v7156
      %v7158 = vrcp.pop %v7069
      %v7159 = vmul.f32 %v7005, %v7158
      %v7160 = vrcp.pop %v7070
      %v7161 = vmul.f32 %v7006, %v7160
      %v7162 = vrcp.pop %v7071
      %v7163 = vmul.f32 %v7007, %v7162
      %v7164 = vrcp.pop %v7072
      %v7165 = vmul.f32 %v7008, %v7164
      %v7166 = vrcp.pop %v7073
      %v7167 = vmul.f32 %v7009, %v7166
      %v7168 = vrcp.pop %v7074
      %v7169 = vmul.f32 %v7010, %v7168
      %v7170 = vrcp.pop %v7075
      %v7171 = vmul.f32 %v7011, %v7170
      %v7172 = vrcp.pop %v7076
      %v7173 = vmul.f32 %v7012, %v7172
      %v7174 = vrcp.pop %v7077
      %v7175 = vmul.f32 %v7013, %v7174
      %v7176 = vrcp.pop %v7078
      %v7177 = vmul.f32 %v7014, %v7176
      %v7178 = vrcp.pop %v7079
      %v7179 = vmul.f32 %v7015, %v7178
      %v7180 = vrcp.pop %v7080
      %v7181 = vmul.f32 %v7016, %v7180
      %v7182 = vrcp.pop %v7081
      %v7183 = vmul.f32 %v7017, %v7182
      %v7184 = vrcp.pop %v7082
      %v7185 = vmul.f32 %v7018, %v7184
      %v7186 = vrcp.pop %v7083
      %v7187 = vmul.f32 %v7019, %v7186
      %v7188 = vrcp.pop %v7084
      %v7189 = vmul.f32 %v7020, %v7188
      %v7190 = vrcp.pop %v7085
      %v7191 = vmul.f32 %v7021, %v7190
      %v7192 = vrcp.pop %v7086
      %v7193 = vmul.f32 %v7022, %v7192
      %v7194 = vrcp.pop %v7087
      %v7195 = vmul.f32 %v7023, %v7194
      %v7196 = vrcp.pop %v7088
      %v7197 = vmul.f32 %v7024, %v7196
      %v7198 = vrcp.pop %v7089
      %v7199 = vmul.f32 %v7025, %v7198
      %v7200 = vrcp.pop %v7090
      %v7201 = vmul.f32 %v7026, %v7200
      %v7202 = vrcp.pop %v7091
      %v7203 = vmul.f32 %v7027, %v7202
      %v7204 = vrcp.pop %v7092
      %v7205 = vmul.f32 %v7028, %v7204
      %v7206 = vrcp.pop %v7093
      %v7207 = vmul.f32 %v7029, %v7206
      %v7208 = vrcp.pop %v7094
      %v7209 = vmul.f32 %v7030, %v7208
      %v7210 = vrcp.pop %v7095
      %v7211 = vmul.f32 %v7031, %v7210
      %v7212 = vrcp.pop %v7096
      %v7213 = vmul.f32 %v7032, %v7212
      %v7214 = vrcp.pop %v7097
      %v7215 = vmul.f32 %v7033, %v7214
      %v7216 = vrcp.pop %v7098
      %v7217 = vmul.f32 %v7034, %v7216
      %v7218 = vrcp.pop %v7099
      %v7219 = vmul.f32 %v7035, %v7218
      %v7220 = vrcp.pop %v7100
      %v7221 = vmul.f32 %v7036, %v7220
      %v7222 = vrcp.pop %v7101
      %v7223 = vmul.f32 %v7037, %v7222
      %v7224 = vrcp.pop %v7102
      %v7225 = vmul.f32 %v7038, %v7224
      %v7226 = vrcp.pop %v7103
      %v7227 = vmul.f32 %v7039, %v7226
      %v7228 = vrcp.pop %v7104
      %v7229 = vmul.f32 %v7040, %v7228
      %v7230 = vrcp.pop %v7105
      %v7231 = vmul.f32 %v7041, %v7230
      %v7232 = vrcp.pop %v7106
      %v7233 = vmul.f32 %v7042, %v7232
      %v7234 = vrcp.pop %v7107
      %v7235 = vmul.f32 %v7043, %v7234
      %vm7236 = vcmp.gt.f32.partialorder %v6502, 20.0
      %vm7237 = vcmp.gt.f32.partialorder %v6504, 20.0
      %vm7238 = vcmp.gt.f32.partialorder %v6506, 20.0
      %vm7239 = vcmp.gt.f32.partialorder %v6508, 20.0
      %vm7240 = vcmp.gt.f32.partialorder %v6512, 20.0
      %vm7241 = vcmp.gt.f32.partialorder %v6514, 20.0
      %vm7242 = vcmp.gt.f32.partialorder %v6516, 20.0
      %vm7243 = vcmp.gt.f32.partialorder %v6518, 20.0
      %vm7244 = vcmp.gt.f32.partialorder %v6522, 20.0
      %vm7245 = vcmp.gt.f32.partialorder %v6524, 20.0
      %vm7246 = vcmp.gt.f32.partialorder %v6526, 20.0
      %vm7247 = vcmp.gt.f32.partialorder %v6528, 20.0
      %vm7248 = vcmp.gt.f32.partialorder %v6532, 20.0
      %vm7249 = vcmp.gt.f32.partialorder %v6534, 20.0
      %vm7250 = vcmp.gt.f32.partialorder %v6536, 20.0
      %vm7251 = vcmp.gt.f32.partialorder %v6538, 20.0
      %vm7252 = vcmp.gt.f32.partialorder %v6542, 20.0
      %vm7253 = vcmp.gt.f32.partialorder %v6544, 20.0
      %vm7254 = vcmp.gt.f32.partialorder %v6546, 20.0
      %vm7255 = vcmp.gt.f32.partialorder %v6548, 20.0
      %vm7256 = vcmp.gt.f32.partialorder %v6552, 20.0
      %vm7257 = vcmp.gt.f32.partialorder %v6554, 20.0
      %vm7258 = vcmp.gt.f32.partialorder %v6556, 20.0
      %vm7259 = vcmp.gt.f32.partialorder %v6558, 20.0
      %vm7260 = vcmp.gt.f32.partialorder %v6562, 20.0
      %vm7261 = vcmp.gt.f32.partialorder %v6564, 20.0
      %vm7262 = vcmp.gt.f32.partialorder %v6566, 20.0
      %vm7263 = vcmp.gt.f32.partialorder %v6568, 20.0
      %vm7264 = vcmp.gt.f32.partialorder %v6572, 20.0
      %vm7265 = vcmp.gt.f32.partialorder %v6574, 20.0
      %vm7266 = vcmp.gt.f32.partialorder %v6576, 20.0
      %vm7267 = vcmp.gt.f32.partialorder %v6578, 20.0
      %vm7268 = vcmp.gt.f32.partialorder %v6582, 20.0
      %vm7269 = vcmp.gt.f32.partialorder %v6584, 20.0
      %vm7270 = vcmp.gt.f32.partialorder %v6586, 20.0
      %vm7271 = vcmp.gt.f32.partialorder %v6588, 20.0
      %vm7272 = vcmp.gt.f32.partialorder %v6592, 20.0
      %vm7273 = vcmp.gt.f32.partialorder %v6594, 20.0
      %vm7274 = vcmp.gt.f32.partialorder %v6596, 20.0
      %vm7275 = vcmp.gt.f32.partialorder %v6598, 20.0
      %vm7276 = vcmp.gt.f32.partialorder %v6602, 20.0
      %vm7277 = vcmp.gt.f32.partialorder %v6604, 20.0
      %vm7278 = vcmp.gt.f32.partialorder %v6606, 20.0
      %vm7279 = vcmp.gt.f32.partialorder %v6608, 20.0
      %vm7280 = vcmp.gt.f32.partialorder %v6612, 20.0
      %vm7281 = vcmp.gt.f32.partialorder %v6614, 20.0
      %vm7282 = vcmp.gt.f32.partialorder %v6616, 20.0
      %vm7283 = vcmp.gt.f32.partialorder %v6618, 20.0
      %vm7284 = vcmp.gt.f32.partialorder %v6622, 20.0
      %vm7285 = vcmp.gt.f32.partialorder %v6624, 20.0
      %vm7286 = vcmp.gt.f32.partialorder %v6626, 20.0
      %vm7287 = vcmp.gt.f32.partialorder %v6628, 20.0
      %vm7288 = vcmp.gt.f32.partialorder %v6632, 20.0
      %vm7289 = vcmp.gt.f32.partialorder %v6634, 20.0
      %vm7290 = vcmp.gt.f32.partialorder %v6636, 20.0
      %vm7291 = vcmp.gt.f32.partialorder %v6638, 20.0
      %vm7292 = vcmp.gt.f32.partialorder %v6642, 20.0
      %vm7293 = vcmp.gt.f32.partialorder %v6644, 20.0
      %vm7294 = vcmp.gt.f32.partialorder %v6646, 20.0
      %vm7295 = vcmp.gt.f32.partialorder %v6648, 20.0
      %vm7296 = vcmp.gt.f32.partialorder %v6652, 20.0
      %vm7297 = vcmp.gt.f32.partialorder %v6654, 20.0
      %vm7298 = vcmp.gt.f32.partialorder %v6656, 20.0
      %vm7299 = vcmp.gt.f32.partialorder %v6658, 20.0
      %v7300 = vmul.f32 %v6502, %v7109
      %v7301 = vmul.f32 %v6504, %v7111
      %v7302 = vmul.f32 %v6506, %v7113
      %v7303 = vmul.f32 %v6508, %v7115
      %v7304 = vmul.f32 %v6512, %v7117
      %v7305 = vmul.f32 %v6514, %v7119
      %v7306 = vmul.f32 %v6516, %v7121
      %v7307 = vmul.f32 %v6518, %v7123
      %v7308 = vmul.f32 %v6522, %v7125
      %v7309 = vmul.f32 %v6524, %v7127
      %v7310 = vmul.f32 %v6526, %v7129
      %v7311 = vmul.f32 %v6528, %v7131
      %v7312 = vmul.f32 %v6532, %v7133
      %v7313 = vmul.f32 %v6534, %v7135
      %v7314 = vmul.f32 %v6536, %v7137
      %v7315 = vmul.f32 %v6538, %v7139
      %v7316 = vmul.f32 %v6542, %v7141
      %v7317 = vmul.f32 %v6544, %v7143
      %v7318 = vmul.f32 %v6546, %v7145
      %v7319 = vmul.f32 %v6548, %v7147
      %v7320 = vmul.f32 %v6552, %v7149
      %v7321 = vmul.f32 %v6554, %v7151
      %v7322 = vmul.f32 %v6556, %v7153
      %v7323 = vmul.f32 %v6558, %v7155
      %v7324 = vmul.f32 %v6562, %v7157
      %v7325 = vmul.f32 %v6564, %v7159
      %v7326 = vmul.f32 %v6566, %v7161
      %v7327 = vmul.f32 %v6568, %v7163
      %v7328 = vmul.f32 %v6572, %v7165
      %v7329 = vmul.f32 %v6574, %v7167
      %v7330 = vmul.f32 %v6576, %v7169
      %v7331 = vmul.f32 %v6578, %v7171
      %v7332 = vmul.f32 %v6582, %v7173
      %v7333 = vmul.f32 %v6584, %v7175
      %v7334 = vmul.f32 %v6586, %v7177
      %v7335 = vmul.f32 %v6588, %v7179
      %v7336 = vmul.f32 %v6592, %v7181
      %v7337 = vmul.f32 %v6594, %v7183
      %v7338 = vmul.f32 %v6596, %v7185
      %v7339 = vmul.f32 %v6598, %v7187
      %v7340 = vmul.f32 %v6602, %v7189
      %v7341 = vmul.f32 %v6604, %v7191
      %v7342 = vmul.f32 %v6606, %v7193
      %v7343 = vmul.f32 %v6608, %v7195
      %v7344 = vmul.f32 %v6612, %v7197
      %v7345 = vmul.f32 %v6614, %v7199
      %v7346 = vmul.f32 %v6616, %v7201
      %v7347 = vmul.f32 %v6618, %v7203
      %v7348 = vmul.f32 %v6622, %v7205
      %v7349 = vmul.f32 %v6624, %v7207
      %v7350 = vmul.f32 %v6626, %v7209
      %v7351 = vmul.f32 %v6628, %v7211
      %v7352 = vmul.f32 %v6632, %v7213
      %v7353 = vmul.f32 %v6634, %v7215
      %v7354 = vmul.f32 %v6636, %v7217
      %v7355 = vmul.f32 %v6638, %v7219
      %v7356 = vmul.f32 %v6642, %v7221
      %v7357 = vmul.f32 %v6644, %v7223
      %v7358 = vmul.f32 %v6646, %v7225
      %v7359 = vmul.f32 %v6648, %v7227
      %v7360 = vmul.f32 %v6652, %v7229
      %v7361 = vmul.f32 %v6654, %v7231
      %v7362 = vmul.f32 %v6656, %v7233
      %v7363 = vmul.f32 %v6658, %v7235
      %v7364 = vsel %vm7236, %v6502, %v7300
      %v7365 = vsel %vm7237, %v6504, %v7301
      %v7366 = vsel %vm7238, %v6506, %v7302
      %v7367 = vsel %vm7239, %v6508, %v7303
      %v7368 = vsel %vm7240, %v6512, %v7304
      %v7369 = vsel %vm7241, %v6514, %v7305
      %v7370 = vsel %vm7242, %v6516, %v7306
      %v7371 = vsel %vm7243, %v6518, %v7307
      %v7372 = vsel %vm7244, %v6522, %v7308
      %v7373 = vsel %vm7245, %v6524, %v7309
      %v7374 = vsel %vm7246, %v6526, %v7310
      %v7375 = vsel %vm7247, %v6528, %v7311
      %v7376 = vsel %vm7248, %v6532, %v7312
      %v7377 = vsel %vm7249, %v6534, %v7313
      %v7378 = vsel %vm7250, %v6536, %v7314
      %v7379 = vsel %vm7251, %v6538, %v7315
      %v7380 = vsel %vm7252, %v6542, %v7316
      %v7381 = vsel %vm7253, %v6544, %v7317
      %v7382 = vsel %vm7254, %v6546, %v7318
      %v7383 = vsel %vm7255, %v6548, %v7319
      %v7384 = vsel %vm7256, %v6552, %v7320
      %v7385 = vsel %vm7257, %v6554, %v7321
      %v7386 = vsel %vm7258, %v6556, %v7322
      %v7387 = vsel %vm7259, %v6558, %v7323
      %v7388 = vsel %vm7260, %v6562, %v7324
      %v7389 = vsel %vm7261, %v6564, %v7325
      %v7390 = vsel %vm7262, %v6566, %v7326
      %v7391 = vsel %vm7263, %v6568, %v7327
      %v7392 = vsel %vm7264, %v6572, %v7328
      %v7393 = vsel %vm7265, %v6574, %v7329
      %v7394 = vsel %vm7266, %v6576, %v7330
      %v7395 = vsel %vm7267, %v6578, %v7331
      %v7396 = vsel %vm7268, %v6582, %v7332
      %v7397 = vsel %vm7269, %v6584, %v7333
      %v7398 = vsel %vm7270, %v6586, %v7334
      %v7399 = vsel %vm7271, %v6588, %v7335
      %v7400 = vsel %vm7272, %v6592, %v7336
      %v7401 = vsel %vm7273, %v6594, %v7337
      %v7402 = vsel %vm7274, %v6596, %v7338
      %v7403 = vsel %vm7275, %v6598, %v7339
      %v7404 = vsel %vm7276, %v6602, %v7340
      %v7405 = vsel %vm7277, %v6604, %v7341
      %v7406 = vsel %vm7278, %v6606, %v7342
      %v7407 = vsel %vm7279, %v6608, %v7343
      %v7408 = vsel %vm7280, %v6612, %v7344
      %v7409 = vsel %vm7281, %v6614, %v7345
      %v7410 = vsel %vm7282, %v6616, %v7346
      %v7411 = vsel %vm7283, %v6618, %v7347
      %v7412 = vsel %vm7284, %v6622, %v7348
      %v7413 = vsel %vm7285, %v6624, %v7349
      %v7414 = vsel %vm7286, %v6626, %v7350
      %v7415 = vsel %vm7287, %v6628, %v7351
      %v7416 = vsel %vm7288, %v6632, %v7352
      %v7417 = vsel %vm7289, %v6634, %v7353
      %v7418 = vsel %vm7290, %v6636, %v7354
      %v7419 = vsel %vm7291, %v6638, %v7355
      %v7420 = vsel %vm7292, %v6642, %v7356
      %v7421 = vsel %vm7293, %v6644, %v7357
      %v7422 = vsel %vm7294, %v6646, %v7358
      %v7423 = vsel %vm7295, %v6648, %v7359
      %v7424 = vsel %vm7296, %v6652, %v7360
      %v7425 = vsel %vm7297, %v6654, %v7361
      %v7426 = vsel %vm7298, %v6656, %v7362
      %v7427 = vsel %vm7299, %v6658, %v7363
      %v7428 = vpack.c.bf16 %v7366, %v7364
      %v7429 = vpack.c.bf16 %v7367, %v7365
      %v7430 = vpack.c.bf16 %v7370, %v7368
      %v7431 = vpack.c.bf16 %v7371, %v7369
      %v7432 = vpack.c.bf16 %v7374, %v7372
      %v7433 = vpack.c.bf16 %v7375, %v7373
      %v7434 = vpack.c.bf16 %v7378, %v7376
      %v7435 = vpack.c.bf16 %v7379, %v7377
      %v7436 = vpack.c.bf16 %v7382, %v7380
      %v7437 = vpack.c.bf16 %v7383, %v7381
      %v7438 = vpack.c.bf16 %v7386, %v7384
      %v7439 = vpack.c.bf16 %v7387, %v7385
      %v7440 = vpack.c.bf16 %v7390, %v7388
      %v7441 = vpack.c.bf16 %v7391, %v7389
      %v7442 = vpack.c.bf16 %v7394, %v7392
      %v7443 = vpack.c.bf16 %v7395, %v7393
      %v7444 = vpack.c.bf16 %v7398, %v7396
      %v7445 = vpack.c.bf16 %v7399, %v7397
      %v7446 = vpack.c.bf16 %v7402, %v7400
      %v7447 = vpack.c.bf16 %v7403, %v7401
      %v7448 = vpack.c.bf16 %v7406, %v7404
      %v7449 = vpack.c.bf16 %v7407, %v7405
      %v7450 = vpack.c.bf16 %v7410, %v7408
      %v7451 = vpack.c.bf16 %v7411, %v7409
      %v7452 = vpack.c.bf16 %v7414, %v7412
      %v7453 = vpack.c.bf16 %v7415, %v7413
      %v7454 = vpack.c.bf16 %v7418, %v7416
      %v7455 = vpack.c.bf16 %v7419, %v7417
      %v7456 = vpack.c.bf16 %v7422, %v7420
      %v7457 = vpack.c.bf16 %v7423, %v7421
      %v7458 = vpack.c.bf16 %v7426, %v7424
      %v7459 = vpack.c.bf16 %v7427, %v7425
      %v7460 = vld [vmem:[%s16] sm:$0xff]
      %v7461 = vld [vmem:[%s16 + $0x8] sm:$0xff]
      %v7462 = vld [vmem:[%s16 + $0x10] sm:$0xff]
      %v7463 = vld [vmem:[%s16 + $0x18] sm:$0xff]
      %v7464 = vld [vmem:[%s16 + $0x20] sm:$0xff]
      %v7465 = vld [vmem:[%s16 + $0x28] sm:$0xff]
      %v7466 = vld [vmem:[%s16 + $0x30] sm:$0xff]
      %v7467 = vld [vmem:[%s16 + $0x38] sm:$0xff]
      %v7468 = vld [vmem:[%s16 + $0x40] sm:$0xff]
      %v7469 = vld [vmem:[%s16 + $0x48] sm:$0xff]
      %v7470 = vld [vmem:[%s16 + $0x50] sm:$0xff]
      %v7471 = vld [vmem:[%s16 + $0x58] sm:$0xff]
      %v7472 = vld [vmem:[%s16 + $0x60] sm:$0xff]
      %v7473 = vld [vmem:[%s16 + $0x68] sm:$0xff]
      %v7474 = vld [vmem:[%s16 + $0x70] sm:$0xff]
      %v7475 = vld [vmem:[%s16 + $0x78] sm:$0xff]
      %v7476 = vld [vmem:[%s16 + $0x80] sm:$0xff]
      %v7477 = vld [vmem:[%s16 + $0x88] sm:$0xff]
      %v7478 = vld [vmem:[%s16 + $0x90] sm:$0xff]
      %v7479 = vld [vmem:[%s16 + $0x98] sm:$0xff]
      %v7480 = vld [vmem:[%s16 + $0xa0] sm:$0xff]
      %v7481 = vld [vmem:[%s16 + $0xa8] sm:$0xff]
      %v7482 = vld [vmem:[%s16 + $0xb0] sm:$0xff]
      %v7483 = vld [vmem:[%s16 + $0xb8] sm:$0xff]
      %v7484 = vld [vmem:[%s16 + $0xc0] sm:$0xff]
      %v7485 = vld [vmem:[%s16 + $0xc8] sm:$0xff]
      %v7486 = vld [vmem:[%s16 + $0xd0] sm:$0xff]
      %v7487 = vld [vmem:[%s16 + $0xd8] sm:$0xff]
      %v7488 = vld [vmem:[%s16 + $0xe0] sm:$0xff]
      %v7489 = vld [vmem:[%s16 + $0xe8] sm:$0xff]
      %v7490 = vld [vmem:[%s16 + $0xf0] sm:$0xff]
      %v7491 = vld [vmem:[%s16 + $0xf8] sm:$0xff]
      %v7492 = vld [vmem:[%s17] sm:$0x3]
      %v7494 = vlaneseq
      %v7495 = vshrl.u32 %v7494, 7
      %v7496 = vsub.s32 0, %v7495
      %v7497 = vrot.slane %v7492, %v7496
      %v7498 = vlaneseq
      %v7499 = vshrl.u32 %v7498, 7
      %v7500 = vsub.s32 1, %v7499
      %v7501 = vrot.slane %v7492, %v7500
      %v7536 = vunpack.c.l.b16 %v7460
      %v7537 = vunpack.c.h.b16 %v7460
      %v7538 = vunpack.c.l.b16 %v7461
      %v7539 = vunpack.c.h.b16 %v7461
      %v7540 = vunpack.c.l.b16 %v7462
      %v7541 = vunpack.c.h.b16 %v7462
      %v7542 = vunpack.c.l.b16 %v7463
      %v7543 = vunpack.c.h.b16 %v7463
      %v7544 = vunpack.c.l.b16 %v7464
      %v7545 = vunpack.c.h.b16 %v7464
      %v7546 = vunpack.c.l.b16 %v7465
      %v7547 = vunpack.c.h.b16 %v7465
      %v7548 = vunpack.c.l.b16 %v7466
      %v7549 = vunpack.c.h.b16 %v7466
      %v7550 = vunpack.c.l.b16 %v7467
      %v7551 = vunpack.c.h.b16 %v7467
      %v7552 = vunpack.c.l.b16 %v7468
      %v7553 = vunpack.c.h.b16 %v7468
      %v7554 = vunpack.c.l.b16 %v7469
      %v7555 = vunpack.c.h.b16 %v7469
      %v7556 = vunpack.c.l.b16 %v7470
      %v7557 = vunpack.c.h.b16 %v7470
      %v7558 = vunpack.c.l.b16 %v7471
      %v7559 = vunpack.c.h.b16 %v7471
      %v7560 = vunpack.c.l.b16 %v7472
      %v7561 = vunpack.c.h.b16 %v7472
      %v7562 = vunpack.c.l.b16 %v7473
      %v7563 = vunpack.c.h.b16 %v7473
      %v7564 = vunpack.c.l.b16 %v7474
      %v7565 = vunpack.c.h.b16 %v7474
      %v7566 = vunpack.c.l.b16 %v7475
      %v7567 = vunpack.c.h.b16 %v7475
      %v7568 = vunpack.c.l.b16 %v7476
      %v7569 = vunpack.c.h.b16 %v7476
      %v7570 = vunpack.c.l.b16 %v7477
      %v7571 = vunpack.c.h.b16 %v7477
      %v7572 = vunpack.c.l.b16 %v7478
      %v7573 = vunpack.c.h.b16 %v7478
      %v7574 = vunpack.c.l.b16 %v7479
      %v7575 = vunpack.c.h.b16 %v7479
      %v7576 = vunpack.c.l.b16 %v7480
      %v7577 = vunpack.c.h.b16 %v7480
      %v7578 = vunpack.c.l.b16 %v7481
      %v7579 = vunpack.c.h.b16 %v7481
      %v7580 = vunpack.c.l.b16 %v7482
      %v7581 = vunpack.c.h.b16 %v7482
      %v7582 = vunpack.c.l.b16 %v7483
      %v7583 = vunpack.c.h.b16 %v7483
      %v7584 = vunpack.c.l.b16 %v7484
      %v7585 = vunpack.c.h.b16 %v7484
      %v7586 = vunpack.c.l.b16 %v7485
      %v7587 = vunpack.c.h.b16 %v7485
      %v7588 = vunpack.c.l.b16 %v7486
      %v7589 = vunpack.c.h.b16 %v7486
      %v7590 = vunpack.c.l.b16 %v7487
      %v7591 = vunpack.c.h.b16 %v7487
      %v7592 = vunpack.c.l.b16 %v7488
      %v7593 = vunpack.c.h.b16 %v7488
      %v7594 = vunpack.c.l.b16 %v7489
      %v7595 = vunpack.c.h.b16 %v7489
      %v7596 = vunpack.c.l.b16 %v7490
      %v7597 = vunpack.c.h.b16 %v7490
      %v7598 = vunpack.c.l.b16 %v7491
      %v7599 = vunpack.c.h.b16 %v7491
      %v7600 = vpack.c.b16 %v7538, %v7536
      %v7601 = vpack.c.b16 %v7539, %v7537
      %v7602 = vpack.c.b16 %v7542, %v7540
      %v7603 = vpack.c.b16 %v7543, %v7541
      %v7604 = vpack.c.b16 %v7546, %v7544
      %v7605 = vpack.c.b16 %v7547, %v7545
      %v7606 = vpack.c.b16 %v7550, %v7548
      %v7607 = vpack.c.b16 %v7551, %v7549
      %v7608 = vpack.c.b16 %v7554, %v7552
      %v7609 = vpack.c.b16 %v7555, %v7553
      %v7610 = vpack.c.b16 %v7558, %v7556
      %v7611 = vpack.c.b16 %v7559, %v7557
      %v7612 = vpack.c.b16 %v7562, %v7560
      %v7613 = vpack.c.b16 %v7563, %v7561
      %v7614 = vpack.c.b16 %v7566, %v7564
      %v7615 = vpack.c.b16 %v7567, %v7565
      %v7616 = vpack.c.b16 %v7570, %v7568
      %v7617 = vpack.c.b16 %v7571, %v7569
      %v7618 = vpack.c.b16 %v7574, %v7572
      %v7619 = vpack.c.b16 %v7575, %v7573
      %v7620 = vpack.c.b16 %v7578, %v7576
      %v7621 = vpack.c.b16 %v7579, %v7577
      %v7622 = vpack.c.b16 %v7582, %v7580
      %v7623 = vpack.c.b16 %v7583, %v7581
      %v7624 = vpack.c.b16 %v7586, %v7584
      %v7625 = vpack.c.b16 %v7587, %v7585
      %v7626 = vpack.c.b16 %v7590, %v7588
      %v7627 = vpack.c.b16 %v7591, %v7589
      %v7628 = vpack.c.b16 %v7594, %v7592
      %v7629 = vpack.c.b16 %v7595, %v7593
      %v7630 = vpack.c.b16 %v7598, %v7596
      %v7631 = vpack.c.b16 %v7599, %v7597
      %7664 = vmatprep.subr.bf16.mxu0 %v7615
      %7665 = vmatpush1.bf16.msra.mxu0 %v7614
      %7666 = vmatprep.subr.bf16.mxu0 %v7613
      %7667 = vmatpush1.bf16.msra.mxu0 %v7612
      %7668 = vmatprep.subr.bf16.mxu0 %v7611
      %7669 = vmatpush1.bf16.msra.mxu0 %v7610
      %7670 = vmatprep.subr.bf16.mxu0 %v7609
      %7671 = vmatpush1.bf16.msra.mxu0 %v7608
      %7672 = vmatprep.subr.bf16.mxu0 %v7607
      %7673 = vmatpush1.bf16.msra.mxu0 %v7606
      %7674 = vmatprep.subr.bf16.mxu0 %v7605
      %7675 = vmatpush1.bf16.msra.mxu0 %v7604
      %7676 = vmatprep.subr.bf16.mxu0 %v7603
      %7677 = vmatpush1.bf16.msra.mxu0 %v7602
      %7678 = vmatprep.subr.bf16.mxu0 %v7601
      %7679 = vmatpush1.bf16.msra.mxu0 %v7600
      %7680 = vmatprep.subr.bf16.mxu0 %v7631
      %7681 = vmatpush2.bf16.msra.mxu0 %v7630
      %7682 = vmatprep.subr.bf16.mxu0 %v7629
      %7683 = vmatpush2.bf16.msra.mxu0 %v7628
      %7684 = vmatprep.subr.bf16.mxu0 %v7627
      %7685 = vmatpush2.bf16.msra.mxu0 %v7626
      %7686 = vmatprep.subr.bf16.mxu0 %v7625
      %7687 = vmatpush2.bf16.msra.mxu0 %v7624
      %7688 = vmatprep.subr.bf16.mxu0 %v7623
      %7689 = vmatpush2.bf16.msra.mxu0 %v7622
      %7690 = vmatprep.subr.bf16.mxu0 %v7621
      %7691 = vmatpush2.bf16.msra.mxu0 %v7620
      %7692 = vmatprep.subr.bf16.mxu0 %v7619
      %7693 = vmatpush2.bf16.msra.mxu0 %v7618
      %7694 = vmatprep.subr.bf16.mxu0 %v7617
      %7695 = vmatpush2.bf16.msra.mxu0 %v7616
      %7696 = vmatprep.mubr.bf16.mxu0 %v7429
      %7697 = vmatmul.mubr.bf16.gmra.mxu0 %v7428
      %v7698 = vpop.f32.mrf.mxu0
      %v7699 = vadd.f32 %v7497, %v7698
      %v7700 = vpop.f32.mrf.mxu0
      %v7701 = vadd.f32 %v7501, %v7700
      %v7702 = vpop.f32.mrf.mxu0
      %v7703 = vadd.f32 %v7497, %v7702
      %v7704 = vpop.f32.mrf.mxu0
      %v7705 = vadd.f32 %v7501, %v7704
      %7706 = vmatprep.mubr.bf16.mxu0 %v7431
      %7707 = vmatmul.mubr.bf16.gmra.mxu0 %v7430
      %v7708 = vpop.f32.mrf.mxu0
      %v7709 = vadd.f32 %v7497, %v7708
      %v7710 = vpop.f32.mrf.mxu0
      %v7711 = vadd.f32 %v7501, %v7710
      %v7712 = vpop.f32.mrf.mxu0
      %v7713 = vadd.f32 %v7497, %v7712
      %v7714 = vpop.f32.mrf.mxu0
      %v7715 = vadd.f32 %v7501, %v7714
      %7716 = vmatprep.mubr.bf16.mxu0 %v7433
      %7717 = vmatmul.mubr.bf16.gmra.mxu0 %v7432
      %v7718 = vpop.f32.mrf.mxu0
      %v7719 = vadd.f32 %v7497, %v7718
      %v7720 = vpop.f32.mrf.mxu0
      %v7721 = vadd.f32 %v7501, %v7720
      %v7722 = vpop.f32.mrf.mxu0
      %v7723 = vadd.f32 %v7497, %v7722
      %v7724 = vpop.f32.mrf.mxu0
      %v7725 = vadd.f32 %v7501, %v7724
      %7726 = vmatprep.mubr.bf16.mxu0 %v7435
      %7727 = vmatmul.mubr.bf16.gmra.mxu0 %v7434
      %v7728 = vpop.f32.mrf.mxu0
      %v7729 = vadd.f32 %v7497, %v7728
      %v7730 = vpop.f32.mrf.mxu0
      %v7731 = vadd.f32 %v7501, %v7730
      %v7732 = vpop.f32.mrf.mxu0
      %v7733 = vadd.f32 %v7497, %v7732
      %v7734 = vpop.f32.mrf.mxu0
      %v7735 = vadd.f32 %v7501, %v7734
      %7736 = vmatprep.mubr.bf16.mxu0 %v7437
      %7737 = vmatmul.mubr.bf16.gmra.mxu0 %v7436
      %v7738 = vpop.f32.mrf.mxu0
      %v7739 = vadd.f32 %v7497, %v7738
      %v7740 = vpop.f32.mrf.mxu0
      %v7741 = vadd.f32 %v7501, %v7740
      %v7742 = vpop.f32.mrf.mxu0
      %v7743 = vadd.f32 %v7497, %v7742
      %v7744 = vpop.f32.mrf.mxu0
      %v7745 = vadd.f32 %v7501, %v7744
      %7746 = vmatprep.mubr.bf16.mxu0 %v7439
      %7747 = vmatmul.mubr.bf16.gmra.mxu0 %v7438
      %v7748 = vpop.f32.mrf.mxu0
      %v7749 = vadd.f32 %v7497, %v7748
      %v7750 = vpop.f32.mrf.mxu0
      %v7751 = vadd.f32 %v7501, %v7750
      %v7752 = vpop.f32.mrf.mxu0
      %v7753 = vadd.f32 %v7497, %v7752
      %v7754 = vpop.f32.mrf.mxu0
      %v7755 = vadd.f32 %v7501, %v7754
      %7756 = vmatprep.mubr.bf16.mxu0 %v7441
      %7757 = vmatmul.mubr.bf16.gmra.mxu0 %v7440
      %v7758 = vpop.f32.mrf.mxu0
      %v7759 = vadd.f32 %v7497, %v7758
      %v7760 = vpop.f32.mrf.mxu0
      %v7761 = vadd.f32 %v7501, %v7760
      %v7762 = vpop.f32.mrf.mxu0
      %v7763 = vadd.f32 %v7497, %v7762
      %v7764 = vpop.f32.mrf.mxu0
      %v7765 = vadd.f32 %v7501, %v7764
      %7766 = vmatprep.mubr.bf16.mxu0 %v7443
      %7767 = vmatmul.mubr.bf16.gmra.mxu0 %v7442
      %v7768 = vpop.f32.mrf.mxu0
      %v7769 = vadd.f32 %v7497, %v7768
      %v7770 = vpop.f32.mrf.mxu0
      %v7771 = vadd.f32 %v7501, %v7770
      %v7772 = vpop.f32.mrf.mxu0
      %v7773 = vadd.f32 %v7497, %v7772
      %v7774 = vpop.f32.mrf.mxu0
      %v7775 = vadd.f32 %v7501, %v7774
      %7776 = vmatprep.mubr.bf16.mxu0 %v7445
      %7777 = vmatmul.mubr.bf16.gmra.mxu0 %v7444
      %v7778 = vpop.f32.mrf.mxu0
      %v7779 = vadd.f32 %v7497, %v7778
      %v7780 = vpop.f32.mrf.mxu0
      %v7781 = vadd.f32 %v7501, %v7780
      %v7782 = vpop.f32.mrf.mxu0
      %v7783 = vadd.f32 %v7497, %v7782
      %v7784 = vpop.f32.mrf.mxu0
      %v7785 = vadd.f32 %v7501, %v7784
      %7786 = vmatprep.mubr.bf16.mxu0 %v7447
      %7787 = vmatmul.mubr.bf16.gmra.mxu0 %v7446
      %v7788 = vpop.f32.mrf.mxu0
      %v7789 = vadd.f32 %v7497, %v7788
      %v7790 = vpop.f32.mrf.mxu0
      %v7791 = vadd.f32 %v7501, %v7790
      %v7792 = vpop.f32.mrf.mxu0
      %v7793 = vadd.f32 %v7497, %v7792
      %v7794 = vpop.f32.mrf.mxu0
      %v7795 = vadd.f32 %v7501, %v7794
      %7796 = vmatprep.mubr.bf16.mxu0 %v7449
      %7797 = vmatmul.mubr.bf16.gmra.mxu0 %v7448
      %v7798 = vpop.f32.mrf.mxu0
      %v7799 = vadd.f32 %v7497, %v7798
      %v7800 = vpop.f32.mrf.mxu0
      %v7801 = vadd.f32 %v7501, %v7800
      %v7802 = vpop.f32.mrf.mxu0
      %v7803 = vadd.f32 %v7497, %v7802
      %v7804 = vpop.f32.mrf.mxu0
      %v7805 = vadd.f32 %v7501, %v7804
      %7806 = vmatprep.mubr.bf16.mxu0 %v7451
      %7807 = vmatmul.mubr.bf16.gmra.mxu0 %v7450
      %v7808 = vpop.f32.mrf.mxu0
      %v7809 = vadd.f32 %v7497, %v7808
      %v7810 = vpop.f32.mrf.mxu0
      %v7811 = vadd.f32 %v7501, %v7810
      %v7812 = vpop.f32.mrf.mxu0
      %v7813 = vadd.f32 %v7497, %v7812
      %v7814 = vpop.f32.mrf.mxu0
      %v7815 = vadd.f32 %v7501, %v7814
      %7816 = vmatprep.mubr.bf16.mxu0 %v7453
      %7817 = vmatmul.mubr.bf16.gmra.mxu0 %v7452
      %v7818 = vpop.f32.mrf.mxu0
      %v7819 = vadd.f32 %v7497, %v7818
      %v7820 = vpop.f32.mrf.mxu0
      %v7821 = vadd.f32 %v7501, %v7820
      %v7822 = vpop.f32.mrf.mxu0
      %v7823 = vadd.f32 %v7497, %v7822
      %v7824 = vpop.f32.mrf.mxu0
      %v7825 = vadd.f32 %v7501, %v7824
      %7826 = vmatprep.mubr.bf16.mxu0 %v7455
      %7827 = vmatmul.mubr.bf16.gmra.mxu0 %v7454
      %v7828 = vpop.f32.mrf.mxu0
      %v7829 = vadd.f32 %v7497, %v7828
      %v7830 = vpop.f32.mrf.mxu0
      %v7831 = vadd.f32 %v7501, %v7830
      %v7832 = vpop.f32.mrf.mxu0
      %v7833 = vadd.f32 %v7497, %v7832
      %v7834 = vpop.f32.mrf.mxu0
      %v7835 = vadd.f32 %v7501, %v7834
      %7836 = vmatprep.mubr.bf16.mxu0 %v7457
      %7837 = vmatmul.mubr.bf16.gmra.mxu0 %v7456
      %v7838 = vpop.f32.mrf.mxu0
      %v7839 = vadd.f32 %v7497, %v7838
      %v7840 = vpop.f32.mrf.mxu0
      %v7841 = vadd.f32 %v7501, %v7840
      %v7842 = vpop.f32.mrf.mxu0
      %v7843 = vadd.f32 %v7497, %v7842
      %v7844 = vpop.f32.mrf.mxu0
      %v7845 = vadd.f32 %v7501, %v7844
      %7846 = vmatprep.mubr.bf16.mxu0 %v7459
      %7847 = vmatmul.mubr.bf16.gmra.mxu0 %v7458
      %v7848 = vpop.f32.mrf.mxu0
      %v7849 = vadd.f32 %v7497, %v7848
      %v7850 = vpop.f32.mrf.mxu0
      %v7851 = vadd.f32 %v7501, %v7850
      %v7852 = vpop.f32.mrf.mxu0
      %v7853 = vadd.f32 %v7497, %v7852
      %v7854 = vpop.f32.mrf.mxu0
      %v7855 = vadd.f32 %v7501, %v7854
      %7856 = vdwg.mxu0
      %v7857 = vmin.f32 %v7699, 20.0
      %v7858 = vmin.f32 %v7701, 20.0
      %v7859 = vmin.f32 %v7703, 20.0
      %v7860 = vmin.f32 %v7705, 20.0
      %v7861 = vmin.f32 %v7709, 20.0
      %v7862 = vmin.f32 %v7711, 20.0
      %v7863 = vmin.f32 %v7713, 20.0
      %v7864 = vmin.f32 %v7715, 20.0
      %v7865 = vmin.f32 %v7719, 20.0
      %v7866 = vmin.f32 %v7721, 20.0
      %v7867 = vmin.f32 %v7723, 20.0
      %v7868 = vmin.f32 %v7725, 20.0
      %v7869 = vmin.f32 %v7729, 20.0
      %v7870 = vmin.f32 %v7731, 20.0
      %v7871 = vmin.f32 %v7733, 20.0
      %v7872 = vmin.f32 %v7735, 20.0
      %v7873 = vmin.f32 %v7739, 20.0
      %v7874 = vmin.f32 %v7741, 20.0
      %v7875 = vmin.f32 %v7743, 20.0
      %v7876 = vmin.f32 %v7745, 20.0
      %v7877 = vmin.f32 %v7749, 20.0
      %v7878 = vmin.f32 %v7751, 20.0
      %v7879 = vmin.f32 %v7753, 20.0
      %v7880 = vmin.f32 %v7755, 20.0
      %v7881 = vmin.f32 %v7759, 20.0
      %v7882 = vmin.f32 %v7761, 20.0
      %v7883 = vmin.f32 %v7763, 20.0
      %v7884 = vmin.f32 %v7765, 20.0
      %v7885 = vmin.f32 %v7769, 20.0
      %v7886 = vmin.f32 %v7771, 20.0
      %v7887 = vmin.f32 %v7773, 20.0
      %v7888 = vmin.f32 %v7775, 20.0
      %v7889 = vmin.f32 %v7779, 20.0
      %v7890 = vmin.f32 %v7781, 20.0
      %v7891 = vmin.f32 %v7783, 20.0
      %v7892 = vmin.f32 %v7785, 20.0
      %v7893 = vmin.f32 %v7789, 20.0
      %v7894 = vmin.f32 %v7791, 20.0
      %v7895 = vmin.f32 %v7793, 20.0
      %v7896 = vmin.f32 %v7795, 20.0
      %v7897 = vmin.f32 %v7799, 20.0
      %v7898 = vmin.f32 %v7801, 20.0
      %v7899 = vmin.f32 %v7803, 20.0
      %v7900 = vmin.f32 %v7805, 20.0
      %v7901 = vmin.f32 %v7809, 20.0
      %v7902 = vmin.f32 %v7811, 20.0
      %v7903 = vmin.f32 %v7813, 20.0
      %v7904 = vmin.f32 %v7815, 20.0
      %v7905 = vmin.f32 %v7819, 20.0
      %v7906 = vmin.f32 %v7821, 20.0
      %v7907 = vmin.f32 %v7823, 20.0
      %v7908 = vmin.f32 %v7825, 20.0
      %v7909 = vmin.f32 %v7829, 20.0
      %v7910 = vmin.f32 %v7831, 20.0
      %v7911 = vmin.f32 %v7833, 20.0
      %v7912 = vmin.f32 %v7835, 20.0
      %v7913 = vmin.f32 %v7839, 20.0
      %v7914 = vmin.f32 %v7841, 20.0
      %v7915 = vmin.f32 %v7843, 20.0
      %v7916 = vmin.f32 %v7845, 20.0
      %v7917 = vmin.f32 %v7849, 20.0
      %v7918 = vmin.f32 %v7851, 20.0
      %v7919 = vmin.f32 %v7853, 20.0
      %v7920 = vmin.f32 %v7855, 20.0
      %v7921 = vmul.f32 %v7857, 1.442695
      %v7922 = vpow.pop %v7921
      %v7923 = vmul.f32 %v7858, 1.442695
      %v7924 = vpow.pop %v7923
      %v7925 = vmul.f32 %v7859, 1.442695
      %v7926 = vpow.pop %v7925
      %v7927 = vmul.f32 %v7860, 1.442695
      %v7928 = vpow.pop %v7927
      %v7929 = vmul.f32 %v7861, 1.442695
      %v7930 = vpow.pop %v7929
      %v7931 = vmul.f32 %v7862, 1.442695
      %v7932 = vpow.pop %v7931
      %v7933 = vmul.f32 %v7863, 1.442695
      %v7934 = vpow.pop %v7933
      %v7935 = vmul.f32 %v7864, 1.442695
      %v7936 = vpow.pop %v7935
      %v7937 = vmul.f32 %v7865, 1.442695
      %v7938 = vpow.pop %v7937
      %v7939 = vmul.f32 %v7866, 1.442695
      %v7940 = vpow.pop %v7939
      %v7941 = vmul.f32 %v7867, 1.442695
      %v7942 = vpow.pop %v7941
      %v7943 = vmul.f32 %v7868, 1.442695
      %v7944 = vpow.pop %v7943
      %v7945 = vmul.f32 %v7869, 1.442695
      %v7946 = vpow.pop %v7945
      %v7947 = vmul.f32 %v7870, 1.442695
      %v7948 = vpow.pop %v7947
      %v7949 = vmul.f32 %v7871, 1.442695
      %v7950 = vpow.pop %v7949
      %v7951 = vmul.f32 %v7872, 1.442695
      %v7952 = vpow.pop %v7951
      %v7953 = vmul.f32 %v7873, 1.442695
      %v7954 = vpow.pop %v7953
      %v7955 = vmul.f32 %v7874, 1.442695
      %v7956 = vpow.pop %v7955
      %v7957 = vmul.f32 %v7875, 1.442695
      %v7958 = vpow.pop %v7957
      %v7959 = vmul.f32 %v7876, 1.442695
      %v7960 = vpow.pop %v7959
      %v7961 = vmul.f32 %v7877, 1.442695
      %v7962 = vpow.pop %v7961
      %v7963 = vmul.f32 %v7878, 1.442695
      %v7964 = vpow.pop %v7963
      %v7965 = vmul.f32 %v7879, 1.442695
      %v7966 = vpow.pop %v7965
      %v7967 = vmul.f32 %v7880, 1.442695
      %v7968 = vpow.pop %v7967
      %v7969 = vmul.f32 %v7881, 1.442695
      %v7970 = vpow.pop %v7969
      %v7971 = vmul.f32 %v7882, 1.442695
      %v7972 = vpow.pop %v7971
      %v7973 = vmul.f32 %v7883, 1.442695
      %v7974 = vpow.pop %v7973
      %v7975 = vmul.f32 %v7884, 1.442695
      %v7976 = vpow.pop %v7975
      %v7977 = vmul.f32 %v7885, 1.442695
      %v7978 = vpow.pop %v7977
      %v7979 = vmul.f32 %v7886, 1.442695
      %v7980 = vpow.pop %v7979
      %v7981 = vmul.f32 %v7887, 1.442695
      %v7982 = vpow.pop %v7981
      %v7983 = vmul.f32 %v7888, 1.442695
      %v7984 = vpow.pop %v7983
      %v7985 = vmul.f32 %v7889, 1.442695
      %v7986 = vpow.pop %v7985
      %v7987 = vmul.f32 %v7890, 1.442695
      %v7988 = vpow.pop %v7987
      %v7989 = vmul.f32 %v7891, 1.442695
      %v7990 = vpow.pop %v7989
      %v7991 = vmul.f32 %v7892, 1.442695
      %v7992 = vpow.pop %v7991
      %v7993 = vmul.f32 %v7893, 1.442695
      %v7994 = vpow.pop %v7993
      %v7995 = vmul.f32 %v7894, 1.442695
      %v7996 = vpow.pop %v7995
      %v7997 = vmul.f32 %v7895, 1.442695
      %v7998 = vpow.pop %v7997
      %v7999 = vmul.f32 %v7896, 1.442695
      %v8000 = vpow.pop %v7999
      %v8001 = vmul.f32 %v7897, 1.442695
      %v8002 = vpow.pop %v8001
      %v8003 = vmul.f32 %v7898, 1.442695
      %v8004 = vpow.pop %v8003
      %v8005 = vmul.f32 %v7899, 1.442695
      %v8006 = vpow.pop %v8005
      %v8007 = vmul.f32 %v7900, 1.442695
      %v8008 = vpow.pop %v8007
      %v8009 = vmul.f32 %v7901, 1.442695
      %v8010 = vpow.pop %v8009
      %v8011 = vmul.f32 %v7902, 1.442695
      %v8012 = vpow.pop %v8011
      %v8013 = vmul.f32 %v7903, 1.442695
      %v8014 = vpow.pop %v8013
      %v8015 = vmul.f32 %v7904, 1.442695
      %v8016 = vpow.pop %v8015
      %v8017 = vmul.f32 %v7905, 1.442695
      %v8018 = vpow.pop %v8017
      %v8019 = vmul.f32 %v7906, 1.442695
      %v8020 = vpow.pop %v8019
      %v8021 = vmul.f32 %v7907, 1.442695
      %v8022 = vpow.pop %v8021
      %v8023 = vmul.f32 %v7908, 1.442695
      %v8024 = vpow.pop %v8023
      %v8025 = vmul.f32 %v7909, 1.442695
      %v8026 = vpow.pop %v8025
      %v8027 = vmul.f32 %v7910, 1.442695
      %v8028 = vpow.pop %v8027
      %v8029 = vmul.f32 %v7911, 1.442695
      %v8030 = vpow.pop %v8029
      %v8031 = vmul.f32 %v7912, 1.442695
      %v8032 = vpow.pop %v8031
      %v8033 = vmul.f32 %v7913, 1.442695
      %v8034 = vpow.pop %v8033
      %v8035 = vmul.f32 %v7914, 1.442695
      %v8036 = vpow.pop %v8035
      %v8037 = vmul.f32 %v7915, 1.442695
      %v8038 = vpow.pop %v8037
      %v8039 = vmul.f32 %v7916, 1.442695
      %v8040 = vpow.pop %v8039
      %v8041 = vmul.f32 %v7917, 1.442695
      %v8042 = vpow.pop %v8041
      %v8043 = vmul.f32 %v7918, 1.442695
      %v8044 = vpow.pop %v8043
      %v8045 = vmul.f32 %v7919, 1.442695
      %v8046 = vpow.pop %v8045
      %v8047 = vmul.f32 %v7920, 1.442695
      %v8048 = vpow.pop %v8047
      %v8049 = vadd.f32 %v7922, 1.0
      %v8050 = vadd.f32 %v7924, 1.0
      %v8051 = vadd.f32 %v7926, 1.0
      %v8052 = vadd.f32 %v7928, 1.0
      %v8053 = vadd.f32 %v7930, 1.0
      %v8054 = vadd.f32 %v7932, 1.0
      %v8055 = vadd.f32 %v7934, 1.0
      %v8056 = vadd.f32 %v7936, 1.0
      %v8057 = vadd.f32 %v7938, 1.0
      %v8058 = vadd.f32 %v7940, 1.0
      %v8059 = vadd.f32 %v7942, 1.0
      %v8060 = vadd.f32 %v7944, 1.0
      %v8061 = vadd.f32 %v7946, 1.0
      %v8062 = vadd.f32 %v7948, 1.0
      %v8063 = vadd.f32 %v7950, 1.0
      %v8064 = vadd.f32 %v7952, 1.0
      %v8065 = vadd.f32 %v7954, 1.0
      %v8066 = vadd.f32 %v7956, 1.0
      %v8067 = vadd.f32 %v7958, 1.0
      %v8068 = vadd.f32 %v7960, 1.0
      %v8069 = vadd.f32 %v7962, 1.0
      %v8070 = vadd.f32 %v7964, 1.0
      %v8071 = vadd.f32 %v7966, 1.0
      %v8072 = vadd.f32 %v7968, 1.0
      %v8073 = vadd.f32 %v7970, 1.0
      %v8074 = vadd.f32 %v7972, 1.0
      %v8075 = vadd.f32 %v7974, 1.0
      %v8076 = vadd.f32 %v7976, 1.0
      %v8077 = vadd.f32 %v7978, 1.0
      %v8078 = vadd.f32 %v7980, 1.0
      %v8079 = vadd.f32 %v7982, 1.0
      %v8080 = vadd.f32 %v7984, 1.0
      %v8081 = vadd.f32 %v7986, 1.0
      %v8082 = vadd.f32 %v7988, 1.0
      %v8083 = vadd.f32 %v7990, 1.0
      %v8084 = vadd.f32 %v7992, 1.0
      %v8085 = vadd.f32 %v7994, 1.0
      %v8086 = vadd.f32 %v7996, 1.0
      %v8087 = vadd.f32 %v7998, 1.0
      %v8088 = vadd.f32 %v8000, 1.0
      %v8089 = vadd.f32 %v8002, 1.0
      %v8090 = vadd.f32 %v8004, 1.0
      %v8091 = vadd.f32 %v8006, 1.0
      %v8092 = vadd.f32 %v8008, 1.0
      %v8093 = vadd.f32 %v8010, 1.0
      %v8094 = vadd.f32 %v8012, 1.0
      %v8095 = vadd.f32 %v8014, 1.0
      %v8096 = vadd.f32 %v8016, 1.0
      %v8097 = vadd.f32 %v8018, 1.0
      %v8098 = vadd.f32 %v8020, 1.0
      %v8099 = vadd.f32 %v8022, 1.0
      %v8100 = vadd.f32 %v8024, 1.0
      %v8101 = vadd.f32 %v8026, 1.0
      %v8102 = vadd.f32 %v8028, 1.0
      %v8103 = vadd.f32 %v8030, 1.0
      %v8104 = vadd.f32 %v8032, 1.0
      %v8105 = vadd.f32 %v8034, 1.0
      %v8106 = vadd.f32 %v8036, 1.0
      %v8107 = vadd.f32 %v8038, 1.0
      %v8108 = vadd.f32 %v8040, 1.0
      %v8109 = vadd.f32 %v8042, 1.0
      %v8110 = vadd.f32 %v8044, 1.0
      %v8111 = vadd.f32 %v8046, 1.0
      %v8112 = vadd.f32 %v8048, 1.0
      %v8113 = vmul.f32 %v8049, %v8049
      %v8114 = vmul.f32 %v8050, %v8050
      %v8115 = vmul.f32 %v8051, %v8051
      %v8116 = vmul.f32 %v8052, %v8052
      %v8117 = vmul.f32 %v8053, %v8053
      %v8118 = vmul.f32 %v8054, %v8054
      %v8119 = vmul.f32 %v8055, %v8055
      %v8120 = vmul.f32 %v8056, %v8056
      %v8121 = vmul.f32 %v8057, %v8057
      %v8122 = vmul.f32 %v8058, %v8058
      %v8123 = vmul.f32 %v8059, %v8059
      %v8124 = vmul.f32 %v8060, %v8060
      %v8125 = vmul.f32 %v8061, %v8061
      %v8126 = vmul.f32 %v8062, %v8062
      %v8127 = vmul.f32 %v8063, %v8063
      %v8128 = vmul.f32 %v8064, %v8064
      %v8129 = vmul.f32 %v8065, %v8065
      %v8130 = vmul.f32 %v8066, %v8066
      %v8131 = vmul.f32 %v8067, %v8067
      %v8132 = vmul.f32 %v8068, %v8068
      %v8133 = vmul.f32 %v8069, %v8069
      %v8134 = vmul.f32 %v8070, %v8070
      %v8135 = vmul.f32 %v8071, %v8071
      %v8136 = vmul.f32 %v8072, %v8072
      %v8137 = vmul.f32 %v8073, %v8073
      %v8138 = vmul.f32 %v8074, %v8074
      %v8139 = vmul.f32 %v8075, %v8075
      %v8140 = vmul.f32 %v8076, %v8076
      %v8141 = vmul.f32 %v8077, %v8077
      %v8142 = vmul.f32 %v8078, %v8078
      %v8143 = vmul.f32 %v8079, %v8079
      %v8144 = vmul.f32 %v8080, %v8080
      %v8145 = vmul.f32 %v8081, %v8081
      %v8146 = vmul.f32 %v8082, %v8082
      %v8147 = vmul.f32 %v8083, %v8083
      %v8148 = vmul.f32 %v8084, %v8084
      %v8149 = vmul.f32 %v8085, %v8085
      %v8150 = vmul.f32 %v8086, %v8086
      %v8151 = vmul.f32 %v8087, %v8087
      %v8152 = vmul.f32 %v8088, %v8088
      %v8153 = vmul.f32 %v8089, %v8089
      %v8154 = vmul.f32 %v8090, %v8090
      %v8155 = vmul.f32 %v8091, %v8091
      %v8156 = vmul.f32 %v8092, %v8092
      %v8157 = vmul.f32 %v8093, %v8093
      %v8158 = vmul.f32 %v8094, %v8094
      %v8159 = vmul.f32 %v8095, %v8095
      %v8160 = vmul.f32 %v8096, %v8096
      %v8161 = vmul.f32 %v8097, %v8097
      %v8162 = vmul.f32 %v8098, %v8098
      %v8163 = vmul.f32 %v8099, %v8099
      %v8164 = vmul.f32 %v8100, %v8100
      %v8165 = vmul.f32 %v8101, %v8101
      %v8166 = vmul.f32 %v8102, %v8102
      %v8167 = vmul.f32 %v8103, %v8103
      %v8168 = vmul.f32 %v8104, %v8104
      %v8169 = vmul.f32 %v8105, %v8105
      %v8170 = vmul.f32 %v8106, %v8106
      %v8171 = vmul.f32 %v8107, %v8107
      %v8172 = vmul.f32 %v8108, %v8108
      %v8173 = vmul.f32 %v8109, %v8109
      %v8174 = vmul.f32 %v8110, %v8110
      %v8175 = vmul.f32 %v8111, %v8111
      %v8176 = vmul.f32 %v8112, %v8112
      %v8177 = vsub.f32 %v8113, 1.0
      %v8178 = vsub.f32 %v8114, 1.0
      %v8179 = vsub.f32 %v8115, 1.0
      %v8180 = vsub.f32 %v8116, 1.0
      %v8181 = vsub.f32 %v8117, 1.0
      %v8182 = vsub.f32 %v8118, 1.0
      %v8183 = vsub.f32 %v8119, 1.0
      %v8184 = vsub.f32 %v8120, 1.0
      %v8185 = vsub.f32 %v8121, 1.0
      %v8186 = vsub.f32 %v8122, 1.0
      %v8187 = vsub.f32 %v8123, 1.0
      %v8188 = vsub.f32 %v8124, 1.0
      %v8189 = vsub.f32 %v8125, 1.0
      %v8190 = vsub.f32 %v8126, 1.0
      %v8191 = vsub.f32 %v8127, 1.0
      %v8192 = vsub.f32 %v8128, 1.0
      %v8193 = vsub.f32 %v8129, 1.0
      %v8194 = vsub.f32 %v8130, 1.0
      %v8195 = vsub.f32 %v8131, 1.0
      %v8196 = vsub.f32 %v8132, 1.0
      %v8197 = vsub.f32 %v8133, 1.0
      %v8198 = vsub.f32 %v8134, 1.0
      %v8199 = vsub.f32 %v8135, 1.0
      %v8200 = vsub.f32 %v8136, 1.0
      %v8201 = vsub.f32 %v8137, 1.0
      %v8202 = vsub.f32 %v8138, 1.0
      %v8203 = vsub.f32 %v8139, 1.0
      %v8204 = vsub.f32 %v8140, 1.0
      %v8205 = vsub.f32 %v8141, 1.0
      %v8206 = vsub.f32 %v8142, 1.0
      %v8207 = vsub.f32 %v8143, 1.0
      %v8208 = vsub.f32 %v8144, 1.0
      %v8209 = vsub.f32 %v8145, 1.0
      %v8210 = vsub.f32 %v8146, 1.0
      %v8211 = vsub.f32 %v8147, 1.0
      %v8212 = vsub.f32 %v8148, 1.0
      %v8213 = vsub.f32 %v8149, 1.0
      %v8214 = vsub.f32 %v8150, 1.0
      %v8215 = vsub.f32 %v8151, 1.0
      %v8216 = vsub.f32 %v8152, 1.0
      %v8217 = vsub.f32 %v8153, 1.0
      %v8218 = vsub.f32 %v8154, 1.0
      %v8219 = vsub.f32 %v8155, 1.0
      %v8220 = vsub.f32 %v8156, 1.0
      %v8221 = vsub.f32 %v8157, 1.0
      %v8222 = vsub.f32 %v8158, 1.0
      %v8223 = vsub.f32 %v8159, 1.0
      %v8224 = vsub.f32 %v8160, 1.0
      %v8225 = vsub.f32 %v8161, 1.0
      %v8226 = vsub.f32 %v8162, 1.0
      %v8227 = vsub.f32 %v8163, 1.0
      %v8228 = vsub.f32 %v8164, 1.0
      %v8229 = vsub.f32 %v8165, 1.0
      %v8230 = vsub.f32 %v8166, 1.0
      %v8231 = vsub.f32 %v8167, 1.0
      %v8232 = vsub.f32 %v8168, 1.0
      %v8233 = vsub.f32 %v8169, 1.0
      %v8234 = vsub.f32 %v8170, 1.0
      %v8235 = vsub.f32 %v8171, 1.0
      %v8236 = vsub.f32 %v8172, 1.0
      %v8237 = vsub.f32 %v8173, 1.0
      %v8238 = vsub.f32 %v8174, 1.0
      %v8239 = vsub.f32 %v8175, 1.0
      %v8240 = vsub.f32 %v8176, 1.0
      %v8241 = vadd.f32 %v8113, 1.0
      %v8242 = vadd.f32 %v8114, 1.0
      %v8243 = vadd.f32 %v8115, 1.0
      %v8244 = vadd.f32 %v8116, 1.0
      %v8245 = vadd.f32 %v8117, 1.0
      %v8246 = vadd.f32 %v8118, 1.0
      %v8247 = vadd.f32 %v8119, 1.0
      %v8248 = vadd.f32 %v8120, 1.0
      %v8249 = vadd.f32 %v8121, 1.0
      %v8250 = vadd.f32 %v8122, 1.0
      %v8251 = vadd.f32 %v8123, 1.0
      %v8252 = vadd.f32 %v8124, 1.0
      %v8253 = vadd.f32 %v8125, 1.0
      %v8254 = vadd.f32 %v8126, 1.0
      %v8255 = vadd.f32 %v8127, 1.0
      %v8256 = vadd.f32 %v8128, 1.0
      %v8257 = vadd.f32 %v8129, 1.0
      %v8258 = vadd.f32 %v8130, 1.0
      %v8259 = vadd.f32 %v8131, 1.0
      %v8260 = vadd.f32 %v8132, 1.0
      %v8261 = vadd.f32 %v8133, 1.0
      %v8262 = vadd.f32 %v8134, 1.0
      %v8263 = vadd.f32 %v8135, 1.0
      %v8264 = vadd.f32 %v8136, 1.0
      %v8265 = vadd.f32 %v8137, 1.0
      %v8266 = vadd.f32 %v8138, 1.0
      %v8267 = vadd.f32 %v8139, 1.0
      %v8268 = vadd.f32 %v8140, 1.0
      %v8269 = vadd.f32 %v8141, 1.0
      %v8270 = vadd.f32 %v8142, 1.0
      %v8271 = vadd.f32 %v8143, 1.0
      %v8272 = vadd.f32 %v8144, 1.0
      %v8273 = vadd.f32 %v8145, 1.0
      %v8274 = vadd.f32 %v8146, 1.0
      %v8275 = vadd.f32 %v8147, 1.0
      %v8276 = vadd.f32 %v8148, 1.0
      %v8277 = vadd.f32 %v8149, 1.0
      %v8278 = vadd.f32 %v8150, 1.0
      %v8279 = vadd.f32 %v8151, 1.0
      %v8280 = vadd.f32 %v8152, 1.0
      %v8281 = vadd.f32 %v8153, 1.0
      %v8282 = vadd.f32 %v8154, 1.0
      %v8283 = vadd.f32 %v8155, 1.0
      %v8284 = vadd.f32 %v8156, 1.0
      %v8285 = vadd.f32 %v8157, 1.0
      %v8286 = vadd.f32 %v8158, 1.0
      %v8287 = vadd.f32 %v8159, 1.0
      %v8288 = vadd.f32 %v8160, 1.0
      %v8289 = vadd.f32 %v8161, 1.0
      %v8290 = vadd.f32 %v8162, 1.0
      %v8291 = vadd.f32 %v8163, 1.0
      %v8292 = vadd.f32 %v8164, 1.0
      %v8293 = vadd.f32 %v8165, 1.0
      %v8294 = vadd.f32 %v8166, 1.0
      %v8295 = vadd.f32 %v8167, 1.0
      %v8296 = vadd.f32 %v8168, 1.0
      %v8297 = vadd.f32 %v8169, 1.0
      %v8298 = vadd.f32 %v8170, 1.0
      %v8299 = vadd.f32 %v8171, 1.0
      %v8300 = vadd.f32 %v8172, 1.0
      %v8301 = vadd.f32 %v8173, 1.0
      %v8302 = vadd.f32 %v8174, 1.0
      %v8303 = vadd.f32 %v8175, 1.0
      %v8304 = vadd.f32 %v8176, 1.0
      %v8305 = vrcp.pop %v8241
      %v8306 = vmul.f32 %v8177, %v8305
      %v8307 = vrcp.pop %v8242
      %v8308 = vmul.f32 %v8178, %v8307
      %v8309 = vrcp.pop %v8243
      %v8310 = vmul.f32 %v8179, %v8309
      %v8311 = vrcp.pop %v8244
      %v8312 = vmul.f32 %v8180, %v8311
      %v8313 = vrcp.pop %v8245
      %v8314 = vmul.f32 %v8181, %v8313
      %v8315 = vrcp.pop %v8246
      %v8316 = vmul.f32 %v8182, %v8315
      %v8317 = vrcp.pop %v8247
      %v8318 = vmul.f32 %v8183, %v8317
      %v8319 = vrcp.pop %v8248
      %v8320 = vmul.f32 %v8184, %v8319
      %v8321 = vrcp.pop %v8249
      %v8322 = vmul.f32 %v8185, %v8321
      %v8323 = vrcp.pop %v8250
      %v8324 = vmul.f32 %v8186, %v8323
      %v8325 = vrcp.pop %v8251
      %v8326 = vmul.f32 %v8187, %v8325
      %v8327 = vrcp.pop %v8252
      %v8328 = vmul.f32 %v8188, %v8327
      %v8329 = vrcp.pop %v8253
      %v8330 = vmul.f32 %v8189, %v8329
      %v8331 = vrcp.pop %v8254
      %v8332 = vmul.f32 %v8190, %v8331
      %v8333 = vrcp.pop %v8255
      %v8334 = vmul.f32 %v8191, %v8333
      %v8335 = vrcp.pop %v8256
      %v8336 = vmul.f32 %v8192, %v8335
      %v8337 = vrcp.pop %v8257
      %v8338 = vmul.f32 %v8193, %v8337
      %v8339 = vrcp.pop %v8258
      %v8340 = vmul.f32 %v8194, %v8339
      %v8341 = vrcp.pop %v8259
      %v8342 = vmul.f32 %v8195, %v8341
      %v8343 = vrcp.pop %v8260
      %v8344 = vmul.f32 %v8196, %v8343
      %v8345 = vrcp.pop %v8261
      %v8346 = vmul.f32 %v8197, %v8345
      %v8347 = vrcp.pop %v8262
      %v8348 = vmul.f32 %v8198, %v8347
      %v8349 = vrcp.pop %v8263
      %v8350 = vmul.f32 %v8199, %v8349
      %v8351 = vrcp.pop %v8264
      %v8352 = vmul.f32 %v8200, %v8351
      %v8353 = vrcp.pop %v8265
      %v8354 = vmul.f32 %v8201, %v8353
      %v8355 = vrcp.pop %v8266
      %v8356 = vmul.f32 %v8202, %v8355
      %v8357 = vrcp.pop %v8267
      %v8358 = vmul.f32 %v8203, %v8357
      %v8359 = vrcp.pop %v8268
      %v8360 = vmul.f32 %v8204, %v8359
      %v8361 = vrcp.pop %v8269
      %v8362 = vmul.f32 %v8205, %v8361
      %v8363 = vrcp.pop %v8270
      %v8364 = vmul.f32 %v8206, %v8363
      %v8365 = vrcp.pop %v8271
      %v8366 = vmul.f32 %v8207, %v8365
      %v8367 = vrcp.pop %v8272
      %v8368 = vmul.f32 %v8208, %v8367
      %v8369 = vrcp.pop %v8273
      %v8370 = vmul.f32 %v8209, %v8369
      %v8371 = vrcp.pop %v8274
      %v8372 = vmul.f32 %v8210, %v8371
      %v8373 = vrcp.pop %v8275
      %v8374 = vmul.f32 %v8211, %v8373
      %v8375 = vrcp.pop %v8276
      %v8376 = vmul.f32 %v8212, %v8375
      %v8377 = vrcp.pop %v8277
      %v8378 = vmul.f32 %v8213, %v8377
      %v8379 = vrcp.pop %v8278
      %v8380 = vmul.f32 %v8214, %v8379
      %v8381 = vrcp.pop %v8279
      %v8382 = vmul.f32 %v8215, %v8381
      %v8383 = vrcp.pop %v8280
      %v8384 = vmul.f32 %v8216, %v8383
      %v8385 = vrcp.pop %v8281
      %v8386 = vmul.f32 %v8217, %v8385
      %v8387 = vrcp.pop %v8282
      %v8388 = vmul.f32 %v8218, %v8387
      %v8389 = vrcp.pop %v8283
      %v8390 = vmul.f32 %v8219, %v8389
      %v8391 = vrcp.pop %v8284
      %v8392 = vmul.f32 %v8220, %v8391
      %v8393 = vrcp.pop %v8285
      %v8394 = vmul.f32 %v8221, %v8393
      %v8395 = vrcp.pop %v8286
      %v8396 = vmul.f32 %v8222, %v8395
      %v8397 = vrcp.pop %v8287
      %v8398 = vmul.f32 %v8223, %v8397
      %v8399 = vrcp.pop %v8288
      %v8400 = vmul.f32 %v8224, %v8399
      %v8401 = vrcp.pop %v8289
      %v8402 = vmul.f32 %v8225, %v8401
      %v8403 = vrcp.pop %v8290
      %v8404 = vmul.f32 %v8226, %v8403
      %v8405 = vrcp.pop %v8291
      %v8406 = vmul.f32 %v8227, %v8405
      %v8407 = vrcp.pop %v8292
      %v8408 = vmul.f32 %v8228, %v8407
      %v8409 = vrcp.pop %v8293
      %v8410 = vmul.f32 %v8229, %v8409
      %v8411 = vrcp.pop %v8294
      %v8412 = vmul.f32 %v8230, %v8411
      %v8413 = vrcp.pop %v8295
      %v8414 = vmul.f32 %v8231, %v8413
      %v8415 = vrcp.pop %v8296
      %v8416 = vmul.f32 %v8232, %v8415
      %v8417 = vrcp.pop %v8297
      %v8418 = vmul.f32 %v8233, %v8417
      %v8419 = vrcp.pop %v8298
      %v8420 = vmul.f32 %v8234, %v8419
      %v8421 = vrcp.pop %v8299
      %v8422 = vmul.f32 %v8235, %v8421
      %v8423 = vrcp.pop %v8300
      %v8424 = vmul.f32 %v8236, %v8423
      %v8425 = vrcp.pop %v8301
      %v8426 = vmul.f32 %v8237, %v8425
      %v8427 = vrcp.pop %v8302
      %v8428 = vmul.f32 %v8238, %v8427
      %v8429 = vrcp.pop %v8303
      %v8430 = vmul.f32 %v8239, %v8429
      %v8431 = vrcp.pop %v8304
      %v8432 = vmul.f32 %v8240, %v8431
      %vm8433 = vcmp.gt.f32.partialorder %v7699, 20.0
      %vm8434 = vcmp.gt.f32.partialorder %v7701, 20.0
      %vm8435 = vcmp.gt.f32.partialorder %v7703, 20.0
      %vm8436 = vcmp.gt.f32.partialorder %v7705, 20.0
      %vm8437 = vcmp.gt.f32.partialorder %v7709, 20.0
      %vm8438 = vcmp.gt.f32.partialorder %v7711, 20.0
      %vm8439 = vcmp.gt.f32.partialorder %v7713, 20.0
      %vm8440 = vcmp.gt.f32.partialorder %v7715, 20.0
      %vm8441 = vcmp.gt.f32.partialorder %v7719, 20.0
      %vm8442 = vcmp.gt.f32.partialorder %v7721, 20.0
      %vm8443 = vcmp.gt.f32.partialorder %v7723, 20.0
      %vm8444 = vcmp.gt.f32.partialorder %v7725, 20.0
      %vm8445 = vcmp.gt.f32.partialorder %v7729, 20.0
      %vm8446 = vcmp.gt.f32.partialorder %v7731, 20.0
      %vm8447 = vcmp.gt.f32.partialorder %v7733, 20.0
      %vm8448 = vcmp.gt.f32.partialorder %v7735, 20.0
      %vm8449 = vcmp.gt.f32.partialorder %v7739, 20.0
      %vm8450 = vcmp.gt.f32.partialorder %v7741, 20.0
      %vm8451 = vcmp.gt.f32.partialorder %v7743, 20.0
      %vm8452 = vcmp.gt.f32.partialorder %v7745, 20.0
      %vm8453 = vcmp.gt.f32.partialorder %v7749, 20.0
      %vm8454 = vcmp.gt.f32.partialorder %v7751, 20.0
      %vm8455 = vcmp.gt.f32.partialorder %v7753, 20.0
      %vm8456 = vcmp.gt.f32.partialorder %v7755, 20.0
      %vm8457 = vcmp.gt.f32.partialorder %v7759, 20.0
      %vm8458 = vcmp.gt.f32.partialorder %v7761, 20.0
      %vm8459 = vcmp.gt.f32.partialorder %v7763, 20.0
      %vm8460 = vcmp.gt.f32.partialorder %v7765, 20.0
      %vm8461 = vcmp.gt.f32.partialorder %v7769, 20.0
      %vm8462 = vcmp.gt.f32.partialorder %v7771, 20.0
      %vm8463 = vcmp.gt.f32.partialorder %v7773, 20.0
      %vm8464 = vcmp.gt.f32.partialorder %v7775, 20.0
      %vm8465 = vcmp.gt.f32.partialorder %v7779, 20.0
      %vm8466 = vcmp.gt.f32.partialorder %v7781, 20.0
      %vm8467 = vcmp.gt.f32.partialorder %v7783, 20.0
      %vm8468 = vcmp.gt.f32.partialorder %v7785, 20.0
      %vm8469 = vcmp.gt.f32.partialorder %v7789, 20.0
      %vm8470 = vcmp.gt.f32.partialorder %v7791, 20.0
      %vm8471 = vcmp.gt.f32.partialorder %v7793, 20.0
      %vm8472 = vcmp.gt.f32.partialorder %v7795, 20.0
      %vm8473 = vcmp.gt.f32.partialorder %v7799, 20.0
      %vm8474 = vcmp.gt.f32.partialorder %v7801, 20.0
      %vm8475 = vcmp.gt.f32.partialorder %v7803, 20.0
      %vm8476 = vcmp.gt.f32.partialorder %v7805, 20.0
      %vm8477 = vcmp.gt.f32.partialorder %v7809, 20.0
      %vm8478 = vcmp.gt.f32.partialorder %v7811, 20.0
      %vm8479 = vcmp.gt.f32.partialorder %v7813, 20.0
      %vm8480 = vcmp.gt.f32.partialorder %v7815, 20.0
      %vm8481 = vcmp.gt.f32.partialorder %v7819, 20.0
      %vm8482 = vcmp.gt.f32.partialorder %v7821, 20.0
      %vm8483 = vcmp.gt.f32.partialorder %v7823, 20.0
      %vm8484 = vcmp.gt.f32.partialorder %v7825, 20.0
      %vm8485 = vcmp.gt.f32.partialorder %v7829, 20.0
      %vm8486 = vcmp.gt.f32.partialorder %v7831, 20.0
      %vm8487 = vcmp.gt.f32.partialorder %v7833, 20.0
      %vm8488 = vcmp.gt.f32.partialorder %v7835, 20.0
      %vm8489 = vcmp.gt.f32.partialorder %v7839, 20.0
      %vm8490 = vcmp.gt.f32.partialorder %v7841, 20.0
      %vm8491 = vcmp.gt.f32.partialorder %v7843, 20.0
      %vm8492 = vcmp.gt.f32.partialorder %v7845, 20.0
      %vm8493 = vcmp.gt.f32.partialorder %v7849, 20.0
      %vm8494 = vcmp.gt.f32.partialorder %v7851, 20.0
      %vm8495 = vcmp.gt.f32.partialorder %v7853, 20.0
      %vm8496 = vcmp.gt.f32.partialorder %v7855, 20.0
      %v8497 = vmul.f32 %v7699, %v8306
      %v8498 = vmul.f32 %v7701, %v8308
      %v8499 = vmul.f32 %v7703, %v8310
      %v8500 = vmul.f32 %v7705, %v8312
      %v8501 = vmul.f32 %v7709, %v8314
      %v8502 = vmul.f32 %v7711, %v8316
      %v8503 = vmul.f32 %v7713, %v8318
      %v8504 = vmul.f32 %v7715, %v8320
      %v8505 = vmul.f32 %v7719, %v8322
      %v8506 = vmul.f32 %v7721, %v8324
      %v8507 = vmul.f32 %v7723, %v8326
      %v8508 = vmul.f32 %v7725, %v8328
      %v8509 = vmul.f32 %v7729, %v8330
      %v8510 = vmul.f32 %v7731, %v8332
      %v8511 = vmul.f32 %v7733, %v8334
      %v8512 = vmul.f32 %v7735, %v8336
      %v8513 = vmul.f32 %v7739, %v8338
      %v8514 = vmul.f32 %v7741, %v8340
      %v8515 = vmul.f32 %v7743, %v8342
      %v8516 = vmul.f32 %v7745, %v8344
      %v8517 = vmul.f32 %v7749, %v8346
      %v8518 = vmul.f32 %v7751, %v8348
      %v8519 = vmul.f32 %v7753, %v8350
      %v8520 = vmul.f32 %v7755, %v8352
      %v8521 = vmul.f32 %v7759, %v8354
      %v8522 = vmul.f32 %v7761, %v8356
      %v8523 = vmul.f32 %v7763, %v8358
      %v8524 = vmul.f32 %v7765, %v8360
      %v8525 = vmul.f32 %v7769, %v8362
      %v8526 = vmul.f32 %v7771, %v8364
      %v8527 = vmul.f32 %v7773, %v8366
      %v8528 = vmul.f32 %v7775, %v8368
      %v8529 = vmul.f32 %v7779, %v8370
      %v8530 = vmul.f32 %v7781, %v8372
      %v8531 = vmul.f32 %v7783, %v8374
      %v8532 = vmul.f32 %v7785, %v8376
      %v8533 = vmul.f32 %v7789, %v8378
      %v8534 = vmul.f32 %v7791, %v8380
      %v8535 = vmul.f32 %v7793, %v8382
      %v8536 = vmul.f32 %v7795, %v8384
      %v8537 = vmul.f32 %v7799, %v8386
      %v8538 = vmul.f32 %v7801, %v8388
      %v8539 = vmul.f32 %v7803, %v8390
      %v8540 = vmul.f32 %v7805, %v8392
      %v8541 = vmul.f32 %v7809, %v8394
      %v8542 = vmul.f32 %v7811, %v8396
      %v8543 = vmul.f32 %v7813, %v8398
      %v8544 = vmul.f32 %v7815, %v8400
      %v8545 = vmul.f32 %v7819, %v8402
      %v8546 = vmul.f32 %v7821, %v8404
      %v8547 = vmul.f32 %v7823, %v8406
      %v8548 = vmul.f32 %v7825, %v8408
      %v8549 = vmul.f32 %v7829, %v8410
      %v8550 = vmul.f32 %v7831, %v8412
      %v8551 = vmul.f32 %v7833, %v8414
      %v8552 = vmul.f32 %v7835, %v8416
      %v8553 = vmul.f32 %v7839, %v8418
      %v8554 = vmul.f32 %v7841, %v8420
      %v8555 = vmul.f32 %v7843, %v8422
      %v8556 = vmul.f32 %v7845, %v8424
      %v8557 = vmul.f32 %v7849, %v8426
      %v8558 = vmul.f32 %v7851, %v8428
      %v8559 = vmul.f32 %v7853, %v8430
      %v8560 = vmul.f32 %v7855, %v8432
      %v8561 = vsel %vm8433, %v7699, %v8497
      %v8562 = vsel %vm8434, %v7701, %v8498
      %v8563 = vsel %vm8435, %v7703, %v8499
      %v8564 = vsel %vm8436, %v7705, %v8500
      %v8565 = vsel %vm8437, %v7709, %v8501
      %v8566 = vsel %vm8438, %v7711, %v8502
      %v8567 = vsel %vm8439, %v7713, %v8503
      %v8568 = vsel %vm8440, %v7715, %v8504
      %v8569 = vsel %vm8441, %v7719, %v8505
      %v8570 = vsel %vm8442, %v7721, %v8506
      %v8571 = vsel %vm8443, %v7723, %v8507
      %v8572 = vsel %vm8444, %v7725, %v8508
      %v8573 = vsel %vm8445, %v7729, %v8509
      %v8574 = vsel %vm8446, %v7731, %v8510
      %v8575 = vsel %vm8447, %v7733, %v8511
      %v8576 = vsel %vm8448, %v7735, %v8512
      %v8577 = vsel %vm8449, %v7739, %v8513
      %v8578 = vsel %vm8450, %v7741, %v8514
      %v8579 = vsel %vm8451, %v7743, %v8515
      %v8580 = vsel %vm8452, %v7745, %v8516
      %v8581 = vsel %vm8453, %v7749, %v8517
      %v8582 = vsel %vm8454, %v7751, %v8518
      %v8583 = vsel %vm8455, %v7753, %v8519
      %v8584 = vsel %vm8456, %v7755, %v8520
      %v8585 = vsel %vm8457, %v7759, %v8521
      %v8586 = vsel %vm8458, %v7761, %v8522
      %v8587 = vsel %vm8459, %v7763, %v8523
      %v8588 = vsel %vm8460, %v7765, %v8524
      %v8589 = vsel %vm8461, %v7769, %v8525
      %v8590 = vsel %vm8462, %v7771, %v8526
      %v8591 = vsel %vm8463, %v7773, %v8527
      %v8592 = vsel %vm8464, %v7775, %v8528
      %v8593 = vsel %vm8465, %v7779, %v8529
      %v8594 = vsel %vm8466, %v7781, %v8530
      %v8595 = vsel %vm8467, %v7783, %v8531
      %v8596 = vsel %vm8468, %v7785, %v8532
      %v8597 = vsel %vm8469, %v7789, %v8533
      %v8598 = vsel %vm8470, %v7791, %v8534
      %v8599 = vsel %vm8471, %v7793, %v8535
      %v8600 = vsel %vm8472, %v7795, %v8536
      %v8601 = vsel %vm8473, %v7799, %v8537
      %v8602 = vsel %vm8474, %v7801, %v8538
      %v8603 = vsel %vm8475, %v7803, %v8539
      %v8604 = vsel %vm8476, %v7805, %v8540
      %v8605 = vsel %vm8477, %v7809, %v8541
      %v8606 = vsel %vm8478, %v7811, %v8542
      %v8607 = vsel %vm8479, %v7813, %v8543
      %v8608 = vsel %vm8480, %v7815, %v8544
      %v8609 = vsel %vm8481, %v7819, %v8545
      %v8610 = vsel %vm8482, %v7821, %v8546
      %v8611 = vsel %vm8483, %v7823, %v8547
      %v8612 = vsel %vm8484, %v7825, %v8548
      %v8613 = vsel %vm8485, %v7829, %v8549
      %v8614 = vsel %vm8486, %v7831, %v8550
      %v8615 = vsel %vm8487, %v7833, %v8551
      %v8616 = vsel %vm8488, %v7835, %v8552
      %v8617 = vsel %vm8489, %v7839, %v8553
      %v8618 = vsel %vm8490, %v7841, %v8554
      %v8619 = vsel %vm8491, %v7843, %v8555
      %v8620 = vsel %vm8492, %v7845, %v8556
      %v8621 = vsel %vm8493, %v7849, %v8557
      %v8622 = vsel %vm8494, %v7851, %v8558
      %v8623 = vsel %vm8495, %v7853, %v8559
      %v8624 = vsel %vm8496, %v7855, %v8560
      %v8625 = vpack.c.bf16 %v8563, %v8561
      %v8626 = vpack.c.bf16 %v8564, %v8562
      %v8627 = vpack.c.bf16 %v8567, %v8565
      %v8628 = vpack.c.bf16 %v8568, %v8566
      %v8629 = vpack.c.bf16 %v8571, %v8569
      %v8630 = vpack.c.bf16 %v8572, %v8570
      %v8631 = vpack.c.bf16 %v8575, %v8573
      %v8632 = vpack.c.bf16 %v8576, %v8574
      %v8633 = vpack.c.bf16 %v8579, %v8577
      %v8634 = vpack.c.bf16 %v8580, %v8578
      %v8635 = vpack.c.bf16 %v8583, %v8581
      %v8636 = vpack.c.bf16 %v8584, %v8582
      %v8637 = vpack.c.bf16 %v8587, %v8585
      %v8638 = vpack.c.bf16 %v8588, %v8586
      %v8639 = vpack.c.bf16 %v8591, %v8589
      %v8640 = vpack.c.bf16 %v8592, %v8590
      %v8641 = vpack.c.bf16 %v8595, %v8593
      %v8642 = vpack.c.bf16 %v8596, %v8594
      %v8643 = vpack.c.bf16 %v8599, %v8597
      %v8644 = vpack.c.bf16 %v8600, %v8598
      %v8645 = vpack.c.bf16 %v8603, %v8601
      %v8646 = vpack.c.bf16 %v8604, %v8602
      %v8647 = vpack.c.bf16 %v8607, %v8605
      %v8648 = vpack.c.bf16 %v8608, %v8606
      %v8649 = vpack.c.bf16 %v8611, %v8609
      %v8650 = vpack.c.bf16 %v8612, %v8610
      %v8651 = vpack.c.bf16 %v8615, %v8613
      %v8652 = vpack.c.bf16 %v8616, %v8614
      %v8653 = vpack.c.bf16 %v8619, %v8617
      %v8654 = vpack.c.bf16 %v8620, %v8618
      %v8655 = vpack.c.bf16 %v8623, %v8621
      %v8656 = vpack.c.bf16 %v8624, %v8622
      %v8657 = vld [vmem:[%s18] sm:$0xf]
      %v8658 = vld [vmem:[%s18 + $0x4] sm:$0xf]
      %v8659 = vld [vmem:[%s18 + $0x8] sm:$0xf]
      %v8660 = vld [vmem:[%s18 + $0xc] sm:$0xf]
      %v8661 = vld [vmem:[%s18 + $0x10] sm:$0xf]
      %v8662 = vld [vmem:[%s18 + $0x14] sm:$0xf]
      %v8663 = vld [vmem:[%s18 + $0x18] sm:$0xf]
      %v8664 = vld [vmem:[%s18 + $0x1c] sm:$0xf]
      %v8665 = vld [vmem:[%s18 + $0x20] sm:$0xf]
      %v8666 = vld [vmem:[%s18 + $0x24] sm:$0xf]
      %v8667 = vld [vmem:[%s18 + $0x28] sm:$0xf]
      %v8668 = vld [vmem:[%s18 + $0x2c] sm:$0xf]
      %v8669 = vld [vmem:[%s18 + $0x30] sm:$0xf]
      %v8670 = vld [vmem:[%s18 + $0x34] sm:$0xf]
      %v8671 = vld [vmem:[%s18 + $0x38] sm:$0xf]
      %v8672 = vld [vmem:[%s18 + $0x3c] sm:$0xf]
      %v8673 = vld [vmem:[%s18 + $0x40] sm:$0xf]
      %v8674 = vld [vmem:[%s18 + $0x44] sm:$0xf]
      %v8675 = vld [vmem:[%s18 + $0x48] sm:$0xf]
      %v8676 = vld [vmem:[%s18 + $0x4c] sm:$0xf]
      %v8677 = vld [vmem:[%s18 + $0x50] sm:$0xf]
      %v8678 = vld [vmem:[%s18 + $0x54] sm:$0xf]
      %v8679 = vld [vmem:[%s18 + $0x58] sm:$0xf]
      %v8680 = vld [vmem:[%s18 + $0x5c] sm:$0xf]
      %v8681 = vld [vmem:[%s18 + $0x60] sm:$0xf]
      %v8682 = vld [vmem:[%s18 + $0x64] sm:$0xf]
      %v8683 = vld [vmem:[%s18 + $0x68] sm:$0xf]
      %v8684 = vld [vmem:[%s18 + $0x6c] sm:$0xf]
      %v8685 = vld [vmem:[%s18 + $0x70] sm:$0xf]
      %v8686 = vld [vmem:[%s18 + $0x74] sm:$0xf]
      %v8687 = vld [vmem:[%s18 + $0x78] sm:$0xf]
      %v8688 = vld [vmem:[%s18 + $0x7c] sm:$0xf]
      %v8689 = vld [vmem:[%s19] sm:$0x1]
      %v8691 = vlaneseq
      %v8692 = vshrl.u32 %v8691, 7
      %v8693 = vsub.s32 0, %v8692
      %v8694 = vrot.slane %v8689, %v8693
      %v8728 = vunpack.c.l.b16 %v8657
      %v8729 = vunpack.c.l.b16 %v8658
      %v8730 = vunpack.c.l.b16 %v8659
      %v8731 = vunpack.c.l.b16 %v8660
      %v8732 = vunpack.c.l.b16 %v8661
      %v8733 = vunpack.c.l.b16 %v8662
      %v8734 = vunpack.c.l.b16 %v8663
      %v8735 = vunpack.c.l.b16 %v8664
      %v8736 = vunpack.c.l.b16 %v8665
      %v8737 = vunpack.c.l.b16 %v8666
      %v8738 = vunpack.c.l.b16 %v8667
      %v8739 = vunpack.c.l.b16 %v8668
      %v8740 = vunpack.c.l.b16 %v8669
      %v8741 = vunpack.c.l.b16 %v8670
      %v8742 = vunpack.c.l.b16 %v8671
      %v8743 = vunpack.c.l.b16 %v8672
      %v8744 = vunpack.c.l.b16 %v8673
      %v8745 = vunpack.c.l.b16 %v8674
      %v8746 = vunpack.c.l.b16 %v8675
      %v8747 = vunpack.c.l.b16 %v8676
      %v8748 = vunpack.c.l.b16 %v8677
      %v8749 = vunpack.c.l.b16 %v8678
      %v8750 = vunpack.c.l.b16 %v8679
      %v8751 = vunpack.c.l.b16 %v8680
      %v8752 = vunpack.c.l.b16 %v8681
      %v8753 = vunpack.c.l.b16 %v8682
      %v8754 = vunpack.c.l.b16 %v8683
      %v8755 = vunpack.c.l.b16 %v8684
      %v8756 = vunpack.c.l.b16 %v8685
      %v8757 = vunpack.c.l.b16 %v8686
      %v8758 = vunpack.c.l.b16 %v8687
      %v8759 = vunpack.c.l.b16 %v8688
      %v8760 = vpack.c.b16 %v8729, %v8728
      %v8761 = vpack.c.b16 %v8731, %v8730
      %v8762 = vpack.c.b16 %v8733, %v8732
      %v8763 = vpack.c.b16 %v8735, %v8734
      %v8764 = vpack.c.b16 %v8737, %v8736
      %v8765 = vpack.c.b16 %v8739, %v8738
      %v8766 = vpack.c.b16 %v8741, %v8740
      %v8767 = vpack.c.b16 %v8743, %v8742
      %v8768 = vpack.c.b16 %v8745, %v8744
      %v8769 = vpack.c.b16 %v8747, %v8746
      %v8770 = vpack.c.b16 %v8749, %v8748
      %v8771 = vpack.c.b16 %v8751, %v8750
      %v8772 = vpack.c.b16 %v8753, %v8752
      %v8773 = vpack.c.b16 %v8755, %v8754
      %v8774 = vpack.c.b16 %v8757, %v8756
      %v8775 = vpack.c.b16 %v8759, %v8758
      %8792 = vmatprep.subr.bf16.mxu0 0
      %8793 = vmatpush1.bf16.msra.mxu0 %v8767
      %8794 = vmatprep.subr.bf16.mxu0 0
      %8795 = vmatpush1.bf16.msra.mxu0 %v8766
      %8796 = vmatprep.subr.bf16.mxu0 0
      %8797 = vmatpush1.bf16.msra.mxu0 %v8765
      %8798 = vmatprep.subr.bf16.mxu0 0
      %8799 = vmatpush1.bf16.msra.mxu0 %v8764
      %8800 = vmatprep.subr.bf16.mxu0 0
      %8801 = vmatpush1.bf16.msra.mxu0 %v8763
      %8802 = vmatprep.subr.bf16.mxu0 0
      %8803 = vmatpush1.bf16.msra.mxu0 %v8762
      %8804 = vmatprep.subr.bf16.mxu0 0
      %8805 = vmatpush1.bf16.msra.mxu0 %v8761
      %8806 = vmatprep.subr.bf16.mxu0 0
      %8807 = vmatpush1.bf16.msra.mxu0 %v8760
      %8808 = vmatprep.subr.bf16.mxu0 0
      %8809 = vmatpush2.bf16.msra.mxu0 %v8775
      %8810 = vmatprep.subr.bf16.mxu0 0
      %8811 = vmatpush2.bf16.msra.mxu0 %v8774
      %8812 = vmatprep.subr.bf16.mxu0 0
      %8813 = vmatpush2.bf16.msra.mxu0 %v8773
      %8814 = vmatprep.subr.bf16.mxu0 0
      %8815 = vmatpush2.bf16.msra.mxu0 %v8772
      %8816 = vmatprep.subr.bf16.mxu0 0
      %8817 = vmatpush2.bf16.msra.mxu0 %v8771
      %8818 = vmatprep.subr.bf16.mxu0 0
      %8819 = vmatpush2.bf16.msra.mxu0 %v8770
      %8820 = vmatprep.subr.bf16.mxu0 0
      %8821 = vmatpush2.bf16.msra.mxu0 %v8769
      %8822 = vmatprep.subr.bf16.mxu0 0
      %8823 = vmatpush2.bf16.msra.mxu0 %v8768
      %8824 = vmatprep.mubr.bf16.mxu0 %v8626
      %8825 = vmatmul.mubr.bf16.gmra.mxu0 %v8625
      %v8826 = vpop.f32.mrf.mxu0
      %v8827 = vadd.f32 %v8694, %v8826
      %v8828 = vpop.f32.mrf.mxu0
      %v8829 = vpop.f32.mrf.mxu0
      %v8830 = vadd.f32 %v8694, %v8829
      %v8831 = vpop.f32.mrf.mxu0
      %8832 = vmatprep.mubr.bf16.mxu0 %v8628
      %8833 = vmatmul.mubr.bf16.gmra.mxu0 %v8627
      %v8834 = vpop.f32.mrf.mxu0
      %v8835 = vadd.f32 %v8694, %v8834
      %v8836 = vpop.f32.mrf.mxu0
      %v8837 = vpop.f32.mrf.mxu0
      %v8838 = vadd.f32 %v8694, %v8837
      %v8839 = vpop.f32.mrf.mxu0
      %8840 = vmatprep.mubr.bf16.mxu0 %v8630
      %8841 = vmatmul.mubr.bf16.gmra.mxu0 %v8629
      %v8842 = vpop.f32.mrf.mxu0
      %v8843 = vadd.f32 %v8694, %v8842
      %v8844 = vpop.f32.mrf.mxu0
      %v8845 = vpop.f32.mrf.mxu0
      %v8846 = vadd.f32 %v8694, %v8845
      %v8847 = vpop.f32.mrf.mxu0
      %8848 = vmatprep.mubr.bf16.mxu0 %v8632
      %8849 = vmatmul.mubr.bf16.gmra.mxu0 %v8631
      %v8850 = vpop.f32.mrf.mxu0
      %v8851 = vadd.f32 %v8694, %v8850
      %v8852 = vpop.f32.mrf.mxu0
      %v8853 = vpop.f32.mrf.mxu0
      %v8854 = vadd.f32 %v8694, %v8853
      %v8855 = vpop.f32.mrf.mxu0
      %8856 = vmatprep.mubr.bf16.mxu0 %v8634
      %8857 = vmatmul.mubr.bf16.gmra.mxu0 %v8633
      %v8858 = vpop.f32.mrf.mxu0
      %v8859 = vadd.f32 %v8694, %v8858
      %v8860 = vpop.f32.mrf.mxu0
      %v8861 = vpop.f32.mrf.mxu0
      %v8862 = vadd.f32 %v8694, %v8861
      %v8863 = vpop.f32.mrf.mxu0
      %8864 = vmatprep.mubr.bf16.mxu0 %v8636
      %8865 = vmatmul.mubr.bf16.gmra.mxu0 %v8635
      %v8866 = vpop.f32.mrf.mxu0
      %v8867 = vadd.f32 %v8694, %v8866
      %v8868 = vpop.f32.mrf.mxu0
      %v8869 = vpop.f32.mrf.mxu0
      %v8870 = vadd.f32 %v8694, %v8869
      %v8871 = vpop.f32.mrf.mxu0
      %8872 = vmatprep.mubr.bf16.mxu0 %v8638
      %8873 = vmatmul.mubr.bf16.gmra.mxu0 %v8637
      %v8874 = vpop.f32.mrf.mxu0
      %v8875 = vadd.f32 %v8694, %v8874
      %v8876 = vpop.f32.mrf.mxu0
      %v8877 = vpop.f32.mrf.mxu0
      %v8878 = vadd.f32 %v8694, %v8877
      %v8879 = vpop.f32.mrf.mxu0
      %8880 = vmatprep.mubr.bf16.mxu0 %v8640
      %8881 = vmatmul.mubr.bf16.gmra.mxu0 %v8639
      %v8882 = vpop.f32.mrf.mxu0
      %v8883 = vadd.f32 %v8694, %v8882
      %v8884 = vpop.f32.mrf.mxu0
      %v8885 = vpop.f32.mrf.mxu0
      %v8886 = vadd.f32 %v8694, %v8885
      %v8887 = vpop.f32.mrf.mxu0
      %8888 = vmatprep.mubr.bf16.mxu0 %v8642
      %8889 = vmatmul.mubr.bf16.gmra.mxu0 %v8641
      %v8890 = vpop.f32.mrf.mxu0
      %v8891 = vadd.f32 %v8694, %v8890
      %v8892 = vpop.f32.mrf.mxu0
      %v8893 = vpop.f32.mrf.mxu0
      %v8894 = vadd.f32 %v8694, %v8893
      %v8895 = vpop.f32.mrf.mxu0
      %8896 = vmatprep.mubr.bf16.mxu0 %v8644
      %8897 = vmatmul.mubr.bf16.gmra.mxu0 %v8643
      %v8898 = vpop.f32.mrf.mxu0
      %v8899 = vadd.f32 %v8694, %v8898
      %v8900 = vpop.f32.mrf.mxu0
      %v8901 = vpop.f32.mrf.mxu0
      %v8902 = vadd.f32 %v8694, %v8901
      %v8903 = vpop.f32.mrf.mxu0
      %8904 = vmatprep.mubr.bf16.mxu0 %v8646
      %8905 = vmatmul.mubr.bf16.gmra.mxu0 %v8645
      %v8906 = vpop.f32.mrf.mxu0
      %v8907 = vadd.f32 %v8694, %v8906
      %v8908 = vpop.f32.mrf.mxu0
      %v8909 = vpop.f32.mrf.mxu0
      %v8910 = vadd.f32 %v8694, %v8909
      %v8911 = vpop.f32.mrf.mxu0
      %8912 = vmatprep.mubr.bf16.mxu0 %v8648
      %8913 = vmatmul.mubr.bf16.gmra.mxu0 %v8647
      %v8914 = vpop.f32.mrf.mxu0
      %v8915 = vadd.f32 %v8694, %v8914
      %v8916 = vpop.f32.mrf.mxu0
      %v8917 = vpop.f32.mrf.mxu0
      %v8918 = vadd.f32 %v8694, %v8917
      %v8919 = vpop.f32.mrf.mxu0
      %8920 = vmatprep.mubr.bf16.mxu0 %v8650
      %8921 = vmatmul.mubr.bf16.gmra.mxu0 %v8649
      %v8922 = vpop.f32.mrf.mxu0
      %v8923 = vadd.f32 %v8694, %v8922
      %v8924 = vpop.f32.mrf.mxu0
      %v8925 = vpop.f32.mrf.mxu0
      %v8926 = vadd.f32 %v8694, %v8925
      %v8927 = vpop.f32.mrf.mxu0
      %8928 = vmatprep.mubr.bf16.mxu0 %v8652
      %8929 = vmatmul.mubr.bf16.gmra.mxu0 %v8651
      %v8930 = vpop.f32.mrf.mxu0
      %v8931 = vadd.f32 %v8694, %v8930
      %v8932 = vpop.f32.mrf.mxu0
      %v8933 = vpop.f32.mrf.mxu0
      %v8934 = vadd.f32 %v8694, %v8933
      %v8935 = vpop.f32.mrf.mxu0
      %8936 = vmatprep.mubr.bf16.mxu0 %v8654
      %8937 = vmatmul.mubr.bf16.gmra.mxu0 %v8653
      %v8938 = vpop.f32.mrf.mxu0
      %v8939 = vadd.f32 %v8694, %v8938
      %v8940 = vpop.f32.mrf.mxu0
      %v8941 = vpop.f32.mrf.mxu0
      %v8942 = vadd.f32 %v8694, %v8941
      %v8943 = vpop.f32.mrf.mxu0
      %8944 = vmatprep.mubr.bf16.mxu0 %v8656
      %8945 = vmatmul.mubr.bf16.gmra.mxu0 %v8655
      %v8946 = vpop.f32.mrf.mxu0
      %v8947 = vadd.f32 %v8694, %v8946
      %v8948 = vpop.f32.mrf.mxu0
      %v8949 = vpop.f32.mrf.mxu0
      %v8950 = vadd.f32 %v8694, %v8949
      %v8951 = vpop.f32.mrf.mxu0
      %8952 = vdwg.mxu0
      %v8953 = vmax.f32 %v8827, -1.0
      %v8954 = vmax.f32 %v8830, -1.0
      %v8955 = vmax.f32 %v8835, -1.0
      %v8956 = vmax.f32 %v8838, -1.0
      %v8957 = vmax.f32 %v8843, -1.0
      %v8958 = vmax.f32 %v8846, -1.0
      %v8959 = vmax.f32 %v8851, -1.0
      %v8960 = vmax.f32 %v8854, -1.0
      %v8961 = vmax.f32 %v8859, -1.0
      %v8962 = vmax.f32 %v8862, -1.0
      %v8963 = vmax.f32 %v8867, -1.0
      %v8964 = vmax.f32 %v8870, -1.0
      %v8965 = vmax.f32 %v8875, -1.0
      %v8966 = vmax.f32 %v8878, -1.0
      %v8967 = vmax.f32 %v8883, -1.0
      %v8968 = vmax.f32 %v8886, -1.0
      %v8969 = vmax.f32 %v8891, -1.0
      %v8970 = vmax.f32 %v8894, -1.0
      %v8971 = vmax.f32 %v8899, -1.0
      %v8972 = vmax.f32 %v8902, -1.0
      %v8973 = vmax.f32 %v8907, -1.0
      %v8974 = vmax.f32 %v8910, -1.0
      %v8975 = vmax.f32 %v8915, -1.0
      %v8976 = vmax.f32 %v8918, -1.0
      %v8977 = vmax.f32 %v8923, -1.0
      %v8978 = vmax.f32 %v8926, -1.0
      %v8979 = vmax.f32 %v8931, -1.0
      %v8980 = vmax.f32 %v8934, -1.0
      %v8981 = vmax.f32 %v8939, -1.0
      %v8982 = vmax.f32 %v8942, -1.0
      %v8983 = vmax.f32 %v8947, -1.0
      %v8984 = vmax.f32 %v8950, -1.0
      %v8985 = vmin.f32 %v8953, 1.0
      %v8986 = vmin.f32 %v8954, 1.0
      %v8987 = vmin.f32 %v8955, 1.0
      %v8988 = vmin.f32 %v8956, 1.0
      %v8989 = vmin.f32 %v8957, 1.0
      %v8990 = vmin.f32 %v8958, 1.0
      %v8991 = vmin.f32 %v8959, 1.0
      %v8992 = vmin.f32 %v8960, 1.0
      %v8993 = vmin.f32 %v8961, 1.0
      %v8994 = vmin.f32 %v8962, 1.0
      %v8995 = vmin.f32 %v8963, 1.0
      %v8996 = vmin.f32 %v8964, 1.0
      %v8997 = vmin.f32 %v8965, 1.0
      %v8998 = vmin.f32 %v8966, 1.0
      %v8999 = vmin.f32 %v8967, 1.0
      %v9000 = vmin.f32 %v8968, 1.0
      %v9001 = vmin.f32 %v8969, 1.0
      %v9002 = vmin.f32 %v8970, 1.0
      %v9003 = vmin.f32 %v8971, 1.0
      %v9004 = vmin.f32 %v8972, 1.0
      %v9005 = vmin.f32 %v8973, 1.0
      %v9006 = vmin.f32 %v8974, 1.0
      %v9007 = vmin.f32 %v8975, 1.0
      %v9008 = vmin.f32 %v8976, 1.0
      %v9009 = vmin.f32 %v8977, 1.0
      %v9010 = vmin.f32 %v8978, 1.0
      %v9011 = vmin.f32 %v8979, 1.0
      %v9012 = vmin.f32 %v8980, 1.0
      %v9013 = vmin.f32 %v8981, 1.0
      %v9014 = vmin.f32 %v8982, 1.0
      %v9015 = vmin.f32 %v8983, 1.0
      %v9016 = vmin.f32 %v8984, 1.0
      %9049 = vrot.lane.b32.xlu0 %v4831, 8
      %v9050 = vpop.permute.xlu0 %9049
      %9051 = vrot.lane.b32.xlu0 %v4832, 8
      %v9052 = vpop.permute.xlu0 %9051
      %9053 = vrot.lane.b32.xlu0 %v4833, 8
      %v9054 = vpop.permute.xlu0 %9053
      %9055 = vrot.lane.b32.xlu0 %v4834, 8
      %v9056 = vpop.permute.xlu0 %9055
      %9057 = vrot.lane.b32.xlu0 %v4835, 8
      %v9058 = vpop.permute.xlu0 %9057
      %9059 = vrot.lane.b32.xlu0 %v4836, 8
      %v9060 = vpop.permute.xlu0 %9059
      %9061 = vrot.lane.b32.xlu0 %v4837, 8
      %v9062 = vpop.permute.xlu0 %9061
      %9063 = vrot.lane.b32.xlu0 %v4838, 8
      %v9064 = vpop.permute.xlu0 %9063
      %9065 = vrot.lane.b32.xlu0 %v4839, 8
      %v9066 = vpop.permute.xlu0 %9065
      %9067 = vrot.lane.b32.xlu0 %v4840, 8
      %v9068 = vpop.permute.xlu0 %9067
      %9069 = vrot.lane.b32.xlu0 %v4841, 8
      %v9070 = vpop.permute.xlu0 %9069
      %9071 = vrot.lane.b32.xlu0 %v4842, 8
      %v9072 = vpop.permute.xlu0 %9071
      %9073 = vrot.lane.b32.xlu0 %v4843, 8
      %v9074 = vpop.permute.xlu0 %9073
      %9075 = vrot.lane.b32.xlu0 %v4844, 8
      %v9076 = vpop.permute.xlu0 %9075
      %9077 = vrot.lane.b32.xlu0 %v4845, 8
      %v9078 = vpop.permute.xlu0 %9077
      %9079 = vrot.lane.b32.xlu0 %v4846, 8
      %v9080 = vpop.permute.xlu0 %9079
      %9081 = vrot.lane.b32.xlu0 %v4847, 8
      %v9082 = vpop.permute.xlu0 %9081
      %9083 = vrot.lane.b32.xlu0 %v4848, 8
      %v9084 = vpop.permute.xlu0 %9083
      %9085 = vrot.lane.b32.xlu0 %v4849, 8
      %v9086 = vpop.permute.xlu0 %9085
      %9087 = vrot.lane.b32.xlu0 %v4850, 8
      %v9088 = vpop.permute.xlu0 %9087
      %9089 = vrot.lane.b32.xlu0 %v4851, 8
      %v9090 = vpop.permute.xlu0 %9089
      %9091 = vrot.lane.b32.xlu0 %v4852, 8
      %v9092 = vpop.permute.xlu0 %9091
      %9093 = vrot.lane.b32.xlu0 %v4853, 8
      %v9094 = vpop.permute.xlu0 %9093
      %9095 = vrot.lane.b32.xlu0 %v4854, 8
      %v9096 = vpop.permute.xlu0 %9095
      %9097 = vrot.lane.b32.xlu0 %v4855, 8
      %v9098 = vpop.permute.xlu0 %9097
      %9099 = vrot.lane.b32.xlu0 %v4856, 8
      %v9100 = vpop.permute.xlu0 %9099
      %9101 = vrot.lane.b32.xlu0 %v4857, 8
      %v9102 = vpop.permute.xlu0 %9101
      %9103 = vrot.lane.b32.xlu0 %v4858, 8
      %v9104 = vpop.permute.xlu0 %9103
      %9105 = vrot.lane.b32.xlu0 %v4859, 8
      %v9106 = vpop.permute.xlu0 %9105
      %9107 = vrot.lane.b32.xlu0 %v4860, 8
      %v9108 = vpop.permute.xlu0 %9107
      %9109 = vrot.lane.b32.xlu0 %v4861, 8
      %v9110 = vpop.permute.xlu0 %9109
      %9111 = vrot.lane.b32.xlu0 %v4862, 8
      %v9112 = vpop.permute.xlu0 %9111
      %9177 = vrot.lane.b32.xlu0 %v4417, 16
      %v9178 = vpop.permute.xlu0 %9177
      %9179 = vrot.lane.b32.xlu0 %v4420, 16
      %v9180 = vpop.permute.xlu0 %9179
      %9181 = vrot.lane.b32.xlu0 %v4425, 16
      %v9182 = vpop.permute.xlu0 %9181
      %9183 = vrot.lane.b32.xlu0 %v4428, 16
      %v9184 = vpop.permute.xlu0 %9183
      %9185 = vrot.lane.b32.xlu0 %v4433, 16
      %v9186 = vpop.permute.xlu0 %9185
      %9187 = vrot.lane.b32.xlu0 %v4436, 16
      %v9188 = vpop.permute.xlu0 %9187
      %9189 = vrot.lane.b32.xlu0 %v4441, 16
      %v9190 = vpop.permute.xlu0 %9189
      %9191 = vrot.lane.b32.xlu0 %v4444, 16
      %v9192 = vpop.permute.xlu0 %9191
      %9193 = vrot.lane.b32.xlu0 %v4449, 16
      %v9194 = vpop.permute.xlu0 %9193
      %9195 = vrot.lane.b32.xlu0 %v4452, 16
      %v9196 = vpop.permute.xlu0 %9195
      %9197 = vrot.lane.b32.xlu0 %v4457, 16
      %v9198 = vpop.permute.xlu0 %9197
      %9199 = vrot.lane.b32.xlu0 %v4460, 16
      %v9200 = vpop.permute.xlu0 %9199
      %9201 = vrot.lane.b32.xlu0 %v4465, 16
      %v9202 = vpop.permute.xlu0 %9201
      %9203 = vrot.lane.b32.xlu0 %v4468, 16
      %v9204 = vpop.permute.xlu0 %9203
      %9205 = vrot.lane.b32.xlu0 %v4473, 16
      %v9206 = vpop.permute.xlu0 %9205
      %9207 = vrot.lane.b32.xlu0 %v4476, 16
      %v9208 = vpop.permute.xlu0 %9207
      %9209 = vrot.lane.b32.xlu0 %v4481, 16
      %v9210 = vpop.permute.xlu0 %9209
      %9211 = vrot.lane.b32.xlu0 %v4484, 16
      %v9212 = vpop.permute.xlu0 %9211
      %9213 = vrot.lane.b32.xlu0 %v4489, 16
      %v9214 = vpop.permute.xlu0 %9213
      %9215 = vrot.lane.b32.xlu0 %v4492, 16
      %v9216 = vpop.permute.xlu0 %9215
      %9217 = vrot.lane.b32.xlu0 %v4497, 16
      %v9218 = vpop.permute.xlu0 %9217
      %9219 = vrot.lane.b32.xlu0 %v4500, 16
      %v9220 = vpop.permute.xlu0 %9219
      %9221 = vrot.lane.b32.xlu0 %v4505, 16
      %v9222 = vpop.permute.xlu0 %9221
      %9223 = vrot.lane.b32.xlu0 %v4508, 16
      %v9224 = vpop.permute.xlu0 %9223
      %9225 = vrot.lane.b32.xlu0 %v4513, 16
      %v9226 = vpop.permute.xlu0 %9225
      %9227 = vrot.lane.b32.xlu0 %v4516, 16
      %v9228 = vpop.permute.xlu0 %9227
      %9229 = vrot.lane.b32.xlu0 %v4521, 16
      %v9230 = vpop.permute.xlu0 %9229
      %9231 = vrot.lane.b32.xlu0 %v4524, 16
      %v9232 = vpop.permute.xlu0 %9231
      %9233 = vrot.lane.b32.xlu0 %v4529, 16
      %v9234 = vpop.permute.xlu0 %9233
      %9235 = vrot.lane.b32.xlu0 %v4532, 16
      %v9236 = vpop.permute.xlu0 %9235
      %9237 = vrot.lane.b32.xlu0 %v4537, 16
      %v9238 = vpop.permute.xlu0 %9237
      %9239 = vrot.lane.b32.xlu0 %v4540, 16
      %v9240 = vpop.permute.xlu0 %9239
      %v9273 = vsel %vm4887, %v8985, %v9050
      %v9274 = vsel %vm4887, %v8986, %v9052
      %v9275 = vsel %vm4887, %v8987, %v9054
      %v9276 = vsel %vm4887, %v8988, %v9056
      %v9277 = vsel %vm4887, %v8989, %v9058
      %v9278 = vsel %vm4887, %v8990, %v9060
      %v9279 = vsel %vm4887, %v8991, %v9062
      %v9280 = vsel %vm4887, %v8992, %v9064
      %v9281 = vsel %vm4887, %v8993, %v9066
      %v9282 = vsel %vm4887, %v8994, %v9068
      %v9283 = vsel %vm4887, %v8995, %v9070
      %v9284 = vsel %vm4887, %v8996, %v9072
      %v9285 = vsel %vm4887, %v8997, %v9074
      %v9286 = vsel %vm4887, %v8998, %v9076
      %v9287 = vsel %vm4887, %v8999, %v9078
      %v9288 = vsel %vm4887, %v9000, %v9080
      %v9289 = vsel %vm4887, %v9001, %v9082
      %v9290 = vsel %vm4887, %v9002, %v9084
      %v9291 = vsel %vm4887, %v9003, %v9086
      %v9292 = vsel %vm4887, %v9004, %v9088
      %v9293 = vsel %vm4887, %v9005, %v9090
      %v9294 = vsel %vm4887, %v9006, %v9092
      %v9295 = vsel %vm4887, %v9007, %v9094
      %v9296 = vsel %vm4887, %v9008, %v9096
      %v9297 = vsel %vm4887, %v9009, %v9098
      %v9298 = vsel %vm4887, %v9010, %v9100
      %v9299 = vsel %vm4887, %v9011, %v9102
      %v9300 = vsel %vm4887, %v9012, %v9104
      %v9301 = vsel %vm4887, %v9013, %v9106
      %v9302 = vsel %vm4887, %v9014, %v9108
      %v9303 = vsel %vm4887, %v9015, %v9110
      %v9304 = vsel %vm4887, %v9016, %v9112
      %v9305 = vsel %vm5145, %v9273, %v9178
      %v9306 = vsel %vm5145, %v9274, %v9180
      %v9307 = vsel %vm5145, %v9275, %v9182
      %v9308 = vsel %vm5145, %v9276, %v9184
      %v9309 = vsel %vm5145, %v9277, %v9186
      %v9310 = vsel %vm5145, %v9278, %v9188
      %v9311 = vsel %vm5145, %v9279, %v9190
      %v9312 = vsel %vm5145, %v9280, %v9192
      %v9313 = vsel %vm5145, %v9281, %v9194
      %v9314 = vsel %vm5145, %v9282, %v9196
      %v9315 = vsel %vm5145, %v9283, %v9198
      %v9316 = vsel %vm5145, %v9284, %v9200
      %v9317 = vsel %vm5145, %v9285, %v9202
      %v9318 = vsel %vm5145, %v9286, %v9204
      %v9319 = vsel %vm5145, %v9287, %v9206
      %v9320 = vsel %vm5145, %v9288, %v9208
      %v9321 = vsel %vm5145, %v9289, %v9210
      %v9322 = vsel %vm5145, %v9290, %v9212
      %v9323 = vsel %vm5145, %v9291, %v9214
      %v9324 = vsel %vm5145, %v9292, %v9216
      %v9325 = vsel %vm5145, %v9293, %v9218
      %v9326 = vsel %vm5145, %v9294, %v9220
      %v9327 = vsel %vm5145, %v9295, %v9222
      %v9328 = vsel %vm5145, %v9296, %v9224
      %v9329 = vsel %vm5145, %v9297, %v9226
      %v9330 = vsel %vm5145, %v9298, %v9228
      %v9331 = vsel %vm5145, %v9299, %v9230
      %v9332 = vsel %vm5145, %v9300, %v9232
      %v9333 = vsel %vm5145, %v9301, %v9234
      %v9334 = vsel %vm5145, %v9302, %v9236
      %v9335 = vsel %vm5145, %v9303, %v9238
      %v9336 = vsel %vm5145, %v9304, %v9240
      %vm9337 = vcmask 261120
      %9338 = vst.msk [vmem:[%s675] sm:$0xff] %vm9337, %v9305
      %9339 = vst.msk [vmem:[%s675 + $0x8] sm:$0xff] %vm9337, %v9306
      %9340 = vst.msk [vmem:[%s675 + $0x10] sm:$0xff] %vm9337, %v9307
      %9341 = vst.msk [vmem:[%s675 + $0x18] sm:$0xff] %vm9337, %v9308
      %9342 = vst.msk [vmem:[%s675 + $0x20] sm:$0xff] %vm9337, %v9309
      %9343 = vst.msk [vmem:[%s675 + $0x28] sm:$0xff] %vm9337, %v9310
      %9344 = vst.msk [vmem:[%s675 + $0x30] sm:$0xff] %vm9337, %v9311
      %9345 = vst.msk [vmem:[%s675 + $0x38] sm:$0xff] %vm9337, %v9312
      %9346 = vst.msk [vmem:[%s675 + $0x40] sm:$0xff] %vm9337, %v9313
      %9347 = vst.msk [vmem:[%s675 + $0x48] sm:$0xff] %vm9337, %v9314
      %9348 = vst.msk [vmem:[%s675 + $0x50] sm:$0xff] %vm9337, %v9315
      %9349 = vst.msk [vmem:[%s675 + $0x58] sm:$0xff] %vm9337, %v9316
      %9350 = vst.msk [vmem:[%s675 + $0x60] sm:$0xff] %vm9337, %v9317
      %9351 = vst.msk [vmem:[%s675 + $0x68] sm:$0xff] %vm9337, %v9318
      %9352 = vst.msk [vmem:[%s675 + $0x70] sm:$0xff] %vm9337, %v9319
      %9353 = vst.msk [vmem:[%s675 + $0x78] sm:$0xff] %vm9337, %v9320
      %9354 = vst.msk [vmem:[%s675 + $0x80] sm:$0xff] %vm9337, %v9321
      %9355 = vst.msk [vmem:[%s675 + $0x88] sm:$0xff] %vm9337, %v9322
      %9356 = vst.msk [vmem:[%s675 + $0x90] sm:$0xff] %vm9337, %v9323
      %9357 = vst.msk [vmem:[%s675 + $0x98] sm:$0xff] %vm9337, %v9324
      %9358 = vst.msk [vmem:[%s675 + $0xa0] sm:$0xff] %vm9337, %v9325
      %9359 = vst.msk [vmem:[%s675 + $0xa8] sm:$0xff] %vm9337, %v9326
      %9360 = vst.msk [vmem:[%s675 + $0xb0] sm:$0xff] %vm9337, %v9327
      %9361 = vst.msk [vmem:[%s675 + $0xb8] sm:$0xff] %vm9337, %v9328
      %9362 = vst.msk [vmem:[%s675 + $0xc0] sm:$0xff] %vm9337, %v9329
      %9363 = vst.msk [vmem:[%s675 + $0xc8] sm:$0xff] %vm9337, %v9330
      %9364 = vst.msk [vmem:[%s675 + $0xd0] sm:$0xff] %vm9337, %v9331
      %9365 = vst.msk [vmem:[%s675 + $0xd8] sm:$0xff] %vm9337, %v9332
      %9366 = vst.msk [vmem:[%s675 + $0xe0] sm:$0xff] %vm9337, %v9333
      %9367 = vst.msk [vmem:[%s675 + $0xe8] sm:$0xff] %vm9337, %v9334
      %9368 = vst.msk [vmem:[%s675 + $0xf0] sm:$0xff] %vm9337, %v9335
      %9369 = vst.msk [vmem:[%s675 + $0xf8] sm:$0xff] %vm9337, %v9336
      %s9370 = smul.u32 32, %s31
      %p9371 = scmp.lt.s32.totalorder %s9370, 63
      %s9372 = scalar_select %p9371, %s9370, 63
      %s9373 = smul.addr %s9372, 8
      %s9374 = scalar_lea.vmem %s20, %s9373
      // Predicated region
      $region101: #{tpu_custom_call.1} parent=99 // pred_check
        %p9375 = pneg %p484
      $region102: #{tpu_custom_call.1} parent=99 // pred_check_branch
        %9377 = sbr.rel (%p9375) target = $region104
      $region103: #{tpu_custom_call.1} parent=99 // pred_region
        %s9378 = smul.u32 32, %s31
      $region104: #{tpu_custom_call.1} parent=99 // pred_fallthru
        _
    $region100: #{tpu_custom_call.1} parent=5 // pred_fallthru
      _
    %p9379 = scmp.le.s32.totalorder 2, %s26
    // Predicated region
    $region105: #{tpu_custom_call.1} parent=5 // pred_check
      %p9380 = pneg %p9379
    $region106: #{tpu_custom_call.1} parent=5 // pred_check_branch
      %9382 = sbr.rel (%p9380) target = $region108
    $region107: #{tpu_custom_call.1} parent=5 // pred_region
      %s9383 = ssub.s32 %s26, 2
      // Predicated region
      $region109: #{tpu_custom_call.1} parent=107 // pred_check
        %p9384 = pneg %p490
      $region110: #{tpu_custom_call.1} parent=107 // pred_check_branch
        %9386 = sbr.rel (%p9384) target = $region112
      $region111: #{tpu_custom_call.1} parent=107 // pred_region
        %s9387 = smul.u32 32, %s32
        %p9388 = scmp.lt.s32.totalorder %s9387, 63
        %s9389 = scalar_select %p9388, %s9387, 63
        %s9390 = smul.addr %s9389, 8
        %s9391 = scalar_lea.vmem %s20, %s9390
      $region112: #{tpu_custom_call.1} parent=107 // pred_fallthru
        _
    $region108: #{tpu_custom_call.1} parent=5 // pred_fallthru
      _
  $region6: #{tpu_custom_call.1} parent=0 // loop_footer
    %s30 = sadd.s32 1, %s26
  $region7: #{tpu_custom_call.1} parent=0 // loop_footer_branch
    %25 = sbr.rel target = $region3
  $region8: #{tpu_custom_call.1} parent=0 // loop_exit
    _

</llo_original>
